<compile_context>
chip_gen: v5e
topology: v5e:2x2
jax: 0.10.0
libtpu: 0.0.40
codegen_flags: <defaults>
</compile_context>

<pallas_src>
import math

import jax
import jax.numpy as jnp
from jax.experimental import pallas as pl
from jax.experimental.pallas import tpu as pltpu

INPUT_DIM = 1 * 28 * 28   # 784
HIDDEN_DIM = 400
LATENT_DIM = 200
IMG_H = IMG_W = 28

# Lane-padded (multiple-of-128) feature dims.
D_IN_P = 896              # 784 -> 7*128
D_HID_P = 512             # 400 -> 4*128
D_LAT_P = 256             # 200 -> 2*128
D_MUVAR_P = 2 * D_LAT_P   # fused [mu | logvar] projection, 512

MAX_TILE_B = 256          # fills the 256-wide MXU M dim on v6e/v7x; fine on v5e too.


def _round_up(n, m):
    return (n + m - 1) // m * m


def _pad2d(a, rows, cols):
    out = jnp.zeros((rows, cols), a.dtype)
    return out.at[: a.shape[0], : a.shape[1]].set(a)


# --------------------------------------------------------------------------------------
# Kernel: full encoder + reparameterization + decoder for one batch tile.
# --------------------------------------------------------------------------------------
def _vae_kernel(x_ref, eps_ref,
                w1_ref, b1_ref, w2_ref, b2_ref,
                wmv_ref, bmv_ref,
                wd1_ref, bd1_ref, wd2_ref, bd2_ref, wd3_ref, bd3_ref,
                xrec_ref, mean_ref, logvar_ref):
    mm_dtype = w1_ref.dtype  # bf16 (default) or f32 operands; MXU accumulates in f32.

    def linear(h, w_ref, b_ref):
        # h is already mm_dtype; f32 accumulation, bias added in f32.
        return (jnp.dot(h, w_ref[...], preferred_element_type=jnp.float32)
                + b_ref[...])

    def relu_mm(a):
        # ReLU in f32, then narrow once to the MXU operand dtype for the next layer.
        return jnp.maximum(a, 0.0).astype(mm_dtype)

    x = x_ref[...]        # (TILE_B, 896) mm_dtype, zero-padded lanes
    eps = eps_ref[...]    # (TILE_B, 256) f32, zero-padded lanes

    # ---------------- encoder ----------------
    h = relu_mm(linear(x, w1_ref, b1_ref))
    h = relu_mm(linear(h, w2_ref, b2_ref))

    # Fused mu / log_var projection: one lane-dense N=512 matmul, split at a 128-aligned
    # boundary.
    mv = linear(h, wmv_ref, bmv_ref)            # (TILE_B, 512) f32
    mean = mv[:, :D_LAT_P]                      # (TILE_B, 256)
    log_var = mv[:, D_LAT_P:]                   # (TILE_B, 256)

    # -------- reparameterization (f32): z = mean + exp(0.5*log_var) * eps --------
    # Padded lanes: mean=0, log_var=0, eps=0  ->  z=0, which feeds zero decoder rows.
    z = mean + jnp.exp(0.5 * log_var) * eps

    # ---------------- decoder ----------------
    d = relu_mm(linear(z.astype(mm_dtype), wd1_ref, bd1_ref))
    d = relu_mm(linear(d, wd2_ref, bd2_ref))
    logits = linear(d, wd3_ref, bd3_ref)

    # NOTE: padded x_rec lanes receive sigmoid(0) = 0.5 (sliced off by the wrapper).
    xrec_ref[...] = jax.nn.sigmoid(logits).astype(xrec_ref.dtype)
    mean_ref[...] = mean.astype(mean_ref.dtype)
    logvar_ref[...] = log_var.astype(logvar_ref.dtype)


# --------------------------------------------------------------------------------------
# Parameter construction / preparation.
# --------------------------------------------------------------------------------------
def _init_linear(key, fan_in, fan_out):
    """PyTorch nn.Linear default init (uniform +/- 1/sqrt(fan_in)); W stored (in, out)."""
    kw, kb = jax.random.split(key)
    bound = 1.0 / math.sqrt(fan_in)
    w = jax.random.uniform(kw, (fan_in, fan_out), jnp.float32, -bound, bound)
    b = jax.random.uniform(kb, (1, fan_out), jnp.float32, -bound, bound)
    return w, b


def init_vae_params(key):
    keys = jax.random.split(key, 7)
    return {
        "enc_fc1": _init_linear(keys[0], INPUT_DIM, HIDDEN_DIM),
        "enc_fc2": _init_linear(keys[1], HIDDEN_DIM, HIDDEN_DIM),
        "fc_mu": _init_linear(keys[2], HIDDEN_DIM, LATENT_DIM),
        "fc_logvar": _init_linear(keys[3], HIDDEN_DIM, LATENT_DIM),
        "dec_fc1": _init_linear(keys[4], LATENT_DIM, HIDDEN_DIM),
        "dec_fc2": _init_linear(keys[5], HIDDEN_DIM, HIDDEN_DIM),
        "dec_fc3": _init_linear(keys[6], HIDDEN_DIM, INPUT_DIM),
    }


def prepare_params(params, weights_dtype=jnp.bfloat16):
    """Zero-pad to lane multiples, fuse mu/logvar, cast weights (default bf16).

    Do this once and reuse across calls.  Biases stay f32 and are added after the
    f32 MXU accumulation.
    """
    def wp(w, rows, cols):
        return _pad2d(w, rows, cols).astype(weights_dtype)

    w1, b1 = params["enc_fc1"]
    w2, b2 = params["enc_fc2"]
    wmu, bmu = params["fc_mu"]
    wlv, blv = params["fc_logvar"]
    wd1, bd1 = params["dec_fc1"]
    wd2, bd2 = params["dec_fc2"]
    wd3, bd3 = params["dec_fc3"]

    wmv = jnp.concatenate(
        [_pad2d(wmu, HIDDEN_DIM, D_LAT_P), _pad2d(wlv, HIDDEN_DIM, D_LAT_P)], axis=1)
    bmv = jnp.concatenate(
        [_pad2d(bmu, 1, D_LAT_P), _pad2d(blv, 1, D_LAT_P)], axis=1)

    return (
        wp(w1, D_IN_P, D_HID_P), _pad2d(b1, 1, D_HID_P),
        wp(w2, D_HID_P, D_HID_P), _pad2d(b2, 1, D_HID_P),
        wp(wmv, D_HID_P, D_MUVAR_P), _pad2d(bmv, 1, D_MUVAR_P),
        wp(wd1, D_LAT_P, D_HID_P), _pad2d(bd1, 1, D_HID_P),
        wp(wd2, D_HID_P, D_HID_P), _pad2d(bd2, 1, D_HID_P),
        wp(wd3, D_HID_P, D_IN_P), _pad2d(bd3, 1, D_IN_P),
    )


# --------------------------------------------------------------------------------------
# Forward pass wrapper.
# --------------------------------------------------------------------------------------
def vae_forward(x_nchw, prepared_params, eps, *,
                out_dtype=jnp.float32, unpad_outputs=True):
    """VAE forward.

    Args:
      x_nchw:          (B, 1, 28, 28) float (NCHW, same as PyTorch).
      prepared_params: output of prepare_params(...).
      eps:             (B, LATENT_DIM) float32 standard-normal noise
                       (torch.randn_like equivalent, supplied explicitly).
      out_dtype:       dtype of the three outputs (bf16 halves x_rec HBM writeback).
      unpad_outputs:   if False, return padded (b_pad, lane-dense) outputs so downstream
                       kernels can consume them directly (padded x_rec lanes are 0.5!).

    Returns:
      (x_reconstructed (B,1,28,28), mean (B,200), log_var (B,200)) when unpad_outputs.
    """
    assert x_nchw.shape[-3:] == (1, IMG_H, IMG_W)
    B = x_nchw.shape[0]
    assert eps.shape == (B, LATENT_DIM), "eps must be (B, LATENT_DIM); padding is done here"

    mm_dtype = prepared_params[0].dtype
    # Cast x once to the MXU operand dtype (halves x DMA when weights are bf16).
    x_flat = x_nchw.reshape(B, INPUT_DIM).astype(mm_dtype)
    eps = eps.astype(jnp.float32)

    # Batch tiling (MXU M-dim):
    #   * always >= 2 tiles so v7x's second TensorCore gets work ("parallel" axis),
    #   * tile_b <= 256 (fills v6e/v7x's 256-wide MXU; also fine for v5e's 128-wide),
    #   * tile_b a multiple of 8 (sublane), minimal padded rows.
    b8 = _round_up(B, 8)
    n_tiles = max(2, pl.cdiv(b8, MAX_TILE_B))
    tile_b = _round_up(pl.cdiv(b8, n_tiles), 8)
    b_pad = tile_b * n_tiles

    x_p = _pad2d(x_flat, b_pad, D_IN_P)
    eps_p = _pad2d(eps, b_pad, D_LAT_P)

    def row_spec(cols):
        return pl.BlockSpec((tile_b, cols), lambda i: (i, 0))

    def resident_spec(arr):
        # Full-array block, constant index -> fetched once, stays in VMEM across tiles.
        # TODO(synk): pl.Buffered(1) pipeline_mode would reclaim the second weight
        # buffer; not needed at bf16 (whole weight set ~3.7 MiB).
        return pl.BlockSpec(arr.shape, lambda i: (0, 0))

    in_specs = [row_spec(D_IN_P), row_spec(D_LAT_P)]
    in_specs += [resident_spec(p) for p in prepared_params]
    out_specs = (row_spec(D_IN_P), row_spec(D_LAT_P), row_spec(D_LAT_P))

    xrec_p, mean_p, logvar_p = pl.pallas_call(
        _vae_kernel,
        grid=(n_tiles,),
        out_shape=(
            jax.ShapeDtypeStruct((b_pad, D_IN_P), out_dtype),
            jax.ShapeDtypeStruct((b_pad, D_LAT_P), out_dtype),
            jax.ShapeDtypeStruct((b_pad, D_LAT_P), out_dtype),
        ),
        in_specs=in_specs,
        out_specs=out_specs,
        compiler_params=pltpu.CompilerParams(
            dimension_semantics=("parallel",),   # shard batch tiles over v7x's 2 TCs
            vmem_limit_bytes=32 << 20,           # > v5e's 16 MiB default; v7x headroom OK
        ),
    )(x_p, eps_p, *prepared_params)

    if not unpad_outputs:
        # Padded layout for fused consumers.  NOTE: x_rec padded lanes = 0.5,
        # mean/log_var padded lanes = 0, rows >= B come from zero inputs.
        return xrec_p, mean_p, logvar_p

    x_rec = xrec_p[:B, :INPUT_DIM].reshape(B, 1, IMG_H, IMG_W)
    mean = mean_p[:B, :LATENT_DIM]
    log_var = logvar_p[:B, :LATENT_DIM]
    return x_rec, mean, log_var


# --------------------------------------------------------------------------------------
# Self-test.
# --------------------------------------------------------------------------------------
if __name__ == "__main__":
    key = jax.random.PRNGKey(0)
    k_params, k_x, k_eps = jax.random.split(key, 3)

    B = 2
    params = init_vae_params(k_params)
    x = jax.random.uniform(k_x, (B, 1, IMG_H, IMG_W), jnp.float32)    # image-like input
    eps = jax.random.normal(k_eps, (B, LATENT_DIM), jnp.float32)      # reparam noise

    fwd = jax.jit(vae_forward)

    def ref_forward(x_nchw, params, eps):
        h = x_nchw.reshape(x_nchw.shape[0], -1)
        w, b = params["enc_fc1"]; h = jnp.maximum(h @ w + b, 0.0)
        w, b = params["enc_fc2"]; h = jnp.maximum(h @ w + b, 0.0)
        w, b = params["fc_mu"]; mu = h @ w + b
        w, b = params["fc_logvar"]; lv = h @ w + b
        z = mu + jnp.exp(0.5 * lv) * eps
        w, b = params["dec_fc1"]; d = jnp.maximum(z @ w + b, 0.0)
        w, b = params["dec_fc2"]; d = jnp.maximum(d @ w + b, 0.0)
        w, b = params["dec_fc3"]; xr = jax.nn.sigmoid(d @ w + b)
        return xr.reshape(x_nchw.shape[0], 1, IMG_H, IMG_W), mu, lv

    xr_ref, mu_ref, lv_ref = ref_forward(x, params, eps)

    # ---- default bf16-weight path (MXU-native rate, half weight/x DMA) ----
    pp_bf16 = prepare_params(params)                       # bf16 is the default
    x_rec_b, mean_b, log_var_b = fwd(x, pp_bf16, eps)
    jax.block_until_ready((x_rec_b, mean_b, log_var_b))

    assert x_rec_b.shape == (B, 1, IMG_H, IMG_W)
    assert mean_b.shape == (B, LATENT_DIM)
    assert log_var_b.shape == (B, LATENT_DIM)
    assert bool(jnp.all(jnp.isfinite(x_rec_b)))
    assert bool(jnp.all((x_rec_b >= 0.0) & (x_rec_b <= 1.0)))
    # bf16 weight rounding only; f32 accumulation keeps these tight.
    assert bool(jnp.all(jnp.abs(x_rec_b - xr_ref) < 0.05))
    assert bool(jnp.all(jnp.abs(mean_b - mu_ref) < 0.05))
    assert bool(jnp.all(jnp.abs(log_var_b - lv_ref) < 0.05))

    # ---- f32-weight path: must match the module's math to float tolerance ----
    pp_f32 = prepare_params(params, jnp.float32)
    x_rec, mean, log_var = fwd(x, pp_f32, eps)
    jax.block_until_ready((x_rec, mean, log_var))

    assert jnp.allclose(x_rec, xr_ref, atol=1e-5)
    assert jnp.allclose(mean, mu_ref, atol=1e-4)
    assert jnp.allclose(log_var, lv_ref, atol=1e-4)

    print("KERNEL_OK")
</pallas_src>

<mosaic_0001>
module attributes {stable_mosaic.version = 11 : i64} {
  func.func @_vae_kernel(%arg0: i32, %arg1: memref<8x896xbf16, #tpu.memory_space<vmem>>, %arg2: memref<8x256xf32, #tpu.memory_space<vmem>>, %arg3: memref<896x512xbf16, #tpu.memory_space<vmem>>, %arg4: memref<1x512xf32, #tpu.memory_space<vmem>>, %arg5: memref<512x512xbf16, #tpu.memory_space<vmem>>, %arg6: memref<1x512xf32, #tpu.memory_space<vmem>>, %arg7: memref<512x512xbf16, #tpu.memory_space<vmem>>, %arg8: memref<1x512xf32, #tpu.memory_space<vmem>>, %arg9: memref<256x512xbf16, #tpu.memory_space<vmem>>, %arg10: memref<1x512xf32, #tpu.memory_space<vmem>>, %arg11: memref<512x512xbf16, #tpu.memory_space<vmem>>, %arg12: memref<1x512xf32, #tpu.memory_space<vmem>>, %arg13: memref<512x896xbf16, #tpu.memory_space<vmem>>, %arg14: memref<1x896xf32, #tpu.memory_space<vmem>>, %arg15: memref<8x896xf32, #tpu.memory_space<vmem>>, %arg16: memref<8x256xf32, #tpu.memory_space<vmem>>, %arg17: memref<8x256xf32, #tpu.memory_space<vmem>>) attributes {dimension_semantics = [#tpu.dimension_semantics<parallel>], iteration_bounds = array<i64: 2>, scalar_prefetch = 0 : i64, scratch_operands = 0 : i64, tpu.core_type = #tpu.core_type<tc>, window_params = [{transform_indices = @transform_0, window_bounds = array<i64: 8, 896>}, {transform_indices = @transform_1, window_bounds = array<i64: 8, 256>}, {pipeline_mode = #tpu.pipeline_mode<synchronous>, transform_indices = @transform_2, window_bounds = array<i64: 896, 512>}, {pipeline_mode = #tpu.pipeline_mode<synchronous>, transform_indices = @transform_3, window_bounds = array<i64: 1, 512>}, {pipeline_mode = #tpu.pipeline_mode<synchronous>, transform_indices = @transform_4, window_bounds = array<i64: 512, 512>}, {pipeline_mode = #tpu.pipeline_mode<synchronous>, transform_indices = @transform_5, window_bounds = array<i64: 1, 512>}, {pipeline_mode = #tpu.pipeline_mode<synchronous>, transform_indices = @transform_6, window_bounds = array<i64: 512, 512>}, {pipeline_mode = #tpu.pipeline_mode<synchronous>, transform_indices = @transform_7, window_bounds = array<i64: 1, 512>}, {pipeline_mode = #tpu.pipeline_mode<synchronous>, transform_indices = @transform_8, window_bounds = array<i64: 256, 512>}, {pipeline_mode = #tpu.pipeline_mode<synchronous>, transform_indices = @transform_9, window_bounds = array<i64: 1, 512>}, {pipeline_mode = #tpu.pipeline_mode<synchronous>, transform_indices = @transform_10, window_bounds = array<i64: 512, 512>}, {pipeline_mode = #tpu.pipeline_mode<synchronous>, transform_indices = @transform_11, window_bounds = array<i64: 1, 512>}, {pipeline_mode = #tpu.pipeline_mode<synchronous>, transform_indices = @transform_12, window_bounds = array<i64: 512, 896>}, {pipeline_mode = #tpu.pipeline_mode<synchronous>, transform_indices = @transform_13, window_bounds = array<i64: 1, 896>}, {transform_indices = @transform_14, window_bounds = array<i64: 8, 896>}, {transform_indices = @transform_15, window_bounds = array<i64: 8, 256>}, {transform_indices = @transform_16, window_bounds = array<i64: 8, 256>}]} {
    %c0 = arith.constant 0 : index
    %c0_0 = arith.constant 0 : index
    %0 = vector.load %arg1[%c0, %c0_0] : memref<8x896xbf16, #tpu.memory_space<vmem>>, vector<8x896xbf16>
    %c0_1 = arith.constant 0 : index
    %c0_2 = arith.constant 0 : index
    %1 = vector.load %arg2[%c0_1, %c0_2] : memref<8x256xf32, #tpu.memory_space<vmem>>, vector<8x256xf32>
    %c0_3 = arith.constant 0 : index
    %c0_4 = arith.constant 0 : index
    %2 = vector.load %arg3[%c0_3, %c0_4] : memref<896x512xbf16, #tpu.memory_space<vmem>>, vector<896x512xbf16>
    %cst = arith.constant dense<0.000000e+00> : vector<8x512xf32>
    %3 = tpu.matmul %0, %2, %cst {dimension_numbers = #tpu.dot_dimension_numbers<[1], [0], [0], [1], [0, 0, 1, 1], [], []>} : vector<8x896xbf16>, vector<896x512xbf16>, vector<8x512xf32> -> vector<8x512xf32>
    %c0_5 = arith.constant 0 : index
    %c0_6 = arith.constant 0 : index
    %4 = vector.load %arg4[%c0_5, %c0_6] : memref<1x512xf32, #tpu.memory_space<vmem>>, vector<1x512xf32>
    %5 = vector.broadcast %4 : vector<1x512xf32> to vector<8x512xf32>
    %6 = arith.addf %3, %5 : vector<8x512xf32>
    %cst_7 = arith.constant 0.000000e+00 : f32
    %7 = vector.broadcast %cst_7 : f32 to vector<8x512xf32>
    %8 = arith.maximumf %6, %7 : vector<8x512xf32>
    %9 = arith.truncf %8 : vector<8x512xf32> to vector<8x512xbf16>
    %c0_8 = arith.constant 0 : index
    %c0_9 = arith.constant 0 : index
    %10 = vector.load %arg5[%c0_8, %c0_9] : memref<512x512xbf16, #tpu.memory_space<vmem>>, vector<512x512xbf16>
    %cst_10 = arith.constant dense<0.000000e+00> : vector<8x512xf32>
    %11 = tpu.matmul %9, %10, %cst_10 {dimension_numbers = #tpu.dot_dimension_numbers<[1], [0], [0], [1], [0, 0, 1, 1], [], []>} : vector<8x512xbf16>, vector<512x512xbf16>, vector<8x512xf32> -> vector<8x512xf32>
    %c0_11 = arith.constant 0 : index
    %c0_12 = arith.constant 0 : index
    %12 = vector.load %arg6[%c0_11, %c0_12] : memref<1x512xf32, #tpu.memory_space<vmem>>, vector<1x512xf32>
    %13 = vector.broadcast %12 : vector<1x512xf32> to vector<8x512xf32>
    %14 = arith.addf %11, %13 : vector<8x512xf32>
    %cst_13 = arith.constant 0.000000e+00 : f32
    %15 = vector.broadcast %cst_13 : f32 to vector<8x512xf32>
    %16 = arith.maximumf %14, %15 : vector<8x512xf32>
    %17 = arith.truncf %16 : vector<8x512xf32> to vector<8x512xbf16>
    %c0_14 = arith.constant 0 : index
    %c0_15 = arith.constant 0 : index
    %18 = vector.load %arg7[%c0_14, %c0_15] : memref<512x512xbf16, #tpu.memory_space<vmem>>, vector<512x512xbf16>
    %cst_16 = arith.constant dense<0.000000e+00> : vector<8x512xf32>
    %19 = tpu.matmul %17, %18, %cst_16 {dimension_numbers = #tpu.dot_dimension_numbers<[1], [0], [0], [1], [0, 0, 1, 1], [], []>} : vector<8x512xbf16>, vector<512x512xbf16>, vector<8x512xf32> -> vector<8x512xf32>
    %c0_17 = arith.constant 0 : index
    %c0_18 = arith.constant 0 : index
    %20 = vector.load %arg8[%c0_17, %c0_18] : memref<1x512xf32, #tpu.memory_space<vmem>>, vector<1x512xf32>
    %21 = vector.broadcast %20 : vector<1x512xf32> to vector<8x512xf32>
    %22 = arith.addf %19, %21 : vector<8x512xf32>
    %23 = vector.extract_strided_slice %22 {offsets = [0, 0], sizes = [8, 256], strides = [1, 1]} : vector<8x512xf32> to vector<8x256xf32>
    %24 = vector.extract_strided_slice %22 {offsets = [0, 256], sizes = [8, 256], strides = [1, 1]} : vector<8x512xf32> to vector<8x256xf32>
    %cst_19 = arith.constant 5.000000e-01 : f32
    %25 = vector.broadcast %cst_19 : f32 to vector<8x256xf32>
    %26 = arith.mulf %25, %24 : vector<8x256xf32>
    %27 = math.exp %26 : vector<8x256xf32>
    %28 = arith.mulf %27, %1 : vector<8x256xf32>
    %29 = arith.addf %23, %28 : vector<8x256xf32>
    %30 = arith.truncf %29 : vector<8x256xf32> to vector<8x256xbf16>
    %c0_20 = arith.constant 0 : index
    %c0_21 = arith.constant 0 : index
    %31 = vector.load %arg9[%c0_20, %c0_21] : memref<256x512xbf16, #tpu.memory_space<vmem>>, vector<256x512xbf16>
    %cst_22 = arith.constant dense<0.000000e+00> : vector<8x512xf32>
    %32 = tpu.matmul %30, %31, %cst_22 {dimension_numbers = #tpu.dot_dimension_numbers<[1], [0], [0], [1], [0, 0, 1, 1], [], []>} : vector<8x256xbf16>, vector<256x512xbf16>, vector<8x512xf32> -> vector<8x512xf32>
    %c0_23 = arith.constant 0 : index
    %c0_24 = arith.constant 0 : index
    %33 = vector.load %arg10[%c0_23, %c0_24] : memref<1x512xf32, #tpu.memory_space<vmem>>, vector<1x512xf32>
    %34 = vector.broadcast %33 : vector<1x512xf32> to vector<8x512xf32>
    %35 = arith.addf %32, %34 : vector<8x512xf32>
    %cst_25 = arith.constant 0.000000e+00 : f32
    %36 = vector.broadcast %cst_25 : f32 to vector<8x512xf32>
    %37 = arith.maximumf %35, %36 : vector<8x512xf32>
    %38 = arith.truncf %37 : vector<8x512xf32> to vector<8x512xbf16>
    %c0_26 = arith.constant 0 : index
    %c0_27 = arith.constant 0 : index
    %39 = vector.load %arg11[%c0_26, %c0_27] : memref<512x512xbf16, #tpu.memory_space<vmem>>, vector<512x512xbf16>
    %cst_28 = arith.constant dense<0.000000e+00> : vector<8x512xf32>
    %40 = tpu.matmul %38, %39, %cst_28 {dimension_numbers = #tpu.dot_dimension_numbers<[1], [0], [0], [1], [0, 0, 1, 1], [], []>} : vector<8x512xbf16>, vector<512x512xbf16>, vector<8x512xf32> -> vector<8x512xf32>
    %c0_29 = arith.constant 0 : index
    %c0_30 = arith.constant 0 : index
    %41 = vector.load %arg12[%c0_29, %c0_30] : memref<1x512xf32, #tpu.memory_space<vmem>>, vector<1x512xf32>
    %42 = vector.broadcast %41 : vector<1x512xf32> to vector<8x512xf32>
    %43 = arith.addf %40, %42 : vector<8x512xf32>
    %cst_31 = arith.constant 0.000000e+00 : f32
    %44 = vector.broadcast %cst_31 : f32 to vector<8x512xf32>
    %45 = arith.maximumf %43, %44 : vector<8x512xf32>
    %46 = arith.truncf %45 : vector<8x512xf32> to vector<8x512xbf16>
    %c0_32 = arith.constant 0 : index
    %c0_33 = arith.constant 0 : index
    %47 = vector.load %arg13[%c0_32, %c0_33] : memref<512x896xbf16, #tpu.memory_space<vmem>>, vector<512x896xbf16>
    %cst_34 = arith.constant dense<0.000000e+00> : vector<8x896xf32>
    %48 = tpu.matmul %46, %47, %cst_34 {dimension_numbers = #tpu.dot_dimension_numbers<[1], [0], [0], [1], [0, 0, 1, 1], [], []>} : vector<8x512xbf16>, vector<512x896xbf16>, vector<8x896xf32> -> vector<8x896xf32>
    %c0_35 = arith.constant 0 : index
    %c0_36 = arith.constant 0 : index
    %49 = vector.load %arg14[%c0_35, %c0_36] : memref<1x896xf32, #tpu.memory_space<vmem>>, vector<1x896xf32>
    %50 = vector.broadcast %49 : vector<1x896xf32> to vector<8x896xf32>
    %51 = arith.addf %48, %50 : vector<8x896xf32>
    %52 = arith.negf %51 : vector<8x896xf32>
    %53 = math.exp %52 : vector<8x896xf32>
    %cst_37 = arith.constant 1.000000e+00 : f32
    %54 = vector.broadcast %cst_37 : f32 to vector<8x896xf32>
    %55 = arith.addf %54, %53 : vector<8x896xf32>
    %56 = arith.divf %54, %55 : vector<8x896xf32>
    %c0_38 = arith.constant 0 : index
    %c0_39 = arith.constant 0 : index
    %57 = vector.load %arg15[%c0_38, %c0_39] : memref<8x896xf32, #tpu.memory_space<vmem>>, vector<8x896xf32>
    tpu.vector_store %arg15[%c0_38, %c0_39], %56 {strides = array<i32>} : memref<8x896xf32, #tpu.memory_space<vmem>>, vector<8x896xf32>,
    %c0_40 = arith.constant 0 : index
    %c0_41 = arith.constant 0 : index
    %58 = vector.load %arg16[%c0_40, %c0_41] : memref<8x256xf32, #tpu.memory_space<vmem>>, vector<8x256xf32>
    tpu.vector_store %arg16[%c0_40, %c0_41], %23 {strides = array<i32>} : memref<8x256xf32, #tpu.memory_space<vmem>>, vector<8x256xf32>,
    %c0_42 = arith.constant 0 : index
    %c0_43 = arith.constant 0 : index
    %59 = vector.load %arg17[%c0_42, %c0_43] : memref<8x256xf32, #tpu.memory_space<vmem>>, vector<8x256xf32>
    tpu.vector_store %arg17[%c0_42, %c0_43], %24 {strides = array<i32>} : memref<8x256xf32, #tpu.memory_space<vmem>>, vector<8x256xf32>,
    return
  }
  func.func @transform_0(%arg0: i32) -> (i32, i32) {
    %c0_i32 = arith.constant 0 : i32
    %c0_i32_0 = arith.constant 0 : i32
    return %arg0, %c0_i32 : i32, i32
  }
  func.func @transform_1(%arg0: i32) -> (i32, i32) {
    %c0_i32 = arith.constant 0 : i32
    %c0_i32_0 = arith.constant 0 : i32
    return %arg0, %c0_i32 : i32, i32
  }
  func.func @transform_2(%arg0: i32) -> (i32, i32) {
    %c0_i32 = arith.constant 0 : i32
    %c0_i32_0 = arith.constant 0 : i32
    %c0_i32_1 = arith.constant 0 : i32
    return %c0_i32, %c0_i32_0 : i32, i32
  }
  func.func @transform_3(%arg0: i32) -> (i32, i32) {
    %c0_i32 = arith.constant 0 : i32
    %c0_i32_0 = arith.constant 0 : i32
    %c0_i32_1 = arith.constant 0 : i32
    return %c0_i32, %c0_i32_0 : i32, i32
  }
  func.func @transform_4(%arg0: i32) -> (i32, i32) {
    %c0_i32 = arith.constant 0 : i32
    %c0_i32_0 = arith.constant 0 : i32
    %c0_i32_1 = arith.constant 0 : i32
    return %c0_i32, %c0_i32_0 : i32, i32
  }
  func.func @transform_5(%arg0: i32) -> (i32, i32) {
    %c0_i32 = arith.constant 0 : i32
    %c0_i32_0 = arith.constant 0 : i32
    %c0_i32_1 = arith.constant 0 : i32
    return %c0_i32, %c0_i32_0 : i32, i32
  }
  func.func @transform_6(%arg0: i32) -> (i32, i32) {
    %c0_i32 = arith.constant 0 : i32
    %c0_i32_0 = arith.constant 0 : i32
    %c0_i32_1 = arith.constant 0 : i32
    return %c0_i32, %c0_i32_0 : i32, i32
  }
  func.func @transform_7(%arg0: i32) -> (i32, i32) {
    %c0_i32 = arith.constant 0 : i32
    %c0_i32_0 = arith.constant 0 : i32
    %c0_i32_1 = arith.constant 0 : i32
    return %c0_i32, %c0_i32_0 : i32, i32
  }
  func.func @transform_8(%arg0: i32) -> (i32, i32) {
    %c0_i32 = arith.constant 0 : i32
    %c0_i32_0 = arith.constant 0 : i32
    %c0_i32_1 = arith.constant 0 : i32
    return %c0_i32, %c0_i32_0 : i32, i32
  }
  func.func @transform_9(%arg0: i32) -> (i32, i32) {
    %c0_i32 = arith.constant 0 : i32
    %c0_i32_0 = arith.constant 0 : i32
    %c0_i32_1 = arith.constant 0 : i32
    return %c0_i32, %c0_i32_0 : i32, i32
  }
  func.func @transform_10(%arg0: i32) -> (i32, i32) {
    %c0_i32 = arith.constant 0 : i32
    %c0_i32_0 = arith.constant 0 : i32
    %c0_i32_1 = arith.constant 0 : i32
    return %c0_i32, %c0_i32_0 : i32, i32
  }
  func.func @transform_11(%arg0: i32) -> (i32, i32) {
    %c0_i32 = arith.constant 0 : i32
    %c0_i32_0 = arith.constant 0 : i32
    %c0_i32_1 = arith.constant 0 : i32
    return %c0_i32, %c0_i32_0 : i32, i32
  }
  func.func @transform_12(%arg0: i32) -> (i32, i32) {
    %c0_i32 = arith.constant 0 : i32
    %c0_i32_0 = arith.constant 0 : i32
    %c0_i32_1 = arith.constant 0 : i32
    return %c0_i32, %c0_i32_0 : i32, i32
  }
  func.func @transform_13(%arg0: i32) -> (i32, i32) {
    %c0_i32 = arith.constant 0 : i32
    %c0_i32_0 = arith.constant 0 : i32
    %c0_i32_1 = arith.constant 0 : i32
    return %c0_i32, %c0_i32_0 : i32, i32
  }
  func.func @transform_14(%arg0: i32) -> (i32, i32) {
    %c0_i32 = arith.constant 0 : i32
    %c0_i32_0 = arith.constant 0 : i32
    return %arg0, %c0_i32 : i32, i32
  }
  func.func @transform_15(%arg0: i32) -> (i32, i32) {
    %c0_i32 = arith.constant 0 : i32
    %c0_i32_0 = arith.constant 0 : i32
    return %arg0, %c0_i32 : i32, i32
  }
  func.func @transform_16(%arg0: i32) -> (i32, i32) {
    %c0_i32 = arith.constant 0 : i32
    %c0_i32_0 = arith.constant 0 : i32
    return %arg0, %c0_i32 : i32, i32
  }
}

</mosaic_0001>

<llo_original>
// kernel: vae_forward.1
$region0: #{vae_forward.1}
  #allocation0 [shape = 'u32[]', space=smem, size = 0x4, offset = 0x4, fixed_abs, tag = 'smem constant byte address 0x4 - core index']
  #allocation1 [shape = 'u32[72,128]{1,0:T(1,128)}', space=vmem, size = 0x9000, scoped, tag = 'internal scratch']
  %s0 = inlined_call_operand.vmem [shape: bf16[16,896], index: 0, kind: input, shape index: {}]
  %s1 = inlined_call_operand.vmem [shape: f32[16,256], index: 1, kind: input, shape index: {}]
  %s2 = inlined_call_operand.hbm [shape: bf16[896,512], index: 2, kind: input, shape index: {}]
  %s3 = inlined_call_operand.vmem [shape: f32[1,512], index: 3, kind: input, shape index: {}]
  %s4 = inlined_call_operand.hbm [shape: bf16[512,512], index: 4, kind: input, shape index: {}]
  %s5 = inlined_call_operand.vmem [shape: f32[1,512], index: 5, kind: input, shape index: {}]
  %s6 = inlined_call_operand.hbm [shape: bf16[512,512], index: 6, kind: input, shape index: {}]
  %s7 = inlined_call_operand.vmem [shape: f32[1,512], index: 7, kind: input, shape index: {}]
  %s8 = inlined_call_operand.hbm [shape: bf16[256,512], index: 8, kind: input, shape index: {}]
  %s9 = inlined_call_operand.vmem [shape: f32[1,512], index: 9, kind: input, shape index: {}]
  %s10 = inlined_call_operand.hbm [shape: bf16[512,512], index: 10, kind: input, shape index: {}]
  %s11 = inlined_call_operand.vmem [shape: f32[1,512], index: 11, kind: input, shape index: {}]
  %s12 = inlined_call_operand.hbm [shape: bf16[512,896], index: 12, kind: input, shape index: {}]
  %s13 = inlined_call_operand.vmem [shape: f32[1,896], index: 13, kind: input, shape index: {}]
  %s14 = inlined_call_operand.vmem [shape: f32[16,896], index: 14, kind: output, shape index: {0}]
  %s15 = inlined_call_operand.vmem [shape: f32[16,256], index: 15, kind: output, shape index: {1}]
  %s16 = inlined_call_operand.vmem [shape: f32[16,256], index: 16, kind: output, shape index: {2}]
  %17 = xla_tuple %s14, %s15, %s16
  %s18 = sld [smem:[#allocation0]]
  $region129: #{vae_forward.1} parent=0
    _
  %s20 = ssub.s32 1, %s18
  %s21 = scalar_select 0, %s20, %s18
  $region1: #{vae_forward.1} parent=0
    #allocation2 [shape = 'u8[917504]{0}', space=vmem, size = 0xe0000, scoped, tag = 'input window, operand 2, single buffered']
    #allocation3 [shape = 's32[2]{0}', space=sflag, size = 0x8, scoped, tag = 'scoped memory for vae_forward.1']
    #allocation4 [shape = 'u8[524288]{0}', space=vmem, size = 0x80000, scoped, tag = 'input window, operand 4, single buffered']
    #allocation5 [shape = 's32[1]{0}', space=sflag, size = 0x4, scoped, tag = 'scoped memory for vae_forward.1']
    #allocation6 [shape = 'u8[524288]{0}', space=vmem, size = 0x80000, scoped, tag = 'input window, operand 6, single buffered']
    #allocation7 [shape = 'u8[262144]{0}', space=vmem, size = 0x40000, scoped, tag = 'input window, operand 8, single buffered']
    #allocation8 [shape = 's32[1]{0}', space=sflag, size = 0x4, scoped, tag = 'scoped memory for vae_forward.1']
    #allocation9 [shape = 'u8[524288]{0}', space=vmem, size = 0x80000, scoped, tag = 'input window, operand 10, single buffered']
    #allocation10 [shape = 'u8[917504]{0}', space=vmem, size = 0xe0000, scoped, tag = 'input window, operand 12, single buffered']
    #allocation11 [shape = 's32[1]{0}', space=sflag, size = 0x4, scoped, tag = 'scoped memory for vae_forward.1']
    %22 = vsyncpa [#allocation3], 0
    %23 = vsyncpa [#allocation5], 0
    %24 = vsyncpa [#allocation8], 0
    %25 = vsyncpa [#allocation11], 0
    loop: start=0, step=1, limit=4
    $region2: #{vae_forward.1} parent=1 // loop_pre_header
      _
    $region3: #{vae_forward.1} parent=1 // loop_header
      %s27 = sphi 0, %s31
      %p28 = scmp.ge.s32.totalorder %s27, 4
      %s37 = sphi 0, %s39
      %s40 = sphi 0, %s37
      %s41 = sphi 0, %s40
      %s57 = sphi 0, %s41
      %s63 = sphi 0, %s65
      %s66 = sphi 0, %s63
      %s67 = sphi 0, %s66
      %s83 = sphi 0, %s67
      %s87 = sphi 0, %s87
      %s89 = sphi 0, %s87
      %s90 = sphi 0, %s89
      %s104 = sphi 0, %s90
      %s108 = sphi 0, %s108
      %s110 = sphi 0, %s108
      %s111 = sphi 0, %s110
      %s125 = sphi 0, %s111
      %s129 = sphi 0, %s129
      %s131 = sphi 0, %s129
      %s132 = sphi 0, %s131
      %s146 = sphi 0, %s132
      %s150 = sphi 0, %s150
      %s152 = sphi 0, %s150
      %s153 = sphi 0, %s152
      %s167 = sphi 0, %s153
      %s171 = sphi 0, %s171
      %s173 = sphi 0, %s171
      %s174 = sphi 0, %s173
      %s188 = sphi 0, %s174
      %s192 = sphi 0, %s192
      %s194 = sphi 0, %s192
      %s195 = sphi 0, %s194
      %s209 = sphi 0, %s195
      %s213 = sphi 0, %s213
      %s215 = sphi 0, %s213
      %s216 = sphi 0, %s215
      %s230 = sphi 0, %s216
      %s234 = sphi 0, %s234
      %s236 = sphi 0, %s234
      %s237 = sphi 0, %s236
      %s251 = sphi 0, %s237
      %s255 = sphi 0, %s255
      %s257 = sphi 0, %s255
      %s258 = sphi 0, %s257
      %s272 = sphi 0, %s258
      %s276 = sphi 0, %s276
      %s278 = sphi 0, %s276
      %s279 = sphi 0, %s278
      %s293 = sphi 0, %s279
      %s297 = sphi 0, %s297
      %s299 = sphi 0, %s297
      %s300 = sphi 0, %s299
      %s314 = sphi 0, %s300
      %s318 = sphi 0, %s318
      %s320 = sphi 0, %s318
      %s321 = sphi 0, %s320
      %s335 = sphi 0, %s321
      %s341 = sphi 0, %s343
      %s344 = sphi 0, %s341
      %s345 = sphi 0, %s344
      %s361 = sphi 0, %s345
      %s367 = sphi 0, %s369
      %s370 = sphi 0, %s367
      %s371 = sphi 0, %s370
      %s387 = sphi 0, %s371
      %s393 = sphi 0, %s395
      %s396 = sphi 0, %s393
      %s397 = sphi 0, %s396
      %s413 = sphi 0, %s397
    $region4: #{vae_forward.1} parent=1 // loop_header_branch
      %30 = sbr.rel (%p28) target = $region8
    $region5: #{vae_forward.1} parent=1 // loop_body
      %s32 = ssub.s32 %s27, 1
      %s33 = ssub.s32 %s27, 2
      %s34 = sadd.s32 %s27, 1
      %s35 = ssub.s32 %s27, %s34
      %p36 = scmp.eq.s32.totalorder %s35, 0
      %s38 = sadd.s32 %s37, 1
      %s39 = scalar_select %p36, %s37, %s38
      %p42 = pneg %p36
      %p43 = scmp.eq.s32.totalorder %s27, 1
      %p44 = por %p42, %p43
      %p45 = scmp.ne.s32.totalorder %s37, %s40
      %p46 = scmp.eq.s32.totalorder %s27, 0
      %p47 = por %p45, %p46
      %p48 = scmp.ne.s32.totalorder %s37, %s40
      %p49 = scmp.eq.s32.totalorder %s32, 1
      %p50 = por %p48, %p49
      %p51 = scmp.ne.s32.totalorder %s40, %s41
      %p52 = scmp.eq.s32.totalorder %s32, 0
      %p53 = por %p51, %p52
      %p54 = scmp.ne.s32.totalorder %s40, %s41
      %p55 = scmp.eq.s32.totalorder %s33, 1
      %p56 = por %p54, %p55
      %p58 = scmp.ne.s32.totalorder %s41, %s57
      %p59 = scmp.eq.s32.totalorder %s33, 0
      %p60 = por %p58, %p59
      %s61 = ssub.s32 %s27, %s34
      %p62 = scmp.eq.s32.totalorder %s61, 0
      %s64 = sadd.s32 %s63, 1
      %s65 = scalar_select %p62, %s63, %s64
      %p68 = pneg %p62
      %p69 = scmp.eq.s32.totalorder %s27, 1
      %p70 = por %p68, %p69
      %p71 = scmp.ne.s32.totalorder %s63, %s66
      %p72 = scmp.eq.s32.totalorder %s27, 0
      %p73 = por %p71, %p72
      %p74 = scmp.ne.s32.totalorder %s63, %s66
      %p75 = scmp.eq.s32.totalorder %s32, 1
      %p76 = por %p74, %p75
      %p77 = scmp.ne.s32.totalorder %s66, %s67
      %p78 = scmp.eq.s32.totalorder %s32, 0
      %p79 = por %p77, %p78
      %p80 = scmp.ne.s32.totalorder %s66, %s67
      %p81 = scmp.eq.s32.totalorder %s33, 1
      %p82 = por %p80, %p81
      %p84 = scmp.ne.s32.totalorder %s67, %s83
      %p85 = scmp.eq.s32.totalorder %s33, 0
      %p86 = por %p84, %p85
      %s88 = sadd.s32 %s87, 1
      %p91 = scmp.eq.s32.totalorder %s27, 1
      %p92 = scmp.ne.s32.totalorder %s87, %s89
      %p93 = scmp.eq.s32.totalorder %s27, 0
      %p94 = por %p92, %p93
      %p95 = scmp.ne.s32.totalorder %s87, %s89
      %p96 = scmp.eq.s32.totalorder %s32, 1
      %p97 = por %p95, %p96
      %p98 = scmp.ne.s32.totalorder %s89, %s90
      %p99 = scmp.eq.s32.totalorder %s32, 0
      %p100 = por %p98, %p99
      %p101 = scmp.ne.s32.totalorder %s89, %s90
      %p102 = scmp.eq.s32.totalorder %s33, 1
      %p103 = por %p101, %p102
      %p105 = scmp.ne.s32.totalorder %s90, %s104
      %p106 = scmp.eq.s32.totalorder %s33, 0
      %p107 = por %p105, %p106
      %s109 = sadd.s32 %s108, 1
      %p112 = scmp.eq.s32.totalorder %s27, 1
      %p113 = scmp.ne.s32.totalorder %s108, %s110
      %p114 = scmp.eq.s32.totalorder %s27, 0
      %p115 = por %p113, %p114
      %p116 = scmp.ne.s32.totalorder %s108, %s110
      %p117 = scmp.eq.s32.totalorder %s32, 1
      %p118 = por %p116, %p117
      %p119 = scmp.ne.s32.totalorder %s110, %s111
      %p120 = scmp.eq.s32.totalorder %s32, 0
      %p121 = por %p119, %p120
      %p122 = scmp.ne.s32.totalorder %s110, %s111
      %p123 = scmp.eq.s32.totalorder %s33, 1
      %p124 = por %p122, %p123
      %p126 = scmp.ne.s32.totalorder %s111, %s125
      %p127 = scmp.eq.s32.totalorder %s33, 0
      %p128 = por %p126, %p127
      %s130 = sadd.s32 %s129, 1
      %p133 = scmp.eq.s32.totalorder %s27, 1
      %p134 = scmp.ne.s32.totalorder %s129, %s131
      %p135 = scmp.eq.s32.totalorder %s27, 0
      %p136 = por %p134, %p135
      %p137 = scmp.ne.s32.totalorder %s129, %s131
      %p138 = scmp.eq.s32.totalorder %s32, 1
      %p139 = por %p137, %p138
      %p140 = scmp.ne.s32.totalorder %s131, %s132
      %p141 = scmp.eq.s32.totalorder %s32, 0
      %p142 = por %p140, %p141
      %p143 = scmp.ne.s32.totalorder %s131, %s132
      %p144 = scmp.eq.s32.totalorder %s33, 1
      %p145 = por %p143, %p144
      %p147 = scmp.ne.s32.totalorder %s132, %s146
      %p148 = scmp.eq.s32.totalorder %s33, 0
      %p149 = por %p147, %p148
      %s151 = sadd.s32 %s150, 1
      %p154 = scmp.eq.s32.totalorder %s27, 1
      %p155 = scmp.ne.s32.totalorder %s150, %s152
      %p156 = scmp.eq.s32.totalorder %s27, 0
      %p157 = por %p155, %p156
      %p158 = scmp.ne.s32.totalorder %s150, %s152
      %p159 = scmp.eq.s32.totalorder %s32, 1
      %p160 = por %p158, %p159
      %p161 = scmp.ne.s32.totalorder %s152, %s153
      %p162 = scmp.eq.s32.totalorder %s32, 0
      %p163 = por %p161, %p162
      %p164 = scmp.ne.s32.totalorder %s152, %s153
      %p165 = scmp.eq.s32.totalorder %s33, 1
      %p166 = por %p164, %p165
      %p168 = scmp.ne.s32.totalorder %s153, %s167
      %p169 = scmp.eq.s32.totalorder %s33, 0
      %p170 = por %p168, %p169
      %s172 = sadd.s32 %s171, 1
      %p175 = scmp.eq.s32.totalorder %s27, 1
      %p176 = scmp.ne.s32.totalorder %s171, %s173
      %p177 = scmp.eq.s32.totalorder %s27, 0
      %p178 = por %p176, %p177
      %p179 = scmp.ne.s32.totalorder %s171, %s173
      %p180 = scmp.eq.s32.totalorder %s32, 1
      %p181 = por %p179, %p180
      %p182 = scmp.ne.s32.totalorder %s173, %s174
      %p183 = scmp.eq.s32.totalorder %s32, 0
      %p184 = por %p182, %p183
      %p185 = scmp.ne.s32.totalorder %s173, %s174
      %p186 = scmp.eq.s32.totalorder %s33, 1
      %p187 = por %p185, %p186
      %p189 = scmp.ne.s32.totalorder %s174, %s188
      %p190 = scmp.eq.s32.totalorder %s33, 0
      %p191 = por %p189, %p190
      %s193 = sadd.s32 %s192, 1
      %p196 = scmp.eq.s32.totalorder %s27, 1
      %p197 = scmp.ne.s32.totalorder %s192, %s194
      %p198 = scmp.eq.s32.totalorder %s27, 0
      %p199 = por %p197, %p198
      %p200 = scmp.ne.s32.totalorder %s192, %s194
      %p201 = scmp.eq.s32.totalorder %s32, 1
      %p202 = por %p200, %p201
      %p203 = scmp.ne.s32.totalorder %s194, %s195
      %p204 = scmp.eq.s32.totalorder %s32, 0
      %p205 = por %p203, %p204
      %p206 = scmp.ne.s32.totalorder %s194, %s195
      %p207 = scmp.eq.s32.totalorder %s33, 1
      %p208 = por %p206, %p207
      %p210 = scmp.ne.s32.totalorder %s195, %s209
      %p211 = scmp.eq.s32.totalorder %s33, 0
      %p212 = por %p210, %p211
      %s214 = sadd.s32 %s213, 1
      %p217 = scmp.eq.s32.totalorder %s27, 1
      %p218 = scmp.ne.s32.totalorder %s213, %s215
      %p219 = scmp.eq.s32.totalorder %s27, 0
      %p220 = por %p218, %p219
      %p221 = scmp.ne.s32.totalorder %s213, %s215
      %p222 = scmp.eq.s32.totalorder %s32, 1
      %p223 = por %p221, %p222
      %p224 = scmp.ne.s32.totalorder %s215, %s216
      %p225 = scmp.eq.s32.totalorder %s32, 0
      %p226 = por %p224, %p225
      %p227 = scmp.ne.s32.totalorder %s215, %s216
      %p228 = scmp.eq.s32.totalorder %s33, 1
      %p229 = por %p227, %p228
      %p231 = scmp.ne.s32.totalorder %s216, %s230
      %p232 = scmp.eq.s32.totalorder %s33, 0
      %p233 = por %p231, %p232
      %s235 = sadd.s32 %s234, 1
      %p238 = scmp.eq.s32.totalorder %s27, 1
      %p239 = scmp.ne.s32.totalorder %s234, %s236
      %p240 = scmp.eq.s32.totalorder %s27, 0
      %p241 = por %p239, %p240
      %p242 = scmp.ne.s32.totalorder %s234, %s236
      %p243 = scmp.eq.s32.totalorder %s32, 1
      %p244 = por %p242, %p243
      %p245 = scmp.ne.s32.totalorder %s236, %s237
      %p246 = scmp.eq.s32.totalorder %s32, 0
      %p247 = por %p245, %p246
      %p248 = scmp.ne.s32.totalorder %s236, %s237
      %p249 = scmp.eq.s32.totalorder %s33, 1
      %p250 = por %p248, %p249
      %p252 = scmp.ne.s32.totalorder %s237, %s251
      %p253 = scmp.eq.s32.totalorder %s33, 0
      %p254 = por %p252, %p253
      %s256 = sadd.s32 %s255, 1
      %p259 = scmp.eq.s32.totalorder %s27, 1
      %p260 = scmp.ne.s32.totalorder %s255, %s257
      %p261 = scmp.eq.s32.totalorder %s27, 0
      %p262 = por %p260, %p261
      %p263 = scmp.ne.s32.totalorder %s255, %s257
      %p264 = scmp.eq.s32.totalorder %s32, 1
      %p265 = por %p263, %p264
      %p266 = scmp.ne.s32.totalorder %s257, %s258
      %p267 = scmp.eq.s32.totalorder %s32, 0
      %p268 = por %p266, %p267
      %p269 = scmp.ne.s32.totalorder %s257, %s258
      %p270 = scmp.eq.s32.totalorder %s33, 1
      %p271 = por %p269, %p270
      %p273 = scmp.ne.s32.totalorder %s258, %s272
      %p274 = scmp.eq.s32.totalorder %s33, 0
      %p275 = por %p273, %p274
      %s277 = sadd.s32 %s276, 1
      %p280 = scmp.eq.s32.totalorder %s27, 1
      %p281 = scmp.ne.s32.totalorder %s276, %s278
      %p282 = scmp.eq.s32.totalorder %s27, 0
      %p283 = por %p281, %p282
      %p284 = scmp.ne.s32.totalorder %s276, %s278
      %p285 = scmp.eq.s32.totalorder %s32, 1
      %p286 = por %p284, %p285
      %p287 = scmp.ne.s32.totalorder %s278, %s279
      %p288 = scmp.eq.s32.totalorder %s32, 0
      %p289 = por %p287, %p288
      %p290 = scmp.ne.s32.totalorder %s278, %s279
      %p291 = scmp.eq.s32.totalorder %s33, 1
      %p292 = por %p290, %p291
      %p294 = scmp.ne.s32.totalorder %s279, %s293
      %p295 = scmp.eq.s32.totalorder %s33, 0
      %p296 = por %p294, %p295
      %s298 = sadd.s32 %s297, 1
      %p301 = scmp.eq.s32.totalorder %s27, 1
      %p302 = scmp.ne.s32.totalorder %s297, %s299
      %p303 = scmp.eq.s32.totalorder %s27, 0
      %p304 = por %p302, %p303
      %p305 = scmp.ne.s32.totalorder %s297, %s299
      %p306 = scmp.eq.s32.totalorder %s32, 1
      %p307 = por %p305, %p306
      %p308 = scmp.ne.s32.totalorder %s299, %s300
      %p309 = scmp.eq.s32.totalorder %s32, 0
      %p310 = por %p308, %p309
      %p311 = scmp.ne.s32.totalorder %s299, %s300
      %p312 = scmp.eq.s32.totalorder %s33, 1
      %p313 = por %p311, %p312
      %p315 = scmp.ne.s32.totalorder %s300, %s314
      %p316 = scmp.eq.s32.totalorder %s33, 0
      %p317 = por %p315, %p316
      %s319 = sadd.s32 %s318, 1
      %p322 = scmp.eq.s32.totalorder %s27, 1
      %p323 = scmp.ne.s32.totalorder %s318, %s320
      %p324 = scmp.eq.s32.totalorder %s27, 0
      %p325 = por %p323, %p324
      %p326 = scmp.ne.s32.totalorder %s318, %s320
      %p327 = scmp.eq.s32.totalorder %s32, 1
      %p328 = por %p326, %p327
      %p329 = scmp.ne.s32.totalorder %s320, %s321
      %p330 = scmp.eq.s32.totalorder %s32, 0
      %p331 = por %p329, %p330
      %p332 = scmp.ne.s32.totalorder %s320, %s321
      %p333 = scmp.eq.s32.totalorder %s33, 1
      %p334 = por %p332, %p333
      %p336 = scmp.ne.s32.totalorder %s321, %s335
      %p337 = scmp.eq.s32.totalorder %s33, 0
      %p338 = por %p336, %p337
      %s339 = ssub.s32 %s27, %s34
      %p340 = scmp.eq.s32.totalorder %s339, 0
      %s342 = sadd.s32 %s341, 1
      %s343 = scalar_select %p340, %s341, %s342
      %p346 = pneg %p340
      %p347 = scmp.eq.s32.totalorder %s27, 1
      %p348 = por %p346, %p347
      %p349 = scmp.ne.s32.totalorder %s341, %s344
      %p350 = scmp.eq.s32.totalorder %s27, 0
      %p351 = por %p349, %p350
      %p352 = scmp.ne.s32.totalorder %s341, %s344
      %p353 = scmp.eq.s32.totalorder %s32, 1
      %p354 = por %p352, %p353
      %p355 = scmp.ne.s32.totalorder %s344, %s345
      %p356 = scmp.eq.s32.totalorder %s32, 0
      %p357 = por %p355, %p356
      %p358 = scmp.ne.s32.totalorder %s344, %s345
      %p359 = scmp.eq.s32.totalorder %s33, 1
      %p360 = por %p358, %p359
      %p362 = scmp.ne.s32.totalorder %s345, %s361
      %p363 = scmp.eq.s32.totalorder %s33, 0
      %p364 = por %p362, %p363
      %s365 = ssub.s32 %s27, %s34
      %p366 = scmp.eq.s32.totalorder %s365, 0
      %s368 = sadd.s32 %s367, 1
      %s369 = scalar_select %p366, %s367, %s368
      %p372 = pneg %p366
      %p373 = scmp.eq.s32.totalorder %s27, 1
      %p374 = por %p372, %p373
      %p375 = scmp.ne.s32.totalorder %s367, %s370
      %p376 = scmp.eq.s32.totalorder %s27, 0
      %p377 = por %p375, %p376
      %p378 = scmp.ne.s32.totalorder %s367, %s370
      %p379 = scmp.eq.s32.totalorder %s32, 1
      %p380 = por %p378, %p379
      %p381 = scmp.ne.s32.totalorder %s370, %s371
      %p382 = scmp.eq.s32.totalorder %s32, 0
      %p383 = por %p381, %p382
      %p384 = scmp.ne.s32.totalorder %s370, %s371
      %p385 = scmp.eq.s32.totalorder %s33, 1
      %p386 = por %p384, %p385
      %p388 = scmp.ne.s32.totalorder %s371, %s387
      %p389 = scmp.eq.s32.totalorder %s33, 0
      %p390 = por %p388, %p389
      %s391 = ssub.s32 %s27, %s34
      %p392 = scmp.eq.s32.totalorder %s391, 0
      %s394 = sadd.s32 %s393, 1
      %s395 = scalar_select %p392, %s393, %s394
      %p398 = pneg %p392
      %p399 = scmp.eq.s32.totalorder %s27, 1
      %p400 = por %p398, %p399
      %p401 = scmp.ne.s32.totalorder %s393, %s396
      %p402 = scmp.eq.s32.totalorder %s27, 0
      %p403 = por %p401, %p402
      %p404 = scmp.ne.s32.totalorder %s393, %s396
      %p405 = scmp.eq.s32.totalorder %s32, 1
      %p406 = por %p404, %p405
      %p407 = scmp.ne.s32.totalorder %s396, %s397
      %p408 = scmp.eq.s32.totalorder %s32, 0
      %p409 = por %p407, %p408
      %p410 = scmp.ne.s32.totalorder %s396, %s397
      %p411 = scmp.eq.s32.totalorder %s33, 1
      %p412 = por %p410, %p411
      %p414 = scmp.ne.s32.totalorder %s397, %s413
      %p415 = scmp.eq.s32.totalorder %s33, 0
      %p416 = por %p414, %p415
      %p417 = scmp.le.s32.totalorder 1, %s27
      %p418 = scmp.lt.s32.totalorder %s27, 3
      %p419 = pnand %p417, %p418
      %p420 = pneg %p419
      // Predicated region
      $region9: #{vae_forward.1} parent=5 // pred_check
        _
      $region10: #{vae_forward.1} parent=5 // pred_check_branch
        %422 = sbr.rel (%p419) target = $region12
      $region11: #{vae_forward.1} parent=5 // pred_region
        %s423 = ssub.s32 %s27, 1
        // Predicated region
        $region13: #{vae_forward.1} parent=11 // pred_check
          %p424 = pneg %p100
        $region14: #{vae_forward.1} parent=11 // pred_check_branch
          %426 = sbr.rel (%p424) target = $region16
        $region15: #{vae_forward.1} parent=11 // pred_region
          %428 = vsyncadd [#allocation3], 0
          %s429 = sshll.u32 %s2, 4
          %s430 = int_to_ptr.hbm [resolvable:$true] %s429
          %s431 = sshll.u32 [#allocation2], 4
          %s432 = int_to_ptr.vmem [resolvable:$true] %s431
          %437 = dma.hbm_to_vmem [thread:$0]  %s430, 28672, %s432, [#allocation3], 256, 256, 16
        $region16: #{vae_forward.1} parent=11 // pred_fallthru
          _
        // Predicated region
        $region17: #{vae_forward.1} parent=11 // pred_check
          %p438 = pneg %p121
        $region18: #{vae_forward.1} parent=11 // pred_check_branch
          %440 = sbr.rel (%p438) target = $region20
        $region19: #{vae_forward.1} parent=11 // pred_region
          _
        $region20: #{vae_forward.1} parent=11 // pred_fallthru
          _
        // Predicated region
        $region21: #{vae_forward.1} parent=11 // pred_check
          %p441 = pneg %p142
        $region22: #{vae_forward.1} parent=11 // pred_check_branch
          %443 = sbr.rel (%p441) target = $region24
        $region23: #{vae_forward.1} parent=11 // pred_region
          %445 = vsyncadd [#allocation5], 0
          %s446 = sshll.u32 %s4, 4
          %s447 = int_to_ptr.hbm [resolvable:$true] %s446
          %s448 = sshll.u32 [#allocation4], 4
          %s449 = int_to_ptr.vmem [resolvable:$true] %s448
          %454 = dma.hbm_to_vmem [thread:$0]  %s447, 16384, %s449, [#allocation5], 256, 256, 16
        $region24: #{vae_forward.1} parent=11 // pred_fallthru
          _
        // Predicated region
        $region25: #{vae_forward.1} parent=11 // pred_check
          %p455 = pneg %p163
        $region26: #{vae_forward.1} parent=11 // pred_check_branch
          %457 = sbr.rel (%p455) target = $region28
        $region27: #{vae_forward.1} parent=11 // pred_region
          _
        $region28: #{vae_forward.1} parent=11 // pred_fallthru
          _
        // Predicated region
        $region29: #{vae_forward.1} parent=11 // pred_check
          %p458 = pneg %p184
        $region30: #{vae_forward.1} parent=11 // pred_check_branch
          %460 = sbr.rel (%p458) target = $region32
        $region31: #{vae_forward.1} parent=11 // pred_region
          %462 = vsyncadd [#allocation5], 0
          %s463 = sshll.u32 %s6, 4
          %s464 = int_to_ptr.hbm [resolvable:$true] %s463
          %s465 = sshll.u32 [#allocation6], 4
          %s466 = int_to_ptr.vmem [resolvable:$true] %s465
          %471 = dma.hbm_to_vmem [thread:$0]  %s464, 16384, %s466, [#allocation5], 256, 256, 16
        $region32: #{vae_forward.1} parent=11 // pred_fallthru
          _
        // Predicated region
        $region33: #{vae_forward.1} parent=11 // pred_check
          %p472 = pneg %p205
        $region34: #{vae_forward.1} parent=11 // pred_check_branch
          %474 = sbr.rel (%p472) target = $region36
        $region35: #{vae_forward.1} parent=11 // pred_region
          _
        $region36: #{vae_forward.1} parent=11 // pred_fallthru
          _
        // Predicated region
        $region37: #{vae_forward.1} parent=11 // pred_check
          %p475 = pneg %p226
        $region38: #{vae_forward.1} parent=11 // pred_check_branch
          %477 = sbr.rel (%p475) target = $region40
        $region39: #{vae_forward.1} parent=11 // pred_region
          %479 = vsyncadd [#allocation8], 0
          %s480 = sshll.u32 %s8, 4
          %s481 = int_to_ptr.hbm [resolvable:$true] %s480
          %s482 = sshll.u32 [#allocation7], 4
          %s483 = int_to_ptr.vmem [resolvable:$true] %s482
          %488 = dma.hbm_to_vmem [thread:$0]  %s481, 8192, %s483, [#allocation8], 256, 256, 16
        $region40: #{vae_forward.1} parent=11 // pred_fallthru
          _
        // Predicated region
        $region41: #{vae_forward.1} parent=11 // pred_check
          %p489 = pneg %p247
        $region42: #{vae_forward.1} parent=11 // pred_check_branch
          %491 = sbr.rel (%p489) target = $region44
        $region43: #{vae_forward.1} parent=11 // pred_region
          _
        $region44: #{vae_forward.1} parent=11 // pred_fallthru
          _
        // Predicated region
        $region45: #{vae_forward.1} parent=11 // pred_check
          %p492 = pneg %p268
        $region46: #{vae_forward.1} parent=11 // pred_check_branch
          %494 = sbr.rel (%p492) target = $region48
        $region47: #{vae_forward.1} parent=11 // pred_region
          %496 = vsyncadd [#allocation8], 0
          %s497 = sshll.u32 %s10, 4
          %s498 = int_to_ptr.hbm [resolvable:$true] %s497
          %s499 = sshll.u32 [#allocation9], 4
          %s500 = int_to_ptr.vmem [resolvable:$true] %s499
          %505 = dma.hbm_to_vmem [thread:$0]  %s498, 16384, %s500, [#allocation8], 256, 256, 16
        $region48: #{vae_forward.1} parent=11 // pred_fallthru
          _
        // Predicated region
        $region49: #{vae_forward.1} parent=11 // pred_check
          %p506 = pneg %p289
        $region50: #{vae_forward.1} parent=11 // pred_check_branch
          %508 = sbr.rel (%p506) target = $region52
        $region51: #{vae_forward.1} parent=11 // pred_region
          _
        $region52: #{vae_forward.1} parent=11 // pred_fallthru
          _
        // Predicated region
        $region53: #{vae_forward.1} parent=11 // pred_check
          %p509 = pneg %p310
        $region54: #{vae_forward.1} parent=11 // pred_check_branch
          %511 = sbr.rel (%p509) target = $region56
        $region55: #{vae_forward.1} parent=11 // pred_region
          %513 = vsyncadd [#allocation11], 0
          %s514 = sshll.u32 %s12, 4
          %s515 = int_to_ptr.hbm [resolvable:$true] %s514
          %s516 = sshll.u32 [#allocation10], 4
          %s517 = int_to_ptr.vmem [resolvable:$true] %s516
          %522 = dma.hbm_to_vmem [thread:$0]  %s515, 28672, %s517, [#allocation11], 448, 448, 28
        $region56: #{vae_forward.1} parent=11 // pred_fallthru
          _
        // Predicated region
        $region57: #{vae_forward.1} parent=11 // pred_check
          %p523 = pneg %p331
        $region58: #{vae_forward.1} parent=11 // pred_check_branch
          %525 = sbr.rel (%p523) target = $region60
        $region59: #{vae_forward.1} parent=11 // pred_region
          _
        $region60: #{vae_forward.1} parent=11 // pred_fallthru
          _
      $region12: #{vae_forward.1} parent=5 // pred_fallthru
        _
      %p526 = scmp.lt.s32.totalorder %s27, 2
      // Predicated region
      $region61: #{vae_forward.1} parent=5 // pred_check
        %p527 = pneg %p526
      $region62: #{vae_forward.1} parent=5 // pred_check_branch
        %529 = sbr.rel (%p527) target = $region64
      $region63: #{vae_forward.1} parent=5 // pred_region
        // Predicated region
        $region65: #{vae_forward.1} parent=63 // pred_check
          %p530 = pneg %p47
        $region66: #{vae_forward.1} parent=63 // pred_check_branch
          %532 = sbr.rel (%p530) target = $region68
        $region67: #{vae_forward.1} parent=63 // pred_region
          %p533 = scmp.lt.s32.totalorder %s27, 1
          %s534 = scalar_select %p533, %s27, 1
          %s535 = smul.addr %s534, 7
          %s536 = smul.addr %s535, 4
          %s537 = scalar_lea.vmem %s0, %s536
        $region68: #{vae_forward.1} parent=63 // pred_fallthru
          _
        // Predicated region
        $region69: #{vae_forward.1} parent=63 // pred_check
          %p538 = pneg %p73
        $region70: #{vae_forward.1} parent=63 // pred_check_branch
          %540 = sbr.rel (%p538) target = $region72
        $region71: #{vae_forward.1} parent=63 // pred_region
          %p541 = scmp.lt.s32.totalorder %s27, 1
          %s542 = scalar_select %p541, %s27, 1
          %s543 = smul.addr %s542, 2
          %s544 = smul.addr %s543, 8
          %s545 = scalar_lea.vmem %s1, %s544
        $region72: #{vae_forward.1} parent=63 // pred_fallthru
          _
      $region64: #{vae_forward.1} parent=5 // pred_fallthru
        _
      %p546 = scmp.le.s32.totalorder 1, %s27
      %p547 = scmp.lt.s32.totalorder %s27, 3
      %p548 = pnand %p546, %p547
      %p549 = pneg %p548
      // Predicated region
      $region73: #{vae_forward.1} parent=5 // pred_check
        _
      $region74: #{vae_forward.1} parent=5 // pred_check_branch
        %551 = sbr.rel (%p548) target = $region76
      $region75: #{vae_forward.1} parent=5 // pred_region
        %s552 = ssub.s32 %s27, 1
        // Predicated region
        $region77: #{vae_forward.1} parent=75 // pred_check
          %p553 = pneg %p100
        $region78: #{vae_forward.1} parent=75 // pred_check_branch
          %555 = sbr.rel (%p553) target = $region80
        $region79: #{vae_forward.1} parent=75 // pred_region
          %557 = dma.done [#allocation3], 28672
        $region80: #{vae_forward.1} parent=75 // pred_fallthru
          _
        // Predicated region
        $region81: #{vae_forward.1} parent=75 // pred_check
          %p558 = pneg %p142
        $region82: #{vae_forward.1} parent=75 // pred_check_branch
          %560 = sbr.rel (%p558) target = $region84
        $region83: #{vae_forward.1} parent=75 // pred_region
          %562 = dma.done [#allocation5], 16384
        $region84: #{vae_forward.1} parent=75 // pred_fallthru
          _
        // Predicated region
        $region85: #{vae_forward.1} parent=75 // pred_check
          %p563 = pneg %p184
        $region86: #{vae_forward.1} parent=75 // pred_check_branch
          %565 = sbr.rel (%p563) target = $region88
        $region87: #{vae_forward.1} parent=75 // pred_region
          %567 = dma.done [#allocation5], 16384
        $region88: #{vae_forward.1} parent=75 // pred_fallthru
          _
        // Predicated region
        $region89: #{vae_forward.1} parent=75 // pred_check
          %p568 = pneg %p226
        $region90: #{vae_forward.1} parent=75 // pred_check_branch
          %570 = sbr.rel (%p568) target = $region92
        $region91: #{vae_forward.1} parent=75 // pred_region
          %572 = dma.done [#allocation8], 8192
        $region92: #{vae_forward.1} parent=75 // pred_fallthru
          _
        // Predicated region
        $region93: #{vae_forward.1} parent=75 // pred_check
          %p573 = pneg %p268
        $region94: #{vae_forward.1} parent=75 // pred_check_branch
          %575 = sbr.rel (%p573) target = $region96
        $region95: #{vae_forward.1} parent=75 // pred_region
          %577 = dma.done [#allocation8], 16384
        $region96: #{vae_forward.1} parent=75 // pred_fallthru
          _
        // Predicated region
        $region97: #{vae_forward.1} parent=75 // pred_check
          %p578 = pneg %p310
        $region98: #{vae_forward.1} parent=75 // pred_check_branch
          %580 = sbr.rel (%p578) target = $region100
        $region99: #{vae_forward.1} parent=75 // pred_region
          %582 = dma.done [#allocation11], 28672
        $region100: #{vae_forward.1} parent=75 // pred_fallthru
          _
        %p583 = scmp.lt.s32.totalorder %s32, 1
        %s584 = scalar_select %p583, %s32, 1
        %s585 = smul.addr %s584, 7
        %s586 = smul.addr %s585, 4
        %s587 = scalar_lea.vmem %s0, %s586
        %p588 = pneg %p53
        %p589 = pneg %p50
        %p590 = scmp.lt.s32.totalorder %s32, 1
        %s591 = scalar_select %p590, %s32, 1
        %s592 = smul.addr %s591, 2
        %s593 = smul.addr %s592, 8
        %s594 = scalar_lea.vmem %s1, %s593
        %p595 = pneg %p79
        %p596 = pneg %p76
        %p597 = pneg %p100
        %p598 = pneg %p97
        %p599 = pneg %p121
        %p600 = pneg %p118
        %p601 = pneg %p142
        %p602 = pneg %p139
        %p603 = pneg %p163
        %p604 = pneg %p160
        %p605 = pneg %p184
        %p606 = pneg %p181
        %p607 = pneg %p205
        %p608 = pneg %p202
        %p609 = pneg %p226
        %p610 = pneg %p223
        %p611 = pneg %p247
        %p612 = pneg %p244
        %p613 = pneg %p268
        %p614 = pneg %p265
        %p615 = pneg %p289
        %p616 = pneg %p286
        %p617 = pneg %p310
        %p618 = pneg %p307
        %p619 = pneg %p331
        %p620 = pneg %p328
        %p621 = pneg %p357
        %p622 = pneg %p354
        %p623 = scmp.lt.s32.totalorder %s32, 1
        %s624 = scalar_select %p623, %s32, 1
        %s625 = smul.addr %s624, 7
        %s626 = smul.addr %s625, 8
        %s627 = scalar_lea.vmem %s14, %s626
        %p628 = pneg %p383
        %p629 = pneg %p380
        %p630 = scmp.lt.s32.totalorder %s32, 1
        %s631 = scalar_select %p630, %s32, 1
        %s632 = smul.addr %s631, 2
        %s633 = smul.addr %s632, 8
        %s634 = scalar_lea.vmem %s15, %s633
        %p635 = pneg %p409
        %p636 = pneg %p406
        %p637 = scmp.lt.s32.totalorder %s32, 1
        %s638 = scalar_select %p637, %s32, 1
        %s639 = smul.addr %s638, 2
        %s640 = smul.addr %s639, 8
        %s641 = scalar_lea.vmem %s16, %s640
        %p642 = scmp.lt.s32.totalorder %s32, 1
        %s643 = scalar_select %p642, %s32, 1
        %s644 = smul.addr %s643, 7
        %s645 = smul.addr %s644, 4
        %s646 = scalar_lea.vmem %s0, %s645
        %p647 = scmp.lt.s32.totalorder %s32, 1
        %s648 = scalar_select %p647, %s32, 1
        %s649 = smul.addr %s648, 2
        %s650 = smul.addr %s649, 8
        %s651 = scalar_lea.vmem %s1, %s650
        %p652 = scmp.lt.s32.totalorder %s32, 1
        %s653 = scalar_select %p652, %s32, 1
        %s654 = smul.addr %s653, 7
        %s655 = smul.addr %s654, 8
        %s656 = scalar_lea.vmem %s14, %s655
        %p657 = scmp.lt.s32.totalorder %s32, 1
        %s658 = scalar_select %p657, %s32, 1
        %s659 = smul.addr %s658, 2
        %s660 = smul.addr %s659, 8
        %s661 = scalar_lea.vmem %s15, %s660
        %p662 = scmp.lt.s32.totalorder %s32, 1
        %s663 = scalar_select %p662, %s32, 1
        %s664 = smul.addr %s663, 2
        %s665 = smul.addr %s664, 8
        %s666 = scalar_lea.vmem %s16, %s665
        %v667 = vld [vmem:[%s646] sm:$0xff]
        %v668 = vld [vmem:[%s646 + $0x8] sm:$0xff]
        %v669 = vld [vmem:[%s646 + $0x10] sm:$0xff]
        %v670 = vld [vmem:[%s646 + $0x18] sm:$0xf]
        %v671 = vld [vmem:[%s651] sm:$0xff]
        %v672 = vld [vmem:[%s651 + $0x8] sm:$0xff]
        %v673 = vld [vmem:[#allocation2] sm:$0xff]
        %v674 = vld [vmem:[#allocation2 + $0x8] sm:$0xff]
        %v675 = vld [vmem:[#allocation2 + $0x10] sm:$0xff]
        %v676 = vld [vmem:[#allocation2 + $0x18] sm:$0xff]
        %v677 = vld [vmem:[#allocation2 + $0x20] sm:$0xff]
        %v678 = vld [vmem:[#allocation2 + $0x28] sm:$0xff]
        %v679 = vld [vmem:[#allocation2 + $0x30] sm:$0xff]
        %v680 = vld [vmem:[#allocation2 + $0x38] sm:$0xff]
        %v681 = vld [vmem:[#allocation2 + $0x40] sm:$0xff]
        %v682 = vld [vmem:[#allocation2 + $0x48] sm:$0xff]
        %v683 = vld [vmem:[#allocation2 + $0x50] sm:$0xff]
        %v684 = vld [vmem:[#allocation2 + $0x58] sm:$0xff]
        %v685 = vld [vmem:[#allocation2 + $0x60] sm:$0xff]
        %v686 = vld [vmem:[#allocation2 + $0x68] sm:$0xff]
        %v687 = vld [vmem:[#allocation2 + $0x70] sm:$0xff]
        %v688 = vld [vmem:[#allocation2 + $0x78] sm:$0xff]
        %v689 = vld [vmem:[#allocation2 + $0x80] sm:$0xff]
        %v690 = vld [vmem:[#allocation2 + $0x88] sm:$0xff]
        %v691 = vld [vmem:[#allocation2 + $0x90] sm:$0xff]
        %v692 = vld [vmem:[#allocation2 + $0x98] sm:$0xff]
        %v693 = vld [vmem:[#allocation2 + $0xa0] sm:$0xff]
        %v694 = vld [vmem:[#allocation2 + $0xa8] sm:$0xff]
        %v695 = vld [vmem:[#allocation2 + $0xb0] sm:$0xff]
        %v696 = vld [vmem:[#allocation2 + $0xb8] sm:$0xff]
        %v697 = vld [vmem:[#allocation2 + $0xc0] sm:$0xff]
        %v698 = vld [vmem:[#allocation2 + $0xc8] sm:$0xff]
        %v699 = vld [vmem:[#allocation2 + $0xd0] sm:$0xff]
        %v700 = vld [vmem:[#allocation2 + $0xd8] sm:$0xff]
        %v701 = vld [vmem:[#allocation2 + $0xe0] sm:$0xff]
        %v702 = vld [vmem:[#allocation2 + $0xe8] sm:$0xff]
        %v703 = vld [vmem:[#allocation2 + $0xf0] sm:$0xff]
        %v704 = vld [vmem:[#allocation2 + $0xf8] sm:$0xff]
        %v705 = vld [vmem:[#allocation2 + $0x100] sm:$0xff]
        %v706 = vld [vmem:[#allocation2 + $0x108] sm:$0xff]
        %v707 = vld [vmem:[#allocation2 + $0x110] sm:$0xff]
        %v708 = vld [vmem:[#allocation2 + $0x118] sm:$0xff]
        %v709 = vld [vmem:[#allocation2 + $0x120] sm:$0xff]
        %v710 = vld [vmem:[#allocation2 + $0x128] sm:$0xff]
        %v711 = vld [vmem:[#allocation2 + $0x130] sm:$0xff]
        %v712 = vld [vmem:[#allocation2 + $0x138] sm:$0xff]
        %v713 = vld [vmem:[#allocation2 + $0x140] sm:$0xff]
        %v714 = vld [vmem:[#allocation2 + $0x148] sm:$0xff]
        %v715 = vld [vmem:[#allocation2 + $0x150] sm:$0xff]
        %v716 = vld [vmem:[#allocation2 + $0x158] sm:$0xff]
        %v717 = vld [vmem:[#allocation2 + $0x160] sm:$0xff]
        %v718 = vld [vmem:[#allocation2 + $0x168] sm:$0xff]
        %v719 = vld [vmem:[#allocation2 + $0x170] sm:$0xff]
        %v720 = vld [vmem:[#allocation2 + $0x178] sm:$0xff]
        %v721 = vld [vmem:[#allocation2 + $0x180] sm:$0xff]
        %v722 = vld [vmem:[#allocation2 + $0x188] sm:$0xff]
        %v723 = vld [vmem:[#allocation2 + $0x190] sm:$0xff]
        %v724 = vld [vmem:[#allocation2 + $0x198] sm:$0xff]
        %v725 = vld [vmem:[#allocation2 + $0x1a0] sm:$0xff]
        %v726 = vld [vmem:[#allocation2 + $0x1a8] sm:$0xff]
        %v727 = vld [vmem:[#allocation2 + $0x1b0] sm:$0xff]
        %v728 = vld [vmem:[#allocation2 + $0x1b8] sm:$0xff]
        %v729 = vld [vmem:[#allocation2 + $0x1c0] sm:$0xff]
        %v730 = vld [vmem:[#allocation2 + $0x1c8] sm:$0xff]
        %v731 = vld [vmem:[#allocation2 + $0x1d0] sm:$0xff]
        %v732 = vld [vmem:[#allocation2 + $0x1d8] sm:$0xff]
        %v733 = vld [vmem:[#allocation2 + $0x1e0] sm:$0xff]
        %v734 = vld [vmem:[#allocation2 + $0x1e8] sm:$0xff]
        %v735 = vld [vmem:[#allocation2 + $0x1f0] sm:$0xff]
        %v736 = vld [vmem:[#allocation2 + $0x1f8] sm:$0xff]
        %v737 = vld [vmem:[#allocation2 + $0x200] sm:$0xff]
        %v738 = vld [vmem:[#allocation2 + $0x208] sm:$0xff]
        %v739 = vld [vmem:[#allocation2 + $0x210] sm:$0xff]
        %v740 = vld [vmem:[#allocation2 + $0x218] sm:$0xff]
        %v741 = vld [vmem:[#allocation2 + $0x220] sm:$0xff]
        %v742 = vld [vmem:[#allocation2 + $0x228] sm:$0xff]
        %v743 = vld [vmem:[#allocation2 + $0x230] sm:$0xff]
        %v744 = vld [vmem:[#allocation2 + $0x238] sm:$0xff]
        %v745 = vld [vmem:[#allocation2 + $0x240] sm:$0xff]
        %v746 = vld [vmem:[#allocation2 + $0x248] sm:$0xff]
        %v747 = vld [vmem:[#allocation2 + $0x250] sm:$0xff]
        %v748 = vld [vmem:[#allocation2 + $0x258] sm:$0xff]
        %v749 = vld [vmem:[#allocation2 + $0x260] sm:$0xff]
        %v750 = vld [vmem:[#allocation2 + $0x268] sm:$0xff]
        %v751 = vld [vmem:[#allocation2 + $0x270] sm:$0xff]
        %v752 = vld [vmem:[#allocation2 + $0x278] sm:$0xff]
        %v753 = vld [vmem:[#allocation2 + $0x280] sm:$0xff]
        %v754 = vld [vmem:[#allocation2 + $0x288] sm:$0xff]
        %v755 = vld [vmem:[#allocation2 + $0x290] sm:$0xff]
        %v756 = vld [vmem:[#allocation2 + $0x298] sm:$0xff]
        %v757 = vld [vmem:[#allocation2 + $0x2a0] sm:$0xff]
        %v758 = vld [vmem:[#allocation2 + $0x2a8] sm:$0xff]
        %v759 = vld [vmem:[#allocation2 + $0x2b0] sm:$0xff]
        %v760 = vld [vmem:[#allocation2 + $0x2b8] sm:$0xff]
        %v761 = vld [vmem:[#allocation2 + $0x2c0] sm:$0xff]
        %v762 = vld [vmem:[#allocation2 + $0x2c8] sm:$0xff]
        %v763 = vld [vmem:[#allocation2 + $0x2d0] sm:$0xff]
        %v764 = vld [vmem:[#allocation2 + $0x2d8] sm:$0xff]
        %v765 = vld [vmem:[#allocation2 + $0x2e0] sm:$0xff]
        %v766 = vld [vmem:[#allocation2 + $0x2e8] sm:$0xff]
        %v767 = vld [vmem:[#allocation2 + $0x2f0] sm:$0xff]
        %v768 = vld [vmem:[#allocation2 + $0x2f8] sm:$0xff]
        %v769 = vld [vmem:[#allocation2 + $0x300] sm:$0xff]
        %v770 = vld [vmem:[#allocation2 + $0x308] sm:$0xff]
        %v771 = vld [vmem:[#allocation2 + $0x310] sm:$0xff]
        %v772 = vld [vmem:[#allocation2 + $0x318] sm:$0xff]
        %v773 = vld [vmem:[#allocation2 + $0x320] sm:$0xff]
        %v774 = vld [vmem:[#allocation2 + $0x328] sm:$0xff]
        %v775 = vld [vmem:[#allocation2 + $0x330] sm:$0xff]
        %v776 = vld [vmem:[#allocation2 + $0x338] sm:$0xff]
        %v777 = vld [vmem:[#allocation2 + $0x340] sm:$0xff]
        %v778 = vld [vmem:[#allocation2 + $0x348] sm:$0xff]
        %v779 = vld [vmem:[#allocation2 + $0x350] sm:$0xff]
        %v780 = vld [vmem:[#allocation2 + $0x358] sm:$0xff]
        %v781 = vld [vmem:[#allocation2 + $0x360] sm:$0xff]
        %v782 = vld [vmem:[#allocation2 + $0x368] sm:$0xff]
        %v783 = vld [vmem:[#allocation2 + $0x370] sm:$0xff]
        %v784 = vld [vmem:[#allocation2 + $0x378] sm:$0xff]
        %v785 = vld [vmem:[#allocation2 + $0x380] sm:$0xff]
        %v786 = vld [vmem:[#allocation2 + $0x388] sm:$0xff]
        %v787 = vld [vmem:[#allocation2 + $0x390] sm:$0xff]
        %v788 = vld [vmem:[#allocation2 + $0x398] sm:$0xff]
        %v789 = vld [vmem:[#allocation2 + $0x3a0] sm:$0xff]
        %v790 = vld [vmem:[#allocation2 + $0x3a8] sm:$0xff]
        %v791 = vld [vmem:[#allocation2 + $0x3b0] sm:$0xff]
        %v792 = vld [vmem:[#allocation2 + $0x3b8] sm:$0xff]
        %v793 = vld [vmem:[#allocation2 + $0x3c0] sm:$0xff]
        %v794 = vld [vmem:[#allocation2 + $0x3c8] sm:$0xff]
        %v795 = vld [vmem:[#allocation2 + $0x3d0] sm:$0xff]
        %v796 = vld [vmem:[#allocation2 + $0x3d8] sm:$0xff]
        %v797 = vld [vmem:[#allocation2 + $0x3e0] sm:$0xff]
        %v798 = vld [vmem:[#allocation2 + $0x3e8] sm:$0xff]
        %v799 = vld [vmem:[#allocation2 + $0x3f0] sm:$0xff]
        %v800 = vld [vmem:[#allocation2 + $0x3f8] sm:$0xff]
        %v801 = vld [vmem:[#allocation2 + $0x400] sm:$0xff]
        %v802 = vld [vmem:[#allocation2 + $0x408] sm:$0xff]
        %v803 = vld [vmem:[#allocation2 + $0x410] sm:$0xff]
        %v804 = vld [vmem:[#allocation2 + $0x418] sm:$0xff]
        %v805 = vld [vmem:[#allocation2 + $0x420] sm:$0xff]
        %v806 = vld [vmem:[#allocation2 + $0x428] sm:$0xff]
        %v807 = vld [vmem:[#allocation2 + $0x430] sm:$0xff]
        %v808 = vld [vmem:[#allocation2 + $0x438] sm:$0xff]
        %v809 = vld [vmem:[#allocation2 + $0x440] sm:$0xff]
        %v810 = vld [vmem:[#allocation2 + $0x448] sm:$0xff]
        %v811 = vld [vmem:[#allocation2 + $0x450] sm:$0xff]
        %v812 = vld [vmem:[#allocation2 + $0x458] sm:$0xff]
        %v813 = vld [vmem:[#allocation2 + $0x460] sm:$0xff]
        %v814 = vld [vmem:[#allocation2 + $0x468] sm:$0xff]
        %v815 = vld [vmem:[#allocation2 + $0x470] sm:$0xff]
        %v816 = vld [vmem:[#allocation2 + $0x478] sm:$0xff]
        %v817 = vld [vmem:[#allocation2 + $0x480] sm:$0xff]
        %v818 = vld [vmem:[#allocation2 + $0x488] sm:$0xff]
        %v819 = vld [vmem:[#allocation2 + $0x490] sm:$0xff]
        %v820 = vld [vmem:[#allocation2 + $0x498] sm:$0xff]
        %v821 = vld [vmem:[#allocation2 + $0x4a0] sm:$0xff]
        %v822 = vld [vmem:[#allocation2 + $0x4a8] sm:$0xff]
        %v823 = vld [vmem:[#allocation2 + $0x4b0] sm:$0xff]
        %v824 = vld [vmem:[#allocation2 + $0x4b8] sm:$0xff]
        %v825 = vld [vmem:[#allocation2 + $0x4c0] sm:$0xff]
        %v826 = vld [vmem:[#allocation2 + $0x4c8] sm:$0xff]
        %v827 = vld [vmem:[#allocation2 + $0x4d0] sm:$0xff]
        %v828 = vld [vmem:[#allocation2 + $0x4d8] sm:$0xff]
        %v829 = vld [vmem:[#allocation2 + $0x4e0] sm:$0xff]
        %v830 = vld [vmem:[#allocation2 + $0x4e8] sm:$0xff]
        %v831 = vld [vmem:[#allocation2 + $0x4f0] sm:$0xff]
        %v832 = vld [vmem:[#allocation2 + $0x4f8] sm:$0xff]
        %v833 = vld [vmem:[#allocation2 + $0x500] sm:$0xff]
        %v834 = vld [vmem:[#allocation2 + $0x508] sm:$0xff]
        %v835 = vld [vmem:[#allocation2 + $0x510] sm:$0xff]
        %v836 = vld [vmem:[#allocation2 + $0x518] sm:$0xff]
        %v837 = vld [vmem:[#allocation2 + $0x520] sm:$0xff]
        %v838 = vld [vmem:[#allocation2 + $0x528] sm:$0xff]
        %v839 = vld [vmem:[#allocation2 + $0x530] sm:$0xff]
        %v840 = vld [vmem:[#allocation2 + $0x538] sm:$0xff]
        %v841 = vld [vmem:[#allocation2 + $0x540] sm:$0xff]
        %v842 = vld [vmem:[#allocation2 + $0x548] sm:$0xff]
        %v843 = vld [vmem:[#allocation2 + $0x550] sm:$0xff]
        %v844 = vld [vmem:[#allocation2 + $0x558] sm:$0xff]
        %v845 = vld [vmem:[#allocation2 + $0x560] sm:$0xff]
        %v846 = vld [vmem:[#allocation2 + $0x568] sm:$0xff]
        %v847 = vld [vmem:[#allocation2 + $0x570] sm:$0xff]
        %v848 = vld [vmem:[#allocation2 + $0x578] sm:$0xff]
        %v849 = vld [vmem:[#allocation2 + $0x580] sm:$0xff]
        %v850 = vld [vmem:[#allocation2 + $0x588] sm:$0xff]
        %v851 = vld [vmem:[#allocation2 + $0x590] sm:$0xff]
        %v852 = vld [vmem:[#allocation2 + $0x598] sm:$0xff]
        %v853 = vld [vmem:[#allocation2 + $0x5a0] sm:$0xff]
        %v854 = vld [vmem:[#allocation2 + $0x5a8] sm:$0xff]
        %v855 = vld [vmem:[#allocation2 + $0x5b0] sm:$0xff]
        %v856 = vld [vmem:[#allocation2 + $0x5b8] sm:$0xff]
        %v857 = vld [vmem:[#allocation2 + $0x5c0] sm:$0xff]
        %v858 = vld [vmem:[#allocation2 + $0x5c8] sm:$0xff]
        %v859 = vld [vmem:[#allocation2 + $0x5d0] sm:$0xff]
        %v860 = vld [vmem:[#allocation2 + $0x5d8] sm:$0xff]
        %v861 = vld [vmem:[#allocation2 + $0x5e0] sm:$0xff]
        %v862 = vld [vmem:[#allocation2 + $0x5e8] sm:$0xff]
        %v863 = vld [vmem:[#allocation2 + $0x5f0] sm:$0xff]
        %v864 = vld [vmem:[#allocation2 + $0x5f8] sm:$0xff]
        %v865 = vld [vmem:[#allocation2 + $0x600] sm:$0xff]
        %v866 = vld [vmem:[#allocation2 + $0x608] sm:$0xff]
        %v867 = vld [vmem:[#allocation2 + $0x610] sm:$0xff]
        %v868 = vld [vmem:[#allocation2 + $0x618] sm:$0xff]
        %v869 = vld [vmem:[#allocation2 + $0x620] sm:$0xff]
        %v870 = vld [vmem:[#allocation2 + $0x628] sm:$0xff]
        %v871 = vld [vmem:[#allocation2 + $0x630] sm:$0xff]
        %v872 = vld [vmem:[#allocation2 + $0x638] sm:$0xff]
        %v873 = vld [vmem:[#allocation2 + $0x640] sm:$0xff]
        %v874 = vld [vmem:[#allocation2 + $0x648] sm:$0xff]
        %v875 = vld [vmem:[#allocation2 + $0x650] sm:$0xff]
        %v876 = vld [vmem:[#allocation2 + $0x658] sm:$0xff]
        %v877 = vld [vmem:[#allocation2 + $0x660] sm:$0xff]
        %v878 = vld [vmem:[#allocation2 + $0x668] sm:$0xff]
        %v879 = vld [vmem:[#allocation2 + $0x670] sm:$0xff]
        %v880 = vld [vmem:[#allocation2 + $0x678] sm:$0xff]
        %v881 = vld [vmem:[#allocation2 + $0x680] sm:$0xff]
        %v882 = vld [vmem:[#allocation2 + $0x688] sm:$0xff]
        %v883 = vld [vmem:[#allocation2 + $0x690] sm:$0xff]
        %v884 = vld [vmem:[#allocation2 + $0x698] sm:$0xff]
        %v885 = vld [vmem:[#allocation2 + $0x6a0] sm:$0xff]
        %v886 = vld [vmem:[#allocation2 + $0x6a8] sm:$0xff]
        %v887 = vld [vmem:[#allocation2 + $0x6b0] sm:$0xff]
        %v888 = vld [vmem:[#allocation2 + $0x6b8] sm:$0xff]
        %v889 = vld [vmem:[#allocation2 + $0x6c0] sm:$0xff]
        %v890 = vld [vmem:[#allocation2 + $0x6c8] sm:$0xff]
        %v891 = vld [vmem:[#allocation2 + $0x6d0] sm:$0xff]
        %v892 = vld [vmem:[#allocation2 + $0x6d8] sm:$0xff]
        %v893 = vld [vmem:[#allocation2 + $0x6e0] sm:$0xff]
        %v894 = vld [vmem:[#allocation2 + $0x6e8] sm:$0xff]
        %v895 = vld [vmem:[#allocation2 + $0x6f0] sm:$0xff]
        %v896 = vld [vmem:[#allocation2 + $0x6f8] sm:$0xff]
        %v897 = vld [vmem:[%s3] sm:$0xf]
        %v899 = vperm.slane %v897, 0
        %v900 = vperm.slane %v897, 1
        %v901 = vperm.slane %v897, 2
        %v902 = vperm.slane %v897, 3
        %v911 = vunpack.c.l.b16 %v667
        %v912 = vunpack.c.h.b16 %v667
        %v913 = vunpack.c.l.b16 %v668
        %v914 = vunpack.c.h.b16 %v668
        %v915 = vunpack.c.l.b16 %v669
        %v916 = vunpack.c.h.b16 %v669
        %v917 = vunpack.c.l.b16 %v670
        %v918 = vpack.c.b16 %v911, %v911
        %v919 = vpack.c.b16 %v912, %v912
        %v920 = vpack.c.b16 %v913, %v913
        %v921 = vpack.c.b16 %v914, %v914
        %v922 = vpack.c.b16 %v915, %v915
        %v923 = vpack.c.b16 %v916, %v916
        %v924 = vpack.c.b16 %v917, %v917
        %v1156 = vunpack.c.l.b16 %v673
        %v1157 = vunpack.c.h.b16 %v673
        %v1158 = vunpack.c.l.b16 %v674
        %v1159 = vunpack.c.h.b16 %v674
        %v1160 = vunpack.c.l.b16 %v675
        %v1161 = vunpack.c.h.b16 %v675
        %v1162 = vunpack.c.l.b16 %v676
        %v1163 = vunpack.c.h.b16 %v676
        %v1164 = vunpack.c.l.b16 %v677
        %v1165 = vunpack.c.h.b16 %v677
        %v1166 = vunpack.c.l.b16 %v678
        %v1167 = vunpack.c.h.b16 %v678
        %v1168 = vunpack.c.l.b16 %v679
        %v1169 = vunpack.c.h.b16 %v679
        %v1170 = vunpack.c.l.b16 %v680
        %v1171 = vunpack.c.h.b16 %v680
        %v1172 = vunpack.c.l.b16 %v681
        %v1173 = vunpack.c.h.b16 %v681
        %v1174 = vunpack.c.l.b16 %v682
        %v1175 = vunpack.c.h.b16 %v682
        %v1176 = vunpack.c.l.b16 %v683
        %v1177 = vunpack.c.h.b16 %v683
        %v1178 = vunpack.c.l.b16 %v684
        %v1179 = vunpack.c.h.b16 %v684
        %v1180 = vunpack.c.l.b16 %v685
        %v1181 = vunpack.c.h.b16 %v685
        %v1182 = vunpack.c.l.b16 %v686
        %v1183 = vunpack.c.h.b16 %v686
        %v1184 = vunpack.c.l.b16 %v687
        %v1185 = vunpack.c.h.b16 %v687
        %v1186 = vunpack.c.l.b16 %v688
        %v1187 = vunpack.c.h.b16 %v688
        %v1188 = vunpack.c.l.b16 %v689
        %v1189 = vunpack.c.h.b16 %v689
        %v1190 = vunpack.c.l.b16 %v690
        %v1191 = vunpack.c.h.b16 %v690
        %v1192 = vunpack.c.l.b16 %v691
        %v1193 = vunpack.c.h.b16 %v691
        %v1194 = vunpack.c.l.b16 %v692
        %v1195 = vunpack.c.h.b16 %v692
        %v1196 = vunpack.c.l.b16 %v693
        %v1197 = vunpack.c.h.b16 %v693
        %v1198 = vunpack.c.l.b16 %v694
        %v1199 = vunpack.c.h.b16 %v694
        %v1200 = vunpack.c.l.b16 %v695
        %v1201 = vunpack.c.h.b16 %v695
        %v1202 = vunpack.c.l.b16 %v696
        %v1203 = vunpack.c.h.b16 %v696
        %v1204 = vunpack.c.l.b16 %v697
        %v1205 = vunpack.c.h.b16 %v697
        %v1206 = vunpack.c.l.b16 %v698
        %v1207 = vunpack.c.h.b16 %v698
        %v1208 = vunpack.c.l.b16 %v699
        %v1209 = vunpack.c.h.b16 %v699
        %v1210 = vunpack.c.l.b16 %v700
        %v1211 = vunpack.c.h.b16 %v700
        %v1212 = vunpack.c.l.b16 %v701
        %v1213 = vunpack.c.h.b16 %v701
        %v1214 = vunpack.c.l.b16 %v702
        %v1215 = vunpack.c.h.b16 %v702
        %v1216 = vunpack.c.l.b16 %v703
        %v1217 = vunpack.c.h.b16 %v703
        %v1218 = vunpack.c.l.b16 %v704
        %v1219 = vunpack.c.h.b16 %v704
        %v1220 = vunpack.c.l.b16 %v705
        %v1221 = vunpack.c.h.b16 %v705
        %v1222 = vunpack.c.l.b16 %v706
        %v1223 = vunpack.c.h.b16 %v706
        %v1224 = vunpack.c.l.b16 %v707
        %v1225 = vunpack.c.h.b16 %v707
        %v1226 = vunpack.c.l.b16 %v708
        %v1227 = vunpack.c.h.b16 %v708
        %v1228 = vunpack.c.l.b16 %v709
        %v1229 = vunpack.c.h.b16 %v709
        %v1230 = vunpack.c.l.b16 %v710
        %v1231 = vunpack.c.h.b16 %v710
        %v1232 = vunpack.c.l.b16 %v711
        %v1233 = vunpack.c.h.b16 %v711
        %v1234 = vunpack.c.l.b16 %v712
        %v1235 = vunpack.c.h.b16 %v712
        %v1236 = vunpack.c.l.b16 %v713
        %v1237 = vunpack.c.h.b16 %v713
        %v1238 = vunpack.c.l.b16 %v714
        %v1239 = vunpack.c.h.b16 %v714
        %v1240 = vunpack.c.l.b16 %v715
        %v1241 = vunpack.c.h.b16 %v715
        %v1242 = vunpack.c.l.b16 %v716
        %v1243 = vunpack.c.h.b16 %v716
        %v1244 = vunpack.c.l.b16 %v717
        %v1245 = vunpack.c.h.b16 %v717
        %v1246 = vunpack.c.l.b16 %v718
        %v1247 = vunpack.c.h.b16 %v718
        %v1248 = vunpack.c.l.b16 %v719
        %v1249 = vunpack.c.h.b16 %v719
        %v1250 = vunpack.c.l.b16 %v720
        %v1251 = vunpack.c.h.b16 %v720
        %v1252 = vunpack.c.l.b16 %v721
        %v1253 = vunpack.c.h.b16 %v721
        %v1254 = vunpack.c.l.b16 %v722
        %v1255 = vunpack.c.h.b16 %v722
        %v1256 = vunpack.c.l.b16 %v723
        %v1257 = vunpack.c.h.b16 %v723
        %v1258 = vunpack.c.l.b16 %v724
        %v1259 = vunpack.c.h.b16 %v724
        %v1260 = vunpack.c.l.b16 %v725
        %v1261 = vunpack.c.h.b16 %v725
        %v1262 = vunpack.c.l.b16 %v726
        %v1263 = vunpack.c.h.b16 %v726
        %v1264 = vunpack.c.l.b16 %v727
        %v1265 = vunpack.c.h.b16 %v727
        %v1266 = vunpack.c.l.b16 %v728
        %v1267 = vunpack.c.h.b16 %v728
        %v1268 = vunpack.c.l.b16 %v729
        %v1269 = vunpack.c.h.b16 %v729
        %v1270 = vunpack.c.l.b16 %v730
        %v1271 = vunpack.c.h.b16 %v730
        %v1272 = vunpack.c.l.b16 %v731
        %v1273 = vunpack.c.h.b16 %v731
        %v1274 = vunpack.c.l.b16 %v732
        %v1275 = vunpack.c.h.b16 %v732
        %v1276 = vunpack.c.l.b16 %v733
        %v1277 = vunpack.c.h.b16 %v733
        %v1278 = vunpack.c.l.b16 %v734
        %v1279 = vunpack.c.h.b16 %v734
        %v1280 = vunpack.c.l.b16 %v735
        %v1281 = vunpack.c.h.b16 %v735
        %v1282 = vunpack.c.l.b16 %v736
        %v1283 = vunpack.c.h.b16 %v736
        %v1284 = vunpack.c.l.b16 %v737
        %v1285 = vunpack.c.h.b16 %v737
        %v1286 = vunpack.c.l.b16 %v738
        %v1287 = vunpack.c.h.b16 %v738
        %v1288 = vunpack.c.l.b16 %v739
        %v1289 = vunpack.c.h.b16 %v739
        %v1290 = vunpack.c.l.b16 %v740
        %v1291 = vunpack.c.h.b16 %v740
        %v1292 = vunpack.c.l.b16 %v741
        %v1293 = vunpack.c.h.b16 %v741
        %v1294 = vunpack.c.l.b16 %v742
        %v1295 = vunpack.c.h.b16 %v742
        %v1296 = vunpack.c.l.b16 %v743
        %v1297 = vunpack.c.h.b16 %v743
        %v1298 = vunpack.c.l.b16 %v744
        %v1299 = vunpack.c.h.b16 %v744
        %v1300 = vunpack.c.l.b16 %v745
        %v1301 = vunpack.c.h.b16 %v745
        %v1302 = vunpack.c.l.b16 %v746
        %v1303 = vunpack.c.h.b16 %v746
        %v1304 = vunpack.c.l.b16 %v747
        %v1305 = vunpack.c.h.b16 %v747
        %v1306 = vunpack.c.l.b16 %v748
        %v1307 = vunpack.c.h.b16 %v748
        %v1308 = vunpack.c.l.b16 %v749
        %v1309 = vunpack.c.h.b16 %v749
        %v1310 = vunpack.c.l.b16 %v750
        %v1311 = vunpack.c.h.b16 %v750
        %v1312 = vunpack.c.l.b16 %v751
        %v1313 = vunpack.c.h.b16 %v751
        %v1314 = vunpack.c.l.b16 %v752
        %v1315 = vunpack.c.h.b16 %v752
        %v1316 = vunpack.c.l.b16 %v753
        %v1317 = vunpack.c.h.b16 %v753
        %v1318 = vunpack.c.l.b16 %v754
        %v1319 = vunpack.c.h.b16 %v754
        %v1320 = vunpack.c.l.b16 %v755
        %v1321 = vunpack.c.h.b16 %v755
        %v1322 = vunpack.c.l.b16 %v756
        %v1323 = vunpack.c.h.b16 %v756
        %v1324 = vunpack.c.l.b16 %v757
        %v1325 = vunpack.c.h.b16 %v757
        %v1326 = vunpack.c.l.b16 %v758
        %v1327 = vunpack.c.h.b16 %v758
        %v1328 = vunpack.c.l.b16 %v759
        %v1329 = vunpack.c.h.b16 %v759
        %v1330 = vunpack.c.l.b16 %v760
        %v1331 = vunpack.c.h.b16 %v760
        %v1332 = vunpack.c.l.b16 %v761
        %v1333 = vunpack.c.h.b16 %v761
        %v1334 = vunpack.c.l.b16 %v762
        %v1335 = vunpack.c.h.b16 %v762
        %v1336 = vunpack.c.l.b16 %v763
        %v1337 = vunpack.c.h.b16 %v763
        %v1338 = vunpack.c.l.b16 %v764
        %v1339 = vunpack.c.h.b16 %v764
        %v1340 = vunpack.c.l.b16 %v765
        %v1341 = vunpack.c.h.b16 %v765
        %v1342 = vunpack.c.l.b16 %v766
        %v1343 = vunpack.c.h.b16 %v766
        %v1344 = vunpack.c.l.b16 %v767
        %v1345 = vunpack.c.h.b16 %v767
        %v1346 = vunpack.c.l.b16 %v768
        %v1347 = vunpack.c.h.b16 %v768
        %v1348 = vunpack.c.l.b16 %v769
        %v1349 = vunpack.c.h.b16 %v769
        %v1350 = vunpack.c.l.b16 %v770
        %v1351 = vunpack.c.h.b16 %v770
        %v1352 = vunpack.c.l.b16 %v771
        %v1353 = vunpack.c.h.b16 %v771
        %v1354 = vunpack.c.l.b16 %v772
        %v1355 = vunpack.c.h.b16 %v772
        %v1356 = vunpack.c.l.b16 %v773
        %v1357 = vunpack.c.h.b16 %v773
        %v1358 = vunpack.c.l.b16 %v774
        %v1359 = vunpack.c.h.b16 %v774
        %v1360 = vunpack.c.l.b16 %v775
        %v1361 = vunpack.c.h.b16 %v775
        %v1362 = vunpack.c.l.b16 %v776
        %v1363 = vunpack.c.h.b16 %v776
        %v1364 = vunpack.c.l.b16 %v777
        %v1365 = vunpack.c.h.b16 %v777
        %v1366 = vunpack.c.l.b16 %v778
        %v1367 = vunpack.c.h.b16 %v778
        %v1368 = vunpack.c.l.b16 %v779
        %v1369 = vunpack.c.h.b16 %v779
        %v1370 = vunpack.c.l.b16 %v780
        %v1371 = vunpack.c.h.b16 %v780
        %v1372 = vunpack.c.l.b16 %v781
        %v1373 = vunpack.c.h.b16 %v781
        %v1374 = vunpack.c.l.b16 %v782
        %v1375 = vunpack.c.h.b16 %v782
        %v1376 = vunpack.c.l.b16 %v783
        %v1377 = vunpack.c.h.b16 %v783
        %v1378 = vunpack.c.l.b16 %v784
        %v1379 = vunpack.c.h.b16 %v784
        %v1380 = vunpack.c.l.b16 %v785
        %v1381 = vunpack.c.h.b16 %v785
        %v1382 = vunpack.c.l.b16 %v786
        %v1383 = vunpack.c.h.b16 %v786
        %v1384 = vunpack.c.l.b16 %v787
        %v1385 = vunpack.c.h.b16 %v787
        %v1386 = vunpack.c.l.b16 %v788
        %v1387 = vunpack.c.h.b16 %v788
        %v1388 = vunpack.c.l.b16 %v789
        %v1389 = vunpack.c.h.b16 %v789
        %v1390 = vunpack.c.l.b16 %v790
        %v1391 = vunpack.c.h.b16 %v790
        %v1392 = vunpack.c.l.b16 %v791
        %v1393 = vunpack.c.h.b16 %v791
        %v1394 = vunpack.c.l.b16 %v792
        %v1395 = vunpack.c.h.b16 %v792
        %v1396 = vunpack.c.l.b16 %v793
        %v1397 = vunpack.c.h.b16 %v793
        %v1398 = vunpack.c.l.b16 %v794
        %v1399 = vunpack.c.h.b16 %v794
        %v1400 = vunpack.c.l.b16 %v795
        %v1401 = vunpack.c.h.b16 %v795
        %v1402 = vunpack.c.l.b16 %v796
        %v1403 = vunpack.c.h.b16 %v796
        %v1404 = vunpack.c.l.b16 %v797
        %v1405 = vunpack.c.h.b16 %v797
        %v1406 = vunpack.c.l.b16 %v798
        %v1407 = vunpack.c.h.b16 %v798
        %v1408 = vunpack.c.l.b16 %v799
        %v1409 = vunpack.c.h.b16 %v799
        %v1410 = vunpack.c.l.b16 %v800
        %v1411 = vunpack.c.h.b16 %v800
        %v1412 = vunpack.c.l.b16 %v801
        %v1413 = vunpack.c.h.b16 %v801
        %v1414 = vunpack.c.l.b16 %v802
        %v1415 = vunpack.c.h.b16 %v802
        %v1416 = vunpack.c.l.b16 %v803
        %v1417 = vunpack.c.h.b16 %v803
        %v1418 = vunpack.c.l.b16 %v804
        %v1419 = vunpack.c.h.b16 %v804
        %v1420 = vunpack.c.l.b16 %v805
        %v1421 = vunpack.c.h.b16 %v805
        %v1422 = vunpack.c.l.b16 %v806
        %v1423 = vunpack.c.h.b16 %v806
        %v1424 = vunpack.c.l.b16 %v807
        %v1425 = vunpack.c.h.b16 %v807
        %v1426 = vunpack.c.l.b16 %v808
        %v1427 = vunpack.c.h.b16 %v808
        %v1428 = vunpack.c.l.b16 %v809
        %v1429 = vunpack.c.h.b16 %v809
        %v1430 = vunpack.c.l.b16 %v810
        %v1431 = vunpack.c.h.b16 %v810
        %v1432 = vunpack.c.l.b16 %v811
        %v1433 = vunpack.c.h.b16 %v811
        %v1434 = vunpack.c.l.b16 %v812
        %v1435 = vunpack.c.h.b16 %v812
        %v1436 = vunpack.c.l.b16 %v813
        %v1437 = vunpack.c.h.b16 %v813
        %v1438 = vunpack.c.l.b16 %v814
        %v1439 = vunpack.c.h.b16 %v814
        %v1440 = vunpack.c.l.b16 %v815
        %v1441 = vunpack.c.h.b16 %v815
        %v1442 = vunpack.c.l.b16 %v816
        %v1443 = vunpack.c.h.b16 %v816
        %v1444 = vunpack.c.l.b16 %v817
        %v1445 = vunpack.c.h.b16 %v817
        %v1446 = vunpack.c.l.b16 %v818
        %v1447 = vunpack.c.h.b16 %v818
        %v1448 = vunpack.c.l.b16 %v819
        %v1449 = vunpack.c.h.b16 %v819
        %v1450 = vunpack.c.l.b16 %v820
        %v1451 = vunpack.c.h.b16 %v820
        %v1452 = vunpack.c.l.b16 %v821
        %v1453 = vunpack.c.h.b16 %v821
        %v1454 = vunpack.c.l.b16 %v822
        %v1455 = vunpack.c.h.b16 %v822
        %v1456 = vunpack.c.l.b16 %v823
        %v1457 = vunpack.c.h.b16 %v823
        %v1458 = vunpack.c.l.b16 %v824
        %v1459 = vunpack.c.h.b16 %v824
        %v1460 = vunpack.c.l.b16 %v825
        %v1461 = vunpack.c.h.b16 %v825
        %v1462 = vunpack.c.l.b16 %v826
        %v1463 = vunpack.c.h.b16 %v826
        %v1464 = vunpack.c.l.b16 %v827
        %v1465 = vunpack.c.h.b16 %v827
        %v1466 = vunpack.c.l.b16 %v828
        %v1467 = vunpack.c.h.b16 %v828
        %v1468 = vunpack.c.l.b16 %v829
        %v1469 = vunpack.c.h.b16 %v829
        %v1470 = vunpack.c.l.b16 %v830
        %v1471 = vunpack.c.h.b16 %v830
        %v1472 = vunpack.c.l.b16 %v831
        %v1473 = vunpack.c.h.b16 %v831
        %v1474 = vunpack.c.l.b16 %v832
        %v1475 = vunpack.c.h.b16 %v832
        %v1476 = vunpack.c.l.b16 %v833
        %v1477 = vunpack.c.h.b16 %v833
        %v1478 = vunpack.c.l.b16 %v834
        %v1479 = vunpack.c.h.b16 %v834
        %v1480 = vunpack.c.l.b16 %v835
        %v1481 = vunpack.c.h.b16 %v835
        %v1482 = vunpack.c.l.b16 %v836
        %v1483 = vunpack.c.h.b16 %v836
        %v1484 = vunpack.c.l.b16 %v837
        %v1485 = vunpack.c.h.b16 %v837
        %v1486 = vunpack.c.l.b16 %v838
        %v1487 = vunpack.c.h.b16 %v838
        %v1488 = vunpack.c.l.b16 %v839
        %v1489 = vunpack.c.h.b16 %v839
        %v1490 = vunpack.c.l.b16 %v840
        %v1491 = vunpack.c.h.b16 %v840
        %v1492 = vunpack.c.l.b16 %v841
        %v1493 = vunpack.c.h.b16 %v841
        %v1494 = vunpack.c.l.b16 %v842
        %v1495 = vunpack.c.h.b16 %v842
        %v1496 = vunpack.c.l.b16 %v843
        %v1497 = vunpack.c.h.b16 %v843
        %v1498 = vunpack.c.l.b16 %v844
        %v1499 = vunpack.c.h.b16 %v844
        %v1500 = vunpack.c.l.b16 %v845
        %v1501 = vunpack.c.h.b16 %v845
        %v1502 = vunpack.c.l.b16 %v846
        %v1503 = vunpack.c.h.b16 %v846
        %v1504 = vunpack.c.l.b16 %v847
        %v1505 = vunpack.c.h.b16 %v847
        %v1506 = vunpack.c.l.b16 %v848
        %v1507 = vunpack.c.h.b16 %v848
        %v1508 = vunpack.c.l.b16 %v849
        %v1509 = vunpack.c.h.b16 %v849
        %v1510 = vunpack.c.l.b16 %v850
        %v1511 = vunpack.c.h.b16 %v850
        %v1512 = vunpack.c.l.b16 %v851
        %v1513 = vunpack.c.h.b16 %v851
        %v1514 = vunpack.c.l.b16 %v852
        %v1515 = vunpack.c.h.b16 %v852
        %v1516 = vunpack.c.l.b16 %v853
        %v1517 = vunpack.c.h.b16 %v853
        %v1518 = vunpack.c.l.b16 %v854
        %v1519 = vunpack.c.h.b16 %v854
        %v1520 = vunpack.c.l.b16 %v855
        %v1521 = vunpack.c.h.b16 %v855
        %v1522 = vunpack.c.l.b16 %v856
        %v1523 = vunpack.c.h.b16 %v856
        %v1524 = vunpack.c.l.b16 %v857
        %v1525 = vunpack.c.h.b16 %v857
        %v1526 = vunpack.c.l.b16 %v858
        %v1527 = vunpack.c.h.b16 %v858
        %v1528 = vunpack.c.l.b16 %v859
        %v1529 = vunpack.c.h.b16 %v859
        %v1530 = vunpack.c.l.b16 %v860
        %v1531 = vunpack.c.h.b16 %v860
        %v1532 = vunpack.c.l.b16 %v861
        %v1533 = vunpack.c.h.b16 %v861
        %v1534 = vunpack.c.l.b16 %v862
        %v1535 = vunpack.c.h.b16 %v862
        %v1536 = vunpack.c.l.b16 %v863
        %v1537 = vunpack.c.h.b16 %v863
        %v1538 = vunpack.c.l.b16 %v864
        %v1539 = vunpack.c.h.b16 %v864
        %v1540 = vunpack.c.l.b16 %v865
        %v1541 = vunpack.c.h.b16 %v865
        %v1542 = vunpack.c.l.b16 %v866
        %v1543 = vunpack.c.h.b16 %v866
        %v1544 = vunpack.c.l.b16 %v867
        %v1545 = vunpack.c.h.b16 %v867
        %v1546 = vunpack.c.l.b16 %v868
        %v1547 = vunpack.c.h.b16 %v868
        %v1548 = vunpack.c.l.b16 %v869
        %v1549 = vunpack.c.h.b16 %v869
        %v1550 = vunpack.c.l.b16 %v870
        %v1551 = vunpack.c.h.b16 %v870
        %v1552 = vunpack.c.l.b16 %v871
        %v1553 = vunpack.c.h.b16 %v871
        %v1554 = vunpack.c.l.b16 %v872
        %v1555 = vunpack.c.h.b16 %v872
        %v1556 = vunpack.c.l.b16 %v873
        %v1557 = vunpack.c.h.b16 %v873
        %v1558 = vunpack.c.l.b16 %v874
        %v1559 = vunpack.c.h.b16 %v874
        %v1560 = vunpack.c.l.b16 %v875
        %v1561 = vunpack.c.h.b16 %v875
        %v1562 = vunpack.c.l.b16 %v876
        %v1563 = vunpack.c.h.b16 %v876
        %v1564 = vunpack.c.l.b16 %v877
        %v1565 = vunpack.c.h.b16 %v877
        %v1566 = vunpack.c.l.b16 %v878
        %v1567 = vunpack.c.h.b16 %v878
        %v1568 = vunpack.c.l.b16 %v879
        %v1569 = vunpack.c.h.b16 %v879
        %v1570 = vunpack.c.l.b16 %v880
        %v1571 = vunpack.c.h.b16 %v880
        %v1572 = vunpack.c.l.b16 %v881
        %v1573 = vunpack.c.h.b16 %v881
        %v1574 = vunpack.c.l.b16 %v882
        %v1575 = vunpack.c.h.b16 %v882
        %v1576 = vunpack.c.l.b16 %v883
        %v1577 = vunpack.c.h.b16 %v883
        %v1578 = vunpack.c.l.b16 %v884
        %v1579 = vunpack.c.h.b16 %v884
        %v1580 = vunpack.c.l.b16 %v885
        %v1581 = vunpack.c.h.b16 %v885
        %v1582 = vunpack.c.l.b16 %v886
        %v1583 = vunpack.c.h.b16 %v886
        %v1584 = vunpack.c.l.b16 %v887
        %v1585 = vunpack.c.h.b16 %v887
        %v1586 = vunpack.c.l.b16 %v888
        %v1587 = vunpack.c.h.b16 %v888
        %v1588 = vunpack.c.l.b16 %v889
        %v1589 = vunpack.c.h.b16 %v889
        %v1590 = vunpack.c.l.b16 %v890
        %v1591 = vunpack.c.h.b16 %v890
        %v1592 = vunpack.c.l.b16 %v891
        %v1593 = vunpack.c.h.b16 %v891
        %v1594 = vunpack.c.l.b16 %v892
        %v1595 = vunpack.c.h.b16 %v892
        %v1596 = vunpack.c.l.b16 %v893
        %v1597 = vunpack.c.h.b16 %v893
        %v1598 = vunpack.c.l.b16 %v894
        %v1599 = vunpack.c.h.b16 %v894
        %v1600 = vunpack.c.l.b16 %v895
        %v1601 = vunpack.c.h.b16 %v895
        %v1602 = vunpack.c.l.b16 %v896
        %v1603 = vunpack.c.h.b16 %v896
        %v1604 = vpack.c.b16 %v1160, %v1156
        %v1605 = vpack.c.b16 %v1161, %v1157
        %v1606 = vpack.c.b16 %v1162, %v1158
        %v1607 = vpack.c.b16 %v1163, %v1159
        %v1608 = vpack.c.b16 %v1168, %v1164
        %v1609 = vpack.c.b16 %v1169, %v1165
        %v1610 = vpack.c.b16 %v1170, %v1166
        %v1611 = vpack.c.b16 %v1171, %v1167
        %v1612 = vpack.c.b16 %v1176, %v1172
        %v1613 = vpack.c.b16 %v1177, %v1173
        %v1614 = vpack.c.b16 %v1178, %v1174
        %v1615 = vpack.c.b16 %v1179, %v1175
        %v1616 = vpack.c.b16 %v1184, %v1180
        %v1617 = vpack.c.b16 %v1185, %v1181
        %v1618 = vpack.c.b16 %v1186, %v1182
        %v1619 = vpack.c.b16 %v1187, %v1183
        %v1620 = vpack.c.b16 %v1192, %v1188
        %v1621 = vpack.c.b16 %v1193, %v1189
        %v1622 = vpack.c.b16 %v1194, %v1190
        %v1623 = vpack.c.b16 %v1195, %v1191
        %v1624 = vpack.c.b16 %v1200, %v1196
        %v1625 = vpack.c.b16 %v1201, %v1197
        %v1626 = vpack.c.b16 %v1202, %v1198
        %v1627 = vpack.c.b16 %v1203, %v1199
        %v1628 = vpack.c.b16 %v1208, %v1204
        %v1629 = vpack.c.b16 %v1209, %v1205
        %v1630 = vpack.c.b16 %v1210, %v1206
        %v1631 = vpack.c.b16 %v1211, %v1207
        %v1632 = vpack.c.b16 %v1216, %v1212
        %v1633 = vpack.c.b16 %v1217, %v1213
        %v1634 = vpack.c.b16 %v1218, %v1214
        %v1635 = vpack.c.b16 %v1219, %v1215
        %v1636 = vpack.c.b16 %v1224, %v1220
        %v1637 = vpack.c.b16 %v1225, %v1221
        %v1638 = vpack.c.b16 %v1226, %v1222
        %v1639 = vpack.c.b16 %v1227, %v1223
        %v1640 = vpack.c.b16 %v1232, %v1228
        %v1641 = vpack.c.b16 %v1233, %v1229
        %v1642 = vpack.c.b16 %v1234, %v1230
        %v1643 = vpack.c.b16 %v1235, %v1231
        %v1644 = vpack.c.b16 %v1240, %v1236
        %v1645 = vpack.c.b16 %v1241, %v1237
        %v1646 = vpack.c.b16 %v1242, %v1238
        %v1647 = vpack.c.b16 %v1243, %v1239
        %v1648 = vpack.c.b16 %v1248, %v1244
        %v1649 = vpack.c.b16 %v1249, %v1245
        %v1650 = vpack.c.b16 %v1250, %v1246
        %v1651 = vpack.c.b16 %v1251, %v1247
        %v1652 = vpack.c.b16 %v1256, %v1252
        %v1653 = vpack.c.b16 %v1257, %v1253
        %v1654 = vpack.c.b16 %v1258, %v1254
        %v1655 = vpack.c.b16 %v1259, %v1255
        %v1656 = vpack.c.b16 %v1264, %v1260
        %v1657 = vpack.c.b16 %v1265, %v1261
        %v1658 = vpack.c.b16 %v1266, %v1262
        %v1659 = vpack.c.b16 %v1267, %v1263
        %v1660 = vpack.c.b16 %v1272, %v1268
        %v1661 = vpack.c.b16 %v1273, %v1269
        %v1662 = vpack.c.b16 %v1274, %v1270
        %v1663 = vpack.c.b16 %v1275, %v1271
        %v1664 = vpack.c.b16 %v1280, %v1276
        %v1665 = vpack.c.b16 %v1281, %v1277
        %v1666 = vpack.c.b16 %v1282, %v1278
        %v1667 = vpack.c.b16 %v1283, %v1279
        %v1668 = vpack.c.b16 %v1288, %v1284
        %v1669 = vpack.c.b16 %v1289, %v1285
        %v1670 = vpack.c.b16 %v1290, %v1286
        %v1671 = vpack.c.b16 %v1291, %v1287
        %v1672 = vpack.c.b16 %v1296, %v1292
        %v1673 = vpack.c.b16 %v1297, %v1293
        %v1674 = vpack.c.b16 %v1298, %v1294
        %v1675 = vpack.c.b16 %v1299, %v1295
        %v1676 = vpack.c.b16 %v1304, %v1300
        %v1677 = vpack.c.b16 %v1305, %v1301
        %v1678 = vpack.c.b16 %v1306, %v1302
        %v1679 = vpack.c.b16 %v1307, %v1303
        %v1680 = vpack.c.b16 %v1312, %v1308
        %v1681 = vpack.c.b16 %v1313, %v1309
        %v1682 = vpack.c.b16 %v1314, %v1310
        %v1683 = vpack.c.b16 %v1315, %v1311
        %v1684 = vpack.c.b16 %v1320, %v1316
        %v1685 = vpack.c.b16 %v1321, %v1317
        %v1686 = vpack.c.b16 %v1322, %v1318
        %v1687 = vpack.c.b16 %v1323, %v1319
        %v1688 = vpack.c.b16 %v1328, %v1324
        %v1689 = vpack.c.b16 %v1329, %v1325
        %v1690 = vpack.c.b16 %v1330, %v1326
        %v1691 = vpack.c.b16 %v1331, %v1327
        %v1692 = vpack.c.b16 %v1336, %v1332
        %v1693 = vpack.c.b16 %v1337, %v1333
        %v1694 = vpack.c.b16 %v1338, %v1334
        %v1695 = vpack.c.b16 %v1339, %v1335
        %v1696 = vpack.c.b16 %v1344, %v1340
        %v1697 = vpack.c.b16 %v1345, %v1341
        %v1698 = vpack.c.b16 %v1346, %v1342
        %v1699 = vpack.c.b16 %v1347, %v1343
        %v1700 = vpack.c.b16 %v1352, %v1348
        %v1701 = vpack.c.b16 %v1353, %v1349
        %v1702 = vpack.c.b16 %v1354, %v1350
        %v1703 = vpack.c.b16 %v1355, %v1351
        %v1704 = vpack.c.b16 %v1360, %v1356
        %v1705 = vpack.c.b16 %v1361, %v1357
        %v1706 = vpack.c.b16 %v1362, %v1358
        %v1707 = vpack.c.b16 %v1363, %v1359
        %v1708 = vpack.c.b16 %v1368, %v1364
        %v1709 = vpack.c.b16 %v1369, %v1365
        %v1710 = vpack.c.b16 %v1370, %v1366
        %v1711 = vpack.c.b16 %v1371, %v1367
        %v1712 = vpack.c.b16 %v1376, %v1372
        %v1713 = vpack.c.b16 %v1377, %v1373
        %v1714 = vpack.c.b16 %v1378, %v1374
        %v1715 = vpack.c.b16 %v1379, %v1375
        %v1716 = vpack.c.b16 %v1384, %v1380
        %v1717 = vpack.c.b16 %v1385, %v1381
        %v1718 = vpack.c.b16 %v1386, %v1382
        %v1719 = vpack.c.b16 %v1387, %v1383
        %v1720 = vpack.c.b16 %v1392, %v1388
        %v1721 = vpack.c.b16 %v1393, %v1389
        %v1722 = vpack.c.b16 %v1394, %v1390
        %v1723 = vpack.c.b16 %v1395, %v1391
        %v1724 = vpack.c.b16 %v1400, %v1396
        %v1725 = vpack.c.b16 %v1401, %v1397
        %v1726 = vpack.c.b16 %v1402, %v1398
        %v1727 = vpack.c.b16 %v1403, %v1399
        %v1728 = vpack.c.b16 %v1408, %v1404
        %v1729 = vpack.c.b16 %v1409, %v1405
        %v1730 = vpack.c.b16 %v1410, %v1406
        %v1731 = vpack.c.b16 %v1411, %v1407
        %v1732 = vpack.c.b16 %v1416, %v1412
        %v1733 = vpack.c.b16 %v1417, %v1413
        %v1734 = vpack.c.b16 %v1418, %v1414
        %v1735 = vpack.c.b16 %v1419, %v1415
        %v1736 = vpack.c.b16 %v1424, %v1420
        %v1737 = vpack.c.b16 %v1425, %v1421
        %v1738 = vpack.c.b16 %v1426, %v1422
        %v1739 = vpack.c.b16 %v1427, %v1423
        %v1740 = vpack.c.b16 %v1432, %v1428
        %v1741 = vpack.c.b16 %v1433, %v1429
        %v1742 = vpack.c.b16 %v1434, %v1430
        %v1743 = vpack.c.b16 %v1435, %v1431
        %v1744 = vpack.c.b16 %v1440, %v1436
        %v1745 = vpack.c.b16 %v1441, %v1437
        %v1746 = vpack.c.b16 %v1442, %v1438
        %v1747 = vpack.c.b16 %v1443, %v1439
        %v1748 = vpack.c.b16 %v1448, %v1444
        %v1749 = vpack.c.b16 %v1449, %v1445
        %v1750 = vpack.c.b16 %v1450, %v1446
        %v1751 = vpack.c.b16 %v1451, %v1447
        %v1752 = vpack.c.b16 %v1456, %v1452
        %v1753 = vpack.c.b16 %v1457, %v1453
        %v1754 = vpack.c.b16 %v1458, %v1454
        %v1755 = vpack.c.b16 %v1459, %v1455
        %v1756 = vpack.c.b16 %v1464, %v1460
        %v1757 = vpack.c.b16 %v1465, %v1461
        %v1758 = vpack.c.b16 %v1466, %v1462
        %v1759 = vpack.c.b16 %v1467, %v1463
        %v1760 = vpack.c.b16 %v1472, %v1468
        %v1761 = vpack.c.b16 %v1473, %v1469
        %v1762 = vpack.c.b16 %v1474, %v1470
        %v1763 = vpack.c.b16 %v1475, %v1471
        %v1764 = vpack.c.b16 %v1480, %v1476
        %v1765 = vpack.c.b16 %v1481, %v1477
        %v1766 = vpack.c.b16 %v1482, %v1478
        %v1767 = vpack.c.b16 %v1483, %v1479
        %v1768 = vpack.c.b16 %v1488, %v1484
        %v1769 = vpack.c.b16 %v1489, %v1485
        %v1770 = vpack.c.b16 %v1490, %v1486
        %v1771 = vpack.c.b16 %v1491, %v1487
        %v1772 = vpack.c.b16 %v1496, %v1492
        %v1773 = vpack.c.b16 %v1497, %v1493
        %v1774 = vpack.c.b16 %v1498, %v1494
        %v1775 = vpack.c.b16 %v1499, %v1495
        %v1776 = vpack.c.b16 %v1504, %v1500
        %v1777 = vpack.c.b16 %v1505, %v1501
        %v1778 = vpack.c.b16 %v1506, %v1502
        %v1779 = vpack.c.b16 %v1507, %v1503
        %v1780 = vpack.c.b16 %v1512, %v1508
        %v1781 = vpack.c.b16 %v1513, %v1509
        %v1782 = vpack.c.b16 %v1514, %v1510
        %v1783 = vpack.c.b16 %v1515, %v1511
        %v1784 = vpack.c.b16 %v1520, %v1516
        %v1785 = vpack.c.b16 %v1521, %v1517
        %v1786 = vpack.c.b16 %v1522, %v1518
        %v1787 = vpack.c.b16 %v1523, %v1519
        %v1788 = vpack.c.b16 %v1528, %v1524
        %v1789 = vpack.c.b16 %v1529, %v1525
        %v1790 = vpack.c.b16 %v1530, %v1526
        %v1791 = vpack.c.b16 %v1531, %v1527
        %v1792 = vpack.c.b16 %v1536, %v1532
        %v1793 = vpack.c.b16 %v1537, %v1533
        %v1794 = vpack.c.b16 %v1538, %v1534
        %v1795 = vpack.c.b16 %v1539, %v1535
        %v1796 = vpack.c.b16 %v1544, %v1540
        %v1797 = vpack.c.b16 %v1545, %v1541
        %v1798 = vpack.c.b16 %v1546, %v1542
        %v1799 = vpack.c.b16 %v1547, %v1543
        %v1800 = vpack.c.b16 %v1552, %v1548
        %v1801 = vpack.c.b16 %v1553, %v1549
        %v1802 = vpack.c.b16 %v1554, %v1550
        %v1803 = vpack.c.b16 %v1555, %v1551
        %v1804 = vpack.c.b16 %v1560, %v1556
        %v1805 = vpack.c.b16 %v1561, %v1557
        %v1806 = vpack.c.b16 %v1562, %v1558
        %v1807 = vpack.c.b16 %v1563, %v1559
        %v1808 = vpack.c.b16 %v1568, %v1564
        %v1809 = vpack.c.b16 %v1569, %v1565
        %v1810 = vpack.c.b16 %v1570, %v1566
        %v1811 = vpack.c.b16 %v1571, %v1567
        %v1812 = vpack.c.b16 %v1576, %v1572
        %v1813 = vpack.c.b16 %v1577, %v1573
        %v1814 = vpack.c.b16 %v1578, %v1574
        %v1815 = vpack.c.b16 %v1579, %v1575
        %v1816 = vpack.c.b16 %v1584, %v1580
        %v1817 = vpack.c.b16 %v1585, %v1581
        %v1818 = vpack.c.b16 %v1586, %v1582
        %v1819 = vpack.c.b16 %v1587, %v1583
        %v1820 = vpack.c.b16 %v1592, %v1588
        %v1821 = vpack.c.b16 %v1593, %v1589
        %v1822 = vpack.c.b16 %v1594, %v1590
        %v1823 = vpack.c.b16 %v1595, %v1591
        %v1824 = vpack.c.b16 %v1600, %v1596
        %v1825 = vpack.c.b16 %v1601, %v1597
        %v1826 = vpack.c.b16 %v1602, %v1598
        %v1827 = vpack.c.b16 %v1603, %v1599
        %2052 = vmatpush.bf16.msra.mxu0 %v1632
        %2053 = vmatpush.bf16.msra.mxu0 %v1628
        %2054 = vmatpush.bf16.msra.mxu0 %v1624
        %2055 = vmatpush.bf16.msra.mxu0 %v1620
        %2056 = vmatpush.bf16.msra.mxu0 %v1616
        %2057 = vmatpush.bf16.msra.mxu0 %v1612
        %2058 = vmatpush.bf16.msra.mxu0 %v1608
        %2059 = vmatpush.bf16.msra.mxu0 %v1604
        %2060 = vmatmul.bf16.gmra.mxu0 %v918
        %v2061 = vpop.f32.mrf.mxu0
        %v2062 = vadd.f32 %v899, %v2061
        %v2063 = vpop.f32.mrf.mxu0
        %2064 = vdwg.mxu0
        %2065 = vmatpush.bf16.msra.mxu0 %v1664
        %2066 = vmatpush.bf16.msra.mxu0 %v1660
        %2067 = vmatpush.bf16.msra.mxu0 %v1656
        %2068 = vmatpush.bf16.msra.mxu0 %v1652
        %2069 = vmatpush.bf16.msra.mxu0 %v1648
        %2070 = vmatpush.bf16.msra.mxu0 %v1644
        %2071 = vmatpush.bf16.msra.mxu0 %v1640
        %2072 = vmatpush.bf16.msra.mxu0 %v1636
        %2073 = vmatmul.bf16.gmra.mxu0 %v919
        %v2074 = vpop.f32.mrf.mxu0
        %v2075 = vadd.f32 %v2062, %v2074
        %v2076 = vpop.f32.mrf.mxu0
        %2077 = vdwg.mxu0
        %2078 = vmatpush.bf16.msra.mxu0 %v1696
        %2079 = vmatpush.bf16.msra.mxu0 %v1692
        %2080 = vmatpush.bf16.msra.mxu0 %v1688
        %2081 = vmatpush.bf16.msra.mxu0 %v1684
        %2082 = vmatpush.bf16.msra.mxu0 %v1680
        %2083 = vmatpush.bf16.msra.mxu0 %v1676
        %2084 = vmatpush.bf16.msra.mxu0 %v1672
        %2085 = vmatpush.bf16.msra.mxu0 %v1668
        %2086 = vmatmul.bf16.gmra.mxu0 %v920
        %v2087 = vpop.f32.mrf.mxu0
        %v2088 = vadd.f32 %v2075, %v2087
        %v2089 = vpop.f32.mrf.mxu0
        %2090 = vdwg.mxu0
        %2091 = vmatpush.bf16.msra.mxu0 %v1728
        %2092 = vmatpush.bf16.msra.mxu0 %v1724
        %2093 = vmatpush.bf16.msra.mxu0 %v1720
        %2094 = vmatpush.bf16.msra.mxu0 %v1716
        %2095 = vmatpush.bf16.msra.mxu0 %v1712
        %2096 = vmatpush.bf16.msra.mxu0 %v1708
        %2097 = vmatpush.bf16.msra.mxu0 %v1704
        %2098 = vmatpush.bf16.msra.mxu0 %v1700
        %2099 = vmatmul.bf16.gmra.mxu0 %v921
        %v2100 = vpop.f32.mrf.mxu0
        %v2101 = vadd.f32 %v2088, %v2100
        %v2102 = vpop.f32.mrf.mxu0
        %2103 = vdwg.mxu0
        %2104 = vmatpush.bf16.msra.mxu0 %v1760
        %2105 = vmatpush.bf16.msra.mxu0 %v1756
        %2106 = vmatpush.bf16.msra.mxu0 %v1752
        %2107 = vmatpush.bf16.msra.mxu0 %v1748
        %2108 = vmatpush.bf16.msra.mxu0 %v1744
        %2109 = vmatpush.bf16.msra.mxu0 %v1740
        %2110 = vmatpush.bf16.msra.mxu0 %v1736
        %2111 = vmatpush.bf16.msra.mxu0 %v1732
        %2112 = vmatmul.bf16.gmra.mxu0 %v922
        %v2113 = vpop.f32.mrf.mxu0
        %v2114 = vadd.f32 %v2101, %v2113
        %v2115 = vpop.f32.mrf.mxu0
        %2116 = vdwg.mxu0
        %2117 = vmatpush.bf16.msra.mxu0 %v1792
        %2118 = vmatpush.bf16.msra.mxu0 %v1788
        %2119 = vmatpush.bf16.msra.mxu0 %v1784
        %2120 = vmatpush.bf16.msra.mxu0 %v1780
        %2121 = vmatpush.bf16.msra.mxu0 %v1776
        %2122 = vmatpush.bf16.msra.mxu0 %v1772
        %2123 = vmatpush.bf16.msra.mxu0 %v1768
        %2124 = vmatpush.bf16.msra.mxu0 %v1764
        %2125 = vmatmul.bf16.gmra.mxu0 %v923
        %v2126 = vpop.f32.mrf.mxu0
        %v2127 = vadd.f32 %v2114, %v2126
        %v2128 = vpop.f32.mrf.mxu0
        %2129 = vdwg.mxu0
        %2130 = vmatpush.bf16.msra.mxu0 %v1824
        %2131 = vmatpush.bf16.msra.mxu0 %v1820
        %2132 = vmatpush.bf16.msra.mxu0 %v1816
        %2133 = vmatpush.bf16.msra.mxu0 %v1812
        %2134 = vmatpush.bf16.msra.mxu0 %v1808
        %2135 = vmatpush.bf16.msra.mxu0 %v1804
        %2136 = vmatpush.bf16.msra.mxu0 %v1800
        %2137 = vmatpush.bf16.msra.mxu0 %v1796
        %2138 = vmatmul.bf16.gmra.mxu0 %v924
        %v2139 = vpop.f32.mrf.mxu0
        %v2140 = vadd.f32 %v2127, %v2139
        %v2141 = vpop.f32.mrf.mxu0
        %2142 = vdwg.mxu0
        %2143 = vmatpush.bf16.msra.mxu0 %v1633
        %2144 = vmatpush.bf16.msra.mxu0 %v1629
        %2145 = vmatpush.bf16.msra.mxu0 %v1625
        %2146 = vmatpush.bf16.msra.mxu0 %v1621
        %2147 = vmatpush.bf16.msra.mxu0 %v1617
        %2148 = vmatpush.bf16.msra.mxu0 %v1613
        %2149 = vmatpush.bf16.msra.mxu0 %v1609
        %2150 = vmatpush.bf16.msra.mxu0 %v1605
        %2151 = vmatmul.bf16.gmra.mxu0 %v918
        %v2152 = vpop.f32.mrf.mxu0
        %v2153 = vadd.f32 %v900, %v2152
        %v2154 = vpop.f32.mrf.mxu0
        %2155 = vdwg.mxu0
        %2156 = vmatpush.bf16.msra.mxu0 %v1665
        %2157 = vmatpush.bf16.msra.mxu0 %v1661
        %2158 = vmatpush.bf16.msra.mxu0 %v1657
        %2159 = vmatpush.bf16.msra.mxu0 %v1653
        %2160 = vmatpush.bf16.msra.mxu0 %v1649
        %2161 = vmatpush.bf16.msra.mxu0 %v1645
        %2162 = vmatpush.bf16.msra.mxu0 %v1641
        %2163 = vmatpush.bf16.msra.mxu0 %v1637
        %2164 = vmatmul.bf16.gmra.mxu0 %v919
        %v2165 = vpop.f32.mrf.mxu0
        %v2166 = vadd.f32 %v2153, %v2165
        %v2167 = vpop.f32.mrf.mxu0
        %2168 = vdwg.mxu0
        %2169 = vmatpush.bf16.msra.mxu0 %v1697
        %2170 = vmatpush.bf16.msra.mxu0 %v1693
        %2171 = vmatpush.bf16.msra.mxu0 %v1689
        %2172 = vmatpush.bf16.msra.mxu0 %v1685
        %2173 = vmatpush.bf16.msra.mxu0 %v1681
        %2174 = vmatpush.bf16.msra.mxu0 %v1677
        %2175 = vmatpush.bf16.msra.mxu0 %v1673
        %2176 = vmatpush.bf16.msra.mxu0 %v1669
        %2177 = vmatmul.bf16.gmra.mxu0 %v920
        %v2178 = vpop.f32.mrf.mxu0
        %v2179 = vadd.f32 %v2166, %v2178
        %v2180 = vpop.f32.mrf.mxu0
        %2181 = vdwg.mxu0
        %2182 = vmatpush.bf16.msra.mxu0 %v1729
        %2183 = vmatpush.bf16.msra.mxu0 %v1725
        %2184 = vmatpush.bf16.msra.mxu0 %v1721
        %2185 = vmatpush.bf16.msra.mxu0 %v1717
        %2186 = vmatpush.bf16.msra.mxu0 %v1713
        %2187 = vmatpush.bf16.msra.mxu0 %v1709
        %2188 = vmatpush.bf16.msra.mxu0 %v1705
        %2189 = vmatpush.bf16.msra.mxu0 %v1701
        %2190 = vmatmul.bf16.gmra.mxu0 %v921
        %v2191 = vpop.f32.mrf.mxu0
        %v2192 = vadd.f32 %v2179, %v2191
        %v2193 = vpop.f32.mrf.mxu0
        %2194 = vdwg.mxu0
        %2195 = vmatpush.bf16.msra.mxu0 %v1761
        %2196 = vmatpush.bf16.msra.mxu0 %v1757
        %2197 = vmatpush.bf16.msra.mxu0 %v1753
        %2198 = vmatpush.bf16.msra.mxu0 %v1749
        %2199 = vmatpush.bf16.msra.mxu0 %v1745
        %2200 = vmatpush.bf16.msra.mxu0 %v1741
        %2201 = vmatpush.bf16.msra.mxu0 %v1737
        %2202 = vmatpush.bf16.msra.mxu0 %v1733
        %2203 = vmatmul.bf16.gmra.mxu0 %v922
        %v2204 = vpop.f32.mrf.mxu0
        %v2205 = vadd.f32 %v2192, %v2204
        %v2206 = vpop.f32.mrf.mxu0
        %2207 = vdwg.mxu0
        %2208 = vmatpush.bf16.msra.mxu0 %v1793
        %2209 = vmatpush.bf16.msra.mxu0 %v1789
        %2210 = vmatpush.bf16.msra.mxu0 %v1785
        %2211 = vmatpush.bf16.msra.mxu0 %v1781
        %2212 = vmatpush.bf16.msra.mxu0 %v1777
        %2213 = vmatpush.bf16.msra.mxu0 %v1773
        %2214 = vmatpush.bf16.msra.mxu0 %v1769
        %2215 = vmatpush.bf16.msra.mxu0 %v1765
        %2216 = vmatmul.bf16.gmra.mxu0 %v923
        %v2217 = vpop.f32.mrf.mxu0
        %v2218 = vadd.f32 %v2205, %v2217
        %v2219 = vpop.f32.mrf.mxu0
        %2220 = vdwg.mxu0
        %2221 = vmatpush.bf16.msra.mxu0 %v1825
        %2222 = vmatpush.bf16.msra.mxu0 %v1821
        %2223 = vmatpush.bf16.msra.mxu0 %v1817
        %2224 = vmatpush.bf16.msra.mxu0 %v1813
        %2225 = vmatpush.bf16.msra.mxu0 %v1809
        %2226 = vmatpush.bf16.msra.mxu0 %v1805
        %2227 = vmatpush.bf16.msra.mxu0 %v1801
        %2228 = vmatpush.bf16.msra.mxu0 %v1797
        %2229 = vmatmul.bf16.gmra.mxu0 %v924
        %v2230 = vpop.f32.mrf.mxu0
        %v2231 = vadd.f32 %v2218, %v2230
        %v2232 = vpop.f32.mrf.mxu0
        %2233 = vdwg.mxu0
        %2234 = vmatpush.bf16.msra.mxu0 %v1634
        %2235 = vmatpush.bf16.msra.mxu0 %v1630
        %2236 = vmatpush.bf16.msra.mxu0 %v1626
        %2237 = vmatpush.bf16.msra.mxu0 %v1622
        %2238 = vmatpush.bf16.msra.mxu0 %v1618
        %2239 = vmatpush.bf16.msra.mxu0 %v1614
        %2240 = vmatpush.bf16.msra.mxu0 %v1610
        %2241 = vmatpush.bf16.msra.mxu0 %v1606
        %2242 = vmatmul.bf16.gmra.mxu0 %v918
        %v2243 = vpop.f32.mrf.mxu0
        %v2244 = vadd.f32 %v901, %v2243
        %v2245 = vpop.f32.mrf.mxu0
        %2246 = vdwg.mxu0
        %2247 = vmatpush.bf16.msra.mxu0 %v1666
        %2248 = vmatpush.bf16.msra.mxu0 %v1662
        %2249 = vmatpush.bf16.msra.mxu0 %v1658
        %2250 = vmatpush.bf16.msra.mxu0 %v1654
        %2251 = vmatpush.bf16.msra.mxu0 %v1650
        %2252 = vmatpush.bf16.msra.mxu0 %v1646
        %2253 = vmatpush.bf16.msra.mxu0 %v1642
        %2254 = vmatpush.bf16.msra.mxu0 %v1638
        %2255 = vmatmul.bf16.gmra.mxu0 %v919
        %v2256 = vpop.f32.mrf.mxu0
        %v2257 = vadd.f32 %v2244, %v2256
        %v2258 = vpop.f32.mrf.mxu0
        %2259 = vdwg.mxu0
        %2260 = vmatpush.bf16.msra.mxu0 %v1698
        %2261 = vmatpush.bf16.msra.mxu0 %v1694
        %2262 = vmatpush.bf16.msra.mxu0 %v1690
        %2263 = vmatpush.bf16.msra.mxu0 %v1686
        %2264 = vmatpush.bf16.msra.mxu0 %v1682
        %2265 = vmatpush.bf16.msra.mxu0 %v1678
        %2266 = vmatpush.bf16.msra.mxu0 %v1674
        %2267 = vmatpush.bf16.msra.mxu0 %v1670
        %2268 = vmatmul.bf16.gmra.mxu0 %v920
        %v2269 = vpop.f32.mrf.mxu0
        %v2270 = vadd.f32 %v2257, %v2269
        %v2271 = vpop.f32.mrf.mxu0
        %2272 = vdwg.mxu0
        %2273 = vmatpush.bf16.msra.mxu0 %v1730
        %2274 = vmatpush.bf16.msra.mxu0 %v1726
        %2275 = vmatpush.bf16.msra.mxu0 %v1722
        %2276 = vmatpush.bf16.msra.mxu0 %v1718
        %2277 = vmatpush.bf16.msra.mxu0 %v1714
        %2278 = vmatpush.bf16.msra.mxu0 %v1710
        %2279 = vmatpush.bf16.msra.mxu0 %v1706
        %2280 = vmatpush.bf16.msra.mxu0 %v1702
        %2281 = vmatmul.bf16.gmra.mxu0 %v921
        %v2282 = vpop.f32.mrf.mxu0
        %v2283 = vadd.f32 %v2270, %v2282
        %v2284 = vpop.f32.mrf.mxu0
        %2285 = vdwg.mxu0
        %2286 = vmatpush.bf16.msra.mxu0 %v1762
        %2287 = vmatpush.bf16.msra.mxu0 %v1758
        %2288 = vmatpush.bf16.msra.mxu0 %v1754
        %2289 = vmatpush.bf16.msra.mxu0 %v1750
        %2290 = vmatpush.bf16.msra.mxu0 %v1746
        %2291 = vmatpush.bf16.msra.mxu0 %v1742
        %2292 = vmatpush.bf16.msra.mxu0 %v1738
        %2293 = vmatpush.bf16.msra.mxu0 %v1734
        %2294 = vmatmul.bf16.gmra.mxu0 %v922
        %v2295 = vpop.f32.mrf.mxu0
        %v2296 = vadd.f32 %v2283, %v2295
        %v2297 = vpop.f32.mrf.mxu0
        %2298 = vdwg.mxu0
        %2299 = vmatpush.bf16.msra.mxu0 %v1794
        %2300 = vmatpush.bf16.msra.mxu0 %v1790
        %2301 = vmatpush.bf16.msra.mxu0 %v1786
        %2302 = vmatpush.bf16.msra.mxu0 %v1782
        %2303 = vmatpush.bf16.msra.mxu0 %v1778
        %2304 = vmatpush.bf16.msra.mxu0 %v1774
        %2305 = vmatpush.bf16.msra.mxu0 %v1770
        %2306 = vmatpush.bf16.msra.mxu0 %v1766
        %2307 = vmatmul.bf16.gmra.mxu0 %v923
        %v2308 = vpop.f32.mrf.mxu0
        %v2309 = vadd.f32 %v2296, %v2308
        %v2310 = vpop.f32.mrf.mxu0
        %2311 = vdwg.mxu0
        %2312 = vmatpush.bf16.msra.mxu0 %v1826
        %2313 = vmatpush.bf16.msra.mxu0 %v1822
        %2314 = vmatpush.bf16.msra.mxu0 %v1818
        %2315 = vmatpush.bf16.msra.mxu0 %v1814
        %2316 = vmatpush.bf16.msra.mxu0 %v1810
        %2317 = vmatpush.bf16.msra.mxu0 %v1806
        %2318 = vmatpush.bf16.msra.mxu0 %v1802
        %2319 = vmatpush.bf16.msra.mxu0 %v1798
        %2320 = vmatmul.bf16.gmra.mxu0 %v924
        %v2321 = vpop.f32.mrf.mxu0
        %v2322 = vadd.f32 %v2309, %v2321
        %v2323 = vpop.f32.mrf.mxu0
        %2324 = vdwg.mxu0
        %2325 = vmatpush.bf16.msra.mxu0 %v1635
        %2326 = vmatpush.bf16.msra.mxu0 %v1631
        %2327 = vmatpush.bf16.msra.mxu0 %v1627
        %2328 = vmatpush.bf16.msra.mxu0 %v1623
        %2329 = vmatpush.bf16.msra.mxu0 %v1619
        %2330 = vmatpush.bf16.msra.mxu0 %v1615
        %2331 = vmatpush.bf16.msra.mxu0 %v1611
        %2332 = vmatpush.bf16.msra.mxu0 %v1607
        %2333 = vmatmul.bf16.gmra.mxu0 %v918
        %v2334 = vpop.f32.mrf.mxu0
        %v2335 = vadd.f32 %v902, %v2334
        %v2336 = vpop.f32.mrf.mxu0
        %2337 = vdwg.mxu0
        %2338 = vmatpush.bf16.msra.mxu0 %v1667
        %2339 = vmatpush.bf16.msra.mxu0 %v1663
        %2340 = vmatpush.bf16.msra.mxu0 %v1659
        %2341 = vmatpush.bf16.msra.mxu0 %v1655
        %2342 = vmatpush.bf16.msra.mxu0 %v1651
        %2343 = vmatpush.bf16.msra.mxu0 %v1647
        %2344 = vmatpush.bf16.msra.mxu0 %v1643
        %2345 = vmatpush.bf16.msra.mxu0 %v1639
        %2346 = vmatmul.bf16.gmra.mxu0 %v919
        %v2347 = vpop.f32.mrf.mxu0
        %v2348 = vadd.f32 %v2335, %v2347
        %v2349 = vpop.f32.mrf.mxu0
        %2350 = vdwg.mxu0
        %2351 = vmatpush.bf16.msra.mxu0 %v1699
        %2352 = vmatpush.bf16.msra.mxu0 %v1695
        %2353 = vmatpush.bf16.msra.mxu0 %v1691
        %2354 = vmatpush.bf16.msra.mxu0 %v1687
        %2355 = vmatpush.bf16.msra.mxu0 %v1683
        %2356 = vmatpush.bf16.msra.mxu0 %v1679
        %2357 = vmatpush.bf16.msra.mxu0 %v1675
        %2358 = vmatpush.bf16.msra.mxu0 %v1671
        %2359 = vmatmul.bf16.gmra.mxu0 %v920
        %v2360 = vpop.f32.mrf.mxu0
        %v2361 = vadd.f32 %v2348, %v2360
        %v2362 = vpop.f32.mrf.mxu0
        %2363 = vdwg.mxu0
        %2364 = vmatpush.bf16.msra.mxu0 %v1731
        %2365 = vmatpush.bf16.msra.mxu0 %v1727
        %2366 = vmatpush.bf16.msra.mxu0 %v1723
        %2367 = vmatpush.bf16.msra.mxu0 %v1719
        %2368 = vmatpush.bf16.msra.mxu0 %v1715
        %2369 = vmatpush.bf16.msra.mxu0 %v1711
        %2370 = vmatpush.bf16.msra.mxu0 %v1707
        %2371 = vmatpush.bf16.msra.mxu0 %v1703
        %2372 = vmatmul.bf16.gmra.mxu0 %v921
        %v2373 = vpop.f32.mrf.mxu0
        %v2374 = vadd.f32 %v2361, %v2373
        %v2375 = vpop.f32.mrf.mxu0
        %2376 = vdwg.mxu0
        %2377 = vmatpush.bf16.msra.mxu0 %v1763
        %2378 = vmatpush.bf16.msra.mxu0 %v1759
        %2379 = vmatpush.bf16.msra.mxu0 %v1755
        %2380 = vmatpush.bf16.msra.mxu0 %v1751
        %2381 = vmatpush.bf16.msra.mxu0 %v1747
        %2382 = vmatpush.bf16.msra.mxu0 %v1743
        %2383 = vmatpush.bf16.msra.mxu0 %v1739
        %2384 = vmatpush.bf16.msra.mxu0 %v1735
        %2385 = vmatmul.bf16.gmra.mxu0 %v922
        %v2386 = vpop.f32.mrf.mxu0
        %v2387 = vadd.f32 %v2374, %v2386
        %v2388 = vpop.f32.mrf.mxu0
        %2389 = vdwg.mxu0
        %2390 = vmatpush.bf16.msra.mxu0 %v1795
        %2391 = vmatpush.bf16.msra.mxu0 %v1791
        %2392 = vmatpush.bf16.msra.mxu0 %v1787
        %2393 = vmatpush.bf16.msra.mxu0 %v1783
        %2394 = vmatpush.bf16.msra.mxu0 %v1779
        %2395 = vmatpush.bf16.msra.mxu0 %v1775
        %2396 = vmatpush.bf16.msra.mxu0 %v1771
        %2397 = vmatpush.bf16.msra.mxu0 %v1767
        %2398 = vmatmul.bf16.gmra.mxu0 %v923
        %v2399 = vpop.f32.mrf.mxu0
        %v2400 = vadd.f32 %v2387, %v2399
        %v2401 = vpop.f32.mrf.mxu0
        %2402 = vdwg.mxu0
        %2403 = vmatpush.bf16.msra.mxu0 %v1827
        %2404 = vmatpush.bf16.msra.mxu0 %v1823
        %2405 = vmatpush.bf16.msra.mxu0 %v1819
        %2406 = vmatpush.bf16.msra.mxu0 %v1815
        %2407 = vmatpush.bf16.msra.mxu0 %v1811
        %2408 = vmatpush.bf16.msra.mxu0 %v1807
        %2409 = vmatpush.bf16.msra.mxu0 %v1803
        %2410 = vmatpush.bf16.msra.mxu0 %v1799
        %2411 = vmatmul.bf16.gmra.mxu0 %v924
        %v2412 = vpop.f32.mrf.mxu0
        %v2413 = vadd.f32 %v2400, %v2412
        %v2414 = vpop.f32.mrf.mxu0
        %2415 = vdwg.mxu0
        %v2416 = vmax.f32 %v2140, 0.0
        %v2417 = vmax.f32 %v2231, 0.0
        %v2418 = vmax.f32 %v2322, 0.0
        %v2419 = vmax.f32 %v2413, 0.0
        %v2420 = vpack.c.bf16 %v2416, %v2416
        %v2421 = vpack.c.bf16 %v2417, %v2417
        %v2422 = vpack.c.bf16 %v2418, %v2418
        %v2423 = vpack.c.bf16 %v2419, %v2419
        %v2424 = vld [vmem:[#allocation4] sm:$0xff]
        %v2425 = vld [vmem:[#allocation4 + $0x8] sm:$0xff]
        %v2426 = vld [vmem:[#allocation4 + $0x10] sm:$0xff]
        %v2427 = vld [vmem:[#allocation4 + $0x18] sm:$0xff]
        %v2428 = vld [vmem:[#allocation4 + $0x20] sm:$0xff]
        %v2429 = vld [vmem:[#allocation4 + $0x28] sm:$0xff]
        %v2430 = vld [vmem:[#allocation4 + $0x30] sm:$0xff]
        %v2431 = vld [vmem:[#allocation4 + $0x38] sm:$0xff]
        %v2432 = vld [vmem:[#allocation4 + $0x40] sm:$0xff]
        %v2433 = vld [vmem:[#allocation4 + $0x48] sm:$0xff]
        %v2434 = vld [vmem:[#allocation4 + $0x50] sm:$0xff]
        %v2435 = vld [vmem:[#allocation4 + $0x58] sm:$0xff]
        %v2436 = vld [vmem:[#allocation4 + $0x60] sm:$0xff]
        %v2437 = vld [vmem:[#allocation4 + $0x68] sm:$0xff]
        %v2438 = vld [vmem:[#allocation4 + $0x70] sm:$0xff]
        %v2439 = vld [vmem:[#allocation4 + $0x78] sm:$0xff]
        %v2440 = vld [vmem:[#allocation4 + $0x80] sm:$0xff]
        %v2441 = vld [vmem:[#allocation4 + $0x88] sm:$0xff]
        %v2442 = vld [vmem:[#allocation4 + $0x90] sm:$0xff]
        %v2443 = vld [vmem:[#allocation4 + $0x98] sm:$0xff]
        %v2444 = vld [vmem:[#allocation4 + $0xa0] sm:$0xff]
        %v2445 = vld [vmem:[#allocation4 + $0xa8] sm:$0xff]
        %v2446 = vld [vmem:[#allocation4 + $0xb0] sm:$0xff]
        %v2447 = vld [vmem:[#allocation4 + $0xb8] sm:$0xff]
        %v2448 = vld [vmem:[#allocation4 + $0xc0] sm:$0xff]
        %v2449 = vld [vmem:[#allocation4 + $0xc8] sm:$0xff]
        %v2450 = vld [vmem:[#allocation4 + $0xd0] sm:$0xff]
        %v2451 = vld [vmem:[#allocation4 + $0xd8] sm:$0xff]
        %v2452 = vld [vmem:[#allocation4 + $0xe0] sm:$0xff]
        %v2453 = vld [vmem:[#allocation4 + $0xe8] sm:$0xff]
        %v2454 = vld [vmem:[#allocation4 + $0xf0] sm:$0xff]
        %v2455 = vld [vmem:[#allocation4 + $0xf8] sm:$0xff]
        %v2456 = vld [vmem:[#allocation4 + $0x100] sm:$0xff]
        %v2457 = vld [vmem:[#allocation4 + $0x108] sm:$0xff]
        %v2458 = vld [vmem:[#allocation4 + $0x110] sm:$0xff]
        %v2459 = vld [vmem:[#allocation4 + $0x118] sm:$0xff]
        %v2460 = vld [vmem:[#allocation4 + $0x120] sm:$0xff]
        %v2461 = vld [vmem:[#allocation4 + $0x128] sm:$0xff]
        %v2462 = vld [vmem:[#allocation4 + $0x130] sm:$0xff]
        %v2463 = vld [vmem:[#allocation4 + $0x138] sm:$0xff]
        %v2464 = vld [vmem:[#allocation4 + $0x140] sm:$0xff]
        %v2465 = vld [vmem:[#allocation4 + $0x148] sm:$0xff]
        %v2466 = vld [vmem:[#allocation4 + $0x150] sm:$0xff]
        %v2467 = vld [vmem:[#allocation4 + $0x158] sm:$0xff]
        %v2468 = vld [vmem:[#allocation4 + $0x160] sm:$0xff]
        %v2469 = vld [vmem:[#allocation4 + $0x168] sm:$0xff]
        %v2470 = vld [vmem:[#allocation4 + $0x170] sm:$0xff]
        %v2471 = vld [vmem:[#allocation4 + $0x178] sm:$0xff]
        %v2472 = vld [vmem:[#allocation4 + $0x180] sm:$0xff]
        %v2473 = vld [vmem:[#allocation4 + $0x188] sm:$0xff]
        %v2474 = vld [vmem:[#allocation4 + $0x190] sm:$0xff]
        %v2475 = vld [vmem:[#allocation4 + $0x198] sm:$0xff]
        %v2476 = vld [vmem:[#allocation4 + $0x1a0] sm:$0xff]
        %v2477 = vld [vmem:[#allocation4 + $0x1a8] sm:$0xff]
        %v2478 = vld [vmem:[#allocation4 + $0x1b0] sm:$0xff]
        %v2479 = vld [vmem:[#allocation4 + $0x1b8] sm:$0xff]
        %v2480 = vld [vmem:[#allocation4 + $0x1c0] sm:$0xff]
        %v2481 = vld [vmem:[#allocation4 + $0x1c8] sm:$0xff]
        %v2482 = vld [vmem:[#allocation4 + $0x1d0] sm:$0xff]
        %v2483 = vld [vmem:[#allocation4 + $0x1d8] sm:$0xff]
        %v2484 = vld [vmem:[#allocation4 + $0x1e0] sm:$0xff]
        %v2485 = vld [vmem:[#allocation4 + $0x1e8] sm:$0xff]
        %v2486 = vld [vmem:[#allocation4 + $0x1f0] sm:$0xff]
        %v2487 = vld [vmem:[#allocation4 + $0x1f8] sm:$0xff]
        %v2488 = vld [vmem:[#allocation4 + $0x200] sm:$0xff]
        %v2489 = vld [vmem:[#allocation4 + $0x208] sm:$0xff]
        %v2490 = vld [vmem:[#allocation4 + $0x210] sm:$0xff]
        %v2491 = vld [vmem:[#allocation4 + $0x218] sm:$0xff]
        %v2492 = vld [vmem:[#allocation4 + $0x220] sm:$0xff]
        %v2493 = vld [vmem:[#allocation4 + $0x228] sm:$0xff]
        %v2494 = vld [vmem:[#allocation4 + $0x230] sm:$0xff]
        %v2495 = vld [vmem:[#allocation4 + $0x238] sm:$0xff]
        %v2496 = vld [vmem:[#allocation4 + $0x240] sm:$0xff]
        %v2497 = vld [vmem:[#allocation4 + $0x248] sm:$0xff]
        %v2498 = vld [vmem:[#allocation4 + $0x250] sm:$0xff]
        %v2499 = vld [vmem:[#allocation4 + $0x258] sm:$0xff]
        %v2500 = vld [vmem:[#allocation4 + $0x260] sm:$0xff]
        %v2501 = vld [vmem:[#allocation4 + $0x268] sm:$0xff]
        %v2502 = vld [vmem:[#allocation4 + $0x270] sm:$0xff]
        %v2503 = vld [vmem:[#allocation4 + $0x278] sm:$0xff]
        %v2504 = vld [vmem:[#allocation4 + $0x280] sm:$0xff]
        %v2505 = vld [vmem:[#allocation4 + $0x288] sm:$0xff]
        %v2506 = vld [vmem:[#allocation4 + $0x290] sm:$0xff]
        %v2507 = vld [vmem:[#allocation4 + $0x298] sm:$0xff]
        %v2508 = vld [vmem:[#allocation4 + $0x2a0] sm:$0xff]
        %v2509 = vld [vmem:[#allocation4 + $0x2a8] sm:$0xff]
        %v2510 = vld [vmem:[#allocation4 + $0x2b0] sm:$0xff]
        %v2511 = vld [vmem:[#allocation4 + $0x2b8] sm:$0xff]
        %v2512 = vld [vmem:[#allocation4 + $0x2c0] sm:$0xff]
        %v2513 = vld [vmem:[#allocation4 + $0x2c8] sm:$0xff]
        %v2514 = vld [vmem:[#allocation4 + $0x2d0] sm:$0xff]
        %v2515 = vld [vmem:[#allocation4 + $0x2d8] sm:$0xff]
        %v2516 = vld [vmem:[#allocation4 + $0x2e0] sm:$0xff]
        %v2517 = vld [vmem:[#allocation4 + $0x2e8] sm:$0xff]
        %v2518 = vld [vmem:[#allocation4 + $0x2f0] sm:$0xff]
        %v2519 = vld [vmem:[#allocation4 + $0x2f8] sm:$0xff]
        %v2520 = vld [vmem:[#allocation4 + $0x300] sm:$0xff]
        %v2521 = vld [vmem:[#allocation4 + $0x308] sm:$0xff]
        %v2522 = vld [vmem:[#allocation4 + $0x310] sm:$0xff]
        %v2523 = vld [vmem:[#allocation4 + $0x318] sm:$0xff]
        %v2524 = vld [vmem:[#allocation4 + $0x320] sm:$0xff]
        %v2525 = vld [vmem:[#allocation4 + $0x328] sm:$0xff]
        %v2526 = vld [vmem:[#allocation4 + $0x330] sm:$0xff]
        %v2527 = vld [vmem:[#allocation4 + $0x338] sm:$0xff]
        %v2528 = vld [vmem:[#allocation4 + $0x340] sm:$0xff]
        %v2529 = vld [vmem:[#allocation4 + $0x348] sm:$0xff]
        %v2530 = vld [vmem:[#allocation4 + $0x350] sm:$0xff]
        %v2531 = vld [vmem:[#allocation4 + $0x358] sm:$0xff]
        %v2532 = vld [vmem:[#allocation4 + $0x360] sm:$0xff]
        %v2533 = vld [vmem:[#allocation4 + $0x368] sm:$0xff]
        %v2534 = vld [vmem:[#allocation4 + $0x370] sm:$0xff]
        %v2535 = vld [vmem:[#allocation4 + $0x378] sm:$0xff]
        %v2536 = vld [vmem:[#allocation4 + $0x380] sm:$0xff]
        %v2537 = vld [vmem:[#allocation4 + $0x388] sm:$0xff]
        %v2538 = vld [vmem:[#allocation4 + $0x390] sm:$0xff]
        %v2539 = vld [vmem:[#allocation4 + $0x398] sm:$0xff]
        %v2540 = vld [vmem:[#allocation4 + $0x3a0] sm:$0xff]
        %v2541 = vld [vmem:[#allocation4 + $0x3a8] sm:$0xff]
        %v2542 = vld [vmem:[#allocation4 + $0x3b0] sm:$0xff]
        %v2543 = vld [vmem:[#allocation4 + $0x3b8] sm:$0xff]
        %v2544 = vld [vmem:[#allocation4 + $0x3c0] sm:$0xff]
        %v2545 = vld [vmem:[#allocation4 + $0x3c8] sm:$0xff]
        %v2546 = vld [vmem:[#allocation4 + $0x3d0] sm:$0xff]
        %v2547 = vld [vmem:[#allocation4 + $0x3d8] sm:$0xff]
        %v2548 = vld [vmem:[#allocation4 + $0x3e0] sm:$0xff]
        %v2549 = vld [vmem:[#allocation4 + $0x3e8] sm:$0xff]
        %v2550 = vld [vmem:[#allocation4 + $0x3f0] sm:$0xff]
        %v2551 = vld [vmem:[#allocation4 + $0x3f8] sm:$0xff]
        %v2552 = vld [vmem:[%s5] sm:$0xf]
        %v2554 = vperm.slane %v2552, 0
        %v2555 = vperm.slane %v2552, 1
        %v2556 = vperm.slane %v2552, 2
        %v2557 = vperm.slane %v2552, 3
        %v2690 = vunpack.c.l.b16 %v2424
        %v2691 = vunpack.c.h.b16 %v2424
        %v2692 = vunpack.c.l.b16 %v2425
        %v2693 = vunpack.c.h.b16 %v2425
        %v2694 = vunpack.c.l.b16 %v2426
        %v2695 = vunpack.c.h.b16 %v2426
        %v2696 = vunpack.c.l.b16 %v2427
        %v2697 = vunpack.c.h.b16 %v2427
        %v2698 = vunpack.c.l.b16 %v2428
        %v2699 = vunpack.c.h.b16 %v2428
        %v2700 = vunpack.c.l.b16 %v2429
        %v2701 = vunpack.c.h.b16 %v2429
        %v2702 = vunpack.c.l.b16 %v2430
        %v2703 = vunpack.c.h.b16 %v2430
        %v2704 = vunpack.c.l.b16 %v2431
        %v2705 = vunpack.c.h.b16 %v2431
        %v2706 = vunpack.c.l.b16 %v2432
        %v2707 = vunpack.c.h.b16 %v2432
        %v2708 = vunpack.c.l.b16 %v2433
        %v2709 = vunpack.c.h.b16 %v2433
        %v2710 = vunpack.c.l.b16 %v2434
        %v2711 = vunpack.c.h.b16 %v2434
        %v2712 = vunpack.c.l.b16 %v2435
        %v2713 = vunpack.c.h.b16 %v2435
        %v2714 = vunpack.c.l.b16 %v2436
        %v2715 = vunpack.c.h.b16 %v2436
        %v2716 = vunpack.c.l.b16 %v2437
        %v2717 = vunpack.c.h.b16 %v2437
        %v2718 = vunpack.c.l.b16 %v2438
        %v2719 = vunpack.c.h.b16 %v2438
        %v2720 = vunpack.c.l.b16 %v2439
        %v2721 = vunpack.c.h.b16 %v2439
        %v2722 = vunpack.c.l.b16 %v2440
        %v2723 = vunpack.c.h.b16 %v2440
        %v2724 = vunpack.c.l.b16 %v2441
        %v2725 = vunpack.c.h.b16 %v2441
        %v2726 = vunpack.c.l.b16 %v2442
        %v2727 = vunpack.c.h.b16 %v2442
        %v2728 = vunpack.c.l.b16 %v2443
        %v2729 = vunpack.c.h.b16 %v2443
        %v2730 = vunpack.c.l.b16 %v2444
        %v2731 = vunpack.c.h.b16 %v2444
        %v2732 = vunpack.c.l.b16 %v2445
        %v2733 = vunpack.c.h.b16 %v2445
        %v2734 = vunpack.c.l.b16 %v2446
        %v2735 = vunpack.c.h.b16 %v2446
        %v2736 = vunpack.c.l.b16 %v2447
        %v2737 = vunpack.c.h.b16 %v2447
        %v2738 = vunpack.c.l.b16 %v2448
        %v2739 = vunpack.c.h.b16 %v2448
        %v2740 = vunpack.c.l.b16 %v2449
        %v2741 = vunpack.c.h.b16 %v2449
        %v2742 = vunpack.c.l.b16 %v2450
        %v2743 = vunpack.c.h.b16 %v2450
        %v2744 = vunpack.c.l.b16 %v2451
        %v2745 = vunpack.c.h.b16 %v2451
        %v2746 = vunpack.c.l.b16 %v2452
        %v2747 = vunpack.c.h.b16 %v2452
        %v2748 = vunpack.c.l.b16 %v2453
        %v2749 = vunpack.c.h.b16 %v2453
        %v2750 = vunpack.c.l.b16 %v2454
        %v2751 = vunpack.c.h.b16 %v2454
        %v2752 = vunpack.c.l.b16 %v2455
        %v2753 = vunpack.c.h.b16 %v2455
        %v2754 = vunpack.c.l.b16 %v2456
        %v2755 = vunpack.c.h.b16 %v2456
        %v2756 = vunpack.c.l.b16 %v2457
        %v2757 = vunpack.c.h.b16 %v2457
        %v2758 = vunpack.c.l.b16 %v2458
        %v2759 = vunpack.c.h.b16 %v2458
        %v2760 = vunpack.c.l.b16 %v2459
        %v2761 = vunpack.c.h.b16 %v2459
        %v2762 = vunpack.c.l.b16 %v2460
        %v2763 = vunpack.c.h.b16 %v2460
        %v2764 = vunpack.c.l.b16 %v2461
        %v2765 = vunpack.c.h.b16 %v2461
        %v2766 = vunpack.c.l.b16 %v2462
        %v2767 = vunpack.c.h.b16 %v2462
        %v2768 = vunpack.c.l.b16 %v2463
        %v2769 = vunpack.c.h.b16 %v2463
        %v2770 = vunpack.c.l.b16 %v2464
        %v2771 = vunpack.c.h.b16 %v2464
        %v2772 = vunpack.c.l.b16 %v2465
        %v2773 = vunpack.c.h.b16 %v2465
        %v2774 = vunpack.c.l.b16 %v2466
        %v2775 = vunpack.c.h.b16 %v2466
        %v2776 = vunpack.c.l.b16 %v2467
        %v2777 = vunpack.c.h.b16 %v2467
        %v2778 = vunpack.c.l.b16 %v2468
        %v2779 = vunpack.c.h.b16 %v2468
        %v2780 = vunpack.c.l.b16 %v2469
        %v2781 = vunpack.c.h.b16 %v2469
        %v2782 = vunpack.c.l.b16 %v2470
        %v2783 = vunpack.c.h.b16 %v2470
        %v2784 = vunpack.c.l.b16 %v2471
        %v2785 = vunpack.c.h.b16 %v2471
        %v2786 = vunpack.c.l.b16 %v2472
        %v2787 = vunpack.c.h.b16 %v2472
        %v2788 = vunpack.c.l.b16 %v2473
        %v2789 = vunpack.c.h.b16 %v2473
        %v2790 = vunpack.c.l.b16 %v2474
        %v2791 = vunpack.c.h.b16 %v2474
        %v2792 = vunpack.c.l.b16 %v2475
        %v2793 = vunpack.c.h.b16 %v2475
        %v2794 = vunpack.c.l.b16 %v2476
        %v2795 = vunpack.c.h.b16 %v2476
        %v2796 = vunpack.c.l.b16 %v2477
        %v2797 = vunpack.c.h.b16 %v2477
        %v2798 = vunpack.c.l.b16 %v2478
        %v2799 = vunpack.c.h.b16 %v2478
        %v2800 = vunpack.c.l.b16 %v2479
        %v2801 = vunpack.c.h.b16 %v2479
        %v2802 = vunpack.c.l.b16 %v2480
        %v2803 = vunpack.c.h.b16 %v2480
        %v2804 = vunpack.c.l.b16 %v2481
        %v2805 = vunpack.c.h.b16 %v2481
        %v2806 = vunpack.c.l.b16 %v2482
        %v2807 = vunpack.c.h.b16 %v2482
        %v2808 = vunpack.c.l.b16 %v2483
        %v2809 = vunpack.c.h.b16 %v2483
        %v2810 = vunpack.c.l.b16 %v2484
        %v2811 = vunpack.c.h.b16 %v2484
        %v2812 = vunpack.c.l.b16 %v2485
        %v2813 = vunpack.c.h.b16 %v2485
        %v2814 = vunpack.c.l.b16 %v2486
        %v2815 = vunpack.c.h.b16 %v2486
        %v2816 = vunpack.c.l.b16 %v2487
        %v2817 = vunpack.c.h.b16 %v2487
        %v2818 = vunpack.c.l.b16 %v2488
        %v2819 = vunpack.c.h.b16 %v2488
        %v2820 = vunpack.c.l.b16 %v2489
        %v2821 = vunpack.c.h.b16 %v2489
        %v2822 = vunpack.c.l.b16 %v2490
        %v2823 = vunpack.c.h.b16 %v2490
        %v2824 = vunpack.c.l.b16 %v2491
        %v2825 = vunpack.c.h.b16 %v2491
        %v2826 = vunpack.c.l.b16 %v2492
        %v2827 = vunpack.c.h.b16 %v2492
        %v2828 = vunpack.c.l.b16 %v2493
        %v2829 = vunpack.c.h.b16 %v2493
        %v2830 = vunpack.c.l.b16 %v2494
        %v2831 = vunpack.c.h.b16 %v2494
        %v2832 = vunpack.c.l.b16 %v2495
        %v2833 = vunpack.c.h.b16 %v2495
        %v2834 = vunpack.c.l.b16 %v2496
        %v2835 = vunpack.c.h.b16 %v2496
        %v2836 = vunpack.c.l.b16 %v2497
        %v2837 = vunpack.c.h.b16 %v2497
        %v2838 = vunpack.c.l.b16 %v2498
        %v2839 = vunpack.c.h.b16 %v2498
        %v2840 = vunpack.c.l.b16 %v2499
        %v2841 = vunpack.c.h.b16 %v2499
        %v2842 = vunpack.c.l.b16 %v2500
        %v2843 = vunpack.c.h.b16 %v2500
        %v2844 = vunpack.c.l.b16 %v2501
        %v2845 = vunpack.c.h.b16 %v2501
        %v2846 = vunpack.c.l.b16 %v2502
        %v2847 = vunpack.c.h.b16 %v2502
        %v2848 = vunpack.c.l.b16 %v2503
        %v2849 = vunpack.c.h.b16 %v2503
        %v2850 = vunpack.c.l.b16 %v2504
        %v2851 = vunpack.c.h.b16 %v2504
        %v2852 = vunpack.c.l.b16 %v2505
        %v2853 = vunpack.c.h.b16 %v2505
        %v2854 = vunpack.c.l.b16 %v2506
        %v2855 = vunpack.c.h.b16 %v2506
        %v2856 = vunpack.c.l.b16 %v2507
        %v2857 = vunpack.c.h.b16 %v2507
        %v2858 = vunpack.c.l.b16 %v2508
        %v2859 = vunpack.c.h.b16 %v2508
        %v2860 = vunpack.c.l.b16 %v2509
        %v2861 = vunpack.c.h.b16 %v2509
        %v2862 = vunpack.c.l.b16 %v2510
        %v2863 = vunpack.c.h.b16 %v2510
        %v2864 = vunpack.c.l.b16 %v2511
        %v2865 = vunpack.c.h.b16 %v2511
        %v2866 = vunpack.c.l.b16 %v2512
        %v2867 = vunpack.c.h.b16 %v2512
        %v2868 = vunpack.c.l.b16 %v2513
        %v2869 = vunpack.c.h.b16 %v2513
        %v2870 = vunpack.c.l.b16 %v2514
        %v2871 = vunpack.c.h.b16 %v2514
        %v2872 = vunpack.c.l.b16 %v2515
        %v2873 = vunpack.c.h.b16 %v2515
        %v2874 = vunpack.c.l.b16 %v2516
        %v2875 = vunpack.c.h.b16 %v2516
        %v2876 = vunpack.c.l.b16 %v2517
        %v2877 = vunpack.c.h.b16 %v2517
        %v2878 = vunpack.c.l.b16 %v2518
        %v2879 = vunpack.c.h.b16 %v2518
        %v2880 = vunpack.c.l.b16 %v2519
        %v2881 = vunpack.c.h.b16 %v2519
        %v2882 = vunpack.c.l.b16 %v2520
        %v2883 = vunpack.c.h.b16 %v2520
        %v2884 = vunpack.c.l.b16 %v2521
        %v2885 = vunpack.c.h.b16 %v2521
        %v2886 = vunpack.c.l.b16 %v2522
        %v2887 = vunpack.c.h.b16 %v2522
        %v2888 = vunpack.c.l.b16 %v2523
        %v2889 = vunpack.c.h.b16 %v2523
        %v2890 = vunpack.c.l.b16 %v2524
        %v2891 = vunpack.c.h.b16 %v2524
        %v2892 = vunpack.c.l.b16 %v2525
        %v2893 = vunpack.c.h.b16 %v2525
        %v2894 = vunpack.c.l.b16 %v2526
        %v2895 = vunpack.c.h.b16 %v2526
        %v2896 = vunpack.c.l.b16 %v2527
        %v2897 = vunpack.c.h.b16 %v2527
        %v2898 = vunpack.c.l.b16 %v2528
        %v2899 = vunpack.c.h.b16 %v2528
        %v2900 = vunpack.c.l.b16 %v2529
        %v2901 = vunpack.c.h.b16 %v2529
        %v2902 = vunpack.c.l.b16 %v2530
        %v2903 = vunpack.c.h.b16 %v2530
        %v2904 = vunpack.c.l.b16 %v2531
        %v2905 = vunpack.c.h.b16 %v2531
        %v2906 = vunpack.c.l.b16 %v2532
        %v2907 = vunpack.c.h.b16 %v2532
        %v2908 = vunpack.c.l.b16 %v2533
        %v2909 = vunpack.c.h.b16 %v2533
        %v2910 = vunpack.c.l.b16 %v2534
        %v2911 = vunpack.c.h.b16 %v2534
        %v2912 = vunpack.c.l.b16 %v2535
        %v2913 = vunpack.c.h.b16 %v2535
        %v2914 = vunpack.c.l.b16 %v2536
        %v2915 = vunpack.c.h.b16 %v2536
        %v2916 = vunpack.c.l.b16 %v2537
        %v2917 = vunpack.c.h.b16 %v2537
        %v2918 = vunpack.c.l.b16 %v2538
        %v2919 = vunpack.c.h.b16 %v2538
        %v2920 = vunpack.c.l.b16 %v2539
        %v2921 = vunpack.c.h.b16 %v2539
        %v2922 = vunpack.c.l.b16 %v2540
        %v2923 = vunpack.c.h.b16 %v2540
        %v2924 = vunpack.c.l.b16 %v2541
        %v2925 = vunpack.c.h.b16 %v2541
        %v2926 = vunpack.c.l.b16 %v2542
        %v2927 = vunpack.c.h.b16 %v2542
        %v2928 = vunpack.c.l.b16 %v2543
        %v2929 = vunpack.c.h.b16 %v2543
        %v2930 = vunpack.c.l.b16 %v2544
        %v2931 = vunpack.c.h.b16 %v2544
        %v2932 = vunpack.c.l.b16 %v2545
        %v2933 = vunpack.c.h.b16 %v2545
        %v2934 = vunpack.c.l.b16 %v2546
        %v2935 = vunpack.c.h.b16 %v2546
        %v2936 = vunpack.c.l.b16 %v2547
        %v2937 = vunpack.c.h.b16 %v2547
        %v2938 = vunpack.c.l.b16 %v2548
        %v2939 = vunpack.c.h.b16 %v2548
        %v2940 = vunpack.c.l.b16 %v2549
        %v2941 = vunpack.c.h.b16 %v2549
        %v2942 = vunpack.c.l.b16 %v2550
        %v2943 = vunpack.c.h.b16 %v2550
        %v2944 = vunpack.c.l.b16 %v2551
        %v2945 = vunpack.c.h.b16 %v2551
        %v2946 = vpack.c.b16 %v2694, %v2690
        %v2947 = vpack.c.b16 %v2695, %v2691
        %v2948 = vpack.c.b16 %v2696, %v2692
        %v2949 = vpack.c.b16 %v2697, %v2693
        %v2950 = vpack.c.b16 %v2702, %v2698
        %v2951 = vpack.c.b16 %v2703, %v2699
        %v2952 = vpack.c.b16 %v2704, %v2700
        %v2953 = vpack.c.b16 %v2705, %v2701
        %v2954 = vpack.c.b16 %v2710, %v2706
        %v2955 = vpack.c.b16 %v2711, %v2707
        %v2956 = vpack.c.b16 %v2712, %v2708
        %v2957 = vpack.c.b16 %v2713, %v2709
        %v2958 = vpack.c.b16 %v2718, %v2714
        %v2959 = vpack.c.b16 %v2719, %v2715
        %v2960 = vpack.c.b16 %v2720, %v2716
        %v2961 = vpack.c.b16 %v2721, %v2717
        %v2962 = vpack.c.b16 %v2726, %v2722
        %v2963 = vpack.c.b16 %v2727, %v2723
        %v2964 = vpack.c.b16 %v2728, %v2724
        %v2965 = vpack.c.b16 %v2729, %v2725
        %v2966 = vpack.c.b16 %v2734, %v2730
        %v2967 = vpack.c.b16 %v2735, %v2731
        %v2968 = vpack.c.b16 %v2736, %v2732
        %v2969 = vpack.c.b16 %v2737, %v2733
        %v2970 = vpack.c.b16 %v2742, %v2738
        %v2971 = vpack.c.b16 %v2743, %v2739
        %v2972 = vpack.c.b16 %v2744, %v2740
        %v2973 = vpack.c.b16 %v2745, %v2741
        %v2974 = vpack.c.b16 %v2750, %v2746
        %v2975 = vpack.c.b16 %v2751, %v2747
        %v2976 = vpack.c.b16 %v2752, %v2748
        %v2977 = vpack.c.b16 %v2753, %v2749
        %v2978 = vpack.c.b16 %v2758, %v2754
        %v2979 = vpack.c.b16 %v2759, %v2755
        %v2980 = vpack.c.b16 %v2760, %v2756
        %v2981 = vpack.c.b16 %v2761, %v2757
        %v2982 = vpack.c.b16 %v2766, %v2762
        %v2983 = vpack.c.b16 %v2767, %v2763
        %v2984 = vpack.c.b16 %v2768, %v2764
        %v2985 = vpack.c.b16 %v2769, %v2765
        %v2986 = vpack.c.b16 %v2774, %v2770
        %v2987 = vpack.c.b16 %v2775, %v2771
        %v2988 = vpack.c.b16 %v2776, %v2772
        %v2989 = vpack.c.b16 %v2777, %v2773
        %v2990 = vpack.c.b16 %v2782, %v2778
        %v2991 = vpack.c.b16 %v2783, %v2779
        %v2992 = vpack.c.b16 %v2784, %v2780
        %v2993 = vpack.c.b16 %v2785, %v2781
        %v2994 = vpack.c.b16 %v2790, %v2786
        %v2995 = vpack.c.b16 %v2791, %v2787
        %v2996 = vpack.c.b16 %v2792, %v2788
        %v2997 = vpack.c.b16 %v2793, %v2789
        %v2998 = vpack.c.b16 %v2798, %v2794
        %v2999 = vpack.c.b16 %v2799, %v2795
        %v3000 = vpack.c.b16 %v2800, %v2796
        %v3001 = vpack.c.b16 %v2801, %v2797
        %v3002 = vpack.c.b16 %v2806, %v2802
        %v3003 = vpack.c.b16 %v2807, %v2803
        %v3004 = vpack.c.b16 %v2808, %v2804
        %v3005 = vpack.c.b16 %v2809, %v2805
        %v3006 = vpack.c.b16 %v2814, %v2810
        %v3007 = vpack.c.b16 %v2815, %v2811
        %v3008 = vpack.c.b16 %v2816, %v2812
        %v3009 = vpack.c.b16 %v2817, %v2813
        %v3010 = vpack.c.b16 %v2822, %v2818
        %v3011 = vpack.c.b16 %v2823, %v2819
        %v3012 = vpack.c.b16 %v2824, %v2820
        %v3013 = vpack.c.b16 %v2825, %v2821
        %v3014 = vpack.c.b16 %v2830, %v2826
        %v3015 = vpack.c.b16 %v2831, %v2827
        %v3016 = vpack.c.b16 %v2832, %v2828
        %v3017 = vpack.c.b16 %v2833, %v2829
        %v3018 = vpack.c.b16 %v2838, %v2834
        %v3019 = vpack.c.b16 %v2839, %v2835
        %v3020 = vpack.c.b16 %v2840, %v2836
        %v3021 = vpack.c.b16 %v2841, %v2837
        %v3022 = vpack.c.b16 %v2846, %v2842
        %v3023 = vpack.c.b16 %v2847, %v2843
        %v3024 = vpack.c.b16 %v2848, %v2844
        %v3025 = vpack.c.b16 %v2849, %v2845
        %v3026 = vpack.c.b16 %v2854, %v2850
        %v3027 = vpack.c.b16 %v2855, %v2851
        %v3028 = vpack.c.b16 %v2856, %v2852
        %v3029 = vpack.c.b16 %v2857, %v2853
        %v3030 = vpack.c.b16 %v2862, %v2858
        %v3031 = vpack.c.b16 %v2863, %v2859
        %v3032 = vpack.c.b16 %v2864, %v2860
        %v3033 = vpack.c.b16 %v2865, %v2861
        %v3034 = vpack.c.b16 %v2870, %v2866
        %v3035 = vpack.c.b16 %v2871, %v2867
        %v3036 = vpack.c.b16 %v2872, %v2868
        %v3037 = vpack.c.b16 %v2873, %v2869
        %v3038 = vpack.c.b16 %v2878, %v2874
        %v3039 = vpack.c.b16 %v2879, %v2875
        %v3040 = vpack.c.b16 %v2880, %v2876
        %v3041 = vpack.c.b16 %v2881, %v2877
        %v3042 = vpack.c.b16 %v2886, %v2882
        %v3043 = vpack.c.b16 %v2887, %v2883
        %v3044 = vpack.c.b16 %v2888, %v2884
        %v3045 = vpack.c.b16 %v2889, %v2885
        %v3046 = vpack.c.b16 %v2894, %v2890
        %v3047 = vpack.c.b16 %v2895, %v2891
        %v3048 = vpack.c.b16 %v2896, %v2892
        %v3049 = vpack.c.b16 %v2897, %v2893
        %v3050 = vpack.c.b16 %v2902, %v2898
        %v3051 = vpack.c.b16 %v2903, %v2899
        %v3052 = vpack.c.b16 %v2904, %v2900
        %v3053 = vpack.c.b16 %v2905, %v2901
        %v3054 = vpack.c.b16 %v2910, %v2906
        %v3055 = vpack.c.b16 %v2911, %v2907
        %v3056 = vpack.c.b16 %v2912, %v2908
        %v3057 = vpack.c.b16 %v2913, %v2909
        %v3058 = vpack.c.b16 %v2918, %v2914
        %v3059 = vpack.c.b16 %v2919, %v2915
        %v3060 = vpack.c.b16 %v2920, %v2916
        %v3061 = vpack.c.b16 %v2921, %v2917
        %v3062 = vpack.c.b16 %v2926, %v2922
        %v3063 = vpack.c.b16 %v2927, %v2923
        %v3064 = vpack.c.b16 %v2928, %v2924
        %v3065 = vpack.c.b16 %v2929, %v2925
        %v3066 = vpack.c.b16 %v2934, %v2930
        %v3067 = vpack.c.b16 %v2935, %v2931
        %v3068 = vpack.c.b16 %v2936, %v2932
        %v3069 = vpack.c.b16 %v2937, %v2933
        %v3070 = vpack.c.b16 %v2942, %v2938
        %v3071 = vpack.c.b16 %v2943, %v2939
        %v3072 = vpack.c.b16 %v2944, %v2940
        %v3073 = vpack.c.b16 %v2945, %v2941
        %3202 = vmatpush.bf16.msra.mxu0 %v2974
        %3203 = vmatpush.bf16.msra.mxu0 %v2970
        %3204 = vmatpush.bf16.msra.mxu0 %v2966
        %3205 = vmatpush.bf16.msra.mxu0 %v2962
        %3206 = vmatpush.bf16.msra.mxu0 %v2958
        %3207 = vmatpush.bf16.msra.mxu0 %v2954
        %3208 = vmatpush.bf16.msra.mxu0 %v2950
        %3209 = vmatpush.bf16.msra.mxu0 %v2946
        %3210 = vmatmul.bf16.gmra.mxu0 %v2420
        %v3211 = vpop.f32.mrf.mxu0
        %v3212 = vadd.f32 %v2554, %v3211
        %v3213 = vpop.f32.mrf.mxu0
        %3214 = vdwg.mxu0
        %3215 = vmatpush.bf16.msra.mxu0 %v3006
        %3216 = vmatpush.bf16.msra.mxu0 %v3002
        %3217 = vmatpush.bf16.msra.mxu0 %v2998
        %3218 = vmatpush.bf16.msra.mxu0 %v2994
        %3219 = vmatpush.bf16.msra.mxu0 %v2990
        %3220 = vmatpush.bf16.msra.mxu0 %v2986
        %3221 = vmatpush.bf16.msra.mxu0 %v2982
        %3222 = vmatpush.bf16.msra.mxu0 %v2978
        %3223 = vmatmul.bf16.gmra.mxu0 %v2421
        %v3224 = vpop.f32.mrf.mxu0
        %v3225 = vadd.f32 %v3212, %v3224
        %v3226 = vpop.f32.mrf.mxu0
        %3227 = vdwg.mxu0
        %3228 = vmatpush.bf16.msra.mxu0 %v3038
        %3229 = vmatpush.bf16.msra.mxu0 %v3034
        %3230 = vmatpush.bf16.msra.mxu0 %v3030
        %3231 = vmatpush.bf16.msra.mxu0 %v3026
        %3232 = vmatpush.bf16.msra.mxu0 %v3022
        %3233 = vmatpush.bf16.msra.mxu0 %v3018
        %3234 = vmatpush.bf16.msra.mxu0 %v3014
        %3235 = vmatpush.bf16.msra.mxu0 %v3010
        %3236 = vmatmul.bf16.gmra.mxu0 %v2422
        %v3237 = vpop.f32.mrf.mxu0
        %v3238 = vadd.f32 %v3225, %v3237
        %v3239 = vpop.f32.mrf.mxu0
        %3240 = vdwg.mxu0
        %3241 = vmatpush.bf16.msra.mxu0 %v3070
        %3242 = vmatpush.bf16.msra.mxu0 %v3066
        %3243 = vmatpush.bf16.msra.mxu0 %v3062
        %3244 = vmatpush.bf16.msra.mxu0 %v3058
        %3245 = vmatpush.bf16.msra.mxu0 %v3054
        %3246 = vmatpush.bf16.msra.mxu0 %v3050
        %3247 = vmatpush.bf16.msra.mxu0 %v3046
        %3248 = vmatpush.bf16.msra.mxu0 %v3042
        %3249 = vmatmul.bf16.gmra.mxu0 %v2423
        %v3250 = vpop.f32.mrf.mxu0
        %v3251 = vadd.f32 %v3238, %v3250
        %v3252 = vpop.f32.mrf.mxu0
        %3253 = vdwg.mxu0
        %3254 = vmatpush.bf16.msra.mxu0 %v2975
        %3255 = vmatpush.bf16.msra.mxu0 %v2971
        %3256 = vmatpush.bf16.msra.mxu0 %v2967
        %3257 = vmatpush.bf16.msra.mxu0 %v2963
        %3258 = vmatpush.bf16.msra.mxu0 %v2959
        %3259 = vmatpush.bf16.msra.mxu0 %v2955
        %3260 = vmatpush.bf16.msra.mxu0 %v2951
        %3261 = vmatpush.bf16.msra.mxu0 %v2947
        %3262 = vmatmul.bf16.gmra.mxu0 %v2420
        %v3263 = vpop.f32.mrf.mxu0
        %v3264 = vadd.f32 %v2555, %v3263
        %v3265 = vpop.f32.mrf.mxu0
        %3266 = vdwg.mxu0
        %3267 = vmatpush.bf16.msra.mxu0 %v3007
        %3268 = vmatpush.bf16.msra.mxu0 %v3003
        %3269 = vmatpush.bf16.msra.mxu0 %v2999
        %3270 = vmatpush.bf16.msra.mxu0 %v2995
        %3271 = vmatpush.bf16.msra.mxu0 %v2991
        %3272 = vmatpush.bf16.msra.mxu0 %v2987
        %3273 = vmatpush.bf16.msra.mxu0 %v2983
        %3274 = vmatpush.bf16.msra.mxu0 %v2979
        %3275 = vmatmul.bf16.gmra.mxu0 %v2421
        %v3276 = vpop.f32.mrf.mxu0
        %v3277 = vadd.f32 %v3264, %v3276
        %v3278 = vpop.f32.mrf.mxu0
        %3279 = vdwg.mxu0
        %3280 = vmatpush.bf16.msra.mxu0 %v3039
        %3281 = vmatpush.bf16.msra.mxu0 %v3035
        %3282 = vmatpush.bf16.msra.mxu0 %v3031
        %3283 = vmatpush.bf16.msra.mxu0 %v3027
        %3284 = vmatpush.bf16.msra.mxu0 %v3023
        %3285 = vmatpush.bf16.msra.mxu0 %v3019
        %3286 = vmatpush.bf16.msra.mxu0 %v3015
        %3287 = vmatpush.bf16.msra.mxu0 %v3011
        %3288 = vmatmul.bf16.gmra.mxu0 %v2422
        %v3289 = vpop.f32.mrf.mxu0
        %v3290 = vadd.f32 %v3277, %v3289
        %v3291 = vpop.f32.mrf.mxu0
        %3292 = vdwg.mxu0
        %3293 = vmatpush.bf16.msra.mxu0 %v3071
        %3294 = vmatpush.bf16.msra.mxu0 %v3067
        %3295 = vmatpush.bf16.msra.mxu0 %v3063
        %3296 = vmatpush.bf16.msra.mxu0 %v3059
        %3297 = vmatpush.bf16.msra.mxu0 %v3055
        %3298 = vmatpush.bf16.msra.mxu0 %v3051
        %3299 = vmatpush.bf16.msra.mxu0 %v3047
        %3300 = vmatpush.bf16.msra.mxu0 %v3043
        %3301 = vmatmul.bf16.gmra.mxu0 %v2423
        %v3302 = vpop.f32.mrf.mxu0
        %v3303 = vadd.f32 %v3290, %v3302
        %v3304 = vpop.f32.mrf.mxu0
        %3305 = vdwg.mxu0
        %3306 = vmatpush.bf16.msra.mxu0 %v2976
        %3307 = vmatpush.bf16.msra.mxu0 %v2972
        %3308 = vmatpush.bf16.msra.mxu0 %v2968
        %3309 = vmatpush.bf16.msra.mxu0 %v2964
        %3310 = vmatpush.bf16.msra.mxu0 %v2960
        %3311 = vmatpush.bf16.msra.mxu0 %v2956
        %3312 = vmatpush.bf16.msra.mxu0 %v2952
        %3313 = vmatpush.bf16.msra.mxu0 %v2948
        %3314 = vmatmul.bf16.gmra.mxu0 %v2420
        %v3315 = vpop.f32.mrf.mxu0
        %v3316 = vadd.f32 %v2556, %v3315
        %v3317 = vpop.f32.mrf.mxu0
        %3318 = vdwg.mxu0
        %3319 = vmatpush.bf16.msra.mxu0 %v3008
        %3320 = vmatpush.bf16.msra.mxu0 %v3004
        %3321 = vmatpush.bf16.msra.mxu0 %v3000
        %3322 = vmatpush.bf16.msra.mxu0 %v2996
        %3323 = vmatpush.bf16.msra.mxu0 %v2992
        %3324 = vmatpush.bf16.msra.mxu0 %v2988
        %3325 = vmatpush.bf16.msra.mxu0 %v2984
        %3326 = vmatpush.bf16.msra.mxu0 %v2980
        %3327 = vmatmul.bf16.gmra.mxu0 %v2421
        %v3328 = vpop.f32.mrf.mxu0
        %v3329 = vadd.f32 %v3316, %v3328
        %v3330 = vpop.f32.mrf.mxu0
        %3331 = vdwg.mxu0
        %3332 = vmatpush.bf16.msra.mxu0 %v3040
        %3333 = vmatpush.bf16.msra.mxu0 %v3036
        %3334 = vmatpush.bf16.msra.mxu0 %v3032
        %3335 = vmatpush.bf16.msra.mxu0 %v3028
        %3336 = vmatpush.bf16.msra.mxu0 %v3024
        %3337 = vmatpush.bf16.msra.mxu0 %v3020
        %3338 = vmatpush.bf16.msra.mxu0 %v3016
        %3339 = vmatpush.bf16.msra.mxu0 %v3012
        %3340 = vmatmul.bf16.gmra.mxu0 %v2422
        %v3341 = vpop.f32.mrf.mxu0
        %v3342 = vadd.f32 %v3329, %v3341
        %v3343 = vpop.f32.mrf.mxu0
        %3344 = vdwg.mxu0
        %3345 = vmatpush.bf16.msra.mxu0 %v3072
        %3346 = vmatpush.bf16.msra.mxu0 %v3068
        %3347 = vmatpush.bf16.msra.mxu0 %v3064
        %3348 = vmatpush.bf16.msra.mxu0 %v3060
        %3349 = vmatpush.bf16.msra.mxu0 %v3056
        %3350 = vmatpush.bf16.msra.mxu0 %v3052
        %3351 = vmatpush.bf16.msra.mxu0 %v3048
        %3352 = vmatpush.bf16.msra.mxu0 %v3044
        %3353 = vmatmul.bf16.gmra.mxu0 %v2423
        %v3354 = vpop.f32.mrf.mxu0
        %v3355 = vadd.f32 %v3342, %v3354
        %v3356 = vpop.f32.mrf.mxu0
        %3357 = vdwg.mxu0
        %3358 = vmatpush.bf16.msra.mxu0 %v2977
        %3359 = vmatpush.bf16.msra.mxu0 %v2973
        %3360 = vmatpush.bf16.msra.mxu0 %v2969
        %3361 = vmatpush.bf16.msra.mxu0 %v2965
        %3362 = vmatpush.bf16.msra.mxu0 %v2961
        %3363 = vmatpush.bf16.msra.mxu0 %v2957
        %3364 = vmatpush.bf16.msra.mxu0 %v2953
        %3365 = vmatpush.bf16.msra.mxu0 %v2949
        %3366 = vmatmul.bf16.gmra.mxu0 %v2420
        %v3367 = vpop.f32.mrf.mxu0
        %v3368 = vadd.f32 %v2557, %v3367
        %v3369 = vpop.f32.mrf.mxu0
        %3370 = vdwg.mxu0
        %3371 = vmatpush.bf16.msra.mxu0 %v3009
        %3372 = vmatpush.bf16.msra.mxu0 %v3005
        %3373 = vmatpush.bf16.msra.mxu0 %v3001
        %3374 = vmatpush.bf16.msra.mxu0 %v2997
        %3375 = vmatpush.bf16.msra.mxu0 %v2993
        %3376 = vmatpush.bf16.msra.mxu0 %v2989
        %3377 = vmatpush.bf16.msra.mxu0 %v2985
        %3378 = vmatpush.bf16.msra.mxu0 %v2981
        %3379 = vmatmul.bf16.gmra.mxu0 %v2421
        %v3380 = vpop.f32.mrf.mxu0
        %v3381 = vadd.f32 %v3368, %v3380
        %v3382 = vpop.f32.mrf.mxu0
        %3383 = vdwg.mxu0
        %3384 = vmatpush.bf16.msra.mxu0 %v3041
        %3385 = vmatpush.bf16.msra.mxu0 %v3037
        %3386 = vmatpush.bf16.msra.mxu0 %v3033
        %3387 = vmatpush.bf16.msra.mxu0 %v3029
        %3388 = vmatpush.bf16.msra.mxu0 %v3025
        %3389 = vmatpush.bf16.msra.mxu0 %v3021
        %3390 = vmatpush.bf16.msra.mxu0 %v3017
        %3391 = vmatpush.bf16.msra.mxu0 %v3013
        %3392 = vmatmul.bf16.gmra.mxu0 %v2422
        %v3393 = vpop.f32.mrf.mxu0
        %v3394 = vadd.f32 %v3381, %v3393
        %v3395 = vpop.f32.mrf.mxu0
        %3396 = vdwg.mxu0
        %3397 = vmatpush.bf16.msra.mxu0 %v3073
        %3398 = vmatpush.bf16.msra.mxu0 %v3069
        %3399 = vmatpush.bf16.msra.mxu0 %v3065
        %3400 = vmatpush.bf16.msra.mxu0 %v3061
        %3401 = vmatpush.bf16.msra.mxu0 %v3057
        %3402 = vmatpush.bf16.msra.mxu0 %v3053
        %3403 = vmatpush.bf16.msra.mxu0 %v3049
        %3404 = vmatpush.bf16.msra.mxu0 %v3045
        %3405 = vmatmul.bf16.gmra.mxu0 %v2423
        %v3406 = vpop.f32.mrf.mxu0
        %v3407 = vadd.f32 %v3394, %v3406
        %v3408 = vpop.f32.mrf.mxu0
        %3409 = vdwg.mxu0
        %v3410 = vmax.f32 %v3251, 0.0
        %v3411 = vmax.f32 %v3303, 0.0
        %v3412 = vmax.f32 %v3355, 0.0
        %v3413 = vmax.f32 %v3407, 0.0
        %v3414 = vpack.c.bf16 %v3410, %v3410
        %v3415 = vpack.c.bf16 %v3411, %v3411
        %v3416 = vpack.c.bf16 %v3412, %v3412
        %v3417 = vpack.c.bf16 %v3413, %v3413
        %v3418 = vld [vmem:[#allocation6] sm:$0xff]
        %v3419 = vld [vmem:[#allocation6 + $0x8] sm:$0xff]
        %v3420 = vld [vmem:[#allocation6 + $0x10] sm:$0xff]
        %v3421 = vld [vmem:[#allocation6 + $0x18] sm:$0xff]
        %v3422 = vld [vmem:[#allocation6 + $0x20] sm:$0xff]
        %v3423 = vld [vmem:[#allocation6 + $0x28] sm:$0xff]
        %v3424 = vld [vmem:[#allocation6 + $0x30] sm:$0xff]
        %v3425 = vld [vmem:[#allocation6 + $0x38] sm:$0xff]
        %v3426 = vld [vmem:[#allocation6 + $0x40] sm:$0xff]
        %v3427 = vld [vmem:[#allocation6 + $0x48] sm:$0xff]
        %v3428 = vld [vmem:[#allocation6 + $0x50] sm:$0xff]
        %v3429 = vld [vmem:[#allocation6 + $0x58] sm:$0xff]
        %v3430 = vld [vmem:[#allocation6 + $0x60] sm:$0xff]
        %v3431 = vld [vmem:[#allocation6 + $0x68] sm:$0xff]
        %v3432 = vld [vmem:[#allocation6 + $0x70] sm:$0xff]
        %v3433 = vld [vmem:[#allocation6 + $0x78] sm:$0xff]
        %v3434 = vld [vmem:[#allocation6 + $0x80] sm:$0xff]
        %v3435 = vld [vmem:[#allocation6 + $0x88] sm:$0xff]
        %v3436 = vld [vmem:[#allocation6 + $0x90] sm:$0xff]
        %v3437 = vld [vmem:[#allocation6 + $0x98] sm:$0xff]
        %v3438 = vld [vmem:[#allocation6 + $0xa0] sm:$0xff]
        %v3439 = vld [vmem:[#allocation6 + $0xa8] sm:$0xff]
        %v3440 = vld [vmem:[#allocation6 + $0xb0] sm:$0xff]
        %v3441 = vld [vmem:[#allocation6 + $0xb8] sm:$0xff]
        %v3442 = vld [vmem:[#allocation6 + $0xc0] sm:$0xff]
        %v3443 = vld [vmem:[#allocation6 + $0xc8] sm:$0xff]
        %v3444 = vld [vmem:[#allocation6 + $0xd0] sm:$0xff]
        %v3445 = vld [vmem:[#allocation6 + $0xd8] sm:$0xff]
        %v3446 = vld [vmem:[#allocation6 + $0xe0] sm:$0xff]
        %v3447 = vld [vmem:[#allocation6 + $0xe8] sm:$0xff]
        %v3448 = vld [vmem:[#allocation6 + $0xf0] sm:$0xff]
        %v3449 = vld [vmem:[#allocation6 + $0xf8] sm:$0xff]
        %v3450 = vld [vmem:[#allocation6 + $0x100] sm:$0xff]
        %v3451 = vld [vmem:[#allocation6 + $0x108] sm:$0xff]
        %v3452 = vld [vmem:[#allocation6 + $0x110] sm:$0xff]
        %v3453 = vld [vmem:[#allocation6 + $0x118] sm:$0xff]
        %v3454 = vld [vmem:[#allocation6 + $0x120] sm:$0xff]
        %v3455 = vld [vmem:[#allocation6 + $0x128] sm:$0xff]
        %v3456 = vld [vmem:[#allocation6 + $0x130] sm:$0xff]
        %v3457 = vld [vmem:[#allocation6 + $0x138] sm:$0xff]
        %v3458 = vld [vmem:[#allocation6 + $0x140] sm:$0xff]
        %v3459 = vld [vmem:[#allocation6 + $0x148] sm:$0xff]
        %v3460 = vld [vmem:[#allocation6 + $0x150] sm:$0xff]
        %v3461 = vld [vmem:[#allocation6 + $0x158] sm:$0xff]
        %v3462 = vld [vmem:[#allocation6 + $0x160] sm:$0xff]
        %v3463 = vld [vmem:[#allocation6 + $0x168] sm:$0xff]
        %v3464 = vld [vmem:[#allocation6 + $0x170] sm:$0xff]
        %v3465 = vld [vmem:[#allocation6 + $0x178] sm:$0xff]
        %v3466 = vld [vmem:[#allocation6 + $0x180] sm:$0xff]
        %v3467 = vld [vmem:[#allocation6 + $0x188] sm:$0xff]
        %v3468 = vld [vmem:[#allocation6 + $0x190] sm:$0xff]
        %v3469 = vld [vmem:[#allocation6 + $0x198] sm:$0xff]
        %v3470 = vld [vmem:[#allocation6 + $0x1a0] sm:$0xff]
        %v3471 = vld [vmem:[#allocation6 + $0x1a8] sm:$0xff]
        %v3472 = vld [vmem:[#allocation6 + $0x1b0] sm:$0xff]
        %v3473 = vld [vmem:[#allocation6 + $0x1b8] sm:$0xff]
        %v3474 = vld [vmem:[#allocation6 + $0x1c0] sm:$0xff]
        %v3475 = vld [vmem:[#allocation6 + $0x1c8] sm:$0xff]
        %v3476 = vld [vmem:[#allocation6 + $0x1d0] sm:$0xff]
        %v3477 = vld [vmem:[#allocation6 + $0x1d8] sm:$0xff]
        %v3478 = vld [vmem:[#allocation6 + $0x1e0] sm:$0xff]
        %v3479 = vld [vmem:[#allocation6 + $0x1e8] sm:$0xff]
        %v3480 = vld [vmem:[#allocation6 + $0x1f0] sm:$0xff]
        %v3481 = vld [vmem:[#allocation6 + $0x1f8] sm:$0xff]
        %v3482 = vld [vmem:[#allocation6 + $0x200] sm:$0xff]
        %v3483 = vld [vmem:[#allocation6 + $0x208] sm:$0xff]
        %v3484 = vld [vmem:[#allocation6 + $0x210] sm:$0xff]
        %v3485 = vld [vmem:[#allocation6 + $0x218] sm:$0xff]
        %v3486 = vld [vmem:[#allocation6 + $0x220] sm:$0xff]
        %v3487 = vld [vmem:[#allocation6 + $0x228] sm:$0xff]
        %v3488 = vld [vmem:[#allocation6 + $0x230] sm:$0xff]
        %v3489 = vld [vmem:[#allocation6 + $0x238] sm:$0xff]
        %v3490 = vld [vmem:[#allocation6 + $0x240] sm:$0xff]
        %v3491 = vld [vmem:[#allocation6 + $0x248] sm:$0xff]
        %v3492 = vld [vmem:[#allocation6 + $0x250] sm:$0xff]
        %v3493 = vld [vmem:[#allocation6 + $0x258] sm:$0xff]
        %v3494 = vld [vmem:[#allocation6 + $0x260] sm:$0xff]
        %v3495 = vld [vmem:[#allocation6 + $0x268] sm:$0xff]
        %v3496 = vld [vmem:[#allocation6 + $0x270] sm:$0xff]
        %v3497 = vld [vmem:[#allocation6 + $0x278] sm:$0xff]
        %v3498 = vld [vmem:[#allocation6 + $0x280] sm:$0xff]
        %v3499 = vld [vmem:[#allocation6 + $0x288] sm:$0xff]
        %v3500 = vld [vmem:[#allocation6 + $0x290] sm:$0xff]
        %v3501 = vld [vmem:[#allocation6 + $0x298] sm:$0xff]
        %v3502 = vld [vmem:[#allocation6 + $0x2a0] sm:$0xff]
        %v3503 = vld [vmem:[#allocation6 + $0x2a8] sm:$0xff]
        %v3504 = vld [vmem:[#allocation6 + $0x2b0] sm:$0xff]
        %v3505 = vld [vmem:[#allocation6 + $0x2b8] sm:$0xff]
        %v3506 = vld [vmem:[#allocation6 + $0x2c0] sm:$0xff]
        %v3507 = vld [vmem:[#allocation6 + $0x2c8] sm:$0xff]
        %v3508 = vld [vmem:[#allocation6 + $0x2d0] sm:$0xff]
        %v3509 = vld [vmem:[#allocation6 + $0x2d8] sm:$0xff]
        %v3510 = vld [vmem:[#allocation6 + $0x2e0] sm:$0xff]
        %v3511 = vld [vmem:[#allocation6 + $0x2e8] sm:$0xff]
        %v3512 = vld [vmem:[#allocation6 + $0x2f0] sm:$0xff]
        %v3513 = vld [vmem:[#allocation6 + $0x2f8] sm:$0xff]
        %v3514 = vld [vmem:[#allocation6 + $0x300] sm:$0xff]
        %v3515 = vld [vmem:[#allocation6 + $0x308] sm:$0xff]
        %v3516 = vld [vmem:[#allocation6 + $0x310] sm:$0xff]
        %v3517 = vld [vmem:[#allocation6 + $0x318] sm:$0xff]
        %v3518 = vld [vmem:[#allocation6 + $0x320] sm:$0xff]
        %v3519 = vld [vmem:[#allocation6 + $0x328] sm:$0xff]
        %v3520 = vld [vmem:[#allocation6 + $0x330] sm:$0xff]
        %v3521 = vld [vmem:[#allocation6 + $0x338] sm:$0xff]
        %v3522 = vld [vmem:[#allocation6 + $0x340] sm:$0xff]
        %v3523 = vld [vmem:[#allocation6 + $0x348] sm:$0xff]
        %v3524 = vld [vmem:[#allocation6 + $0x350] sm:$0xff]
        %v3525 = vld [vmem:[#allocation6 + $0x358] sm:$0xff]
        %v3526 = vld [vmem:[#allocation6 + $0x360] sm:$0xff]
        %v3527 = vld [vmem:[#allocation6 + $0x368] sm:$0xff]
        %v3528 = vld [vmem:[#allocation6 + $0x370] sm:$0xff]
        %v3529 = vld [vmem:[#allocation6 + $0x378] sm:$0xff]
        %v3530 = vld [vmem:[#allocation6 + $0x380] sm:$0xff]
        %v3531 = vld [vmem:[#allocation6 + $0x388] sm:$0xff]
        %v3532 = vld [vmem:[#allocation6 + $0x390] sm:$0xff]
        %v3533 = vld [vmem:[#allocation6 + $0x398] sm:$0xff]
        %v3534 = vld [vmem:[#allocation6 + $0x3a0] sm:$0xff]
        %v3535 = vld [vmem:[#allocation6 + $0x3a8] sm:$0xff]
        %v3536 = vld [vmem:[#allocation6 + $0x3b0] sm:$0xff]
        %v3537 = vld [vmem:[#allocation6 + $0x3b8] sm:$0xff]
        %v3538 = vld [vmem:[#allocation6 + $0x3c0] sm:$0xff]
        %v3539 = vld [vmem:[#allocation6 + $0x3c8] sm:$0xff]
        %v3540 = vld [vmem:[#allocation6 + $0x3d0] sm:$0xff]
        %v3541 = vld [vmem:[#allocation6 + $0x3d8] sm:$0xff]
        %v3542 = vld [vmem:[#allocation6 + $0x3e0] sm:$0xff]
        %v3543 = vld [vmem:[#allocation6 + $0x3e8] sm:$0xff]
        %v3544 = vld [vmem:[#allocation6 + $0x3f0] sm:$0xff]
        %v3545 = vld [vmem:[#allocation6 + $0x3f8] sm:$0xff]
        %v3546 = vld [vmem:[%s7] sm:$0xf]
        %v3548 = vperm.slane %v3546, 0
        %v3549 = vperm.slane %v3546, 1
        %v3550 = vperm.slane %v3546, 2
        %v3551 = vperm.slane %v3546, 3
        %v3684 = vunpack.c.l.b16 %v3418
        %v3685 = vunpack.c.h.b16 %v3418
        %v3686 = vunpack.c.l.b16 %v3419
        %v3687 = vunpack.c.h.b16 %v3419
        %v3688 = vunpack.c.l.b16 %v3420
        %v3689 = vunpack.c.h.b16 %v3420
        %v3690 = vunpack.c.l.b16 %v3421
        %v3691 = vunpack.c.h.b16 %v3421
        %v3692 = vunpack.c.l.b16 %v3422
        %v3693 = vunpack.c.h.b16 %v3422
        %v3694 = vunpack.c.l.b16 %v3423
        %v3695 = vunpack.c.h.b16 %v3423
        %v3696 = vunpack.c.l.b16 %v3424
        %v3697 = vunpack.c.h.b16 %v3424
        %v3698 = vunpack.c.l.b16 %v3425
        %v3699 = vunpack.c.h.b16 %v3425
        %v3700 = vunpack.c.l.b16 %v3426
        %v3701 = vunpack.c.h.b16 %v3426
        %v3702 = vunpack.c.l.b16 %v3427
        %v3703 = vunpack.c.h.b16 %v3427
        %v3704 = vunpack.c.l.b16 %v3428
        %v3705 = vunpack.c.h.b16 %v3428
        %v3706 = vunpack.c.l.b16 %v3429
        %v3707 = vunpack.c.h.b16 %v3429
        %v3708 = vunpack.c.l.b16 %v3430
        %v3709 = vunpack.c.h.b16 %v3430
        %v3710 = vunpack.c.l.b16 %v3431
        %v3711 = vunpack.c.h.b16 %v3431
        %v3712 = vunpack.c.l.b16 %v3432
        %v3713 = vunpack.c.h.b16 %v3432
        %v3714 = vunpack.c.l.b16 %v3433
        %v3715 = vunpack.c.h.b16 %v3433
        %v3716 = vunpack.c.l.b16 %v3434
        %v3717 = vunpack.c.h.b16 %v3434
        %v3718 = vunpack.c.l.b16 %v3435
        %v3719 = vunpack.c.h.b16 %v3435
        %v3720 = vunpack.c.l.b16 %v3436
        %v3721 = vunpack.c.h.b16 %v3436
        %v3722 = vunpack.c.l.b16 %v3437
        %v3723 = vunpack.c.h.b16 %v3437
        %v3724 = vunpack.c.l.b16 %v3438
        %v3725 = vunpack.c.h.b16 %v3438
        %v3726 = vunpack.c.l.b16 %v3439
        %v3727 = vunpack.c.h.b16 %v3439
        %v3728 = vunpack.c.l.b16 %v3440
        %v3729 = vunpack.c.h.b16 %v3440
        %v3730 = vunpack.c.l.b16 %v3441
        %v3731 = vunpack.c.h.b16 %v3441
        %v3732 = vunpack.c.l.b16 %v3442
        %v3733 = vunpack.c.h.b16 %v3442
        %v3734 = vunpack.c.l.b16 %v3443
        %v3735 = vunpack.c.h.b16 %v3443
        %v3736 = vunpack.c.l.b16 %v3444
        %v3737 = vunpack.c.h.b16 %v3444
        %v3738 = vunpack.c.l.b16 %v3445
        %v3739 = vunpack.c.h.b16 %v3445
        %v3740 = vunpack.c.l.b16 %v3446
        %v3741 = vunpack.c.h.b16 %v3446
        %v3742 = vunpack.c.l.b16 %v3447
        %v3743 = vunpack.c.h.b16 %v3447
        %v3744 = vunpack.c.l.b16 %v3448
        %v3745 = vunpack.c.h.b16 %v3448
        %v3746 = vunpack.c.l.b16 %v3449
        %v3747 = vunpack.c.h.b16 %v3449
        %v3748 = vunpack.c.l.b16 %v3450
        %v3749 = vunpack.c.h.b16 %v3450
        %v3750 = vunpack.c.l.b16 %v3451
        %v3751 = vunpack.c.h.b16 %v3451
        %v3752 = vunpack.c.l.b16 %v3452
        %v3753 = vunpack.c.h.b16 %v3452
        %v3754 = vunpack.c.l.b16 %v3453
        %v3755 = vunpack.c.h.b16 %v3453
        %v3756 = vunpack.c.l.b16 %v3454
        %v3757 = vunpack.c.h.b16 %v3454
        %v3758 = vunpack.c.l.b16 %v3455
        %v3759 = vunpack.c.h.b16 %v3455
        %v3760 = vunpack.c.l.b16 %v3456
        %v3761 = vunpack.c.h.b16 %v3456
        %v3762 = vunpack.c.l.b16 %v3457
        %v3763 = vunpack.c.h.b16 %v3457
        %v3764 = vunpack.c.l.b16 %v3458
        %v3765 = vunpack.c.h.b16 %v3458
        %v3766 = vunpack.c.l.b16 %v3459
        %v3767 = vunpack.c.h.b16 %v3459
        %v3768 = vunpack.c.l.b16 %v3460
        %v3769 = vunpack.c.h.b16 %v3460
        %v3770 = vunpack.c.l.b16 %v3461
        %v3771 = vunpack.c.h.b16 %v3461
        %v3772 = vunpack.c.l.b16 %v3462
        %v3773 = vunpack.c.h.b16 %v3462
        %v3774 = vunpack.c.l.b16 %v3463
        %v3775 = vunpack.c.h.b16 %v3463
        %v3776 = vunpack.c.l.b16 %v3464
        %v3777 = vunpack.c.h.b16 %v3464
        %v3778 = vunpack.c.l.b16 %v3465
        %v3779 = vunpack.c.h.b16 %v3465
        %v3780 = vunpack.c.l.b16 %v3466
        %v3781 = vunpack.c.h.b16 %v3466
        %v3782 = vunpack.c.l.b16 %v3467
        %v3783 = vunpack.c.h.b16 %v3467
        %v3784 = vunpack.c.l.b16 %v3468
        %v3785 = vunpack.c.h.b16 %v3468
        %v3786 = vunpack.c.l.b16 %v3469
        %v3787 = vunpack.c.h.b16 %v3469
        %v3788 = vunpack.c.l.b16 %v3470
        %v3789 = vunpack.c.h.b16 %v3470
        %v3790 = vunpack.c.l.b16 %v3471
        %v3791 = vunpack.c.h.b16 %v3471
        %v3792 = vunpack.c.l.b16 %v3472
        %v3793 = vunpack.c.h.b16 %v3472
        %v3794 = vunpack.c.l.b16 %v3473
        %v3795 = vunpack.c.h.b16 %v3473
        %v3796 = vunpack.c.l.b16 %v3474
        %v3797 = vunpack.c.h.b16 %v3474
        %v3798 = vunpack.c.l.b16 %v3475
        %v3799 = vunpack.c.h.b16 %v3475
        %v3800 = vunpack.c.l.b16 %v3476
        %v3801 = vunpack.c.h.b16 %v3476
        %v3802 = vunpack.c.l.b16 %v3477
        %v3803 = vunpack.c.h.b16 %v3477
        %v3804 = vunpack.c.l.b16 %v3478
        %v3805 = vunpack.c.h.b16 %v3478
        %v3806 = vunpack.c.l.b16 %v3479
        %v3807 = vunpack.c.h.b16 %v3479
        %v3808 = vunpack.c.l.b16 %v3480
        %v3809 = vunpack.c.h.b16 %v3480
        %v3810 = vunpack.c.l.b16 %v3481
        %v3811 = vunpack.c.h.b16 %v3481
        %v3812 = vunpack.c.l.b16 %v3482
        %v3813 = vunpack.c.h.b16 %v3482
        %v3814 = vunpack.c.l.b16 %v3483
        %v3815 = vunpack.c.h.b16 %v3483
        %v3816 = vunpack.c.l.b16 %v3484
        %v3817 = vunpack.c.h.b16 %v3484
        %v3818 = vunpack.c.l.b16 %v3485
        %v3819 = vunpack.c.h.b16 %v3485
        %v3820 = vunpack.c.l.b16 %v3486
        %v3821 = vunpack.c.h.b16 %v3486
        %v3822 = vunpack.c.l.b16 %v3487
        %v3823 = vunpack.c.h.b16 %v3487
        %v3824 = vunpack.c.l.b16 %v3488
        %v3825 = vunpack.c.h.b16 %v3488
        %v3826 = vunpack.c.l.b16 %v3489
        %v3827 = vunpack.c.h.b16 %v3489
        %v3828 = vunpack.c.l.b16 %v3490
        %v3829 = vunpack.c.h.b16 %v3490
        %v3830 = vunpack.c.l.b16 %v3491
        %v3831 = vunpack.c.h.b16 %v3491
        %v3832 = vunpack.c.l.b16 %v3492
        %v3833 = vunpack.c.h.b16 %v3492
        %v3834 = vunpack.c.l.b16 %v3493
        %v3835 = vunpack.c.h.b16 %v3493
        %v3836 = vunpack.c.l.b16 %v3494
        %v3837 = vunpack.c.h.b16 %v3494
        %v3838 = vunpack.c.l.b16 %v3495
        %v3839 = vunpack.c.h.b16 %v3495
        %v3840 = vunpack.c.l.b16 %v3496
        %v3841 = vunpack.c.h.b16 %v3496
        %v3842 = vunpack.c.l.b16 %v3497
        %v3843 = vunpack.c.h.b16 %v3497
        %v3844 = vunpack.c.l.b16 %v3498
        %v3845 = vunpack.c.h.b16 %v3498
        %v3846 = vunpack.c.l.b16 %v3499
        %v3847 = vunpack.c.h.b16 %v3499
        %v3848 = vunpack.c.l.b16 %v3500
        %v3849 = vunpack.c.h.b16 %v3500
        %v3850 = vunpack.c.l.b16 %v3501
        %v3851 = vunpack.c.h.b16 %v3501
        %v3852 = vunpack.c.l.b16 %v3502
        %v3853 = vunpack.c.h.b16 %v3502
        %v3854 = vunpack.c.l.b16 %v3503
        %v3855 = vunpack.c.h.b16 %v3503
        %v3856 = vunpack.c.l.b16 %v3504
        %v3857 = vunpack.c.h.b16 %v3504
        %v3858 = vunpack.c.l.b16 %v3505
        %v3859 = vunpack.c.h.b16 %v3505
        %v3860 = vunpack.c.l.b16 %v3506
        %v3861 = vunpack.c.h.b16 %v3506
        %v3862 = vunpack.c.l.b16 %v3507
        %v3863 = vunpack.c.h.b16 %v3507
        %v3864 = vunpack.c.l.b16 %v3508
        %v3865 = vunpack.c.h.b16 %v3508
        %v3866 = vunpack.c.l.b16 %v3509
        %v3867 = vunpack.c.h.b16 %v3509
        %v3868 = vunpack.c.l.b16 %v3510
        %v3869 = vunpack.c.h.b16 %v3510
        %v3870 = vunpack.c.l.b16 %v3511
        %v3871 = vunpack.c.h.b16 %v3511
        %v3872 = vunpack.c.l.b16 %v3512
        %v3873 = vunpack.c.h.b16 %v3512
        %v3874 = vunpack.c.l.b16 %v3513
        %v3875 = vunpack.c.h.b16 %v3513
        %v3876 = vunpack.c.l.b16 %v3514
        %v3877 = vunpack.c.h.b16 %v3514
        %v3878 = vunpack.c.l.b16 %v3515
        %v3879 = vunpack.c.h.b16 %v3515
        %v3880 = vunpack.c.l.b16 %v3516
        %v3881 = vunpack.c.h.b16 %v3516
        %v3882 = vunpack.c.l.b16 %v3517
        %v3883 = vunpack.c.h.b16 %v3517
        %v3884 = vunpack.c.l.b16 %v3518
        %v3885 = vunpack.c.h.b16 %v3518
        %v3886 = vunpack.c.l.b16 %v3519
        %v3887 = vunpack.c.h.b16 %v3519
        %v3888 = vunpack.c.l.b16 %v3520
        %v3889 = vunpack.c.h.b16 %v3520
        %v3890 = vunpack.c.l.b16 %v3521
        %v3891 = vunpack.c.h.b16 %v3521
        %v3892 = vunpack.c.l.b16 %v3522
        %v3893 = vunpack.c.h.b16 %v3522
        %v3894 = vunpack.c.l.b16 %v3523
        %v3895 = vunpack.c.h.b16 %v3523
        %v3896 = vunpack.c.l.b16 %v3524
        %v3897 = vunpack.c.h.b16 %v3524
        %v3898 = vunpack.c.l.b16 %v3525
        %v3899 = vunpack.c.h.b16 %v3525
        %v3900 = vunpack.c.l.b16 %v3526
        %v3901 = vunpack.c.h.b16 %v3526
        %v3902 = vunpack.c.l.b16 %v3527
        %v3903 = vunpack.c.h.b16 %v3527
        %v3904 = vunpack.c.l.b16 %v3528
        %v3905 = vunpack.c.h.b16 %v3528
        %v3906 = vunpack.c.l.b16 %v3529
        %v3907 = vunpack.c.h.b16 %v3529
        %v3908 = vunpack.c.l.b16 %v3530
        %v3909 = vunpack.c.h.b16 %v3530
        %v3910 = vunpack.c.l.b16 %v3531
        %v3911 = vunpack.c.h.b16 %v3531
        %v3912 = vunpack.c.l.b16 %v3532
        %v3913 = vunpack.c.h.b16 %v3532
        %v3914 = vunpack.c.l.b16 %v3533
        %v3915 = vunpack.c.h.b16 %v3533
        %v3916 = vunpack.c.l.b16 %v3534
        %v3917 = vunpack.c.h.b16 %v3534
        %v3918 = vunpack.c.l.b16 %v3535
        %v3919 = vunpack.c.h.b16 %v3535
        %v3920 = vunpack.c.l.b16 %v3536
        %v3921 = vunpack.c.h.b16 %v3536
        %v3922 = vunpack.c.l.b16 %v3537
        %v3923 = vunpack.c.h.b16 %v3537
        %v3924 = vunpack.c.l.b16 %v3538
        %v3925 = vunpack.c.h.b16 %v3538
        %v3926 = vunpack.c.l.b16 %v3539
        %v3927 = vunpack.c.h.b16 %v3539
        %v3928 = vunpack.c.l.b16 %v3540
        %v3929 = vunpack.c.h.b16 %v3540
        %v3930 = vunpack.c.l.b16 %v3541
        %v3931 = vunpack.c.h.b16 %v3541
        %v3932 = vunpack.c.l.b16 %v3542
        %v3933 = vunpack.c.h.b16 %v3542
        %v3934 = vunpack.c.l.b16 %v3543
        %v3935 = vunpack.c.h.b16 %v3543
        %v3936 = vunpack.c.l.b16 %v3544
        %v3937 = vunpack.c.h.b16 %v3544
        %v3938 = vunpack.c.l.b16 %v3545
        %v3939 = vunpack.c.h.b16 %v3545
        %v3940 = vpack.c.b16 %v3688, %v3684
        %v3941 = vpack.c.b16 %v3689, %v3685
        %v3942 = vpack.c.b16 %v3690, %v3686
        %v3943 = vpack.c.b16 %v3691, %v3687
        %v3944 = vpack.c.b16 %v3696, %v3692
        %v3945 = vpack.c.b16 %v3697, %v3693
        %v3946 = vpack.c.b16 %v3698, %v3694
        %v3947 = vpack.c.b16 %v3699, %v3695
        %v3948 = vpack.c.b16 %v3704, %v3700
        %v3949 = vpack.c.b16 %v3705, %v3701
        %v3950 = vpack.c.b16 %v3706, %v3702
        %v3951 = vpack.c.b16 %v3707, %v3703
        %v3952 = vpack.c.b16 %v3712, %v3708
        %v3953 = vpack.c.b16 %v3713, %v3709
        %v3954 = vpack.c.b16 %v3714, %v3710
        %v3955 = vpack.c.b16 %v3715, %v3711
        %v3956 = vpack.c.b16 %v3720, %v3716
        %v3957 = vpack.c.b16 %v3721, %v3717
        %v3958 = vpack.c.b16 %v3722, %v3718
        %v3959 = vpack.c.b16 %v3723, %v3719
        %v3960 = vpack.c.b16 %v3728, %v3724
        %v3961 = vpack.c.b16 %v3729, %v3725
        %v3962 = vpack.c.b16 %v3730, %v3726
        %v3963 = vpack.c.b16 %v3731, %v3727
        %v3964 = vpack.c.b16 %v3736, %v3732
        %v3965 = vpack.c.b16 %v3737, %v3733
        %v3966 = vpack.c.b16 %v3738, %v3734
        %v3967 = vpack.c.b16 %v3739, %v3735
        %v3968 = vpack.c.b16 %v3744, %v3740
        %v3969 = vpack.c.b16 %v3745, %v3741
        %v3970 = vpack.c.b16 %v3746, %v3742
        %v3971 = vpack.c.b16 %v3747, %v3743
        %v3972 = vpack.c.b16 %v3752, %v3748
        %v3973 = vpack.c.b16 %v3753, %v3749
        %v3974 = vpack.c.b16 %v3754, %v3750
        %v3975 = vpack.c.b16 %v3755, %v3751
        %v3976 = vpack.c.b16 %v3760, %v3756
        %v3977 = vpack.c.b16 %v3761, %v3757
        %v3978 = vpack.c.b16 %v3762, %v3758
        %v3979 = vpack.c.b16 %v3763, %v3759
        %v3980 = vpack.c.b16 %v3768, %v3764
        %v3981 = vpack.c.b16 %v3769, %v3765
        %v3982 = vpack.c.b16 %v3770, %v3766
        %v3983 = vpack.c.b16 %v3771, %v3767
        %v3984 = vpack.c.b16 %v3776, %v3772
        %v3985 = vpack.c.b16 %v3777, %v3773
        %v3986 = vpack.c.b16 %v3778, %v3774
        %v3987 = vpack.c.b16 %v3779, %v3775
        %v3988 = vpack.c.b16 %v3784, %v3780
        %v3989 = vpack.c.b16 %v3785, %v3781
        %v3990 = vpack.c.b16 %v3786, %v3782
        %v3991 = vpack.c.b16 %v3787, %v3783
        %v3992 = vpack.c.b16 %v3792, %v3788
        %v3993 = vpack.c.b16 %v3793, %v3789
        %v3994 = vpack.c.b16 %v3794, %v3790
        %v3995 = vpack.c.b16 %v3795, %v3791
        %v3996 = vpack.c.b16 %v3800, %v3796
        %v3997 = vpack.c.b16 %v3801, %v3797
        %v3998 = vpack.c.b16 %v3802, %v3798
        %v3999 = vpack.c.b16 %v3803, %v3799
        %v4000 = vpack.c.b16 %v3808, %v3804
        %v4001 = vpack.c.b16 %v3809, %v3805
        %v4002 = vpack.c.b16 %v3810, %v3806
        %v4003 = vpack.c.b16 %v3811, %v3807
        %v4004 = vpack.c.b16 %v3816, %v3812
        %v4005 = vpack.c.b16 %v3817, %v3813
        %v4006 = vpack.c.b16 %v3818, %v3814
        %v4007 = vpack.c.b16 %v3819, %v3815
        %v4008 = vpack.c.b16 %v3824, %v3820
        %v4009 = vpack.c.b16 %v3825, %v3821
        %v4010 = vpack.c.b16 %v3826, %v3822
        %v4011 = vpack.c.b16 %v3827, %v3823
        %v4012 = vpack.c.b16 %v3832, %v3828
        %v4013 = vpack.c.b16 %v3833, %v3829
        %v4014 = vpack.c.b16 %v3834, %v3830
        %v4015 = vpack.c.b16 %v3835, %v3831
        %v4016 = vpack.c.b16 %v3840, %v3836
        %v4017 = vpack.c.b16 %v3841, %v3837
        %v4018 = vpack.c.b16 %v3842, %v3838
        %v4019 = vpack.c.b16 %v3843, %v3839
        %v4020 = vpack.c.b16 %v3848, %v3844
        %v4021 = vpack.c.b16 %v3849, %v3845
        %v4022 = vpack.c.b16 %v3850, %v3846
        %v4023 = vpack.c.b16 %v3851, %v3847
        %v4024 = vpack.c.b16 %v3856, %v3852
        %v4025 = vpack.c.b16 %v3857, %v3853
        %v4026 = vpack.c.b16 %v3858, %v3854
        %v4027 = vpack.c.b16 %v3859, %v3855
        %v4028 = vpack.c.b16 %v3864, %v3860
        %v4029 = vpack.c.b16 %v3865, %v3861
        %v4030 = vpack.c.b16 %v3866, %v3862
        %v4031 = vpack.c.b16 %v3867, %v3863
        %v4032 = vpack.c.b16 %v3872, %v3868
        %v4033 = vpack.c.b16 %v3873, %v3869
        %v4034 = vpack.c.b16 %v3874, %v3870
        %v4035 = vpack.c.b16 %v3875, %v3871
        %v4036 = vpack.c.b16 %v3880, %v3876
        %v4037 = vpack.c.b16 %v3881, %v3877
        %v4038 = vpack.c.b16 %v3882, %v3878
        %v4039 = vpack.c.b16 %v3883, %v3879
        %v4040 = vpack.c.b16 %v3888, %v3884
        %v4041 = vpack.c.b16 %v3889, %v3885
        %v4042 = vpack.c.b16 %v3890, %v3886
        %v4043 = vpack.c.b16 %v3891, %v3887
        %v4044 = vpack.c.b16 %v3896, %v3892
        %v4045 = vpack.c.b16 %v3897, %v3893
        %v4046 = vpack.c.b16 %v3898, %v3894
        %v4047 = vpack.c.b16 %v3899, %v3895
        %v4048 = vpack.c.b16 %v3904, %v3900
        %v4049 = vpack.c.b16 %v3905, %v3901
        %v4050 = vpack.c.b16 %v3906, %v3902
        %v4051 = vpack.c.b16 %v3907, %v3903
        %v4052 = vpack.c.b16 %v3912, %v3908
        %v4053 = vpack.c.b16 %v3913, %v3909
        %v4054 = vpack.c.b16 %v3914, %v3910
        %v4055 = vpack.c.b16 %v3915, %v3911
        %v4056 = vpack.c.b16 %v3920, %v3916
        %v4057 = vpack.c.b16 %v3921, %v3917
        %v4058 = vpack.c.b16 %v3922, %v3918
        %v4059 = vpack.c.b16 %v3923, %v3919
        %v4060 = vpack.c.b16 %v3928, %v3924
        %v4061 = vpack.c.b16 %v3929, %v3925
        %v4062 = vpack.c.b16 %v3930, %v3926
        %v4063 = vpack.c.b16 %v3931, %v3927
        %v4064 = vpack.c.b16 %v3936, %v3932
        %v4065 = vpack.c.b16 %v3937, %v3933
        %v4066 = vpack.c.b16 %v3938, %v3934
        %v4067 = vpack.c.b16 %v3939, %v3935
        %4196 = vmatpush.bf16.msra.mxu0 %v3968
        %4197 = vmatpush.bf16.msra.mxu0 %v3964
        %4198 = vmatpush.bf16.msra.mxu0 %v3960
        %4199 = vmatpush.bf16.msra.mxu0 %v3956
        %4200 = vmatpush.bf16.msra.mxu0 %v3952
        %4201 = vmatpush.bf16.msra.mxu0 %v3948
        %4202 = vmatpush.bf16.msra.mxu0 %v3944
        %4203 = vmatpush.bf16.msra.mxu0 %v3940
        %4204 = vmatmul.bf16.gmra.mxu0 %v3414
        %v4205 = vpop.f32.mrf.mxu0
        %v4206 = vadd.f32 %v3548, %v4205
        %v4207 = vpop.f32.mrf.mxu0
        %4208 = vdwg.mxu0
        %4209 = vmatpush.bf16.msra.mxu0 %v4000
        %4210 = vmatpush.bf16.msra.mxu0 %v3996
        %4211 = vmatpush.bf16.msra.mxu0 %v3992
        %4212 = vmatpush.bf16.msra.mxu0 %v3988
        %4213 = vmatpush.bf16.msra.mxu0 %v3984
        %4214 = vmatpush.bf16.msra.mxu0 %v3980
        %4215 = vmatpush.bf16.msra.mxu0 %v3976
        %4216 = vmatpush.bf16.msra.mxu0 %v3972
        %4217 = vmatmul.bf16.gmra.mxu0 %v3415
        %v4218 = vpop.f32.mrf.mxu0
        %v4219 = vadd.f32 %v4206, %v4218
        %v4220 = vpop.f32.mrf.mxu0
        %4221 = vdwg.mxu0
        %4222 = vmatpush.bf16.msra.mxu0 %v4032
        %4223 = vmatpush.bf16.msra.mxu0 %v4028
        %4224 = vmatpush.bf16.msra.mxu0 %v4024
        %4225 = vmatpush.bf16.msra.mxu0 %v4020
        %4226 = vmatpush.bf16.msra.mxu0 %v4016
        %4227 = vmatpush.bf16.msra.mxu0 %v4012
        %4228 = vmatpush.bf16.msra.mxu0 %v4008
        %4229 = vmatpush.bf16.msra.mxu0 %v4004
        %4230 = vmatmul.bf16.gmra.mxu0 %v3416
        %v4231 = vpop.f32.mrf.mxu0
        %v4232 = vadd.f32 %v4219, %v4231
        %v4233 = vpop.f32.mrf.mxu0
        %4234 = vdwg.mxu0
        %4235 = vmatpush.bf16.msra.mxu0 %v4064
        %4236 = vmatpush.bf16.msra.mxu0 %v4060
        %4237 = vmatpush.bf16.msra.mxu0 %v4056
        %4238 = vmatpush.bf16.msra.mxu0 %v4052
        %4239 = vmatpush.bf16.msra.mxu0 %v4048
        %4240 = vmatpush.bf16.msra.mxu0 %v4044
        %4241 = vmatpush.bf16.msra.mxu0 %v4040
        %4242 = vmatpush.bf16.msra.mxu0 %v4036
        %4243 = vmatmul.bf16.gmra.mxu0 %v3417
        %v4244 = vpop.f32.mrf.mxu0
        %v4245 = vadd.f32 %v4232, %v4244
        %v4246 = vpop.f32.mrf.mxu0
        %4247 = vdwg.mxu0
        %4248 = vmatpush.bf16.msra.mxu0 %v3969
        %4249 = vmatpush.bf16.msra.mxu0 %v3965
        %4250 = vmatpush.bf16.msra.mxu0 %v3961
        %4251 = vmatpush.bf16.msra.mxu0 %v3957
        %4252 = vmatpush.bf16.msra.mxu0 %v3953
        %4253 = vmatpush.bf16.msra.mxu0 %v3949
        %4254 = vmatpush.bf16.msra.mxu0 %v3945
        %4255 = vmatpush.bf16.msra.mxu0 %v3941
        %4256 = vmatmul.bf16.gmra.mxu0 %v3414
        %v4257 = vpop.f32.mrf.mxu0
        %v4258 = vadd.f32 %v3549, %v4257
        %v4259 = vpop.f32.mrf.mxu0
        %4260 = vdwg.mxu0
        %4261 = vmatpush.bf16.msra.mxu0 %v4001
        %4262 = vmatpush.bf16.msra.mxu0 %v3997
        %4263 = vmatpush.bf16.msra.mxu0 %v3993
        %4264 = vmatpush.bf16.msra.mxu0 %v3989
        %4265 = vmatpush.bf16.msra.mxu0 %v3985
        %4266 = vmatpush.bf16.msra.mxu0 %v3981
        %4267 = vmatpush.bf16.msra.mxu0 %v3977
        %4268 = vmatpush.bf16.msra.mxu0 %v3973
        %4269 = vmatmul.bf16.gmra.mxu0 %v3415
        %v4270 = vpop.f32.mrf.mxu0
        %v4271 = vadd.f32 %v4258, %v4270
        %v4272 = vpop.f32.mrf.mxu0
        %4273 = vdwg.mxu0
        %4274 = vmatpush.bf16.msra.mxu0 %v4033
        %4275 = vmatpush.bf16.msra.mxu0 %v4029
        %4276 = vmatpush.bf16.msra.mxu0 %v4025
        %4277 = vmatpush.bf16.msra.mxu0 %v4021
        %4278 = vmatpush.bf16.msra.mxu0 %v4017
        %4279 = vmatpush.bf16.msra.mxu0 %v4013
        %4280 = vmatpush.bf16.msra.mxu0 %v4009
        %4281 = vmatpush.bf16.msra.mxu0 %v4005
        %4282 = vmatmul.bf16.gmra.mxu0 %v3416
        %v4283 = vpop.f32.mrf.mxu0
        %v4284 = vadd.f32 %v4271, %v4283
        %v4285 = vpop.f32.mrf.mxu0
        %4286 = vdwg.mxu0
        %4287 = vmatpush.bf16.msra.mxu0 %v4065
        %4288 = vmatpush.bf16.msra.mxu0 %v4061
        %4289 = vmatpush.bf16.msra.mxu0 %v4057
        %4290 = vmatpush.bf16.msra.mxu0 %v4053
        %4291 = vmatpush.bf16.msra.mxu0 %v4049
        %4292 = vmatpush.bf16.msra.mxu0 %v4045
        %4293 = vmatpush.bf16.msra.mxu0 %v4041
        %4294 = vmatpush.bf16.msra.mxu0 %v4037
        %4295 = vmatmul.bf16.gmra.mxu0 %v3417
        %v4296 = vpop.f32.mrf.mxu0
        %v4297 = vadd.f32 %v4284, %v4296
        %v4298 = vpop.f32.mrf.mxu0
        %4299 = vdwg.mxu0
        %4300 = vmatpush.bf16.msra.mxu0 %v3970
        %4301 = vmatpush.bf16.msra.mxu0 %v3966
        %4302 = vmatpush.bf16.msra.mxu0 %v3962
        %4303 = vmatpush.bf16.msra.mxu0 %v3958
        %4304 = vmatpush.bf16.msra.mxu0 %v3954
        %4305 = vmatpush.bf16.msra.mxu0 %v3950
        %4306 = vmatpush.bf16.msra.mxu0 %v3946
        %4307 = vmatpush.bf16.msra.mxu0 %v3942
        %4308 = vmatmul.bf16.gmra.mxu0 %v3414
        %v4309 = vpop.f32.mrf.mxu0
        %v4310 = vadd.f32 %v3550, %v4309
        %v4311 = vpop.f32.mrf.mxu0
        %4312 = vdwg.mxu0
        %4313 = vmatpush.bf16.msra.mxu0 %v4002
        %4314 = vmatpush.bf16.msra.mxu0 %v3998
        %4315 = vmatpush.bf16.msra.mxu0 %v3994
        %4316 = vmatpush.bf16.msra.mxu0 %v3990
        %4317 = vmatpush.bf16.msra.mxu0 %v3986
        %4318 = vmatpush.bf16.msra.mxu0 %v3982
        %4319 = vmatpush.bf16.msra.mxu0 %v3978
        %4320 = vmatpush.bf16.msra.mxu0 %v3974
        %4321 = vmatmul.bf16.gmra.mxu0 %v3415
        %v4322 = vpop.f32.mrf.mxu0
        %v4323 = vadd.f32 %v4310, %v4322
        %v4324 = vpop.f32.mrf.mxu0
        %4325 = vdwg.mxu0
        %4326 = vmatpush.bf16.msra.mxu0 %v4034
        %4327 = vmatpush.bf16.msra.mxu0 %v4030
        %4328 = vmatpush.bf16.msra.mxu0 %v4026
        %4329 = vmatpush.bf16.msra.mxu0 %v4022
        %4330 = vmatpush.bf16.msra.mxu0 %v4018
        %4331 = vmatpush.bf16.msra.mxu0 %v4014
        %4332 = vmatpush.bf16.msra.mxu0 %v4010
        %4333 = vmatpush.bf16.msra.mxu0 %v4006
        %4334 = vmatmul.bf16.gmra.mxu0 %v3416
        %v4335 = vpop.f32.mrf.mxu0
        %v4336 = vadd.f32 %v4323, %v4335
        %v4337 = vpop.f32.mrf.mxu0
        %4338 = vdwg.mxu0
        %4339 = vmatpush.bf16.msra.mxu0 %v4066
        %4340 = vmatpush.bf16.msra.mxu0 %v4062
        %4341 = vmatpush.bf16.msra.mxu0 %v4058
        %4342 = vmatpush.bf16.msra.mxu0 %v4054
        %4343 = vmatpush.bf16.msra.mxu0 %v4050
        %4344 = vmatpush.bf16.msra.mxu0 %v4046
        %4345 = vmatpush.bf16.msra.mxu0 %v4042
        %4346 = vmatpush.bf16.msra.mxu0 %v4038
        %4347 = vmatmul.bf16.gmra.mxu0 %v3417
        %v4348 = vpop.f32.mrf.mxu0
        %v4349 = vadd.f32 %v4336, %v4348
        %v4350 = vpop.f32.mrf.mxu0
        %4351 = vdwg.mxu0
        %4352 = vmatpush.bf16.msra.mxu0 %v3971
        %4353 = vmatpush.bf16.msra.mxu0 %v3967
        %4354 = vmatpush.bf16.msra.mxu0 %v3963
        %4355 = vmatpush.bf16.msra.mxu0 %v3959
        %4356 = vmatpush.bf16.msra.mxu0 %v3955
        %4357 = vmatpush.bf16.msra.mxu0 %v3951
        %4358 = vmatpush.bf16.msra.mxu0 %v3947
        %4359 = vmatpush.bf16.msra.mxu0 %v3943
        %4360 = vmatmul.bf16.gmra.mxu0 %v3414
        %v4361 = vpop.f32.mrf.mxu0
        %v4362 = vadd.f32 %v3551, %v4361
        %v4363 = vpop.f32.mrf.mxu0
        %4364 = vdwg.mxu0
        %4365 = vmatpush.bf16.msra.mxu0 %v4003
        %4366 = vmatpush.bf16.msra.mxu0 %v3999
        %4367 = vmatpush.bf16.msra.mxu0 %v3995
        %4368 = vmatpush.bf16.msra.mxu0 %v3991
        %4369 = vmatpush.bf16.msra.mxu0 %v3987
        %4370 = vmatpush.bf16.msra.mxu0 %v3983
        %4371 = vmatpush.bf16.msra.mxu0 %v3979
        %4372 = vmatpush.bf16.msra.mxu0 %v3975
        %4373 = vmatmul.bf16.gmra.mxu0 %v3415
        %v4374 = vpop.f32.mrf.mxu0
        %v4375 = vadd.f32 %v4362, %v4374
        %v4376 = vpop.f32.mrf.mxu0
        %4377 = vdwg.mxu0
        %4378 = vmatpush.bf16.msra.mxu0 %v4035
        %4379 = vmatpush.bf16.msra.mxu0 %v4031
        %4380 = vmatpush.bf16.msra.mxu0 %v4027
        %4381 = vmatpush.bf16.msra.mxu0 %v4023
        %4382 = vmatpush.bf16.msra.mxu0 %v4019
        %4383 = vmatpush.bf16.msra.mxu0 %v4015
        %4384 = vmatpush.bf16.msra.mxu0 %v4011
        %4385 = vmatpush.bf16.msra.mxu0 %v4007
        %4386 = vmatmul.bf16.gmra.mxu0 %v3416
        %v4387 = vpop.f32.mrf.mxu0
        %v4388 = vadd.f32 %v4375, %v4387
        %v4389 = vpop.f32.mrf.mxu0
        %4390 = vdwg.mxu0
        %4391 = vmatpush.bf16.msra.mxu0 %v4067
        %4392 = vmatpush.bf16.msra.mxu0 %v4063
        %4393 = vmatpush.bf16.msra.mxu0 %v4059
        %4394 = vmatpush.bf16.msra.mxu0 %v4055
        %4395 = vmatpush.bf16.msra.mxu0 %v4051
        %4396 = vmatpush.bf16.msra.mxu0 %v4047
        %4397 = vmatpush.bf16.msra.mxu0 %v4043
        %4398 = vmatpush.bf16.msra.mxu0 %v4039
        %4399 = vmatmul.bf16.gmra.mxu0 %v3417
        %v4400 = vpop.f32.mrf.mxu0
        %v4401 = vadd.f32 %v4388, %v4400
        %v4402 = vpop.f32.mrf.mxu0
        %4403 = vdwg.mxu0
        %v4404 = vmul.f32 %v4349, 0.5
        %v4405 = vmul.f32 %v4401, 0.5
        %v4406 = vmul.f32 %v4404, 1.442695
        %v4407 = vpow.pop %v4406
        %v4408 = vmul.f32 %v4405, 1.442695
        %v4409 = vpow.pop %v4408
        %v4410 = vmul.f32 %v4407, %v671
        %v4411 = vmul.f32 %v4409, %v672
        %v4412 = vadd.f32 %v4245, %v4410
        %v4413 = vadd.f32 %v4297, %v4411
        %v4414 = vpack.c.bf16 %v4412, %v4412
        %v4415 = vpack.c.bf16 %v4413, %v4413
        %v4416 = vld [vmem:[#allocation7] sm:$0xff]
        %v4417 = vld [vmem:[#allocation7 + $0x8] sm:$0xff]
        %v4418 = vld [vmem:[#allocation7 + $0x10] sm:$0xff]
        %v4419 = vld [vmem:[#allocation7 + $0x18] sm:$0xff]
        %v4420 = vld [vmem:[#allocation7 + $0x20] sm:$0xff]
        %v4421 = vld [vmem:[#allocation7 + $0x28] sm:$0xff]
        %v4422 = vld [vmem:[#allocation7 + $0x30] sm:$0xff]
        %v4423 = vld [vmem:[#allocation7 + $0x38] sm:$0xff]
        %v4424 = vld [vmem:[#allocation7 + $0x40] sm:$0xff]
        %v4425 = vld [vmem:[#allocation7 + $0x48] sm:$0xff]
        %v4426 = vld [vmem:[#allocation7 + $0x50] sm:$0xff]
        %v4427 = vld [vmem:[#allocation7 + $0x58] sm:$0xff]
        %v4428 = vld [vmem:[#allocation7 + $0x60] sm:$0xff]
        %v4429 = vld [vmem:[#allocation7 + $0x68] sm:$0xff]
        %v4430 = vld [vmem:[#allocation7 + $0x70] sm:$0xff]
        %v4431 = vld [vmem:[#allocation7 + $0x78] sm:$0xff]
        %v4432 = vld [vmem:[#allocation7 + $0x80] sm:$0xff]
        %v4433 = vld [vmem:[#allocation7 + $0x88] sm:$0xff]
        %v4434 = vld [vmem:[#allocation7 + $0x90] sm:$0xff]
        %v4435 = vld [vmem:[#allocation7 + $0x98] sm:$0xff]
        %v4436 = vld [vmem:[#allocation7 + $0xa0] sm:$0xff]
        %v4437 = vld [vmem:[#allocation7 + $0xa8] sm:$0xff]
        %v4438 = vld [vmem:[#allocation7 + $0xb0] sm:$0xff]
        %v4439 = vld [vmem:[#allocation7 + $0xb8] sm:$0xff]
        %v4440 = vld [vmem:[#allocation7 + $0xc0] sm:$0xff]
        %v4441 = vld [vmem:[#allocation7 + $0xc8] sm:$0xff]
        %v4442 = vld [vmem:[#allocation7 + $0xd0] sm:$0xff]
        %v4443 = vld [vmem:[#allocation7 + $0xd8] sm:$0xff]
        %v4444 = vld [vmem:[#allocation7 + $0xe0] sm:$0xff]
        %v4445 = vld [vmem:[#allocation7 + $0xe8] sm:$0xff]
        %v4446 = vld [vmem:[#allocation7 + $0xf0] sm:$0xff]
        %v4447 = vld [vmem:[#allocation7 + $0xf8] sm:$0xff]
        %v4448 = vld [vmem:[#allocation7 + $0x100] sm:$0xff]
        %v4449 = vld [vmem:[#allocation7 + $0x108] sm:$0xff]
        %v4450 = vld [vmem:[#allocation7 + $0x110] sm:$0xff]
        %v4451 = vld [vmem:[#allocation7 + $0x118] sm:$0xff]
        %v4452 = vld [vmem:[#allocation7 + $0x120] sm:$0xff]
        %v4453 = vld [vmem:[#allocation7 + $0x128] sm:$0xff]
        %v4454 = vld [vmem:[#allocation7 + $0x130] sm:$0xff]
        %v4455 = vld [vmem:[#allocation7 + $0x138] sm:$0xff]
        %v4456 = vld [vmem:[#allocation7 + $0x140] sm:$0xff]
        %v4457 = vld [vmem:[#allocation7 + $0x148] sm:$0xff]
        %v4458 = vld [vmem:[#allocation7 + $0x150] sm:$0xff]
        %v4459 = vld [vmem:[#allocation7 + $0x158] sm:$0xff]
        %v4460 = vld [vmem:[#allocation7 + $0x160] sm:$0xff]
        %v4461 = vld [vmem:[#allocation7 + $0x168] sm:$0xff]
        %v4462 = vld [vmem:[#allocation7 + $0x170] sm:$0xff]
        %v4463 = vld [vmem:[#allocation7 + $0x178] sm:$0xff]
        %v4464 = vld [vmem:[#allocation7 + $0x180] sm:$0xff]
        %v4465 = vld [vmem:[#allocation7 + $0x188] sm:$0xff]
        %v4466 = vld [vmem:[#allocation7 + $0x190] sm:$0xff]
        %v4467 = vld [vmem:[#allocation7 + $0x198] sm:$0xff]
        %v4468 = vld [vmem:[#allocation7 + $0x1a0] sm:$0xff]
        %v4469 = vld [vmem:[#allocation7 + $0x1a8] sm:$0xff]
        %v4470 = vld [vmem:[#allocation7 + $0x1b0] sm:$0xff]
        %v4471 = vld [vmem:[#allocation7 + $0x1b8] sm:$0xff]
        %v4472 = vld [vmem:[#allocation7 + $0x1c0] sm:$0xff]
        %v4473 = vld [vmem:[#allocation7 + $0x1c8] sm:$0xff]
        %v4474 = vld [vmem:[#allocation7 + $0x1d0] sm:$0xff]
        %v4475 = vld [vmem:[#allocation7 + $0x1d8] sm:$0xff]
        %v4476 = vld [vmem:[#allocation7 + $0x1e0] sm:$0xff]
        %v4477 = vld [vmem:[#allocation7 + $0x1e8] sm:$0xff]
        %v4478 = vld [vmem:[#allocation7 + $0x1f0] sm:$0xff]
        %v4479 = vld [vmem:[#allocation7 + $0x1f8] sm:$0xff]
        %v4480 = vld [vmem:[%s9] sm:$0xf]
        %v4482 = vperm.slane %v4480, 0
        %v4483 = vperm.slane %v4480, 1
        %v4484 = vperm.slane %v4480, 2
        %v4485 = vperm.slane %v4480, 3
        %v4554 = vunpack.c.l.b16 %v4416
        %v4555 = vunpack.c.h.b16 %v4416
        %v4556 = vunpack.c.l.b16 %v4417
        %v4557 = vunpack.c.h.b16 %v4417
        %v4558 = vunpack.c.l.b16 %v4418
        %v4559 = vunpack.c.h.b16 %v4418
        %v4560 = vunpack.c.l.b16 %v4419
        %v4561 = vunpack.c.h.b16 %v4419
        %v4562 = vunpack.c.l.b16 %v4420
        %v4563 = vunpack.c.h.b16 %v4420
        %v4564 = vunpack.c.l.b16 %v4421
        %v4565 = vunpack.c.h.b16 %v4421
        %v4566 = vunpack.c.l.b16 %v4422
        %v4567 = vunpack.c.h.b16 %v4422
        %v4568 = vunpack.c.l.b16 %v4423
        %v4569 = vunpack.c.h.b16 %v4423
        %v4570 = vunpack.c.l.b16 %v4424
        %v4571 = vunpack.c.h.b16 %v4424
        %v4572 = vunpack.c.l.b16 %v4425
        %v4573 = vunpack.c.h.b16 %v4425
        %v4574 = vunpack.c.l.b16 %v4426
        %v4575 = vunpack.c.h.b16 %v4426
        %v4576 = vunpack.c.l.b16 %v4427
        %v4577 = vunpack.c.h.b16 %v4427
        %v4578 = vunpack.c.l.b16 %v4428
        %v4579 = vunpack.c.h.b16 %v4428
        %v4580 = vunpack.c.l.b16 %v4429
        %v4581 = vunpack.c.h.b16 %v4429
        %v4582 = vunpack.c.l.b16 %v4430
        %v4583 = vunpack.c.h.b16 %v4430
        %v4584 = vunpack.c.l.b16 %v4431
        %v4585 = vunpack.c.h.b16 %v4431
        %v4586 = vunpack.c.l.b16 %v4432
        %v4587 = vunpack.c.h.b16 %v4432
        %v4588 = vunpack.c.l.b16 %v4433
        %v4589 = vunpack.c.h.b16 %v4433
        %v4590 = vunpack.c.l.b16 %v4434
        %v4591 = vunpack.c.h.b16 %v4434
        %v4592 = vunpack.c.l.b16 %v4435
        %v4593 = vunpack.c.h.b16 %v4435
        %v4594 = vunpack.c.l.b16 %v4436
        %v4595 = vunpack.c.h.b16 %v4436
        %v4596 = vunpack.c.l.b16 %v4437
        %v4597 = vunpack.c.h.b16 %v4437
        %v4598 = vunpack.c.l.b16 %v4438
        %v4599 = vunpack.c.h.b16 %v4438
        %v4600 = vunpack.c.l.b16 %v4439
        %v4601 = vunpack.c.h.b16 %v4439
        %v4602 = vunpack.c.l.b16 %v4440
        %v4603 = vunpack.c.h.b16 %v4440
        %v4604 = vunpack.c.l.b16 %v4441
        %v4605 = vunpack.c.h.b16 %v4441
        %v4606 = vunpack.c.l.b16 %v4442
        %v4607 = vunpack.c.h.b16 %v4442
        %v4608 = vunpack.c.l.b16 %v4443
        %v4609 = vunpack.c.h.b16 %v4443
        %v4610 = vunpack.c.l.b16 %v4444
        %v4611 = vunpack.c.h.b16 %v4444
        %v4612 = vunpack.c.l.b16 %v4445
        %v4613 = vunpack.c.h.b16 %v4445
        %v4614 = vunpack.c.l.b16 %v4446
        %v4615 = vunpack.c.h.b16 %v4446
        %v4616 = vunpack.c.l.b16 %v4447
        %v4617 = vunpack.c.h.b16 %v4447
        %v4618 = vunpack.c.l.b16 %v4448
        %v4619 = vunpack.c.h.b16 %v4448
        %v4620 = vunpack.c.l.b16 %v4449
        %v4621 = vunpack.c.h.b16 %v4449
        %v4622 = vunpack.c.l.b16 %v4450
        %v4623 = vunpack.c.h.b16 %v4450
        %v4624 = vunpack.c.l.b16 %v4451
        %v4625 = vunpack.c.h.b16 %v4451
        %v4626 = vunpack.c.l.b16 %v4452
        %v4627 = vunpack.c.h.b16 %v4452
        %v4628 = vunpack.c.l.b16 %v4453
        %v4629 = vunpack.c.h.b16 %v4453
        %v4630 = vunpack.c.l.b16 %v4454
        %v4631 = vunpack.c.h.b16 %v4454
        %v4632 = vunpack.c.l.b16 %v4455
        %v4633 = vunpack.c.h.b16 %v4455
        %v4634 = vunpack.c.l.b16 %v4456
        %v4635 = vunpack.c.h.b16 %v4456
        %v4636 = vunpack.c.l.b16 %v4457
        %v4637 = vunpack.c.h.b16 %v4457
        %v4638 = vunpack.c.l.b16 %v4458
        %v4639 = vunpack.c.h.b16 %v4458
        %v4640 = vunpack.c.l.b16 %v4459
        %v4641 = vunpack.c.h.b16 %v4459
        %v4642 = vunpack.c.l.b16 %v4460
        %v4643 = vunpack.c.h.b16 %v4460
        %v4644 = vunpack.c.l.b16 %v4461
        %v4645 = vunpack.c.h.b16 %v4461
        %v4646 = vunpack.c.l.b16 %v4462
        %v4647 = vunpack.c.h.b16 %v4462
        %v4648 = vunpack.c.l.b16 %v4463
        %v4649 = vunpack.c.h.b16 %v4463
        %v4650 = vunpack.c.l.b16 %v4464
        %v4651 = vunpack.c.h.b16 %v4464
        %v4652 = vunpack.c.l.b16 %v4465
        %v4653 = vunpack.c.h.b16 %v4465
        %v4654 = vunpack.c.l.b16 %v4466
        %v4655 = vunpack.c.h.b16 %v4466
        %v4656 = vunpack.c.l.b16 %v4467
        %v4657 = vunpack.c.h.b16 %v4467
        %v4658 = vunpack.c.l.b16 %v4468
        %v4659 = vunpack.c.h.b16 %v4468
        %v4660 = vunpack.c.l.b16 %v4469
        %v4661 = vunpack.c.h.b16 %v4469
        %v4662 = vunpack.c.l.b16 %v4470
        %v4663 = vunpack.c.h.b16 %v4470
        %v4664 = vunpack.c.l.b16 %v4471
        %v4665 = vunpack.c.h.b16 %v4471
        %v4666 = vunpack.c.l.b16 %v4472
        %v4667 = vunpack.c.h.b16 %v4472
        %v4668 = vunpack.c.l.b16 %v4473
        %v4669 = vunpack.c.h.b16 %v4473
        %v4670 = vunpack.c.l.b16 %v4474
        %v4671 = vunpack.c.h.b16 %v4474
        %v4672 = vunpack.c.l.b16 %v4475
        %v4673 = vunpack.c.h.b16 %v4475
        %v4674 = vunpack.c.l.b16 %v4476
        %v4675 = vunpack.c.h.b16 %v4476
        %v4676 = vunpack.c.l.b16 %v4477
        %v4677 = vunpack.c.h.b16 %v4477
        %v4678 = vunpack.c.l.b16 %v4478
        %v4679 = vunpack.c.h.b16 %v4478
        %v4680 = vunpack.c.l.b16 %v4479
        %v4681 = vunpack.c.h.b16 %v4479
        %v4682 = vpack.c.b16 %v4558, %v4554
        %v4683 = vpack.c.b16 %v4559, %v4555
        %v4684 = vpack.c.b16 %v4560, %v4556
        %v4685 = vpack.c.b16 %v4561, %v4557
        %v4686 = vpack.c.b16 %v4566, %v4562
        %v4687 = vpack.c.b16 %v4567, %v4563
        %v4688 = vpack.c.b16 %v4568, %v4564
        %v4689 = vpack.c.b16 %v4569, %v4565
        %v4690 = vpack.c.b16 %v4574, %v4570
        %v4691 = vpack.c.b16 %v4575, %v4571
        %v4692 = vpack.c.b16 %v4576, %v4572
        %v4693 = vpack.c.b16 %v4577, %v4573
        %v4694 = vpack.c.b16 %v4582, %v4578
        %v4695 = vpack.c.b16 %v4583, %v4579
        %v4696 = vpack.c.b16 %v4584, %v4580
        %v4697 = vpack.c.b16 %v4585, %v4581
        %v4698 = vpack.c.b16 %v4590, %v4586
        %v4699 = vpack.c.b16 %v4591, %v4587
        %v4700 = vpack.c.b16 %v4592, %v4588
        %v4701 = vpack.c.b16 %v4593, %v4589
        %v4702 = vpack.c.b16 %v4598, %v4594
        %v4703 = vpack.c.b16 %v4599, %v4595
        %v4704 = vpack.c.b16 %v4600, %v4596
        %v4705 = vpack.c.b16 %v4601, %v4597
        %v4706 = vpack.c.b16 %v4606, %v4602
        %v4707 = vpack.c.b16 %v4607, %v4603
        %v4708 = vpack.c.b16 %v4608, %v4604
        %v4709 = vpack.c.b16 %v4609, %v4605
        %v4710 = vpack.c.b16 %v4614, %v4610
        %v4711 = vpack.c.b16 %v4615, %v4611
        %v4712 = vpack.c.b16 %v4616, %v4612
        %v4713 = vpack.c.b16 %v4617, %v4613
        %v4714 = vpack.c.b16 %v4622, %v4618
        %v4715 = vpack.c.b16 %v4623, %v4619
        %v4716 = vpack.c.b16 %v4624, %v4620
        %v4717 = vpack.c.b16 %v4625, %v4621
        %v4718 = vpack.c.b16 %v4630, %v4626
        %v4719 = vpack.c.b16 %v4631, %v4627
        %v4720 = vpack.c.b16 %v4632, %v4628
        %v4721 = vpack.c.b16 %v4633, %v4629
        %v4722 = vpack.c.b16 %v4638, %v4634
        %v4723 = vpack.c.b16 %v4639, %v4635
        %v4724 = vpack.c.b16 %v4640, %v4636
        %v4725 = vpack.c.b16 %v4641, %v4637
        %v4726 = vpack.c.b16 %v4646, %v4642
        %v4727 = vpack.c.b16 %v4647, %v4643
        %v4728 = vpack.c.b16 %v4648, %v4644
        %v4729 = vpack.c.b16 %v4649, %v4645
        %v4730 = vpack.c.b16 %v4654, %v4650
        %v4731 = vpack.c.b16 %v4655, %v4651
        %v4732 = vpack.c.b16 %v4656, %v4652
        %v4733 = vpack.c.b16 %v4657, %v4653
        %v4734 = vpack.c.b16 %v4662, %v4658
        %v4735 = vpack.c.b16 %v4663, %v4659
        %v4736 = vpack.c.b16 %v4664, %v4660
        %v4737 = vpack.c.b16 %v4665, %v4661
        %v4738 = vpack.c.b16 %v4670, %v4666
        %v4739 = vpack.c.b16 %v4671, %v4667
        %v4740 = vpack.c.b16 %v4672, %v4668
        %v4741 = vpack.c.b16 %v4673, %v4669
        %v4742 = vpack.c.b16 %v4678, %v4674
        %v4743 = vpack.c.b16 %v4679, %v4675
        %v4744 = vpack.c.b16 %v4680, %v4676
        %v4745 = vpack.c.b16 %v4681, %v4677
        %4810 = vmatpush.bf16.msra.mxu0 %v4710
        %4811 = vmatpush.bf16.msra.mxu0 %v4706
        %4812 = vmatpush.bf16.msra.mxu0 %v4702
        %4813 = vmatpush.bf16.msra.mxu0 %v4698
        %4814 = vmatpush.bf16.msra.mxu0 %v4694
        %4815 = vmatpush.bf16.msra.mxu0 %v4690
        %4816 = vmatpush.bf16.msra.mxu0 %v4686
        %4817 = vmatpush.bf16.msra.mxu0 %v4682
        %4818 = vmatmul.bf16.gmra.mxu0 %v4414
        %v4819 = vpop.f32.mrf.mxu0
        %v4820 = vadd.f32 %v4482, %v4819
        %v4821 = vpop.f32.mrf.mxu0
        %4822 = vdwg.mxu0
        %4823 = vmatpush.bf16.msra.mxu0 %v4742
        %4824 = vmatpush.bf16.msra.mxu0 %v4738
        %4825 = vmatpush.bf16.msra.mxu0 %v4734
        %4826 = vmatpush.bf16.msra.mxu0 %v4730
        %4827 = vmatpush.bf16.msra.mxu0 %v4726
        %4828 = vmatpush.bf16.msra.mxu0 %v4722
        %4829 = vmatpush.bf16.msra.mxu0 %v4718
        %4830 = vmatpush.bf16.msra.mxu0 %v4714
        %4831 = vmatmul.bf16.gmra.mxu0 %v4415
        %v4832 = vpop.f32.mrf.mxu0
        %v4833 = vadd.f32 %v4820, %v4832
        %v4834 = vpop.f32.mrf.mxu0
        %4835 = vdwg.mxu0
        %4836 = vmatpush.bf16.msra.mxu0 %v4711
        %4837 = vmatpush.bf16.msra.mxu0 %v4707
        %4838 = vmatpush.bf16.msra.mxu0 %v4703
        %4839 = vmatpush.bf16.msra.mxu0 %v4699
        %4840 = vmatpush.bf16.msra.mxu0 %v4695
        %4841 = vmatpush.bf16.msra.mxu0 %v4691
        %4842 = vmatpush.bf16.msra.mxu0 %v4687
        %4843 = vmatpush.bf16.msra.mxu0 %v4683
        %4844 = vmatmul.bf16.gmra.mxu0 %v4414
        %v4845 = vpop.f32.mrf.mxu0
        %v4846 = vadd.f32 %v4483, %v4845
        %v4847 = vpop.f32.mrf.mxu0
        %4848 = vdwg.mxu0
        %4849 = vmatpush.bf16.msra.mxu0 %v4743
        %4850 = vmatpush.bf16.msra.mxu0 %v4739
        %4851 = vmatpush.bf16.msra.mxu0 %v4735
        %4852 = vmatpush.bf16.msra.mxu0 %v4731
        %4853 = vmatpush.bf16.msra.mxu0 %v4727
        %4854 = vmatpush.bf16.msra.mxu0 %v4723
        %4855 = vmatpush.bf16.msra.mxu0 %v4719
        %4856 = vmatpush.bf16.msra.mxu0 %v4715
        %4857 = vmatmul.bf16.gmra.mxu0 %v4415
        %v4858 = vpop.f32.mrf.mxu0
        %v4859 = vadd.f32 %v4846, %v4858
        %v4860 = vpop.f32.mrf.mxu0
        %4861 = vdwg.mxu0
        %4862 = vmatpush.bf16.msra.mxu0 %v4712
        %4863 = vmatpush.bf16.msra.mxu0 %v4708
        %4864 = vmatpush.bf16.msra.mxu0 %v4704
        %4865 = vmatpush.bf16.msra.mxu0 %v4700
        %4866 = vmatpush.bf16.msra.mxu0 %v4696
        %4867 = vmatpush.bf16.msra.mxu0 %v4692
        %4868 = vmatpush.bf16.msra.mxu0 %v4688
        %4869 = vmatpush.bf16.msra.mxu0 %v4684
        %4870 = vmatmul.bf16.gmra.mxu0 %v4414
        %v4871 = vpop.f32.mrf.mxu0
        %v4872 = vadd.f32 %v4484, %v4871
        %v4873 = vpop.f32.mrf.mxu0
        %4874 = vdwg.mxu0
        %4875 = vmatpush.bf16.msra.mxu0 %v4744
        %4876 = vmatpush.bf16.msra.mxu0 %v4740
        %4877 = vmatpush.bf16.msra.mxu0 %v4736
        %4878 = vmatpush.bf16.msra.mxu0 %v4732
        %4879 = vmatpush.bf16.msra.mxu0 %v4728
        %4880 = vmatpush.bf16.msra.mxu0 %v4724
        %4881 = vmatpush.bf16.msra.mxu0 %v4720
        %4882 = vmatpush.bf16.msra.mxu0 %v4716
        %4883 = vmatmul.bf16.gmra.mxu0 %v4415
        %v4884 = vpop.f32.mrf.mxu0
        %v4885 = vadd.f32 %v4872, %v4884
        %v4886 = vpop.f32.mrf.mxu0
        %4887 = vdwg.mxu0
        %4888 = vmatpush.bf16.msra.mxu0 %v4713
        %4889 = vmatpush.bf16.msra.mxu0 %v4709
        %4890 = vmatpush.bf16.msra.mxu0 %v4705
        %4891 = vmatpush.bf16.msra.mxu0 %v4701
        %4892 = vmatpush.bf16.msra.mxu0 %v4697
        %4893 = vmatpush.bf16.msra.mxu0 %v4693
        %4894 = vmatpush.bf16.msra.mxu0 %v4689
        %4895 = vmatpush.bf16.msra.mxu0 %v4685
        %4896 = vmatmul.bf16.gmra.mxu0 %v4414
        %v4897 = vpop.f32.mrf.mxu0
        %v4898 = vadd.f32 %v4485, %v4897
        %v4899 = vpop.f32.mrf.mxu0
        %4900 = vdwg.mxu0
        %4901 = vmatpush.bf16.msra.mxu0 %v4745
        %4902 = vmatpush.bf16.msra.mxu0 %v4741
        %4903 = vmatpush.bf16.msra.mxu0 %v4737
        %4904 = vmatpush.bf16.msra.mxu0 %v4733
        %4905 = vmatpush.bf16.msra.mxu0 %v4729
        %4906 = vmatpush.bf16.msra.mxu0 %v4725
        %4907 = vmatpush.bf16.msra.mxu0 %v4721
        %4908 = vmatpush.bf16.msra.mxu0 %v4717
        %4909 = vmatmul.bf16.gmra.mxu0 %v4415
        %v4910 = vpop.f32.mrf.mxu0
        %v4911 = vadd.f32 %v4898, %v4910
        %v4912 = vpop.f32.mrf.mxu0
        %4913 = vdwg.mxu0
        %v4914 = vmax.f32 %v4833, 0.0
        %v4915 = vmax.f32 %v4859, 0.0
        %v4916 = vmax.f32 %v4885, 0.0
        %v4917 = vmax.f32 %v4911, 0.0
        %v4918 = vpack.c.bf16 %v4914, %v4914
        %v4919 = vpack.c.bf16 %v4915, %v4915
        %v4920 = vpack.c.bf16 %v4916, %v4916
        %v4921 = vpack.c.bf16 %v4917, %v4917
        %v4922 = vld [vmem:[#allocation9] sm:$0xff]
        %v4923 = vld [vmem:[#allocation9 + $0x8] sm:$0xff]
        %v4924 = vld [vmem:[#allocation9 + $0x10] sm:$0xff]
        %v4925 = vld [vmem:[#allocation9 + $0x18] sm:$0xff]
        %v4926 = vld [vmem:[#allocation9 + $0x20] sm:$0xff]
        %v4927 = vld [vmem:[#allocation9 + $0x28] sm:$0xff]
        %v4928 = vld [vmem:[#allocation9 + $0x30] sm:$0xff]
        %v4929 = vld [vmem:[#allocation9 + $0x38] sm:$0xff]
        %v4930 = vld [vmem:[#allocation9 + $0x40] sm:$0xff]
        %v4931 = vld [vmem:[#allocation9 + $0x48] sm:$0xff]
        %v4932 = vld [vmem:[#allocation9 + $0x50] sm:$0xff]
        %v4933 = vld [vmem:[#allocation9 + $0x58] sm:$0xff]
        %v4934 = vld [vmem:[#allocation9 + $0x60] sm:$0xff]
        %v4935 = vld [vmem:[#allocation9 + $0x68] sm:$0xff]
        %v4936 = vld [vmem:[#allocation9 + $0x70] sm:$0xff]
        %v4937 = vld [vmem:[#allocation9 + $0x78] sm:$0xff]
        %v4938 = vld [vmem:[#allocation9 + $0x80] sm:$0xff]
        %v4939 = vld [vmem:[#allocation9 + $0x88] sm:$0xff]
        %v4940 = vld [vmem:[#allocation9 + $0x90] sm:$0xff]
        %v4941 = vld [vmem:[#allocation9 + $0x98] sm:$0xff]
        %v4942 = vld [vmem:[#allocation9 + $0xa0] sm:$0xff]
        %v4943 = vld [vmem:[#allocation9 + $0xa8] sm:$0xff]
        %v4944 = vld [vmem:[#allocation9 + $0xb0] sm:$0xff]
        %v4945 = vld [vmem:[#allocation9 + $0xb8] sm:$0xff]
        %v4946 = vld [vmem:[#allocation9 + $0xc0] sm:$0xff]
        %v4947 = vld [vmem:[#allocation9 + $0xc8] sm:$0xff]
        %v4948 = vld [vmem:[#allocation9 + $0xd0] sm:$0xff]
        %v4949 = vld [vmem:[#allocation9 + $0xd8] sm:$0xff]
        %v4950 = vld [vmem:[#allocation9 + $0xe0] sm:$0xff]
        %v4951 = vld [vmem:[#allocation9 + $0xe8] sm:$0xff]
        %v4952 = vld [vmem:[#allocation9 + $0xf0] sm:$0xff]
        %v4953 = vld [vmem:[#allocation9 + $0xf8] sm:$0xff]
        %v4954 = vld [vmem:[#allocation9 + $0x100] sm:$0xff]
        %v4955 = vld [vmem:[#allocation9 + $0x108] sm:$0xff]
        %v4956 = vld [vmem:[#allocation9 + $0x110] sm:$0xff]
        %v4957 = vld [vmem:[#allocation9 + $0x118] sm:$0xff]
        %v4958 = vld [vmem:[#allocation9 + $0x120] sm:$0xff]
        %v4959 = vld [vmem:[#allocation9 + $0x128] sm:$0xff]
        %v4960 = vld [vmem:[#allocation9 + $0x130] sm:$0xff]
        %v4961 = vld [vmem:[#allocation9 + $0x138] sm:$0xff]
        %v4962 = vld [vmem:[#allocation9 + $0x140] sm:$0xff]
        %v4963 = vld [vmem:[#allocation9 + $0x148] sm:$0xff]
        %v4964 = vld [vmem:[#allocation9 + $0x150] sm:$0xff]
        %v4965 = vld [vmem:[#allocation9 + $0x158] sm:$0xff]
        %v4966 = vld [vmem:[#allocation9 + $0x160] sm:$0xff]
        %v4967 = vld [vmem:[#allocation9 + $0x168] sm:$0xff]
        %v4968 = vld [vmem:[#allocation9 + $0x170] sm:$0xff]
        %v4969 = vld [vmem:[#allocation9 + $0x178] sm:$0xff]
        %v4970 = vld [vmem:[#allocation9 + $0x180] sm:$0xff]
        %v4971 = vld [vmem:[#allocation9 + $0x188] sm:$0xff]
        %v4972 = vld [vmem:[#allocation9 + $0x190] sm:$0xff]
        %v4973 = vld [vmem:[#allocation9 + $0x198] sm:$0xff]
        %v4974 = vld [vmem:[#allocation9 + $0x1a0] sm:$0xff]
        %v4975 = vld [vmem:[#allocation9 + $0x1a8] sm:$0xff]
        %v4976 = vld [vmem:[#allocation9 + $0x1b0] sm:$0xff]
        %v4977 = vld [vmem:[#allocation9 + $0x1b8] sm:$0xff]
        %v4978 = vld [vmem:[#allocation9 + $0x1c0] sm:$0xff]
        %v4979 = vld [vmem:[#allocation9 + $0x1c8] sm:$0xff]
        %v4980 = vld [vmem:[#allocation9 + $0x1d0] sm:$0xff]
        %v4981 = vld [vmem:[#allocation9 + $0x1d8] sm:$0xff]
        %v4982 = vld [vmem:[#allocation9 + $0x1e0] sm:$0xff]
        %v4983 = vld [vmem:[#allocation9 + $0x1e8] sm:$0xff]
        %v4984 = vld [vmem:[#allocation9 + $0x1f0] sm:$0xff]
        %v4985 = vld [vmem:[#allocation9 + $0x1f8] sm:$0xff]
        %v4986 = vld [vmem:[#allocation9 + $0x200] sm:$0xff]
        %v4987 = vld [vmem:[#allocation9 + $0x208] sm:$0xff]
        %v4988 = vld [vmem:[#allocation9 + $0x210] sm:$0xff]
        %v4989 = vld [vmem:[#allocation9 + $0x218] sm:$0xff]
        %v4990 = vld [vmem:[#allocation9 + $0x220] sm:$0xff]
        %v4991 = vld [vmem:[#allocation9 + $0x228] sm:$0xff]
        %v4992 = vld [vmem:[#allocation9 + $0x230] sm:$0xff]
        %v4993 = vld [vmem:[#allocation9 + $0x238] sm:$0xff]
        %v4994 = vld [vmem:[#allocation9 + $0x240] sm:$0xff]
        %v4995 = vld [vmem:[#allocation9 + $0x248] sm:$0xff]
        %v4996 = vld [vmem:[#allocation9 + $0x250] sm:$0xff]
        %v4997 = vld [vmem:[#allocation9 + $0x258] sm:$0xff]
        %v4998 = vld [vmem:[#allocation9 + $0x260] sm:$0xff]
        %v4999 = vld [vmem:[#allocation9 + $0x268] sm:$0xff]
        %v5000 = vld [vmem:[#allocation9 + $0x270] sm:$0xff]
        %v5001 = vld [vmem:[#allocation9 + $0x278] sm:$0xff]
        %v5002 = vld [vmem:[#allocation9 + $0x280] sm:$0xff]
        %v5003 = vld [vmem:[#allocation9 + $0x288] sm:$0xff]
        %v5004 = vld [vmem:[#allocation9 + $0x290] sm:$0xff]
        %v5005 = vld [vmem:[#allocation9 + $0x298] sm:$0xff]
        %v5006 = vld [vmem:[#allocation9 + $0x2a0] sm:$0xff]
        %v5007 = vld [vmem:[#allocation9 + $0x2a8] sm:$0xff]
        %v5008 = vld [vmem:[#allocation9 + $0x2b0] sm:$0xff]
        %v5009 = vld [vmem:[#allocation9 + $0x2b8] sm:$0xff]
        %v5010 = vld [vmem:[#allocation9 + $0x2c0] sm:$0xff]
        %v5011 = vld [vmem:[#allocation9 + $0x2c8] sm:$0xff]
        %v5012 = vld [vmem:[#allocation9 + $0x2d0] sm:$0xff]
        %v5013 = vld [vmem:[#allocation9 + $0x2d8] sm:$0xff]
        %v5014 = vld [vmem:[#allocation9 + $0x2e0] sm:$0xff]
        %v5015 = vld [vmem:[#allocation9 + $0x2e8] sm:$0xff]
        %v5016 = vld [vmem:[#allocation9 + $0x2f0] sm:$0xff]
        %v5017 = vld [vmem:[#allocation9 + $0x2f8] sm:$0xff]
        %v5018 = vld [vmem:[#allocation9 + $0x300] sm:$0xff]
        %v5019 = vld [vmem:[#allocation9 + $0x308] sm:$0xff]
        %v5020 = vld [vmem:[#allocation9 + $0x310] sm:$0xff]
        %v5021 = vld [vmem:[#allocation9 + $0x318] sm:$0xff]
        %v5022 = vld [vmem:[#allocation9 + $0x320] sm:$0xff]
        %v5023 = vld [vmem:[#allocation9 + $0x328] sm:$0xff]
        %v5024 = vld [vmem:[#allocation9 + $0x330] sm:$0xff]
        %v5025 = vld [vmem:[#allocation9 + $0x338] sm:$0xff]
        %v5026 = vld [vmem:[#allocation9 + $0x340] sm:$0xff]
        %v5027 = vld [vmem:[#allocation9 + $0x348] sm:$0xff]
        %v5028 = vld [vmem:[#allocation9 + $0x350] sm:$0xff]
        %v5029 = vld [vmem:[#allocation9 + $0x358] sm:$0xff]
        %v5030 = vld [vmem:[#allocation9 + $0x360] sm:$0xff]
        %v5031 = vld [vmem:[#allocation9 + $0x368] sm:$0xff]
        %v5032 = vld [vmem:[#allocation9 + $0x370] sm:$0xff]
        %v5033 = vld [vmem:[#allocation9 + $0x378] sm:$0xff]
        %v5034 = vld [vmem:[#allocation9 + $0x380] sm:$0xff]
        %v5035 = vld [vmem:[#allocation9 + $0x388] sm:$0xff]
        %v5036 = vld [vmem:[#allocation9 + $0x390] sm:$0xff]
        %v5037 = vld [vmem:[#allocation9 + $0x398] sm:$0xff]
        %v5038 = vld [vmem:[#allocation9 + $0x3a0] sm:$0xff]
        %v5039 = vld [vmem:[#allocation9 + $0x3a8] sm:$0xff]
        %v5040 = vld [vmem:[#allocation9 + $0x3b0] sm:$0xff]
        %v5041 = vld [vmem:[#allocation9 + $0x3b8] sm:$0xff]
        %v5042 = vld [vmem:[#allocation9 + $0x3c0] sm:$0xff]
        %v5043 = vld [vmem:[#allocation9 + $0x3c8] sm:$0xff]
        %v5044 = vld [vmem:[#allocation9 + $0x3d0] sm:$0xff]
        %v5045 = vld [vmem:[#allocation9 + $0x3d8] sm:$0xff]
        %v5046 = vld [vmem:[#allocation9 + $0x3e0] sm:$0xff]
        %v5047 = vld [vmem:[#allocation9 + $0x3e8] sm:$0xff]
        %v5048 = vld [vmem:[#allocation9 + $0x3f0] sm:$0xff]
        %v5049 = vld [vmem:[#allocation9 + $0x3f8] sm:$0xff]
        %v5050 = vld [vmem:[%s11] sm:$0xf]
        %v5052 = vperm.slane %v5050, 0
        %v5053 = vperm.slane %v5050, 1
        %v5054 = vperm.slane %v5050, 2
        %v5055 = vperm.slane %v5050, 3
        %v5188 = vunpack.c.l.b16 %v4922
        %v5189 = vunpack.c.h.b16 %v4922
        %v5190 = vunpack.c.l.b16 %v4923
        %v5191 = vunpack.c.h.b16 %v4923
        %v5192 = vunpack.c.l.b16 %v4924
        %v5193 = vunpack.c.h.b16 %v4924
        %v5194 = vunpack.c.l.b16 %v4925
        %v5195 = vunpack.c.h.b16 %v4925
        %v5196 = vunpack.c.l.b16 %v4926
        %v5197 = vunpack.c.h.b16 %v4926
        %v5198 = vunpack.c.l.b16 %v4927
        %v5199 = vunpack.c.h.b16 %v4927
        %v5200 = vunpack.c.l.b16 %v4928
        %v5201 = vunpack.c.h.b16 %v4928
        %v5202 = vunpack.c.l.b16 %v4929
        %v5203 = vunpack.c.h.b16 %v4929
        %v5204 = vunpack.c.l.b16 %v4930
        %v5205 = vunpack.c.h.b16 %v4930
        %v5206 = vunpack.c.l.b16 %v4931
        %v5207 = vunpack.c.h.b16 %v4931
        %v5208 = vunpack.c.l.b16 %v4932
        %v5209 = vunpack.c.h.b16 %v4932
        %v5210 = vunpack.c.l.b16 %v4933
        %v5211 = vunpack.c.h.b16 %v4933
        %v5212 = vunpack.c.l.b16 %v4934
        %v5213 = vunpack.c.h.b16 %v4934
        %v5214 = vunpack.c.l.b16 %v4935
        %v5215 = vunpack.c.h.b16 %v4935
        %v5216 = vunpack.c.l.b16 %v4936
        %v5217 = vunpack.c.h.b16 %v4936
        %v5218 = vunpack.c.l.b16 %v4937
        %v5219 = vunpack.c.h.b16 %v4937
        %v5220 = vunpack.c.l.b16 %v4938
        %v5221 = vunpack.c.h.b16 %v4938
        %v5222 = vunpack.c.l.b16 %v4939
        %v5223 = vunpack.c.h.b16 %v4939
        %v5224 = vunpack.c.l.b16 %v4940
        %v5225 = vunpack.c.h.b16 %v4940
        %v5226 = vunpack.c.l.b16 %v4941
        %v5227 = vunpack.c.h.b16 %v4941
        %v5228 = vunpack.c.l.b16 %v4942
        %v5229 = vunpack.c.h.b16 %v4942
        %v5230 = vunpack.c.l.b16 %v4943
        %v5231 = vunpack.c.h.b16 %v4943
        %v5232 = vunpack.c.l.b16 %v4944
        %v5233 = vunpack.c.h.b16 %v4944
        %v5234 = vunpack.c.l.b16 %v4945
        %v5235 = vunpack.c.h.b16 %v4945
        %v5236 = vunpack.c.l.b16 %v4946
        %v5237 = vunpack.c.h.b16 %v4946
        %v5238 = vunpack.c.l.b16 %v4947
        %v5239 = vunpack.c.h.b16 %v4947
        %v5240 = vunpack.c.l.b16 %v4948
        %v5241 = vunpack.c.h.b16 %v4948
        %v5242 = vunpack.c.l.b16 %v4949
        %v5243 = vunpack.c.h.b16 %v4949
        %v5244 = vunpack.c.l.b16 %v4950
        %v5245 = vunpack.c.h.b16 %v4950
        %v5246 = vunpack.c.l.b16 %v4951
        %v5247 = vunpack.c.h.b16 %v4951
        %v5248 = vunpack.c.l.b16 %v4952
        %v5249 = vunpack.c.h.b16 %v4952
        %v5250 = vunpack.c.l.b16 %v4953
        %v5251 = vunpack.c.h.b16 %v4953
        %v5252 = vunpack.c.l.b16 %v4954
        %v5253 = vunpack.c.h.b16 %v4954
        %v5254 = vunpack.c.l.b16 %v4955
        %v5255 = vunpack.c.h.b16 %v4955
        %v5256 = vunpack.c.l.b16 %v4956
        %v5257 = vunpack.c.h.b16 %v4956
        %v5258 = vunpack.c.l.b16 %v4957
        %v5259 = vunpack.c.h.b16 %v4957
        %v5260 = vunpack.c.l.b16 %v4958
        %v5261 = vunpack.c.h.b16 %v4958
        %v5262 = vunpack.c.l.b16 %v4959
        %v5263 = vunpack.c.h.b16 %v4959
        %v5264 = vunpack.c.l.b16 %v4960
        %v5265 = vunpack.c.h.b16 %v4960
        %v5266 = vunpack.c.l.b16 %v4961
        %v5267 = vunpack.c.h.b16 %v4961
        %v5268 = vunpack.c.l.b16 %v4962
        %v5269 = vunpack.c.h.b16 %v4962
        %v5270 = vunpack.c.l.b16 %v4963
        %v5271 = vunpack.c.h.b16 %v4963
        %v5272 = vunpack.c.l.b16 %v4964
        %v5273 = vunpack.c.h.b16 %v4964
        %v5274 = vunpack.c.l.b16 %v4965
        %v5275 = vunpack.c.h.b16 %v4965
        %v5276 = vunpack.c.l.b16 %v4966
        %v5277 = vunpack.c.h.b16 %v4966
        %v5278 = vunpack.c.l.b16 %v4967
        %v5279 = vunpack.c.h.b16 %v4967
        %v5280 = vunpack.c.l.b16 %v4968
        %v5281 = vunpack.c.h.b16 %v4968
        %v5282 = vunpack.c.l.b16 %v4969
        %v5283 = vunpack.c.h.b16 %v4969
        %v5284 = vunpack.c.l.b16 %v4970
        %v5285 = vunpack.c.h.b16 %v4970
        %v5286 = vunpack.c.l.b16 %v4971
        %v5287 = vunpack.c.h.b16 %v4971
        %v5288 = vunpack.c.l.b16 %v4972
        %v5289 = vunpack.c.h.b16 %v4972
        %v5290 = vunpack.c.l.b16 %v4973
        %v5291 = vunpack.c.h.b16 %v4973
        %v5292 = vunpack.c.l.b16 %v4974
        %v5293 = vunpack.c.h.b16 %v4974
        %v5294 = vunpack.c.l.b16 %v4975
        %v5295 = vunpack.c.h.b16 %v4975
        %v5296 = vunpack.c.l.b16 %v4976
        %v5297 = vunpack.c.h.b16 %v4976
        %v5298 = vunpack.c.l.b16 %v4977
        %v5299 = vunpack.c.h.b16 %v4977
        %v5300 = vunpack.c.l.b16 %v4978
        %v5301 = vunpack.c.h.b16 %v4978
        %v5302 = vunpack.c.l.b16 %v4979
        %v5303 = vunpack.c.h.b16 %v4979
        %v5304 = vunpack.c.l.b16 %v4980
        %v5305 = vunpack.c.h.b16 %v4980
        %v5306 = vunpack.c.l.b16 %v4981
        %v5307 = vunpack.c.h.b16 %v4981
        %v5308 = vunpack.c.l.b16 %v4982
        %v5309 = vunpack.c.h.b16 %v4982
        %v5310 = vunpack.c.l.b16 %v4983
        %v5311 = vunpack.c.h.b16 %v4983
        %v5312 = vunpack.c.l.b16 %v4984
        %v5313 = vunpack.c.h.b16 %v4984
        %v5314 = vunpack.c.l.b16 %v4985
        %v5315 = vunpack.c.h.b16 %v4985
        %v5316 = vunpack.c.l.b16 %v4986
        %v5317 = vunpack.c.h.b16 %v4986
        %v5318 = vunpack.c.l.b16 %v4987
        %v5319 = vunpack.c.h.b16 %v4987
        %v5320 = vunpack.c.l.b16 %v4988
        %v5321 = vunpack.c.h.b16 %v4988
        %v5322 = vunpack.c.l.b16 %v4989
        %v5323 = vunpack.c.h.b16 %v4989
        %v5324 = vunpack.c.l.b16 %v4990
        %v5325 = vunpack.c.h.b16 %v4990
        %v5326 = vunpack.c.l.b16 %v4991
        %v5327 = vunpack.c.h.b16 %v4991
        %v5328 = vunpack.c.l.b16 %v4992
        %v5329 = vunpack.c.h.b16 %v4992
        %v5330 = vunpack.c.l.b16 %v4993
        %v5331 = vunpack.c.h.b16 %v4993
        %v5332 = vunpack.c.l.b16 %v4994
        %v5333 = vunpack.c.h.b16 %v4994
        %v5334 = vunpack.c.l.b16 %v4995
        %v5335 = vunpack.c.h.b16 %v4995
        %v5336 = vunpack.c.l.b16 %v4996
        %v5337 = vunpack.c.h.b16 %v4996
        %v5338 = vunpack.c.l.b16 %v4997
        %v5339 = vunpack.c.h.b16 %v4997
        %v5340 = vunpack.c.l.b16 %v4998
        %v5341 = vunpack.c.h.b16 %v4998
        %v5342 = vunpack.c.l.b16 %v4999
        %v5343 = vunpack.c.h.b16 %v4999
        %v5344 = vunpack.c.l.b16 %v5000
        %v5345 = vunpack.c.h.b16 %v5000
        %v5346 = vunpack.c.l.b16 %v5001
        %v5347 = vunpack.c.h.b16 %v5001
        %v5348 = vunpack.c.l.b16 %v5002
        %v5349 = vunpack.c.h.b16 %v5002
        %v5350 = vunpack.c.l.b16 %v5003
        %v5351 = vunpack.c.h.b16 %v5003
        %v5352 = vunpack.c.l.b16 %v5004
        %v5353 = vunpack.c.h.b16 %v5004
        %v5354 = vunpack.c.l.b16 %v5005
        %v5355 = vunpack.c.h.b16 %v5005
        %v5356 = vunpack.c.l.b16 %v5006
        %v5357 = vunpack.c.h.b16 %v5006
        %v5358 = vunpack.c.l.b16 %v5007
        %v5359 = vunpack.c.h.b16 %v5007
        %v5360 = vunpack.c.l.b16 %v5008
        %v5361 = vunpack.c.h.b16 %v5008
        %v5362 = vunpack.c.l.b16 %v5009
        %v5363 = vunpack.c.h.b16 %v5009
        %v5364 = vunpack.c.l.b16 %v5010
        %v5365 = vunpack.c.h.b16 %v5010
        %v5366 = vunpack.c.l.b16 %v5011
        %v5367 = vunpack.c.h.b16 %v5011
        %v5368 = vunpack.c.l.b16 %v5012
        %v5369 = vunpack.c.h.b16 %v5012
        %v5370 = vunpack.c.l.b16 %v5013
        %v5371 = vunpack.c.h.b16 %v5013
        %v5372 = vunpack.c.l.b16 %v5014
        %v5373 = vunpack.c.h.b16 %v5014
        %v5374 = vunpack.c.l.b16 %v5015
        %v5375 = vunpack.c.h.b16 %v5015
        %v5376 = vunpack.c.l.b16 %v5016
        %v5377 = vunpack.c.h.b16 %v5016
        %v5378 = vunpack.c.l.b16 %v5017
        %v5379 = vunpack.c.h.b16 %v5017
        %v5380 = vunpack.c.l.b16 %v5018
        %v5381 = vunpack.c.h.b16 %v5018
        %v5382 = vunpack.c.l.b16 %v5019
        %v5383 = vunpack.c.h.b16 %v5019
        %v5384 = vunpack.c.l.b16 %v5020
        %v5385 = vunpack.c.h.b16 %v5020
        %v5386 = vunpack.c.l.b16 %v5021
        %v5387 = vunpack.c.h.b16 %v5021
        %v5388 = vunpack.c.l.b16 %v5022
        %v5389 = vunpack.c.h.b16 %v5022
        %v5390 = vunpack.c.l.b16 %v5023
        %v5391 = vunpack.c.h.b16 %v5023
        %v5392 = vunpack.c.l.b16 %v5024
        %v5393 = vunpack.c.h.b16 %v5024
        %v5394 = vunpack.c.l.b16 %v5025
        %v5395 = vunpack.c.h.b16 %v5025
        %v5396 = vunpack.c.l.b16 %v5026
        %v5397 = vunpack.c.h.b16 %v5026
        %v5398 = vunpack.c.l.b16 %v5027
        %v5399 = vunpack.c.h.b16 %v5027
        %v5400 = vunpack.c.l.b16 %v5028
        %v5401 = vunpack.c.h.b16 %v5028
        %v5402 = vunpack.c.l.b16 %v5029
        %v5403 = vunpack.c.h.b16 %v5029
        %v5404 = vunpack.c.l.b16 %v5030
        %v5405 = vunpack.c.h.b16 %v5030
        %v5406 = vunpack.c.l.b16 %v5031
        %v5407 = vunpack.c.h.b16 %v5031
        %v5408 = vunpack.c.l.b16 %v5032
        %v5409 = vunpack.c.h.b16 %v5032
        %v5410 = vunpack.c.l.b16 %v5033
        %v5411 = vunpack.c.h.b16 %v5033
        %v5412 = vunpack.c.l.b16 %v5034
        %v5413 = vunpack.c.h.b16 %v5034
        %v5414 = vunpack.c.l.b16 %v5035
        %v5415 = vunpack.c.h.b16 %v5035
        %v5416 = vunpack.c.l.b16 %v5036
        %v5417 = vunpack.c.h.b16 %v5036
        %v5418 = vunpack.c.l.b16 %v5037
        %v5419 = vunpack.c.h.b16 %v5037
        %v5420 = vunpack.c.l.b16 %v5038
        %v5421 = vunpack.c.h.b16 %v5038
        %v5422 = vunpack.c.l.b16 %v5039
        %v5423 = vunpack.c.h.b16 %v5039
        %v5424 = vunpack.c.l.b16 %v5040
        %v5425 = vunpack.c.h.b16 %v5040
        %v5426 = vunpack.c.l.b16 %v5041
        %v5427 = vunpack.c.h.b16 %v5041
        %v5428 = vunpack.c.l.b16 %v5042
        %v5429 = vunpack.c.h.b16 %v5042
        %v5430 = vunpack.c.l.b16 %v5043
        %v5431 = vunpack.c.h.b16 %v5043
        %v5432 = vunpack.c.l.b16 %v5044
        %v5433 = vunpack.c.h.b16 %v5044
        %v5434 = vunpack.c.l.b16 %v5045
        %v5435 = vunpack.c.h.b16 %v5045
        %v5436 = vunpack.c.l.b16 %v5046
        %v5437 = vunpack.c.h.b16 %v5046
        %v5438 = vunpack.c.l.b16 %v5047
        %v5439 = vunpack.c.h.b16 %v5047
        %v5440 = vunpack.c.l.b16 %v5048
        %v5441 = vunpack.c.h.b16 %v5048
        %v5442 = vunpack.c.l.b16 %v5049
        %v5443 = vunpack.c.h.b16 %v5049
        %v5444 = vpack.c.b16 %v5192, %v5188
        %v5445 = vpack.c.b16 %v5193, %v5189
        %v5446 = vpack.c.b16 %v5194, %v5190
        %v5447 = vpack.c.b16 %v5195, %v5191
        %v5448 = vpack.c.b16 %v5200, %v5196
        %v5449 = vpack.c.b16 %v5201, %v5197
        %v5450 = vpack.c.b16 %v5202, %v5198
        %v5451 = vpack.c.b16 %v5203, %v5199
        %v5452 = vpack.c.b16 %v5208, %v5204
        %v5453 = vpack.c.b16 %v5209, %v5205
        %v5454 = vpack.c.b16 %v5210, %v5206
        %v5455 = vpack.c.b16 %v5211, %v5207
        %v5456 = vpack.c.b16 %v5216, %v5212
        %v5457 = vpack.c.b16 %v5217, %v5213
        %v5458 = vpack.c.b16 %v5218, %v5214
        %v5459 = vpack.c.b16 %v5219, %v5215
        %v5460 = vpack.c.b16 %v5224, %v5220
        %v5461 = vpack.c.b16 %v5225, %v5221
        %v5462 = vpack.c.b16 %v5226, %v5222
        %v5463 = vpack.c.b16 %v5227, %v5223
        %v5464 = vpack.c.b16 %v5232, %v5228
        %v5465 = vpack.c.b16 %v5233, %v5229
        %v5466 = vpack.c.b16 %v5234, %v5230
        %v5467 = vpack.c.b16 %v5235, %v5231
        %v5468 = vpack.c.b16 %v5240, %v5236
        %v5469 = vpack.c.b16 %v5241, %v5237
        %v5470 = vpack.c.b16 %v5242, %v5238
        %v5471 = vpack.c.b16 %v5243, %v5239
        %v5472 = vpack.c.b16 %v5248, %v5244
        %v5473 = vpack.c.b16 %v5249, %v5245
        %v5474 = vpack.c.b16 %v5250, %v5246
        %v5475 = vpack.c.b16 %v5251, %v5247
        %v5476 = vpack.c.b16 %v5256, %v5252
        %v5477 = vpack.c.b16 %v5257, %v5253
        %v5478 = vpack.c.b16 %v5258, %v5254
        %v5479 = vpack.c.b16 %v5259, %v5255
        %v5480 = vpack.c.b16 %v5264, %v5260
        %v5481 = vpack.c.b16 %v5265, %v5261
        %v5482 = vpack.c.b16 %v5266, %v5262
        %v5483 = vpack.c.b16 %v5267, %v5263
        %v5484 = vpack.c.b16 %v5272, %v5268
        %v5485 = vpack.c.b16 %v5273, %v5269
        %v5486 = vpack.c.b16 %v5274, %v5270
        %v5487 = vpack.c.b16 %v5275, %v5271
        %v5488 = vpack.c.b16 %v5280, %v5276
        %v5489 = vpack.c.b16 %v5281, %v5277
        %v5490 = vpack.c.b16 %v5282, %v5278
        %v5491 = vpack.c.b16 %v5283, %v5279
        %v5492 = vpack.c.b16 %v5288, %v5284
        %v5493 = vpack.c.b16 %v5289, %v5285
        %v5494 = vpack.c.b16 %v5290, %v5286
        %v5495 = vpack.c.b16 %v5291, %v5287
        %v5496 = vpack.c.b16 %v5296, %v5292
        %v5497 = vpack.c.b16 %v5297, %v5293
        %v5498 = vpack.c.b16 %v5298, %v5294
        %v5499 = vpack.c.b16 %v5299, %v5295
        %v5500 = vpack.c.b16 %v5304, %v5300
        %v5501 = vpack.c.b16 %v5305, %v5301
        %v5502 = vpack.c.b16 %v5306, %v5302
        %v5503 = vpack.c.b16 %v5307, %v5303
        %v5504 = vpack.c.b16 %v5312, %v5308
        %v5505 = vpack.c.b16 %v5313, %v5309
        %v5506 = vpack.c.b16 %v5314, %v5310
        %v5507 = vpack.c.b16 %v5315, %v5311
        %v5508 = vpack.c.b16 %v5320, %v5316
        %v5509 = vpack.c.b16 %v5321, %v5317
        %v5510 = vpack.c.b16 %v5322, %v5318
        %v5511 = vpack.c.b16 %v5323, %v5319
        %v5512 = vpack.c.b16 %v5328, %v5324
        %v5513 = vpack.c.b16 %v5329, %v5325
        %v5514 = vpack.c.b16 %v5330, %v5326
        %v5515 = vpack.c.b16 %v5331, %v5327
        %v5516 = vpack.c.b16 %v5336, %v5332
        %v5517 = vpack.c.b16 %v5337, %v5333
        %v5518 = vpack.c.b16 %v5338, %v5334
        %v5519 = vpack.c.b16 %v5339, %v5335
        %v5520 = vpack.c.b16 %v5344, %v5340
        %v5521 = vpack.c.b16 %v5345, %v5341
        %v5522 = vpack.c.b16 %v5346, %v5342
        %v5523 = vpack.c.b16 %v5347, %v5343
        %v5524 = vpack.c.b16 %v5352, %v5348
        %v5525 = vpack.c.b16 %v5353, %v5349
        %v5526 = vpack.c.b16 %v5354, %v5350
        %v5527 = vpack.c.b16 %v5355, %v5351
        %v5528 = vpack.c.b16 %v5360, %v5356
        %v5529 = vpack.c.b16 %v5361, %v5357
        %v5530 = vpack.c.b16 %v5362, %v5358
        %v5531 = vpack.c.b16 %v5363, %v5359
        %v5532 = vpack.c.b16 %v5368, %v5364
        %v5533 = vpack.c.b16 %v5369, %v5365
        %v5534 = vpack.c.b16 %v5370, %v5366
        %v5535 = vpack.c.b16 %v5371, %v5367
        %v5536 = vpack.c.b16 %v5376, %v5372
        %v5537 = vpack.c.b16 %v5377, %v5373
        %v5538 = vpack.c.b16 %v5378, %v5374
        %v5539 = vpack.c.b16 %v5379, %v5375
        %v5540 = vpack.c.b16 %v5384, %v5380
        %v5541 = vpack.c.b16 %v5385, %v5381
        %v5542 = vpack.c.b16 %v5386, %v5382
        %v5543 = vpack.c.b16 %v5387, %v5383
        %v5544 = vpack.c.b16 %v5392, %v5388
        %v5545 = vpack.c.b16 %v5393, %v5389
        %v5546 = vpack.c.b16 %v5394, %v5390
        %v5547 = vpack.c.b16 %v5395, %v5391
        %v5548 = vpack.c.b16 %v5400, %v5396
        %v5549 = vpack.c.b16 %v5401, %v5397
        %v5550 = vpack.c.b16 %v5402, %v5398
        %v5551 = vpack.c.b16 %v5403, %v5399
        %v5552 = vpack.c.b16 %v5408, %v5404
        %v5553 = vpack.c.b16 %v5409, %v5405
        %v5554 = vpack.c.b16 %v5410, %v5406
        %v5555 = vpack.c.b16 %v5411, %v5407
        %v5556 = vpack.c.b16 %v5416, %v5412
        %v5557 = vpack.c.b16 %v5417, %v5413
        %v5558 = vpack.c.b16 %v5418, %v5414
        %v5559 = vpack.c.b16 %v5419, %v5415
        %v5560 = vpack.c.b16 %v5424, %v5420
        %v5561 = vpack.c.b16 %v5425, %v5421
        %v5562 = vpack.c.b16 %v5426, %v5422
        %v5563 = vpack.c.b16 %v5427, %v5423
        %v5564 = vpack.c.b16 %v5432, %v5428
        %v5565 = vpack.c.b16 %v5433, %v5429
        %v5566 = vpack.c.b16 %v5434, %v5430
        %v5567 = vpack.c.b16 %v5435, %v5431
        %v5568 = vpack.c.b16 %v5440, %v5436
        %v5569 = vpack.c.b16 %v5441, %v5437
        %v5570 = vpack.c.b16 %v5442, %v5438
        %v5571 = vpack.c.b16 %v5443, %v5439
        %5700 = vmatpush.bf16.msra.mxu0 %v5472
        %5701 = vmatpush.bf16.msra.mxu0 %v5468
        %5702 = vmatpush.bf16.msra.mxu0 %v5464
        %5703 = vmatpush.bf16.msra.mxu0 %v5460
        %5704 = vmatpush.bf16.msra.mxu0 %v5456
        %5705 = vmatpush.bf16.msra.mxu0 %v5452
        %5706 = vmatpush.bf16.msra.mxu0 %v5448
        %5707 = vmatpush.bf16.msra.mxu0 %v5444
        %5708 = vmatmul.bf16.gmra.mxu0 %v4918
        %v5709 = vpop.f32.mrf.mxu0
        %v5710 = vadd.f32 %v5052, %v5709
        %v5711 = vpop.f32.mrf.mxu0
        %5712 = vdwg.mxu0
        %5713 = vmatpush.bf16.msra.mxu0 %v5504
        %5714 = vmatpush.bf16.msra.mxu0 %v5500
        %5715 = vmatpush.bf16.msra.mxu0 %v5496
        %5716 = vmatpush.bf16.msra.mxu0 %v5492
        %5717 = vmatpush.bf16.msra.mxu0 %v5488
        %5718 = vmatpush.bf16.msra.mxu0 %v5484
        %5719 = vmatpush.bf16.msra.mxu0 %v5480
        %5720 = vmatpush.bf16.msra.mxu0 %v5476
        %5721 = vmatmul.bf16.gmra.mxu0 %v4919
        %v5722 = vpop.f32.mrf.mxu0
        %v5723 = vadd.f32 %v5710, %v5722
        %v5724 = vpop.f32.mrf.mxu0
        %5725 = vdwg.mxu0
        %5726 = vmatpush.bf16.msra.mxu0 %v5536
        %5727 = vmatpush.bf16.msra.mxu0 %v5532
        %5728 = vmatpush.bf16.msra.mxu0 %v5528
        %5729 = vmatpush.bf16.msra.mxu0 %v5524
        %5730 = vmatpush.bf16.msra.mxu0 %v5520
        %5731 = vmatpush.bf16.msra.mxu0 %v5516
        %5732 = vmatpush.bf16.msra.mxu0 %v5512
        %5733 = vmatpush.bf16.msra.mxu0 %v5508
        %5734 = vmatmul.bf16.gmra.mxu0 %v4920
        %v5735 = vpop.f32.mrf.mxu0
        %v5736 = vadd.f32 %v5723, %v5735
        %v5737 = vpop.f32.mrf.mxu0
        %5738 = vdwg.mxu0
        %5739 = vmatpush.bf16.msra.mxu0 %v5568
        %5740 = vmatpush.bf16.msra.mxu0 %v5564
        %5741 = vmatpush.bf16.msra.mxu0 %v5560
        %5742 = vmatpush.bf16.msra.mxu0 %v5556
        %5743 = vmatpush.bf16.msra.mxu0 %v5552
        %5744 = vmatpush.bf16.msra.mxu0 %v5548
        %5745 = vmatpush.bf16.msra.mxu0 %v5544
        %5746 = vmatpush.bf16.msra.mxu0 %v5540
        %5747 = vmatmul.bf16.gmra.mxu0 %v4921
        %v5748 = vpop.f32.mrf.mxu0
        %v5749 = vadd.f32 %v5736, %v5748
        %v5750 = vpop.f32.mrf.mxu0
        %5751 = vdwg.mxu0
        %5752 = vmatpush.bf16.msra.mxu0 %v5473
        %5753 = vmatpush.bf16.msra.mxu0 %v5469
        %5754 = vmatpush.bf16.msra.mxu0 %v5465
        %5755 = vmatpush.bf16.msra.mxu0 %v5461
        %5756 = vmatpush.bf16.msra.mxu0 %v5457
        %5757 = vmatpush.bf16.msra.mxu0 %v5453
        %5758 = vmatpush.bf16.msra.mxu0 %v5449
        %5759 = vmatpush.bf16.msra.mxu0 %v5445
        %5760 = vmatmul.bf16.gmra.mxu0 %v4918
        %v5761 = vpop.f32.mrf.mxu0
        %v5762 = vadd.f32 %v5053, %v5761
        %v5763 = vpop.f32.mrf.mxu0
        %5764 = vdwg.mxu0
        %5765 = vmatpush.bf16.msra.mxu0 %v5505
        %5766 = vmatpush.bf16.msra.mxu0 %v5501
        %5767 = vmatpush.bf16.msra.mxu0 %v5497
        %5768 = vmatpush.bf16.msra.mxu0 %v5493
        %5769 = vmatpush.bf16.msra.mxu0 %v5489
        %5770 = vmatpush.bf16.msra.mxu0 %v5485
        %5771 = vmatpush.bf16.msra.mxu0 %v5481
        %5772 = vmatpush.bf16.msra.mxu0 %v5477
        %5773 = vmatmul.bf16.gmra.mxu0 %v4919
        %v5774 = vpop.f32.mrf.mxu0
        %v5775 = vadd.f32 %v5762, %v5774
        %v5776 = vpop.f32.mrf.mxu0
        %5777 = vdwg.mxu0
        %5778 = vmatpush.bf16.msra.mxu0 %v5537
        %5779 = vmatpush.bf16.msra.mxu0 %v5533
        %5780 = vmatpush.bf16.msra.mxu0 %v5529
        %5781 = vmatpush.bf16.msra.mxu0 %v5525
        %5782 = vmatpush.bf16.msra.mxu0 %v5521
        %5783 = vmatpush.bf16.msra.mxu0 %v5517
        %5784 = vmatpush.bf16.msra.mxu0 %v5513
        %5785 = vmatpush.bf16.msra.mxu0 %v5509
        %5786 = vmatmul.bf16.gmra.mxu0 %v4920
        %v5787 = vpop.f32.mrf.mxu0
        %v5788 = vadd.f32 %v5775, %v5787
        %v5789 = vpop.f32.mrf.mxu0
        %5790 = vdwg.mxu0
        %5791 = vmatpush.bf16.msra.mxu0 %v5569
        %5792 = vmatpush.bf16.msra.mxu0 %v5565
        %5793 = vmatpush.bf16.msra.mxu0 %v5561
        %5794 = vmatpush.bf16.msra.mxu0 %v5557
        %5795 = vmatpush.bf16.msra.mxu0 %v5553
        %5796 = vmatpush.bf16.msra.mxu0 %v5549
        %5797 = vmatpush.bf16.msra.mxu0 %v5545
        %5798 = vmatpush.bf16.msra.mxu0 %v5541
        %5799 = vmatmul.bf16.gmra.mxu0 %v4921
        %v5800 = vpop.f32.mrf.mxu0
        %v5801 = vadd.f32 %v5788, %v5800
        %v5802 = vpop.f32.mrf.mxu0
        %5803 = vdwg.mxu0
        %5804 = vmatpush.bf16.msra.mxu0 %v5474
        %5805 = vmatpush.bf16.msra.mxu0 %v5470
        %5806 = vmatpush.bf16.msra.mxu0 %v5466
        %5807 = vmatpush.bf16.msra.mxu0 %v5462
        %5808 = vmatpush.bf16.msra.mxu0 %v5458
        %5809 = vmatpush.bf16.msra.mxu0 %v5454
        %5810 = vmatpush.bf16.msra.mxu0 %v5450
        %5811 = vmatpush.bf16.msra.mxu0 %v5446
        %5812 = vmatmul.bf16.gmra.mxu0 %v4918
        %v5813 = vpop.f32.mrf.mxu0
        %v5814 = vadd.f32 %v5054, %v5813
        %v5815 = vpop.f32.mrf.mxu0
        %5816 = vdwg.mxu0
        %5817 = vmatpush.bf16.msra.mxu0 %v5506
        %5818 = vmatpush.bf16.msra.mxu0 %v5502
        %5819 = vmatpush.bf16.msra.mxu0 %v5498
        %5820 = vmatpush.bf16.msra.mxu0 %v5494
        %5821 = vmatpush.bf16.msra.mxu0 %v5490
        %5822 = vmatpush.bf16.msra.mxu0 %v5486
        %5823 = vmatpush.bf16.msra.mxu0 %v5482
        %5824 = vmatpush.bf16.msra.mxu0 %v5478
        %5825 = vmatmul.bf16.gmra.mxu0 %v4919
        %v5826 = vpop.f32.mrf.mxu0
        %v5827 = vadd.f32 %v5814, %v5826
        %v5828 = vpop.f32.mrf.mxu0
        %5829 = vdwg.mxu0
        %5830 = vmatpush.bf16.msra.mxu0 %v5538
        %5831 = vmatpush.bf16.msra.mxu0 %v5534
        %5832 = vmatpush.bf16.msra.mxu0 %v5530
        %5833 = vmatpush.bf16.msra.mxu0 %v5526
        %5834 = vmatpush.bf16.msra.mxu0 %v5522
        %5835 = vmatpush.bf16.msra.mxu0 %v5518
        %5836 = vmatpush.bf16.msra.mxu0 %v5514
        %5837 = vmatpush.bf16.msra.mxu0 %v5510
        %5838 = vmatmul.bf16.gmra.mxu0 %v4920
        %v5839 = vpop.f32.mrf.mxu0
        %v5840 = vadd.f32 %v5827, %v5839
        %v5841 = vpop.f32.mrf.mxu0
        %5842 = vdwg.mxu0
        %5843 = vmatpush.bf16.msra.mxu0 %v5570
        %5844 = vmatpush.bf16.msra.mxu0 %v5566
        %5845 = vmatpush.bf16.msra.mxu0 %v5562
        %5846 = vmatpush.bf16.msra.mxu0 %v5558
        %5847 = vmatpush.bf16.msra.mxu0 %v5554
        %5848 = vmatpush.bf16.msra.mxu0 %v5550
        %5849 = vmatpush.bf16.msra.mxu0 %v5546
        %5850 = vmatpush.bf16.msra.mxu0 %v5542
        %5851 = vmatmul.bf16.gmra.mxu0 %v4921
        %v5852 = vpop.f32.mrf.mxu0
        %v5853 = vadd.f32 %v5840, %v5852
        %v5854 = vpop.f32.mrf.mxu0
        %5855 = vdwg.mxu0
        %5856 = vmatpush.bf16.msra.mxu0 %v5475
        %5857 = vmatpush.bf16.msra.mxu0 %v5471
        %5858 = vmatpush.bf16.msra.mxu0 %v5467
        %5859 = vmatpush.bf16.msra.mxu0 %v5463
        %5860 = vmatpush.bf16.msra.mxu0 %v5459
        %5861 = vmatpush.bf16.msra.mxu0 %v5455
        %5862 = vmatpush.bf16.msra.mxu0 %v5451
        %5863 = vmatpush.bf16.msra.mxu0 %v5447
        %5864 = vmatmul.bf16.gmra.mxu0 %v4918
        %v5865 = vpop.f32.mrf.mxu0
        %v5866 = vadd.f32 %v5055, %v5865
        %v5867 = vpop.f32.mrf.mxu0
        %5868 = vdwg.mxu0
        %5869 = vmatpush.bf16.msra.mxu0 %v5507
        %5870 = vmatpush.bf16.msra.mxu0 %v5503
        %5871 = vmatpush.bf16.msra.mxu0 %v5499
        %5872 = vmatpush.bf16.msra.mxu0 %v5495
        %5873 = vmatpush.bf16.msra.mxu0 %v5491
        %5874 = vmatpush.bf16.msra.mxu0 %v5487
        %5875 = vmatpush.bf16.msra.mxu0 %v5483
        %5876 = vmatpush.bf16.msra.mxu0 %v5479
        %5877 = vmatmul.bf16.gmra.mxu0 %v4919
        %v5878 = vpop.f32.mrf.mxu0
        %v5879 = vadd.f32 %v5866, %v5878
        %v5880 = vpop.f32.mrf.mxu0
        %5881 = vdwg.mxu0
        %5882 = vmatpush.bf16.msra.mxu0 %v5539
        %5883 = vmatpush.bf16.msra.mxu0 %v5535
        %5884 = vmatpush.bf16.msra.mxu0 %v5531
        %5885 = vmatpush.bf16.msra.mxu0 %v5527
        %5886 = vmatpush.bf16.msra.mxu0 %v5523
        %5887 = vmatpush.bf16.msra.mxu0 %v5519
        %5888 = vmatpush.bf16.msra.mxu0 %v5515
        %5889 = vmatpush.bf16.msra.mxu0 %v5511
        %5890 = vmatmul.bf16.gmra.mxu0 %v4920
        %v5891 = vpop.f32.mrf.mxu0
        %v5892 = vadd.f32 %v5879, %v5891
        %v5893 = vpop.f32.mrf.mxu0
        %5894 = vdwg.mxu0
        %5895 = vmatpush.bf16.msra.mxu0 %v5571
        %5896 = vmatpush.bf16.msra.mxu0 %v5567
        %5897 = vmatpush.bf16.msra.mxu0 %v5563
        %5898 = vmatpush.bf16.msra.mxu0 %v5559
        %5899 = vmatpush.bf16.msra.mxu0 %v5555
        %5900 = vmatpush.bf16.msra.mxu0 %v5551
        %5901 = vmatpush.bf16.msra.mxu0 %v5547
        %5902 = vmatpush.bf16.msra.mxu0 %v5543
        %5903 = vmatmul.bf16.gmra.mxu0 %v4921
        %v5904 = vpop.f32.mrf.mxu0
        %v5905 = vadd.f32 %v5892, %v5904
        %v5906 = vpop.f32.mrf.mxu0
        %5907 = vdwg.mxu0
        %v5908 = vmax.f32 %v5749, 0.0
        %v5909 = vmax.f32 %v5801, 0.0
        %v5910 = vmax.f32 %v5853, 0.0
        %v5911 = vmax.f32 %v5905, 0.0
        %v5912 = vpack.c.bf16 %v5908, %v5908
        %v5913 = vpack.c.bf16 %v5909, %v5909
        %v5914 = vpack.c.bf16 %v5910, %v5910
        %v5915 = vpack.c.bf16 %v5911, %v5911
        %v5916 = vld [vmem:[#allocation10] sm:$0xff]
        %v5917 = vld [vmem:[#allocation10 + $0x8] sm:$0xff]
        %v5918 = vld [vmem:[#allocation10 + $0x10] sm:$0xff]
        %v5919 = vld [vmem:[#allocation10 + $0x18] sm:$0xf]
        %v5920 = vld [vmem:[#allocation10 + $0x1c] sm:$0xff]
        %v5921 = vld [vmem:[#allocation10 + $0x24] sm:$0xff]
        %v5922 = vld [vmem:[#allocation10 + $0x2c] sm:$0xff]
        %v5923 = vld [vmem:[#allocation10 + $0x34] sm:$0xf]
        %v5924 = vld [vmem:[#allocation10 + $0x38] sm:$0xff]
        %v5925 = vld [vmem:[#allocation10 + $0x40] sm:$0xff]
        %v5926 = vld [vmem:[#allocation10 + $0x48] sm:$0xff]
        %v5927 = vld [vmem:[#allocation10 + $0x50] sm:$0xf]
        %v5928 = vld [vmem:[#allocation10 + $0x54] sm:$0xff]
        %v5929 = vld [vmem:[#allocation10 + $0x5c] sm:$0xff]
        %v5930 = vld [vmem:[#allocation10 + $0x64] sm:$0xff]
        %v5931 = vld [vmem:[#allocation10 + $0x6c] sm:$0xf]
        %v5932 = vld [vmem:[#allocation10 + $0x70] sm:$0xff]
        %v5933 = vld [vmem:[#allocation10 + $0x78] sm:$0xff]
        %v5934 = vld [vmem:[#allocation10 + $0x80] sm:$0xff]
        %v5935 = vld [vmem:[#allocation10 + $0x88] sm:$0xf]
        %v5936 = vld [vmem:[#allocation10 + $0x8c] sm:$0xff]
        %v5937 = vld [vmem:[#allocation10 + $0x94] sm:$0xff]
        %v5938 = vld [vmem:[#allocation10 + $0x9c] sm:$0xff]
        %v5939 = vld [vmem:[#allocation10 + $0xa4] sm:$0xf]
        %v5940 = vld [vmem:[#allocation10 + $0xa8] sm:$0xff]
        %v5941 = vld [vmem:[#allocation10 + $0xb0] sm:$0xff]
        %v5942 = vld [vmem:[#allocation10 + $0xb8] sm:$0xff]
        %v5943 = vld [vmem:[#allocation10 + $0xc0] sm:$0xf]
        %v5944 = vld [vmem:[#allocation10 + $0xc4] sm:$0xff]
        %v5945 = vld [vmem:[#allocation10 + $0xcc] sm:$0xff]
        %v5946 = vld [vmem:[#allocation10 + $0xd4] sm:$0xff]
        %v5947 = vld [vmem:[#allocation10 + $0xdc] sm:$0xf]
        %v5948 = vld [vmem:[#allocation10 + $0xe0] sm:$0xff]
        %v5949 = vld [vmem:[#allocation10 + $0xe8] sm:$0xff]
        %v5950 = vld [vmem:[#allocation10 + $0xf0] sm:$0xff]
        %v5951 = vld [vmem:[#allocation10 + $0xf8] sm:$0xf]
        %v5952 = vld [vmem:[#allocation10 + $0xfc] sm:$0xff]
        %v5953 = vld [vmem:[#allocation10 + $0x104] sm:$0xff]
        %v5954 = vld [vmem:[#allocation10 + $0x10c] sm:$0xff]
        %v5955 = vld [vmem:[#allocation10 + $0x114] sm:$0xf]
        %v5956 = vld [vmem:[#allocation10 + $0x118] sm:$0xff]
        %v5957 = vld [vmem:[#allocation10 + $0x120] sm:$0xff]
        %v5958 = vld [vmem:[#allocation10 + $0x128] sm:$0xff]
        %v5959 = vld [vmem:[#allocation10 + $0x130] sm:$0xf]
        %v5960 = vld [vmem:[#allocation10 + $0x134] sm:$0xff]
        %v5961 = vld [vmem:[#allocation10 + $0x13c] sm:$0xff]
        %v5962 = vld [vmem:[#allocation10 + $0x144] sm:$0xff]
        %v5963 = vld [vmem:[#allocation10 + $0x14c] sm:$0xf]
        %v5964 = vld [vmem:[#allocation10 + $0x150] sm:$0xff]
        %v5965 = vld [vmem:[#allocation10 + $0x158] sm:$0xff]
        %v5966 = vld [vmem:[#allocation10 + $0x160] sm:$0xff]
        %v5967 = vld [vmem:[#allocation10 + $0x168] sm:$0xf]
        %v5968 = vld [vmem:[#allocation10 + $0x16c] sm:$0xff]
        %v5969 = vld [vmem:[#allocation10 + $0x174] sm:$0xff]
        %v5970 = vld [vmem:[#allocation10 + $0x17c] sm:$0xff]
        %v5971 = vld [vmem:[#allocation10 + $0x184] sm:$0xf]
        %v5972 = vld [vmem:[#allocation10 + $0x188] sm:$0xff]
        %v5973 = vld [vmem:[#allocation10 + $0x190] sm:$0xff]
        %v5974 = vld [vmem:[#allocation10 + $0x198] sm:$0xff]
        %v5975 = vld [vmem:[#allocation10 + $0x1a0] sm:$0xf]
        %v5976 = vld [vmem:[#allocation10 + $0x1a4] sm:$0xff]
        %v5977 = vld [vmem:[#allocation10 + $0x1ac] sm:$0xff]
        %v5978 = vld [vmem:[#allocation10 + $0x1b4] sm:$0xff]
        %v5979 = vld [vmem:[#allocation10 + $0x1bc] sm:$0xf]
        %v5980 = vld [vmem:[#allocation10 + $0x1c0] sm:$0xff]
        %v5981 = vld [vmem:[#allocation10 + $0x1c8] sm:$0xff]
        %v5982 = vld [vmem:[#allocation10 + $0x1d0] sm:$0xff]
        %v5983 = vld [vmem:[#allocation10 + $0x1d8] sm:$0xf]
        %v5984 = vld [vmem:[#allocation10 + $0x1dc] sm:$0xff]
        %v5985 = vld [vmem:[#allocation10 + $0x1e4] sm:$0xff]
        %v5986 = vld [vmem:[#allocation10 + $0x1ec] sm:$0xff]
        %v5987 = vld [vmem:[#allocation10 + $0x1f4] sm:$0xf]
        %v5988 = vld [vmem:[#allocation10 + $0x1f8] sm:$0xff]
        %v5989 = vld [vmem:[#allocation10 + $0x200] sm:$0xff]
        %v5990 = vld [vmem:[#allocation10 + $0x208] sm:$0xff]
        %v5991 = vld [vmem:[#allocation10 + $0x210] sm:$0xf]
        %v5992 = vld [vmem:[#allocation10 + $0x214] sm:$0xff]
        %v5993 = vld [vmem:[#allocation10 + $0x21c] sm:$0xff]
        %v5994 = vld [vmem:[#allocation10 + $0x224] sm:$0xff]
        %v5995 = vld [vmem:[#allocation10 + $0x22c] sm:$0xf]
        %v5996 = vld [vmem:[#allocation10 + $0x230] sm:$0xff]
        %v5997 = vld [vmem:[#allocation10 + $0x238] sm:$0xff]
        %v5998 = vld [vmem:[#allocation10 + $0x240] sm:$0xff]
        %v5999 = vld [vmem:[#allocation10 + $0x248] sm:$0xf]
        %v6000 = vld [vmem:[#allocation10 + $0x24c] sm:$0xff]
        %v6001 = vld [vmem:[#allocation10 + $0x254] sm:$0xff]
        %v6002 = vld [vmem:[#allocation10 + $0x25c] sm:$0xff]
        %v6003 = vld [vmem:[#allocation10 + $0x264] sm:$0xf]
        %v6004 = vld [vmem:[#allocation10 + $0x268] sm:$0xff]
        %v6005 = vld [vmem:[#allocation10 + $0x270] sm:$0xff]
        %v6006 = vld [vmem:[#allocation10 + $0x278] sm:$0xff]
        %v6007 = vld [vmem:[#allocation10 + $0x280] sm:$0xf]
        %v6008 = vld [vmem:[#allocation10 + $0x284] sm:$0xff]
        %v6009 = vld [vmem:[#allocation10 + $0x28c] sm:$0xff]
        %v6010 = vld [vmem:[#allocation10 + $0x294] sm:$0xff]
        %v6011 = vld [vmem:[#allocation10 + $0x29c] sm:$0xf]
        %v6012 = vld [vmem:[#allocation10 + $0x2a0] sm:$0xff]
        %v6013 = vld [vmem:[#allocation10 + $0x2a8] sm:$0xff]
        %v6014 = vld [vmem:[#allocation10 + $0x2b0] sm:$0xff]
        %v6015 = vld [vmem:[#allocation10 + $0x2b8] sm:$0xf]
        %v6016 = vld [vmem:[#allocation10 + $0x2bc] sm:$0xff]
        %v6017 = vld [vmem:[#allocation10 + $0x2c4] sm:$0xff]
        %v6018 = vld [vmem:[#allocation10 + $0x2cc] sm:$0xff]
        %v6019 = vld [vmem:[#allocation10 + $0x2d4] sm:$0xf]
        %v6020 = vld [vmem:[#allocation10 + $0x2d8] sm:$0xff]
        %v6021 = vld [vmem:[#allocation10 + $0x2e0] sm:$0xff]
        %v6022 = vld [vmem:[#allocation10 + $0x2e8] sm:$0xff]
        %v6023 = vld [vmem:[#allocation10 + $0x2f0] sm:$0xf]
        %v6024 = vld [vmem:[#allocation10 + $0x2f4] sm:$0xff]
        %v6025 = vld [vmem:[#allocation10 + $0x2fc] sm:$0xff]
        %v6026 = vld [vmem:[#allocation10 + $0x304] sm:$0xff]
        %v6027 = vld [vmem:[#allocation10 + $0x30c] sm:$0xf]
        %v6028 = vld [vmem:[#allocation10 + $0x310] sm:$0xff]
        %v6029 = vld [vmem:[#allocation10 + $0x318] sm:$0xff]
        %v6030 = vld [vmem:[#allocation10 + $0x320] sm:$0xff]
        %v6031 = vld [vmem:[#allocation10 + $0x328] sm:$0xf]
        %v6032 = vld [vmem:[#allocation10 + $0x32c] sm:$0xff]
        %v6033 = vld [vmem:[#allocation10 + $0x334] sm:$0xff]
        %v6034 = vld [vmem:[#allocation10 + $0x33c] sm:$0xff]
        %v6035 = vld [vmem:[#allocation10 + $0x344] sm:$0xf]
        %v6036 = vld [vmem:[#allocation10 + $0x348] sm:$0xff]
        %v6037 = vld [vmem:[#allocation10 + $0x350] sm:$0xff]
        %v6038 = vld [vmem:[#allocation10 + $0x358] sm:$0xff]
        %v6039 = vld [vmem:[#allocation10 + $0x360] sm:$0xf]
        %v6040 = vld [vmem:[#allocation10 + $0x364] sm:$0xff]
        %v6041 = vld [vmem:[#allocation10 + $0x36c] sm:$0xff]
        %v6042 = vld [vmem:[#allocation10 + $0x374] sm:$0xff]
        %v6043 = vld [vmem:[#allocation10 + $0x37c] sm:$0xf]
        %v6044 = vld [vmem:[#allocation10 + $0x380] sm:$0xff]
        %v6045 = vld [vmem:[#allocation10 + $0x388] sm:$0xff]
        %v6046 = vld [vmem:[#allocation10 + $0x390] sm:$0xff]
        %v6047 = vld [vmem:[#allocation10 + $0x398] sm:$0xf]
        %v6048 = vld [vmem:[#allocation10 + $0x39c] sm:$0xff]
        %v6049 = vld [vmem:[#allocation10 + $0x3a4] sm:$0xff]
        %v6050 = vld [vmem:[#allocation10 + $0x3ac] sm:$0xff]
        %v6051 = vld [vmem:[#allocation10 + $0x3b4] sm:$0xf]
        %v6052 = vld [vmem:[#allocation10 + $0x3b8] sm:$0xff]
        %v6053 = vld [vmem:[#allocation10 + $0x3c0] sm:$0xff]
        %v6054 = vld [vmem:[#allocation10 + $0x3c8] sm:$0xff]
        %v6055 = vld [vmem:[#allocation10 + $0x3d0] sm:$0xf]
        %v6056 = vld [vmem:[#allocation10 + $0x3d4] sm:$0xff]
        %v6057 = vld [vmem:[#allocation10 + $0x3dc] sm:$0xff]
        %v6058 = vld [vmem:[#allocation10 + $0x3e4] sm:$0xff]
        %v6059 = vld [vmem:[#allocation10 + $0x3ec] sm:$0xf]
        %v6060 = vld [vmem:[#allocation10 + $0x3f0] sm:$0xff]
        %v6061 = vld [vmem:[#allocation10 + $0x3f8] sm:$0xff]
        %v6062 = vld [vmem:[#allocation10 + $0x400] sm:$0xff]
        %v6063 = vld [vmem:[#allocation10 + $0x408] sm:$0xf]
        %v6064 = vld [vmem:[#allocation10 + $0x40c] sm:$0xff]
        %v6065 = vld [vmem:[#allocation10 + $0x414] sm:$0xff]
        %v6066 = vld [vmem:[#allocation10 + $0x41c] sm:$0xff]
        %v6067 = vld [vmem:[#allocation10 + $0x424] sm:$0xf]
        %v6068 = vld [vmem:[#allocation10 + $0x428] sm:$0xff]
        %v6069 = vld [vmem:[#allocation10 + $0x430] sm:$0xff]
        %v6070 = vld [vmem:[#allocation10 + $0x438] sm:$0xff]
        %v6071 = vld [vmem:[#allocation10 + $0x440] sm:$0xf]
        %v6072 = vld [vmem:[#allocation10 + $0x444] sm:$0xff]
        %v6073 = vld [vmem:[#allocation10 + $0x44c] sm:$0xff]
        %v6074 = vld [vmem:[#allocation10 + $0x454] sm:$0xff]
        %v6075 = vld [vmem:[#allocation10 + $0x45c] sm:$0xf]
        %v6076 = vld [vmem:[#allocation10 + $0x460] sm:$0xff]
        %v6077 = vld [vmem:[#allocation10 + $0x468] sm:$0xff]
        %v6078 = vld [vmem:[#allocation10 + $0x470] sm:$0xff]
        %v6079 = vld [vmem:[#allocation10 + $0x478] sm:$0xf]
        %v6080 = vld [vmem:[#allocation10 + $0x47c] sm:$0xff]
        %v6081 = vld [vmem:[#allocation10 + $0x484] sm:$0xff]
        %v6082 = vld [vmem:[#allocation10 + $0x48c] sm:$0xff]
        %v6083 = vld [vmem:[#allocation10 + $0x494] sm:$0xf]
        %v6084 = vld [vmem:[#allocation10 + $0x498] sm:$0xff]
        %v6085 = vld [vmem:[#allocation10 + $0x4a0] sm:$0xff]
        %v6086 = vld [vmem:[#allocation10 + $0x4a8] sm:$0xff]
        %v6087 = vld [vmem:[#allocation10 + $0x4b0] sm:$0xf]
        %v6088 = vld [vmem:[#allocation10 + $0x4b4] sm:$0xff]
        %v6089 = vld [vmem:[#allocation10 + $0x4bc] sm:$0xff]
        %v6090 = vld [vmem:[#allocation10 + $0x4c4] sm:$0xff]
        %v6091 = vld [vmem:[#allocation10 + $0x4cc] sm:$0xf]
        %v6092 = vld [vmem:[#allocation10 + $0x4d0] sm:$0xff]
        %v6093 = vld [vmem:[#allocation10 + $0x4d8] sm:$0xff]
        %v6094 = vld [vmem:[#allocation10 + $0x4e0] sm:$0xff]
        %v6095 = vld [vmem:[#allocation10 + $0x4e8] sm:$0xf]
        %v6096 = vld [vmem:[#allocation10 + $0x4ec] sm:$0xff]
        %v6097 = vld [vmem:[#allocation10 + $0x4f4] sm:$0xff]
        %v6098 = vld [vmem:[#allocation10 + $0x4fc] sm:$0xff]
        %v6099 = vld [vmem:[#allocation10 + $0x504] sm:$0xf]
        %v6100 = vld [vmem:[#allocation10 + $0x508] sm:$0xff]
        %v6101 = vld [vmem:[#allocation10 + $0x510] sm:$0xff]
        %v6102 = vld [vmem:[#allocation10 + $0x518] sm:$0xff]
        %v6103 = vld [vmem:[#allocation10 + $0x520] sm:$0xf]
        %v6104 = vld [vmem:[#allocation10 + $0x524] sm:$0xff]
        %v6105 = vld [vmem:[#allocation10 + $0x52c] sm:$0xff]
        %v6106 = vld [vmem:[#allocation10 + $0x534] sm:$0xff]
        %v6107 = vld [vmem:[#allocation10 + $0x53c] sm:$0xf]
        %v6108 = vld [vmem:[#allocation10 + $0x540] sm:$0xff]
        %v6109 = vld [vmem:[#allocation10 + $0x548] sm:$0xff]
        %v6110 = vld [vmem:[#allocation10 + $0x550] sm:$0xff]
        %v6111 = vld [vmem:[#allocation10 + $0x558] sm:$0xf]
        %v6112 = vld [vmem:[#allocation10 + $0x55c] sm:$0xff]
        %v6113 = vld [vmem:[#allocation10 + $0x564] sm:$0xff]
        %v6114 = vld [vmem:[#allocation10 + $0x56c] sm:$0xff]
        %v6115 = vld [vmem:[#allocation10 + $0x574] sm:$0xf]
        %v6116 = vld [vmem:[#allocation10 + $0x578] sm:$0xff]
        %v6117 = vld [vmem:[#allocation10 + $0x580] sm:$0xff]
        %v6118 = vld [vmem:[#allocation10 + $0x588] sm:$0xff]
        %v6119 = vld [vmem:[#allocation10 + $0x590] sm:$0xf]
        %v6120 = vld [vmem:[#allocation10 + $0x594] sm:$0xff]
        %v6121 = vld [vmem:[#allocation10 + $0x59c] sm:$0xff]
        %v6122 = vld [vmem:[#allocation10 + $0x5a4] sm:$0xff]
        %v6123 = vld [vmem:[#allocation10 + $0x5ac] sm:$0xf]
        %v6124 = vld [vmem:[#allocation10 + $0x5b0] sm:$0xff]
        %v6125 = vld [vmem:[#allocation10 + $0x5b8] sm:$0xff]
        %v6126 = vld [vmem:[#allocation10 + $0x5c0] sm:$0xff]
        %v6127 = vld [vmem:[#allocation10 + $0x5c8] sm:$0xf]
        %v6128 = vld [vmem:[#allocation10 + $0x5cc] sm:$0xff]
        %v6129 = vld [vmem:[#allocation10 + $0x5d4] sm:$0xff]
        %v6130 = vld [vmem:[#allocation10 + $0x5dc] sm:$0xff]
        %v6131 = vld [vmem:[#allocation10 + $0x5e4] sm:$0xf]
        %v6132 = vld [vmem:[#allocation10 + $0x5e8] sm:$0xff]
        %v6133 = vld [vmem:[#allocation10 + $0x5f0] sm:$0xff]
        %v6134 = vld [vmem:[#allocation10 + $0x5f8] sm:$0xff]
        %v6135 = vld [vmem:[#allocation10 + $0x600] sm:$0xf]
        %v6136 = vld [vmem:[#allocation10 + $0x604] sm:$0xff]
        %v6137 = vld [vmem:[#allocation10 + $0x60c] sm:$0xff]
        %v6138 = vld [vmem:[#allocation10 + $0x614] sm:$0xff]
        %v6139 = vld [vmem:[#allocation10 + $0x61c] sm:$0xf]
        %v6140 = vld [vmem:[#allocation10 + $0x620] sm:$0xff]
        %v6141 = vld [vmem:[#allocation10 + $0x628] sm:$0xff]
        %v6142 = vld [vmem:[#allocation10 + $0x630] sm:$0xff]
        %v6143 = vld [vmem:[#allocation10 + $0x638] sm:$0xf]
        %v6144 = vld [vmem:[#allocation10 + $0x63c] sm:$0xff]
        %v6145 = vld [vmem:[#allocation10 + $0x644] sm:$0xff]
        %v6146 = vld [vmem:[#allocation10 + $0x64c] sm:$0xff]
        %v6147 = vld [vmem:[#allocation10 + $0x654] sm:$0xf]
        %v6148 = vld [vmem:[#allocation10 + $0x658] sm:$0xff]
        %v6149 = vld [vmem:[#allocation10 + $0x660] sm:$0xff]
        %v6150 = vld [vmem:[#allocation10 + $0x668] sm:$0xff]
        %v6151 = vld [vmem:[#allocation10 + $0x670] sm:$0xf]
        %v6152 = vld [vmem:[#allocation10 + $0x674] sm:$0xff]
        %v6153 = vld [vmem:[#allocation10 + $0x67c] sm:$0xff]
        %v6154 = vld [vmem:[#allocation10 + $0x684] sm:$0xff]
        %v6155 = vld [vmem:[#allocation10 + $0x68c] sm:$0xf]
        %v6156 = vld [vmem:[#allocation10 + $0x690] sm:$0xff]
        %v6157 = vld [vmem:[#allocation10 + $0x698] sm:$0xff]
        %v6158 = vld [vmem:[#allocation10 + $0x6a0] sm:$0xff]
        %v6159 = vld [vmem:[#allocation10 + $0x6a8] sm:$0xf]
        %v6160 = vld [vmem:[#allocation10 + $0x6ac] sm:$0xff]
        %v6161 = vld [vmem:[#allocation10 + $0x6b4] sm:$0xff]
        %v6162 = vld [vmem:[#allocation10 + $0x6bc] sm:$0xff]
        %v6163 = vld [vmem:[#allocation10 + $0x6c4] sm:$0xf]
        %v6164 = vld [vmem:[#allocation10 + $0x6c8] sm:$0xff]
        %v6165 = vld [vmem:[#allocation10 + $0x6d0] sm:$0xff]
        %v6166 = vld [vmem:[#allocation10 + $0x6d8] sm:$0xff]
        %v6167 = vld [vmem:[#allocation10 + $0x6e0] sm:$0xf]
        %v6168 = vld [vmem:[#allocation10 + $0x6e4] sm:$0xff]
        %v6169 = vld [vmem:[#allocation10 + $0x6ec] sm:$0xff]
        %v6170 = vld [vmem:[#allocation10 + $0x6f4] sm:$0xff]
        %v6171 = vld [vmem:[#allocation10 + $0x6fc] sm:$0xf]
        %v6172 = vld [vmem:[%s13] sm:$0xff]
        %v6174 = vperm.slane %v6172, 0
        %v6175 = vperm.slane %v6172, 1
        %v6176 = vperm.slane %v6172, 2
        %v6177 = vperm.slane %v6172, 3
        %v6178 = vperm.slane %v6172, 4
        %v6179 = vperm.slane %v6172, 5
        %v6180 = vperm.slane %v6172, 6
        %v6444 = vunpack.c.l.b16 %v5916
        %v6445 = vunpack.c.h.b16 %v5916
        %v6446 = vunpack.c.l.b16 %v5917
        %v6447 = vunpack.c.h.b16 %v5917
        %v6448 = vunpack.c.l.b16 %v5918
        %v6449 = vunpack.c.h.b16 %v5918
        %v6450 = vunpack.c.l.b16 %v5919
        %v6451 = vunpack.c.l.b16 %v5920
        %v6452 = vunpack.c.h.b16 %v5920
        %v6453 = vunpack.c.l.b16 %v5921
        %v6454 = vunpack.c.h.b16 %v5921
        %v6455 = vunpack.c.l.b16 %v5922
        %v6456 = vunpack.c.h.b16 %v5922
        %v6457 = vunpack.c.l.b16 %v5923
        %v6458 = vunpack.c.l.b16 %v5924
        %v6459 = vunpack.c.h.b16 %v5924
        %v6460 = vunpack.c.l.b16 %v5925
        %v6461 = vunpack.c.h.b16 %v5925
        %v6462 = vunpack.c.l.b16 %v5926
        %v6463 = vunpack.c.h.b16 %v5926
        %v6464 = vunpack.c.l.b16 %v5927
        %v6465 = vunpack.c.l.b16 %v5928
        %v6466 = vunpack.c.h.b16 %v5928
        %v6467 = vunpack.c.l.b16 %v5929
        %v6468 = vunpack.c.h.b16 %v5929
        %v6469 = vunpack.c.l.b16 %v5930
        %v6470 = vunpack.c.h.b16 %v5930
        %v6471 = vunpack.c.l.b16 %v5931
        %v6472 = vunpack.c.l.b16 %v5932
        %v6473 = vunpack.c.h.b16 %v5932
        %v6474 = vunpack.c.l.b16 %v5933
        %v6475 = vunpack.c.h.b16 %v5933
        %v6476 = vunpack.c.l.b16 %v5934
        %v6477 = vunpack.c.h.b16 %v5934
        %v6478 = vunpack.c.l.b16 %v5935
        %v6479 = vunpack.c.l.b16 %v5936
        %v6480 = vunpack.c.h.b16 %v5936
        %v6481 = vunpack.c.l.b16 %v5937
        %v6482 = vunpack.c.h.b16 %v5937
        %v6483 = vunpack.c.l.b16 %v5938
        %v6484 = vunpack.c.h.b16 %v5938
        %v6485 = vunpack.c.l.b16 %v5939
        %v6486 = vunpack.c.l.b16 %v5940
        %v6487 = vunpack.c.h.b16 %v5940
        %v6488 = vunpack.c.l.b16 %v5941
        %v6489 = vunpack.c.h.b16 %v5941
        %v6490 = vunpack.c.l.b16 %v5942
        %v6491 = vunpack.c.h.b16 %v5942
        %v6492 = vunpack.c.l.b16 %v5943
        %v6493 = vunpack.c.l.b16 %v5944
        %v6494 = vunpack.c.h.b16 %v5944
        %v6495 = vunpack.c.l.b16 %v5945
        %v6496 = vunpack.c.h.b16 %v5945
        %v6497 = vunpack.c.l.b16 %v5946
        %v6498 = vunpack.c.h.b16 %v5946
        %v6499 = vunpack.c.l.b16 %v5947
        %v6500 = vunpack.c.l.b16 %v5948
        %v6501 = vunpack.c.h.b16 %v5948
        %v6502 = vunpack.c.l.b16 %v5949
        %v6503 = vunpack.c.h.b16 %v5949
        %v6504 = vunpack.c.l.b16 %v5950
        %v6505 = vunpack.c.h.b16 %v5950
        %v6506 = vunpack.c.l.b16 %v5951
        %v6507 = vunpack.c.l.b16 %v5952
        %v6508 = vunpack.c.h.b16 %v5952
        %v6509 = vunpack.c.l.b16 %v5953
        %v6510 = vunpack.c.h.b16 %v5953
        %v6511 = vunpack.c.l.b16 %v5954
        %v6512 = vunpack.c.h.b16 %v5954
        %v6513 = vunpack.c.l.b16 %v5955
        %v6514 = vunpack.c.l.b16 %v5956
        %v6515 = vunpack.c.h.b16 %v5956
        %v6516 = vunpack.c.l.b16 %v5957
        %v6517 = vunpack.c.h.b16 %v5957
        %v6518 = vunpack.c.l.b16 %v5958
        %v6519 = vunpack.c.h.b16 %v5958
        %v6520 = vunpack.c.l.b16 %v5959
        %v6521 = vunpack.c.l.b16 %v5960
        %v6522 = vunpack.c.h.b16 %v5960
        %v6523 = vunpack.c.l.b16 %v5961
        %v6524 = vunpack.c.h.b16 %v5961
        %v6525 = vunpack.c.l.b16 %v5962
        %v6526 = vunpack.c.h.b16 %v5962
        %v6527 = vunpack.c.l.b16 %v5963
        %v6528 = vunpack.c.l.b16 %v5964
        %v6529 = vunpack.c.h.b16 %v5964
        %v6530 = vunpack.c.l.b16 %v5965
        %v6531 = vunpack.c.h.b16 %v5965
        %v6532 = vunpack.c.l.b16 %v5966
        %v6533 = vunpack.c.h.b16 %v5966
        %v6534 = vunpack.c.l.b16 %v5967
        %v6535 = vunpack.c.l.b16 %v5968
        %v6536 = vunpack.c.h.b16 %v5968
        %v6537 = vunpack.c.l.b16 %v5969
        %v6538 = vunpack.c.h.b16 %v5969
        %v6539 = vunpack.c.l.b16 %v5970
        %v6540 = vunpack.c.h.b16 %v5970
        %v6541 = vunpack.c.l.b16 %v5971
        %v6542 = vunpack.c.l.b16 %v5972
        %v6543 = vunpack.c.h.b16 %v5972
        %v6544 = vunpack.c.l.b16 %v5973
        %v6545 = vunpack.c.h.b16 %v5973
        %v6546 = vunpack.c.l.b16 %v5974
        %v6547 = vunpack.c.h.b16 %v5974
        %v6548 = vunpack.c.l.b16 %v5975
        %v6549 = vunpack.c.l.b16 %v5976
        %v6550 = vunpack.c.h.b16 %v5976
        %v6551 = vunpack.c.l.b16 %v5977
        %v6552 = vunpack.c.h.b16 %v5977
        %v6553 = vunpack.c.l.b16 %v5978
        %v6554 = vunpack.c.h.b16 %v5978
        %v6555 = vunpack.c.l.b16 %v5979
        %v6556 = vunpack.c.l.b16 %v5980
        %v6557 = vunpack.c.h.b16 %v5980
        %v6558 = vunpack.c.l.b16 %v5981
        %v6559 = vunpack.c.h.b16 %v5981
        %v6560 = vunpack.c.l.b16 %v5982
        %v6561 = vunpack.c.h.b16 %v5982
        %v6562 = vunpack.c.l.b16 %v5983
        %v6563 = vunpack.c.l.b16 %v5984
        %v6564 = vunpack.c.h.b16 %v5984
        %v6565 = vunpack.c.l.b16 %v5985
        %v6566 = vunpack.c.h.b16 %v5985
        %v6567 = vunpack.c.l.b16 %v5986
        %v6568 = vunpack.c.h.b16 %v5986
        %v6569 = vunpack.c.l.b16 %v5987
        %v6570 = vunpack.c.l.b16 %v5988
        %v6571 = vunpack.c.h.b16 %v5988
        %v6572 = vunpack.c.l.b16 %v5989
        %v6573 = vunpack.c.h.b16 %v5989
        %v6574 = vunpack.c.l.b16 %v5990
        %v6575 = vunpack.c.h.b16 %v5990
        %v6576 = vunpack.c.l.b16 %v5991
        %v6577 = vunpack.c.l.b16 %v5992
        %v6578 = vunpack.c.h.b16 %v5992
        %v6579 = vunpack.c.l.b16 %v5993
        %v6580 = vunpack.c.h.b16 %v5993
        %v6581 = vunpack.c.l.b16 %v5994
        %v6582 = vunpack.c.h.b16 %v5994
        %v6583 = vunpack.c.l.b16 %v5995
        %v6584 = vunpack.c.l.b16 %v5996
        %v6585 = vunpack.c.h.b16 %v5996
        %v6586 = vunpack.c.l.b16 %v5997
        %v6587 = vunpack.c.h.b16 %v5997
        %v6588 = vunpack.c.l.b16 %v5998
        %v6589 = vunpack.c.h.b16 %v5998
        %v6590 = vunpack.c.l.b16 %v5999
        %v6591 = vunpack.c.l.b16 %v6000
        %v6592 = vunpack.c.h.b16 %v6000
        %v6593 = vunpack.c.l.b16 %v6001
        %v6594 = vunpack.c.h.b16 %v6001
        %v6595 = vunpack.c.l.b16 %v6002
        %v6596 = vunpack.c.h.b16 %v6002
        %v6597 = vunpack.c.l.b16 %v6003
        %v6598 = vunpack.c.l.b16 %v6004
        %v6599 = vunpack.c.h.b16 %v6004
        %v6600 = vunpack.c.l.b16 %v6005
        %v6601 = vunpack.c.h.b16 %v6005
        %v6602 = vunpack.c.l.b16 %v6006
        %v6603 = vunpack.c.h.b16 %v6006
        %v6604 = vunpack.c.l.b16 %v6007
        %v6605 = vunpack.c.l.b16 %v6008
        %v6606 = vunpack.c.h.b16 %v6008
        %v6607 = vunpack.c.l.b16 %v6009
        %v6608 = vunpack.c.h.b16 %v6009
        %v6609 = vunpack.c.l.b16 %v6010
        %v6610 = vunpack.c.h.b16 %v6010
        %v6611 = vunpack.c.l.b16 %v6011
        %v6612 = vunpack.c.l.b16 %v6012
        %v6613 = vunpack.c.h.b16 %v6012
        %v6614 = vunpack.c.l.b16 %v6013
        %v6615 = vunpack.c.h.b16 %v6013
        %v6616 = vunpack.c.l.b16 %v6014
        %v6617 = vunpack.c.h.b16 %v6014
        %v6618 = vunpack.c.l.b16 %v6015
        %v6619 = vunpack.c.l.b16 %v6016
        %v6620 = vunpack.c.h.b16 %v6016
        %v6621 = vunpack.c.l.b16 %v6017
        %v6622 = vunpack.c.h.b16 %v6017
        %v6623 = vunpack.c.l.b16 %v6018
        %v6624 = vunpack.c.h.b16 %v6018
        %v6625 = vunpack.c.l.b16 %v6019
        %v6626 = vunpack.c.l.b16 %v6020
        %v6627 = vunpack.c.h.b16 %v6020
        %v6628 = vunpack.c.l.b16 %v6021
        %v6629 = vunpack.c.h.b16 %v6021
        %v6630 = vunpack.c.l.b16 %v6022
        %v6631 = vunpack.c.h.b16 %v6022
        %v6632 = vunpack.c.l.b16 %v6023
        %v6633 = vunpack.c.l.b16 %v6024
        %v6634 = vunpack.c.h.b16 %v6024
        %v6635 = vunpack.c.l.b16 %v6025
        %v6636 = vunpack.c.h.b16 %v6025
        %v6637 = vunpack.c.l.b16 %v6026
        %v6638 = vunpack.c.h.b16 %v6026
        %v6639 = vunpack.c.l.b16 %v6027
        %v6640 = vunpack.c.l.b16 %v6028
        %v6641 = vunpack.c.h.b16 %v6028
        %v6642 = vunpack.c.l.b16 %v6029
        %v6643 = vunpack.c.h.b16 %v6029
        %v6644 = vunpack.c.l.b16 %v6030
        %v6645 = vunpack.c.h.b16 %v6030
        %v6646 = vunpack.c.l.b16 %v6031
        %v6647 = vunpack.c.l.b16 %v6032
        %v6648 = vunpack.c.h.b16 %v6032
        %v6649 = vunpack.c.l.b16 %v6033
        %v6650 = vunpack.c.h.b16 %v6033
        %v6651 = vunpack.c.l.b16 %v6034
        %v6652 = vunpack.c.h.b16 %v6034
        %v6653 = vunpack.c.l.b16 %v6035
        %v6654 = vunpack.c.l.b16 %v6036
        %v6655 = vunpack.c.h.b16 %v6036
        %v6656 = vunpack.c.l.b16 %v6037
        %v6657 = vunpack.c.h.b16 %v6037
        %v6658 = vunpack.c.l.b16 %v6038
        %v6659 = vunpack.c.h.b16 %v6038
        %v6660 = vunpack.c.l.b16 %v6039
        %v6661 = vunpack.c.l.b16 %v6040
        %v6662 = vunpack.c.h.b16 %v6040
        %v6663 = vunpack.c.l.b16 %v6041
        %v6664 = vunpack.c.h.b16 %v6041
        %v6665 = vunpack.c.l.b16 %v6042
        %v6666 = vunpack.c.h.b16 %v6042
        %v6667 = vunpack.c.l.b16 %v6043
        %v6668 = vunpack.c.l.b16 %v6044
        %v6669 = vunpack.c.h.b16 %v6044
        %v6670 = vunpack.c.l.b16 %v6045
        %v6671 = vunpack.c.h.b16 %v6045
        %v6672 = vunpack.c.l.b16 %v6046
        %v6673 = vunpack.c.h.b16 %v6046
        %v6674 = vunpack.c.l.b16 %v6047
        %v6675 = vunpack.c.l.b16 %v6048
        %v6676 = vunpack.c.h.b16 %v6048
        %v6677 = vunpack.c.l.b16 %v6049
        %v6678 = vunpack.c.h.b16 %v6049
        %v6679 = vunpack.c.l.b16 %v6050
        %v6680 = vunpack.c.h.b16 %v6050
        %v6681 = vunpack.c.l.b16 %v6051
        %v6682 = vunpack.c.l.b16 %v6052
        %v6683 = vunpack.c.h.b16 %v6052
        %v6684 = vunpack.c.l.b16 %v6053
        %v6685 = vunpack.c.h.b16 %v6053
        %v6686 = vunpack.c.l.b16 %v6054
        %v6687 = vunpack.c.h.b16 %v6054
        %v6688 = vunpack.c.l.b16 %v6055
        %v6689 = vunpack.c.l.b16 %v6056
        %v6690 = vunpack.c.h.b16 %v6056
        %v6691 = vunpack.c.l.b16 %v6057
        %v6692 = vunpack.c.h.b16 %v6057
        %v6693 = vunpack.c.l.b16 %v6058
        %v6694 = vunpack.c.h.b16 %v6058
        %v6695 = vunpack.c.l.b16 %v6059
        %v6696 = vunpack.c.l.b16 %v6060
        %v6697 = vunpack.c.h.b16 %v6060
        %v6698 = vunpack.c.l.b16 %v6061
        %v6699 = vunpack.c.h.b16 %v6061
        %v6700 = vunpack.c.l.b16 %v6062
        %v6701 = vunpack.c.h.b16 %v6062
        %v6702 = vunpack.c.l.b16 %v6063
        %v6703 = vunpack.c.l.b16 %v6064
        %v6704 = vunpack.c.h.b16 %v6064
        %v6705 = vunpack.c.l.b16 %v6065
        %v6706 = vunpack.c.h.b16 %v6065
        %v6707 = vunpack.c.l.b16 %v6066
        %v6708 = vunpack.c.h.b16 %v6066
        %v6709 = vunpack.c.l.b16 %v6067
        %v6710 = vunpack.c.l.b16 %v6068
        %v6711 = vunpack.c.h.b16 %v6068
        %v6712 = vunpack.c.l.b16 %v6069
        %v6713 = vunpack.c.h.b16 %v6069
        %v6714 = vunpack.c.l.b16 %v6070
        %v6715 = vunpack.c.h.b16 %v6070
        %v6716 = vunpack.c.l.b16 %v6071
        %v6717 = vunpack.c.l.b16 %v6072
        %v6718 = vunpack.c.h.b16 %v6072
        %v6719 = vunpack.c.l.b16 %v6073
        %v6720 = vunpack.c.h.b16 %v6073
        %v6721 = vunpack.c.l.b16 %v6074
        %v6722 = vunpack.c.h.b16 %v6074
        %v6723 = vunpack.c.l.b16 %v6075
        %v6724 = vunpack.c.l.b16 %v6076
        %v6725 = vunpack.c.h.b16 %v6076
        %v6726 = vunpack.c.l.b16 %v6077
        %v6727 = vunpack.c.h.b16 %v6077
        %v6728 = vunpack.c.l.b16 %v6078
        %v6729 = vunpack.c.h.b16 %v6078
        %v6730 = vunpack.c.l.b16 %v6079
        %v6731 = vunpack.c.l.b16 %v6080
        %v6732 = vunpack.c.h.b16 %v6080
        %v6733 = vunpack.c.l.b16 %v6081
        %v6734 = vunpack.c.h.b16 %v6081
        %v6735 = vunpack.c.l.b16 %v6082
        %v6736 = vunpack.c.h.b16 %v6082
        %v6737 = vunpack.c.l.b16 %v6083
        %v6738 = vunpack.c.l.b16 %v6084
        %v6739 = vunpack.c.h.b16 %v6084
        %v6740 = vunpack.c.l.b16 %v6085
        %v6741 = vunpack.c.h.b16 %v6085
        %v6742 = vunpack.c.l.b16 %v6086
        %v6743 = vunpack.c.h.b16 %v6086
        %v6744 = vunpack.c.l.b16 %v6087
        %v6745 = vunpack.c.l.b16 %v6088
        %v6746 = vunpack.c.h.b16 %v6088
        %v6747 = vunpack.c.l.b16 %v6089
        %v6748 = vunpack.c.h.b16 %v6089
        %v6749 = vunpack.c.l.b16 %v6090
        %v6750 = vunpack.c.h.b16 %v6090
        %v6751 = vunpack.c.l.b16 %v6091
        %v6752 = vunpack.c.l.b16 %v6092
        %v6753 = vunpack.c.h.b16 %v6092
        %v6754 = vunpack.c.l.b16 %v6093
        %v6755 = vunpack.c.h.b16 %v6093
        %v6756 = vunpack.c.l.b16 %v6094
        %v6757 = vunpack.c.h.b16 %v6094
        %v6758 = vunpack.c.l.b16 %v6095
        %v6759 = vunpack.c.l.b16 %v6096
        %v6760 = vunpack.c.h.b16 %v6096
        %v6761 = vunpack.c.l.b16 %v6097
        %v6762 = vunpack.c.h.b16 %v6097
        %v6763 = vunpack.c.l.b16 %v6098
        %v6764 = vunpack.c.h.b16 %v6098
        %v6765 = vunpack.c.l.b16 %v6099
        %v6766 = vunpack.c.l.b16 %v6100
        %v6767 = vunpack.c.h.b16 %v6100
        %v6768 = vunpack.c.l.b16 %v6101
        %v6769 = vunpack.c.h.b16 %v6101
        %v6770 = vunpack.c.l.b16 %v6102
        %v6771 = vunpack.c.h.b16 %v6102
        %v6772 = vunpack.c.l.b16 %v6103
        %v6773 = vunpack.c.l.b16 %v6104
        %v6774 = vunpack.c.h.b16 %v6104
        %v6775 = vunpack.c.l.b16 %v6105
        %v6776 = vunpack.c.h.b16 %v6105
        %v6777 = vunpack.c.l.b16 %v6106
        %v6778 = vunpack.c.h.b16 %v6106
        %v6779 = vunpack.c.l.b16 %v6107
        %v6780 = vunpack.c.l.b16 %v6108
        %v6781 = vunpack.c.h.b16 %v6108
        %v6782 = vunpack.c.l.b16 %v6109
        %v6783 = vunpack.c.h.b16 %v6109
        %v6784 = vunpack.c.l.b16 %v6110
        %v6785 = vunpack.c.h.b16 %v6110
        %v6786 = vunpack.c.l.b16 %v6111
        %v6787 = vunpack.c.l.b16 %v6112
        %v6788 = vunpack.c.h.b16 %v6112
        %v6789 = vunpack.c.l.b16 %v6113
        %v6790 = vunpack.c.h.b16 %v6113
        %v6791 = vunpack.c.l.b16 %v6114
        %v6792 = vunpack.c.h.b16 %v6114
        %v6793 = vunpack.c.l.b16 %v6115
        %v6794 = vunpack.c.l.b16 %v6116
        %v6795 = vunpack.c.h.b16 %v6116
        %v6796 = vunpack.c.l.b16 %v6117
        %v6797 = vunpack.c.h.b16 %v6117
        %v6798 = vunpack.c.l.b16 %v6118
        %v6799 = vunpack.c.h.b16 %v6118
        %v6800 = vunpack.c.l.b16 %v6119
        %v6801 = vunpack.c.l.b16 %v6120
        %v6802 = vunpack.c.h.b16 %v6120
        %v6803 = vunpack.c.l.b16 %v6121
        %v6804 = vunpack.c.h.b16 %v6121
        %v6805 = vunpack.c.l.b16 %v6122
        %v6806 = vunpack.c.h.b16 %v6122
        %v6807 = vunpack.c.l.b16 %v6123
        %v6808 = vunpack.c.l.b16 %v6124
        %v6809 = vunpack.c.h.b16 %v6124
        %v6810 = vunpack.c.l.b16 %v6125
        %v6811 = vunpack.c.h.b16 %v6125
        %v6812 = vunpack.c.l.b16 %v6126
        %v6813 = vunpack.c.h.b16 %v6126
        %v6814 = vunpack.c.l.b16 %v6127
        %v6815 = vunpack.c.l.b16 %v6128
        %v6816 = vunpack.c.h.b16 %v6128
        %v6817 = vunpack.c.l.b16 %v6129
        %v6818 = vunpack.c.h.b16 %v6129
        %v6819 = vunpack.c.l.b16 %v6130
        %v6820 = vunpack.c.h.b16 %v6130
        %v6821 = vunpack.c.l.b16 %v6131
        %v6822 = vunpack.c.l.b16 %v6132
        %v6823 = vunpack.c.h.b16 %v6132
        %v6824 = vunpack.c.l.b16 %v6133
        %v6825 = vunpack.c.h.b16 %v6133
        %v6826 = vunpack.c.l.b16 %v6134
        %v6827 = vunpack.c.h.b16 %v6134
        %v6828 = vunpack.c.l.b16 %v6135
        %v6829 = vunpack.c.l.b16 %v6136
        %v6830 = vunpack.c.h.b16 %v6136
        %v6831 = vunpack.c.l.b16 %v6137
        %v6832 = vunpack.c.h.b16 %v6137
        %v6833 = vunpack.c.l.b16 %v6138
        %v6834 = vunpack.c.h.b16 %v6138
        %v6835 = vunpack.c.l.b16 %v6139
        %v6836 = vunpack.c.l.b16 %v6140
        %v6837 = vunpack.c.h.b16 %v6140
        %v6838 = vunpack.c.l.b16 %v6141
        %v6839 = vunpack.c.h.b16 %v6141
        %v6840 = vunpack.c.l.b16 %v6142
        %v6841 = vunpack.c.h.b16 %v6142
        %v6842 = vunpack.c.l.b16 %v6143
        %v6843 = vunpack.c.l.b16 %v6144
        %v6844 = vunpack.c.h.b16 %v6144
        %v6845 = vunpack.c.l.b16 %v6145
        %v6846 = vunpack.c.h.b16 %v6145
        %v6847 = vunpack.c.l.b16 %v6146
        %v6848 = vunpack.c.h.b16 %v6146
        %v6849 = vunpack.c.l.b16 %v6147
        %v6850 = vunpack.c.l.b16 %v6148
        %v6851 = vunpack.c.h.b16 %v6148
        %v6852 = vunpack.c.l.b16 %v6149
        %v6853 = vunpack.c.h.b16 %v6149
        %v6854 = vunpack.c.l.b16 %v6150
        %v6855 = vunpack.c.h.b16 %v6150
        %v6856 = vunpack.c.l.b16 %v6151
        %v6857 = vunpack.c.l.b16 %v6152
        %v6858 = vunpack.c.h.b16 %v6152
        %v6859 = vunpack.c.l.b16 %v6153
        %v6860 = vunpack.c.h.b16 %v6153
        %v6861 = vunpack.c.l.b16 %v6154
        %v6862 = vunpack.c.h.b16 %v6154
        %v6863 = vunpack.c.l.b16 %v6155
        %v6864 = vunpack.c.l.b16 %v6156
        %v6865 = vunpack.c.h.b16 %v6156
        %v6866 = vunpack.c.l.b16 %v6157
        %v6867 = vunpack.c.h.b16 %v6157
        %v6868 = vunpack.c.l.b16 %v6158
        %v6869 = vunpack.c.h.b16 %v6158
        %v6870 = vunpack.c.l.b16 %v6159
        %v6871 = vunpack.c.l.b16 %v6160
        %v6872 = vunpack.c.h.b16 %v6160
        %v6873 = vunpack.c.l.b16 %v6161
        %v6874 = vunpack.c.h.b16 %v6161
        %v6875 = vunpack.c.l.b16 %v6162
        %v6876 = vunpack.c.h.b16 %v6162
        %v6877 = vunpack.c.l.b16 %v6163
        %v6878 = vunpack.c.l.b16 %v6164
        %v6879 = vunpack.c.h.b16 %v6164
        %v6880 = vunpack.c.l.b16 %v6165
        %v6881 = vunpack.c.h.b16 %v6165
        %v6882 = vunpack.c.l.b16 %v6166
        %v6883 = vunpack.c.h.b16 %v6166
        %v6884 = vunpack.c.l.b16 %v6167
        %v6885 = vunpack.c.l.b16 %v6168
        %v6886 = vunpack.c.h.b16 %v6168
        %v6887 = vunpack.c.l.b16 %v6169
        %v6888 = vunpack.c.h.b16 %v6169
        %v6889 = vunpack.c.l.b16 %v6170
        %v6890 = vunpack.c.h.b16 %v6170
        %v6891 = vunpack.c.l.b16 %v6171
        %v6892 = vpack.c.b16 %v6451, %v6444
        %v6893 = vpack.c.b16 %v6452, %v6445
        %v6894 = vpack.c.b16 %v6453, %v6446
        %v6895 = vpack.c.b16 %v6454, %v6447
        %v6896 = vpack.c.b16 %v6455, %v6448
        %v6897 = vpack.c.b16 %v6456, %v6449
        %v6898 = vpack.c.b16 %v6457, %v6450
        %v6899 = vpack.c.b16 %v6465, %v6458
        %v6900 = vpack.c.b16 %v6466, %v6459
        %v6901 = vpack.c.b16 %v6467, %v6460
        %v6902 = vpack.c.b16 %v6468, %v6461
        %v6903 = vpack.c.b16 %v6469, %v6462
        %v6904 = vpack.c.b16 %v6470, %v6463
        %v6905 = vpack.c.b16 %v6471, %v6464
        %v6906 = vpack.c.b16 %v6479, %v6472
        %v6907 = vpack.c.b16 %v6480, %v6473
        %v6908 = vpack.c.b16 %v6481, %v6474
        %v6909 = vpack.c.b16 %v6482, %v6475
        %v6910 = vpack.c.b16 %v6483, %v6476
        %v6911 = vpack.c.b16 %v6484, %v6477
        %v6912 = vpack.c.b16 %v6485, %v6478
        %v6913 = vpack.c.b16 %v6493, %v6486
        %v6914 = vpack.c.b16 %v6494, %v6487
        %v6915 = vpack.c.b16 %v6495, %v6488
        %v6916 = vpack.c.b16 %v6496, %v6489
        %v6917 = vpack.c.b16 %v6497, %v6490
        %v6918 = vpack.c.b16 %v6498, %v6491
        %v6919 = vpack.c.b16 %v6499, %v6492
        %v6920 = vpack.c.b16 %v6507, %v6500
        %v6921 = vpack.c.b16 %v6508, %v6501
        %v6922 = vpack.c.b16 %v6509, %v6502
        %v6923 = vpack.c.b16 %v6510, %v6503
        %v6924 = vpack.c.b16 %v6511, %v6504
        %v6925 = vpack.c.b16 %v6512, %v6505
        %v6926 = vpack.c.b16 %v6513, %v6506
        %v6927 = vpack.c.b16 %v6521, %v6514
        %v6928 = vpack.c.b16 %v6522, %v6515
        %v6929 = vpack.c.b16 %v6523, %v6516
        %v6930 = vpack.c.b16 %v6524, %v6517
        %v6931 = vpack.c.b16 %v6525, %v6518
        %v6932 = vpack.c.b16 %v6526, %v6519
        %v6933 = vpack.c.b16 %v6527, %v6520
        %v6934 = vpack.c.b16 %v6535, %v6528
        %v6935 = vpack.c.b16 %v6536, %v6529
        %v6936 = vpack.c.b16 %v6537, %v6530
        %v6937 = vpack.c.b16 %v6538, %v6531
        %v6938 = vpack.c.b16 %v6539, %v6532
        %v6939 = vpack.c.b16 %v6540, %v6533
        %v6940 = vpack.c.b16 %v6541, %v6534
        %v6941 = vpack.c.b16 %v6549, %v6542
        %v6942 = vpack.c.b16 %v6550, %v6543
        %v6943 = vpack.c.b16 %v6551, %v6544
        %v6944 = vpack.c.b16 %v6552, %v6545
        %v6945 = vpack.c.b16 %v6553, %v6546
        %v6946 = vpack.c.b16 %v6554, %v6547
        %v6947 = vpack.c.b16 %v6555, %v6548
        %v6948 = vpack.c.b16 %v6563, %v6556
        %v6949 = vpack.c.b16 %v6564, %v6557
        %v6950 = vpack.c.b16 %v6565, %v6558
        %v6951 = vpack.c.b16 %v6566, %v6559
        %v6952 = vpack.c.b16 %v6567, %v6560
        %v6953 = vpack.c.b16 %v6568, %v6561
        %v6954 = vpack.c.b16 %v6569, %v6562
        %v6955 = vpack.c.b16 %v6577, %v6570
        %v6956 = vpack.c.b16 %v6578, %v6571
        %v6957 = vpack.c.b16 %v6579, %v6572
        %v6958 = vpack.c.b16 %v6580, %v6573
        %v6959 = vpack.c.b16 %v6581, %v6574
        %v6960 = vpack.c.b16 %v6582, %v6575
        %v6961 = vpack.c.b16 %v6583, %v6576
        %v6962 = vpack.c.b16 %v6591, %v6584
        %v6963 = vpack.c.b16 %v6592, %v6585
        %v6964 = vpack.c.b16 %v6593, %v6586
        %v6965 = vpack.c.b16 %v6594, %v6587
        %v6966 = vpack.c.b16 %v6595, %v6588
        %v6967 = vpack.c.b16 %v6596, %v6589
        %v6968 = vpack.c.b16 %v6597, %v6590
        %v6969 = vpack.c.b16 %v6605, %v6598
        %v6970 = vpack.c.b16 %v6606, %v6599
        %v6971 = vpack.c.b16 %v6607, %v6600
        %v6972 = vpack.c.b16 %v6608, %v6601
        %v6973 = vpack.c.b16 %v6609, %v6602
        %v6974 = vpack.c.b16 %v6610, %v6603
        %v6975 = vpack.c.b16 %v6611, %v6604
        %v6976 = vpack.c.b16 %v6619, %v6612
        %v6977 = vpack.c.b16 %v6620, %v6613
        %v6978 = vpack.c.b16 %v6621, %v6614
        %v6979 = vpack.c.b16 %v6622, %v6615
        %v6980 = vpack.c.b16 %v6623, %v6616
        %v6981 = vpack.c.b16 %v6624, %v6617
        %v6982 = vpack.c.b16 %v6625, %v6618
        %v6983 = vpack.c.b16 %v6633, %v6626
        %v6984 = vpack.c.b16 %v6634, %v6627
        %v6985 = vpack.c.b16 %v6635, %v6628
        %v6986 = vpack.c.b16 %v6636, %v6629
        %v6987 = vpack.c.b16 %v6637, %v6630
        %v6988 = vpack.c.b16 %v6638, %v6631
        %v6989 = vpack.c.b16 %v6639, %v6632
        %v6990 = vpack.c.b16 %v6647, %v6640
        %v6991 = vpack.c.b16 %v6648, %v6641
        %v6992 = vpack.c.b16 %v6649, %v6642
        %v6993 = vpack.c.b16 %v6650, %v6643
        %v6994 = vpack.c.b16 %v6651, %v6644
        %v6995 = vpack.c.b16 %v6652, %v6645
        %v6996 = vpack.c.b16 %v6653, %v6646
        %v6997 = vpack.c.b16 %v6661, %v6654
        %v6998 = vpack.c.b16 %v6662, %v6655
        %v6999 = vpack.c.b16 %v6663, %v6656
        %v7000 = vpack.c.b16 %v6664, %v6657
        %v7001 = vpack.c.b16 %v6665, %v6658
        %v7002 = vpack.c.b16 %v6666, %v6659
        %v7003 = vpack.c.b16 %v6667, %v6660
        %v7004 = vpack.c.b16 %v6675, %v6668
        %v7005 = vpack.c.b16 %v6676, %v6669
        %v7006 = vpack.c.b16 %v6677, %v6670
        %v7007 = vpack.c.b16 %v6678, %v6671
        %v7008 = vpack.c.b16 %v6679, %v6672
        %v7009 = vpack.c.b16 %v6680, %v6673
        %v7010 = vpack.c.b16 %v6681, %v6674
        %v7011 = vpack.c.b16 %v6689, %v6682
        %v7012 = vpack.c.b16 %v6690, %v6683
        %v7013 = vpack.c.b16 %v6691, %v6684
        %v7014 = vpack.c.b16 %v6692, %v6685
        %v7015 = vpack.c.b16 %v6693, %v6686
        %v7016 = vpack.c.b16 %v6694, %v6687
        %v7017 = vpack.c.b16 %v6695, %v6688
        %v7018 = vpack.c.b16 %v6703, %v6696
        %v7019 = vpack.c.b16 %v6704, %v6697
        %v7020 = vpack.c.b16 %v6705, %v6698
        %v7021 = vpack.c.b16 %v6706, %v6699
        %v7022 = vpack.c.b16 %v6707, %v6700
        %v7023 = vpack.c.b16 %v6708, %v6701
        %v7024 = vpack.c.b16 %v6709, %v6702
        %v7025 = vpack.c.b16 %v6717, %v6710
        %v7026 = vpack.c.b16 %v6718, %v6711
        %v7027 = vpack.c.b16 %v6719, %v6712
        %v7028 = vpack.c.b16 %v6720, %v6713
        %v7029 = vpack.c.b16 %v6721, %v6714
        %v7030 = vpack.c.b16 %v6722, %v6715
        %v7031 = vpack.c.b16 %v6723, %v6716
        %v7032 = vpack.c.b16 %v6731, %v6724
        %v7033 = vpack.c.b16 %v6732, %v6725
        %v7034 = vpack.c.b16 %v6733, %v6726
        %v7035 = vpack.c.b16 %v6734, %v6727
        %v7036 = vpack.c.b16 %v6735, %v6728
        %v7037 = vpack.c.b16 %v6736, %v6729
        %v7038 = vpack.c.b16 %v6737, %v6730
        %v7039 = vpack.c.b16 %v6745, %v6738
        %v7040 = vpack.c.b16 %v6746, %v6739
        %v7041 = vpack.c.b16 %v6747, %v6740
        %v7042 = vpack.c.b16 %v6748, %v6741
        %v7043 = vpack.c.b16 %v6749, %v6742
        %v7044 = vpack.c.b16 %v6750, %v6743
        %v7045 = vpack.c.b16 %v6751, %v6744
        %v7046 = vpack.c.b16 %v6759, %v6752
        %v7047 = vpack.c.b16 %v6760, %v6753
        %v7048 = vpack.c.b16 %v6761, %v6754
        %v7049 = vpack.c.b16 %v6762, %v6755
        %v7050 = vpack.c.b16 %v6763, %v6756
        %v7051 = vpack.c.b16 %v6764, %v6757
        %v7052 = vpack.c.b16 %v6765, %v6758
        %v7053 = vpack.c.b16 %v6773, %v6766
        %v7054 = vpack.c.b16 %v6774, %v6767
        %v7055 = vpack.c.b16 %v6775, %v6768
        %v7056 = vpack.c.b16 %v6776, %v6769
        %v7057 = vpack.c.b16 %v6777, %v6770
        %v7058 = vpack.c.b16 %v6778, %v6771
        %v7059 = vpack.c.b16 %v6779, %v6772
        %v7060 = vpack.c.b16 %v6787, %v6780
        %v7061 = vpack.c.b16 %v6788, %v6781
        %v7062 = vpack.c.b16 %v6789, %v6782
        %v7063 = vpack.c.b16 %v6790, %v6783
        %v7064 = vpack.c.b16 %v6791, %v6784
        %v7065 = vpack.c.b16 %v6792, %v6785
        %v7066 = vpack.c.b16 %v6793, %v6786
        %v7067 = vpack.c.b16 %v6801, %v6794
        %v7068 = vpack.c.b16 %v6802, %v6795
        %v7069 = vpack.c.b16 %v6803, %v6796
        %v7070 = vpack.c.b16 %v6804, %v6797
        %v7071 = vpack.c.b16 %v6805, %v6798
        %v7072 = vpack.c.b16 %v6806, %v6799
        %v7073 = vpack.c.b16 %v6807, %v6800
        %v7074 = vpack.c.b16 %v6815, %v6808
        %v7075 = vpack.c.b16 %v6816, %v6809
        %v7076 = vpack.c.b16 %v6817, %v6810
        %v7077 = vpack.c.b16 %v6818, %v6811
        %v7078 = vpack.c.b16 %v6819, %v6812
        %v7079 = vpack.c.b16 %v6820, %v6813
        %v7080 = vpack.c.b16 %v6821, %v6814
        %v7081 = vpack.c.b16 %v6829, %v6822
        %v7082 = vpack.c.b16 %v6830, %v6823
        %v7083 = vpack.c.b16 %v6831, %v6824
        %v7084 = vpack.c.b16 %v6832, %v6825
        %v7085 = vpack.c.b16 %v6833, %v6826
        %v7086 = vpack.c.b16 %v6834, %v6827
        %v7087 = vpack.c.b16 %v6835, %v6828
        %v7088 = vpack.c.b16 %v6843, %v6836
        %v7089 = vpack.c.b16 %v6844, %v6837
        %v7090 = vpack.c.b16 %v6845, %v6838
        %v7091 = vpack.c.b16 %v6846, %v6839
        %v7092 = vpack.c.b16 %v6847, %v6840
        %v7093 = vpack.c.b16 %v6848, %v6841
        %v7094 = vpack.c.b16 %v6849, %v6842
        %v7095 = vpack.c.b16 %v6857, %v6850
        %v7096 = vpack.c.b16 %v6858, %v6851
        %v7097 = vpack.c.b16 %v6859, %v6852
        %v7098 = vpack.c.b16 %v6860, %v6853
        %v7099 = vpack.c.b16 %v6861, %v6854
        %v7100 = vpack.c.b16 %v6862, %v6855
        %v7101 = vpack.c.b16 %v6863, %v6856
        %v7102 = vpack.c.b16 %v6871, %v6864
        %v7103 = vpack.c.b16 %v6872, %v6865
        %v7104 = vpack.c.b16 %v6873, %v6866
        %v7105 = vpack.c.b16 %v6874, %v6867
        %v7106 = vpack.c.b16 %v6875, %v6868
        %v7107 = vpack.c.b16 %v6876, %v6869
        %v7108 = vpack.c.b16 %v6877, %v6870
        %v7109 = vpack.c.b16 %v6885, %v6878
        %v7110 = vpack.c.b16 %v6886, %v6879
        %v7111 = vpack.c.b16 %v6887, %v6880
        %v7112 = vpack.c.b16 %v6888, %v6881
        %v7113 = vpack.c.b16 %v6889, %v6882
        %v7114 = vpack.c.b16 %v6890, %v6883
        %v7115 = vpack.c.b16 %v6891, %v6884
        %7340 = vmatpush.bf16.msra.mxu0 %v6941
        %7341 = vmatpush.bf16.msra.mxu0 %v6934
        %7342 = vmatpush.bf16.msra.mxu0 %v6927
        %7343 = vmatpush.bf16.msra.mxu0 %v6920
        %7344 = vmatpush.bf16.msra.mxu0 %v6913
        %7345 = vmatpush.bf16.msra.mxu0 %v6906
        %7346 = vmatpush.bf16.msra.mxu0 %v6899
        %7347 = vmatpush.bf16.msra.mxu0 %v6892
        %7348 = vmatmul.bf16.gmra.mxu0 %v5912
        %v7349 = vpop.f32.mrf.mxu0
        %v7350 = vadd.f32 %v6174, %v7349
        %v7351 = vpop.f32.mrf.mxu0
        %7352 = vdwg.mxu0
        %7353 = vmatpush.bf16.msra.mxu0 %v6997
        %7354 = vmatpush.bf16.msra.mxu0 %v6990
        %7355 = vmatpush.bf16.msra.mxu0 %v6983
        %7356 = vmatpush.bf16.msra.mxu0 %v6976
        %7357 = vmatpush.bf16.msra.mxu0 %v6969
        %7358 = vmatpush.bf16.msra.mxu0 %v6962
        %7359 = vmatpush.bf16.msra.mxu0 %v6955
        %7360 = vmatpush.bf16.msra.mxu0 %v6948
        %7361 = vmatmul.bf16.gmra.mxu0 %v5913
        %v7362 = vpop.f32.mrf.mxu0
        %v7363 = vadd.f32 %v7350, %v7362
        %v7364 = vpop.f32.mrf.mxu0
        %7365 = vdwg.mxu0
        %7366 = vmatpush.bf16.msra.mxu0 %v7053
        %7367 = vmatpush.bf16.msra.mxu0 %v7046
        %7368 = vmatpush.bf16.msra.mxu0 %v7039
        %7369 = vmatpush.bf16.msra.mxu0 %v7032
        %7370 = vmatpush.bf16.msra.mxu0 %v7025
        %7371 = vmatpush.bf16.msra.mxu0 %v7018
        %7372 = vmatpush.bf16.msra.mxu0 %v7011
        %7373 = vmatpush.bf16.msra.mxu0 %v7004
        %7374 = vmatmul.bf16.gmra.mxu0 %v5914
        %v7375 = vpop.f32.mrf.mxu0
        %v7376 = vadd.f32 %v7363, %v7375
        %v7377 = vpop.f32.mrf.mxu0
        %7378 = vdwg.mxu0
        %7379 = vmatpush.bf16.msra.mxu0 %v7109
        %7380 = vmatpush.bf16.msra.mxu0 %v7102
        %7381 = vmatpush.bf16.msra.mxu0 %v7095
        %7382 = vmatpush.bf16.msra.mxu0 %v7088
        %7383 = vmatpush.bf16.msra.mxu0 %v7081
        %7384 = vmatpush.bf16.msra.mxu0 %v7074
        %7385 = vmatpush.bf16.msra.mxu0 %v7067
        %7386 = vmatpush.bf16.msra.mxu0 %v7060
        %7387 = vmatmul.bf16.gmra.mxu0 %v5915
        %v7388 = vpop.f32.mrf.mxu0
        %v7389 = vadd.f32 %v7376, %v7388
        %v7390 = vpop.f32.mrf.mxu0
        %7391 = vdwg.mxu0
        %7392 = vmatpush.bf16.msra.mxu0 %v6942
        %7393 = vmatpush.bf16.msra.mxu0 %v6935
        %7394 = vmatpush.bf16.msra.mxu0 %v6928
        %7395 = vmatpush.bf16.msra.mxu0 %v6921
        %7396 = vmatpush.bf16.msra.mxu0 %v6914
        %7397 = vmatpush.bf16.msra.mxu0 %v6907
        %7398 = vmatpush.bf16.msra.mxu0 %v6900
        %7399 = vmatpush.bf16.msra.mxu0 %v6893
        %7400 = vmatmul.bf16.gmra.mxu0 %v5912
        %v7401 = vpop.f32.mrf.mxu0
        %v7402 = vadd.f32 %v6175, %v7401
        %v7403 = vpop.f32.mrf.mxu0
        %7404 = vdwg.mxu0
        %7405 = vmatpush.bf16.msra.mxu0 %v6998
        %7406 = vmatpush.bf16.msra.mxu0 %v6991
        %7407 = vmatpush.bf16.msra.mxu0 %v6984
        %7408 = vmatpush.bf16.msra.mxu0 %v6977
        %7409 = vmatpush.bf16.msra.mxu0 %v6970
        %7410 = vmatpush.bf16.msra.mxu0 %v6963
        %7411 = vmatpush.bf16.msra.mxu0 %v6956
        %7412 = vmatpush.bf16.msra.mxu0 %v6949
        %7413 = vmatmul.bf16.gmra.mxu0 %v5913
        %v7414 = vpop.f32.mrf.mxu0
        %v7415 = vadd.f32 %v7402, %v7414
        %v7416 = vpop.f32.mrf.mxu0
        %7417 = vdwg.mxu0
        %7418 = vmatpush.bf16.msra.mxu0 %v7054
        %7419 = vmatpush.bf16.msra.mxu0 %v7047
        %7420 = vmatpush.bf16.msra.mxu0 %v7040
        %7421 = vmatpush.bf16.msra.mxu0 %v7033
        %7422 = vmatpush.bf16.msra.mxu0 %v7026
        %7423 = vmatpush.bf16.msra.mxu0 %v7019
        %7424 = vmatpush.bf16.msra.mxu0 %v7012
        %7425 = vmatpush.bf16.msra.mxu0 %v7005
        %7426 = vmatmul.bf16.gmra.mxu0 %v5914
        %v7427 = vpop.f32.mrf.mxu0
        %v7428 = vadd.f32 %v7415, %v7427
        %v7429 = vpop.f32.mrf.mxu0
        %7430 = vdwg.mxu0
        %7431 = vmatpush.bf16.msra.mxu0 %v7110
        %7432 = vmatpush.bf16.msra.mxu0 %v7103
        %7433 = vmatpush.bf16.msra.mxu0 %v7096
        %7434 = vmatpush.bf16.msra.mxu0 %v7089
        %7435 = vmatpush.bf16.msra.mxu0 %v7082
        %7436 = vmatpush.bf16.msra.mxu0 %v7075
        %7437 = vmatpush.bf16.msra.mxu0 %v7068
        %7438 = vmatpush.bf16.msra.mxu0 %v7061
        %7439 = vmatmul.bf16.gmra.mxu0 %v5915
        %v7440 = vpop.f32.mrf.mxu0
        %v7441 = vadd.f32 %v7428, %v7440
        %v7442 = vpop.f32.mrf.mxu0
        %7443 = vdwg.mxu0
        %7444 = vmatpush.bf16.msra.mxu0 %v6943
        %7445 = vmatpush.bf16.msra.mxu0 %v6936
        %7446 = vmatpush.bf16.msra.mxu0 %v6929
        %7447 = vmatpush.bf16.msra.mxu0 %v6922
        %7448 = vmatpush.bf16.msra.mxu0 %v6915
        %7449 = vmatpush.bf16.msra.mxu0 %v6908
        %7450 = vmatpush.bf16.msra.mxu0 %v6901
        %7451 = vmatpush.bf16.msra.mxu0 %v6894
        %7452 = vmatmul.bf16.gmra.mxu0 %v5912
        %v7453 = vpop.f32.mrf.mxu0
        %v7454 = vadd.f32 %v6176, %v7453
        %v7455 = vpop.f32.mrf.mxu0
        %7456 = vdwg.mxu0
        %7457 = vmatpush.bf16.msra.mxu0 %v6999
        %7458 = vmatpush.bf16.msra.mxu0 %v6992
        %7459 = vmatpush.bf16.msra.mxu0 %v6985
        %7460 = vmatpush.bf16.msra.mxu0 %v6978
        %7461 = vmatpush.bf16.msra.mxu0 %v6971
        %7462 = vmatpush.bf16.msra.mxu0 %v6964
        %7463 = vmatpush.bf16.msra.mxu0 %v6957
        %7464 = vmatpush.bf16.msra.mxu0 %v6950
        %7465 = vmatmul.bf16.gmra.mxu0 %v5913
        %v7466 = vpop.f32.mrf.mxu0
        %v7467 = vadd.f32 %v7454, %v7466
        %v7468 = vpop.f32.mrf.mxu0
        %7469 = vdwg.mxu0
        %7470 = vmatpush.bf16.msra.mxu0 %v7055
        %7471 = vmatpush.bf16.msra.mxu0 %v7048
        %7472 = vmatpush.bf16.msra.mxu0 %v7041
        %7473 = vmatpush.bf16.msra.mxu0 %v7034
        %7474 = vmatpush.bf16.msra.mxu0 %v7027
        %7475 = vmatpush.bf16.msra.mxu0 %v7020
        %7476 = vmatpush.bf16.msra.mxu0 %v7013
        %7477 = vmatpush.bf16.msra.mxu0 %v7006
        %7478 = vmatmul.bf16.gmra.mxu0 %v5914
        %v7479 = vpop.f32.mrf.mxu0
        %v7480 = vadd.f32 %v7467, %v7479
        %v7481 = vpop.f32.mrf.mxu0
        %7482 = vdwg.mxu0
        %7483 = vmatpush.bf16.msra.mxu0 %v7111
        %7484 = vmatpush.bf16.msra.mxu0 %v7104
        %7485 = vmatpush.bf16.msra.mxu0 %v7097
        %7486 = vmatpush.bf16.msra.mxu0 %v7090
        %7487 = vmatpush.bf16.msra.mxu0 %v7083
        %7488 = vmatpush.bf16.msra.mxu0 %v7076
        %7489 = vmatpush.bf16.msra.mxu0 %v7069
        %7490 = vmatpush.bf16.msra.mxu0 %v7062
        %7491 = vmatmul.bf16.gmra.mxu0 %v5915
        %v7492 = vpop.f32.mrf.mxu0
        %v7493 = vadd.f32 %v7480, %v7492
        %v7494 = vpop.f32.mrf.mxu0
        %7495 = vdwg.mxu0
        %7496 = vmatpush.bf16.msra.mxu0 %v6944
        %7497 = vmatpush.bf16.msra.mxu0 %v6937
        %7498 = vmatpush.bf16.msra.mxu0 %v6930
        %7499 = vmatpush.bf16.msra.mxu0 %v6923
        %7500 = vmatpush.bf16.msra.mxu0 %v6916
        %7501 = vmatpush.bf16.msra.mxu0 %v6909
        %7502 = vmatpush.bf16.msra.mxu0 %v6902
        %7503 = vmatpush.bf16.msra.mxu0 %v6895
        %7504 = vmatmul.bf16.gmra.mxu0 %v5912
        %v7505 = vpop.f32.mrf.mxu0
        %v7506 = vadd.f32 %v6177, %v7505
        %v7507 = vpop.f32.mrf.mxu0
        %7508 = vdwg.mxu0
        %7509 = vmatpush.bf16.msra.mxu0 %v7000
        %7510 = vmatpush.bf16.msra.mxu0 %v6993
        %7511 = vmatpush.bf16.msra.mxu0 %v6986
        %7512 = vmatpush.bf16.msra.mxu0 %v6979
        %7513 = vmatpush.bf16.msra.mxu0 %v6972
        %7514 = vmatpush.bf16.msra.mxu0 %v6965
        %7515 = vmatpush.bf16.msra.mxu0 %v6958
        %7516 = vmatpush.bf16.msra.mxu0 %v6951
        %7517 = vmatmul.bf16.gmra.mxu0 %v5913
        %v7518 = vpop.f32.mrf.mxu0
        %v7519 = vadd.f32 %v7506, %v7518
        %v7520 = vpop.f32.mrf.mxu0
        %7521 = vdwg.mxu0
        %7522 = vmatpush.bf16.msra.mxu0 %v7056
        %7523 = vmatpush.bf16.msra.mxu0 %v7049
        %7524 = vmatpush.bf16.msra.mxu0 %v7042
        %7525 = vmatpush.bf16.msra.mxu0 %v7035
        %7526 = vmatpush.bf16.msra.mxu0 %v7028
        %7527 = vmatpush.bf16.msra.mxu0 %v7021
        %7528 = vmatpush.bf16.msra.mxu0 %v7014
        %7529 = vmatpush.bf16.msra.mxu0 %v7007
        %7530 = vmatmul.bf16.gmra.mxu0 %v5914
        %v7531 = vpop.f32.mrf.mxu0
        %v7532 = vadd.f32 %v7519, %v7531
        %v7533 = vpop.f32.mrf.mxu0
        %7534 = vdwg.mxu0
        %7535 = vmatpush.bf16.msra.mxu0 %v7112
        %7536 = vmatpush.bf16.msra.mxu0 %v7105
        %7537 = vmatpush.bf16.msra.mxu0 %v7098
        %7538 = vmatpush.bf16.msra.mxu0 %v7091
        %7539 = vmatpush.bf16.msra.mxu0 %v7084
        %7540 = vmatpush.bf16.msra.mxu0 %v7077
        %7541 = vmatpush.bf16.msra.mxu0 %v7070
        %7542 = vmatpush.bf16.msra.mxu0 %v7063
        %7543 = vmatmul.bf16.gmra.mxu0 %v5915
        %v7544 = vpop.f32.mrf.mxu0
        %v7545 = vadd.f32 %v7532, %v7544
        %v7546 = vpop.f32.mrf.mxu0
        %7547 = vdwg.mxu0
        %7548 = vmatpush.bf16.msra.mxu0 %v6945
        %7549 = vmatpush.bf16.msra.mxu0 %v6938
        %7550 = vmatpush.bf16.msra.mxu0 %v6931
        %7551 = vmatpush.bf16.msra.mxu0 %v6924
        %7552 = vmatpush.bf16.msra.mxu0 %v6917
        %7553 = vmatpush.bf16.msra.mxu0 %v6910
        %7554 = vmatpush.bf16.msra.mxu0 %v6903
        %7555 = vmatpush.bf16.msra.mxu0 %v6896
        %7556 = vmatmul.bf16.gmra.mxu0 %v5912
        %v7557 = vpop.f32.mrf.mxu0
        %v7558 = vadd.f32 %v6178, %v7557
        %v7559 = vpop.f32.mrf.mxu0
        %7560 = vdwg.mxu0
        %7561 = vmatpush.bf16.msra.mxu0 %v7001
        %7562 = vmatpush.bf16.msra.mxu0 %v6994
        %7563 = vmatpush.bf16.msra.mxu0 %v6987
        %7564 = vmatpush.bf16.msra.mxu0 %v6980
        %7565 = vmatpush.bf16.msra.mxu0 %v6973
        %7566 = vmatpush.bf16.msra.mxu0 %v6966
        %7567 = vmatpush.bf16.msra.mxu0 %v6959
        %7568 = vmatpush.bf16.msra.mxu0 %v6952
        %7569 = vmatmul.bf16.gmra.mxu0 %v5913
        %v7570 = vpop.f32.mrf.mxu0
        %v7571 = vadd.f32 %v7558, %v7570
        %v7572 = vpop.f32.mrf.mxu0
        %7573 = vdwg.mxu0
        %7574 = vmatpush.bf16.msra.mxu0 %v7057
        %7575 = vmatpush.bf16.msra.mxu0 %v7050
        %7576 = vmatpush.bf16.msra.mxu0 %v7043
        %7577 = vmatpush.bf16.msra.mxu0 %v7036
        %7578 = vmatpush.bf16.msra.mxu0 %v7029
        %7579 = vmatpush.bf16.msra.mxu0 %v7022
        %7580 = vmatpush.bf16.msra.mxu0 %v7015
        %7581 = vmatpush.bf16.msra.mxu0 %v7008
        %7582 = vmatmul.bf16.gmra.mxu0 %v5914
        %v7583 = vpop.f32.mrf.mxu0
        %v7584 = vadd.f32 %v7571, %v7583
        %v7585 = vpop.f32.mrf.mxu0
        %7586 = vdwg.mxu0
        %7587 = vmatpush.bf16.msra.mxu0 %v7113
        %7588 = vmatpush.bf16.msra.mxu0 %v7106
        %7589 = vmatpush.bf16.msra.mxu0 %v7099
        %7590 = vmatpush.bf16.msra.mxu0 %v7092
        %7591 = vmatpush.bf16.msra.mxu0 %v7085
        %7592 = vmatpush.bf16.msra.mxu0 %v7078
        %7593 = vmatpush.bf16.msra.mxu0 %v7071
        %7594 = vmatpush.bf16.msra.mxu0 %v7064
        %7595 = vmatmul.bf16.gmra.mxu0 %v5915
        %v7596 = vpop.f32.mrf.mxu0
        %v7597 = vadd.f32 %v7584, %v7596
        %v7598 = vpop.f32.mrf.mxu0
        %7599 = vdwg.mxu0
        %7600 = vmatpush.bf16.msra.mxu0 %v6946
        %7601 = vmatpush.bf16.msra.mxu0 %v6939
        %7602 = vmatpush.bf16.msra.mxu0 %v6932
        %7603 = vmatpush.bf16.msra.mxu0 %v6925
        %7604 = vmatpush.bf16.msra.mxu0 %v6918
        %7605 = vmatpush.bf16.msra.mxu0 %v6911
        %7606 = vmatpush.bf16.msra.mxu0 %v6904
        %7607 = vmatpush.bf16.msra.mxu0 %v6897
        %7608 = vmatmul.bf16.gmra.mxu0 %v5912
        %v7609 = vpop.f32.mrf.mxu0
        %v7610 = vadd.f32 %v6179, %v7609
        %v7611 = vpop.f32.mrf.mxu0
        %7612 = vdwg.mxu0
        %7613 = vmatpush.bf16.msra.mxu0 %v7002
        %7614 = vmatpush.bf16.msra.mxu0 %v6995
        %7615 = vmatpush.bf16.msra.mxu0 %v6988
        %7616 = vmatpush.bf16.msra.mxu0 %v6981
        %7617 = vmatpush.bf16.msra.mxu0 %v6974
        %7618 = vmatpush.bf16.msra.mxu0 %v6967
        %7619 = vmatpush.bf16.msra.mxu0 %v6960
        %7620 = vmatpush.bf16.msra.mxu0 %v6953
        %7621 = vmatmul.bf16.gmra.mxu0 %v5913
        %v7622 = vpop.f32.mrf.mxu0
        %v7623 = vadd.f32 %v7610, %v7622
        %v7624 = vpop.f32.mrf.mxu0
        %7625 = vdwg.mxu0
        %7626 = vmatpush.bf16.msra.mxu0 %v7058
        %7627 = vmatpush.bf16.msra.mxu0 %v7051
        %7628 = vmatpush.bf16.msra.mxu0 %v7044
        %7629 = vmatpush.bf16.msra.mxu0 %v7037
        %7630 = vmatpush.bf16.msra.mxu0 %v7030
        %7631 = vmatpush.bf16.msra.mxu0 %v7023
        %7632 = vmatpush.bf16.msra.mxu0 %v7016
        %7633 = vmatpush.bf16.msra.mxu0 %v7009
        %7634 = vmatmul.bf16.gmra.mxu0 %v5914
        %v7635 = vpop.f32.mrf.mxu0
        %v7636 = vadd.f32 %v7623, %v7635
        %v7637 = vpop.f32.mrf.mxu0
        %7638 = vdwg.mxu0
        %7639 = vmatpush.bf16.msra.mxu0 %v7114
        %7640 = vmatpush.bf16.msra.mxu0 %v7107
        %7641 = vmatpush.bf16.msra.mxu0 %v7100
        %7642 = vmatpush.bf16.msra.mxu0 %v7093
        %7643 = vmatpush.bf16.msra.mxu0 %v7086
        %7644 = vmatpush.bf16.msra.mxu0 %v7079
        %7645 = vmatpush.bf16.msra.mxu0 %v7072
        %7646 = vmatpush.bf16.msra.mxu0 %v7065
        %7647 = vmatmul.bf16.gmra.mxu0 %v5915
        %v7648 = vpop.f32.mrf.mxu0
        %v7649 = vadd.f32 %v7636, %v7648
        %v7650 = vpop.f32.mrf.mxu0
        %7651 = vdwg.mxu0
        %7652 = vmatpush.bf16.msra.mxu0 %v6947
        %7653 = vmatpush.bf16.msra.mxu0 %v6940
        %7654 = vmatpush.bf16.msra.mxu0 %v6933
        %7655 = vmatpush.bf16.msra.mxu0 %v6926
        %7656 = vmatpush.bf16.msra.mxu0 %v6919
        %7657 = vmatpush.bf16.msra.mxu0 %v6912
        %7658 = vmatpush.bf16.msra.mxu0 %v6905
        %7659 = vmatpush.bf16.msra.mxu0 %v6898
        %7660 = vmatmul.bf16.gmra.mxu0 %v5912
        %v7661 = vpop.f32.mrf.mxu0
        %v7662 = vadd.f32 %v6180, %v7661
        %v7663 = vpop.f32.mrf.mxu0
        %7664 = vdwg.mxu0
        %7665 = vmatpush.bf16.msra.mxu0 %v7003
        %7666 = vmatpush.bf16.msra.mxu0 %v6996
        %7667 = vmatpush.bf16.msra.mxu0 %v6989
        %7668 = vmatpush.bf16.msra.mxu0 %v6982
        %7669 = vmatpush.bf16.msra.mxu0 %v6975
        %7670 = vmatpush.bf16.msra.mxu0 %v6968
        %7671 = vmatpush.bf16.msra.mxu0 %v6961
        %7672 = vmatpush.bf16.msra.mxu0 %v6954
        %7673 = vmatmul.bf16.gmra.mxu0 %v5913
        %v7674 = vpop.f32.mrf.mxu0
        %v7675 = vadd.f32 %v7662, %v7674
        %v7676 = vpop.f32.mrf.mxu0
        %7677 = vdwg.mxu0
        %7678 = vmatpush.bf16.msra.mxu0 %v7059
        %7679 = vmatpush.bf16.msra.mxu0 %v7052
        %7680 = vmatpush.bf16.msra.mxu0 %v7045
        %7681 = vmatpush.bf16.msra.mxu0 %v7038
        %7682 = vmatpush.bf16.msra.mxu0 %v7031
        %7683 = vmatpush.bf16.msra.mxu0 %v7024
        %7684 = vmatpush.bf16.msra.mxu0 %v7017
        %7685 = vmatpush.bf16.msra.mxu0 %v7010
        %7686 = vmatmul.bf16.gmra.mxu0 %v5914
        %v7687 = vpop.f32.mrf.mxu0
        %v7688 = vadd.f32 %v7675, %v7687
        %v7689 = vpop.f32.mrf.mxu0
        %7690 = vdwg.mxu0
        %7691 = vmatpush.bf16.msra.mxu0 %v7115
        %7692 = vmatpush.bf16.msra.mxu0 %v7108
        %7693 = vmatpush.bf16.msra.mxu0 %v7101
        %7694 = vmatpush.bf16.msra.mxu0 %v7094
        %7695 = vmatpush.bf16.msra.mxu0 %v7087
        %7696 = vmatpush.bf16.msra.mxu0 %v7080
        %7697 = vmatpush.bf16.msra.mxu0 %v7073
        %7698 = vmatpush.bf16.msra.mxu0 %v7066
        %7699 = vmatmul.bf16.gmra.mxu0 %v5915
        %v7700 = vpop.f32.mrf.mxu0
        %v7701 = vadd.f32 %v7688, %v7700
        %v7702 = vpop.f32.mrf.mxu0
        %7703 = vdwg.mxu0
        %v7704 = vxor.u32 %v7389, 2147483648
        %v7705 = vxor.u32 %v7441, 2147483648
        %v7706 = vxor.u32 %v7493, 2147483648
        %v7707 = vxor.u32 %v7545, 2147483648
        %v7708 = vxor.u32 %v7597, 2147483648
        %v7709 = vxor.u32 %v7649, 2147483648
        %v7710 = vxor.u32 %v7701, 2147483648
        %v7711 = vmul.f32 %v7704, 1.442695
        %v7712 = vpow.pop %v7711
        %v7713 = vmul.f32 %v7705, 1.442695
        %v7714 = vpow.pop %v7713
        %v7715 = vmul.f32 %v7706, 1.442695
        %v7716 = vpow.pop %v7715
        %v7717 = vmul.f32 %v7707, 1.442695
        %v7718 = vpow.pop %v7717
        %v7719 = vmul.f32 %v7708, 1.442695
        %v7720 = vpow.pop %v7719
        %v7721 = vmul.f32 %v7709, 1.442695
        %v7722 = vpow.pop %v7721
        %v7723 = vmul.f32 %v7710, 1.442695
        %v7724 = vpow.pop %v7723
        %v7725 = vadd.f32 %v7712, 1.0
        %v7726 = vadd.f32 %v7714, 1.0
        %v7727 = vadd.f32 %v7716, 1.0
        %v7728 = vadd.f32 %v7718, 1.0
        %v7729 = vadd.f32 %v7720, 1.0
        %v7730 = vadd.f32 %v7722, 1.0
        %v7731 = vadd.f32 %v7724, 1.0
        %v7732 = vrcp.pop %v7725
        %v7733 = vmul.f32 %v7725, %v7732
        %v7734 = vsub.f32 1.0, %v7733
        %v7735 = vmul.f32 %v7732, %v7734
        %v7736 = vadd.f32 %v7732, %v7735
        %vm7737 = vweird.f32 %v7725
        %vm7738 = vweird.f32 %v7732
        %vm7739 = vmor %vm7737, %vm7738
        %v7740 = vsel %vm7739, %v7732, %v7736
        %v7741 = vand.u32 2147483647, %v7725
        %vm7742 = vcmp.eq.f32.partialorder %v7741, 8.507059e+37
        %v7743 = vand.u32 %v7725, 2147483648
        %v7744 = vor.u32 1.1754944e-38, %v7743
        %v7745 = vsel %vm7742, %v7744, %v7740
        %v7746 = vmul.f32 1.0, %v7745
        %v7747 = vrcp.pop %v7726
        %v7748 = vmul.f32 %v7726, %v7747
        %v7749 = vsub.f32 1.0, %v7748
        %v7750 = vmul.f32 %v7747, %v7749
        %v7751 = vadd.f32 %v7747, %v7750
        %vm7752 = vweird.f32 %v7726
        %vm7753 = vweird.f32 %v7747
        %vm7754 = vmor %vm7752, %vm7753
        %v7755 = vsel %vm7754, %v7747, %v7751
        %v7756 = vand.u32 2147483647, %v7726
        %vm7757 = vcmp.eq.f32.partialorder %v7756, 8.507059e+37
        %v7758 = vand.u32 %v7726, 2147483648
        %v7759 = vor.u32 1.1754944e-38, %v7758
        %v7760 = vsel %vm7757, %v7759, %v7755
        %v7761 = vmul.f32 1.0, %v7760
        %v7762 = vrcp.pop %v7727
        %v7763 = vmul.f32 %v7727, %v7762
        %v7764 = vsub.f32 1.0, %v7763
        %v7765 = vmul.f32 %v7762, %v7764
        %v7766 = vadd.f32 %v7762, %v7765
        %vm7767 = vweird.f32 %v7727
        %vm7768 = vweird.f32 %v7762
        %vm7769 = vmor %vm7767, %vm7768
        %v7770 = vsel %vm7769, %v7762, %v7766
        %v7771 = vand.u32 2147483647, %v7727
        %vm7772 = vcmp.eq.f32.partialorder %v7771, 8.507059e+37
        %v7773 = vand.u32 %v7727, 2147483648
        %v7774 = vor.u32 1.1754944e-38, %v7773
        %v7775 = vsel %vm7772, %v7774, %v7770
        %v7776 = vmul.f32 1.0, %v7775
        %v7777 = vrcp.pop %v7728
        %v7778 = vmul.f32 %v7728, %v7777
        %v7779 = vsub.f32 1.0, %v7778
        %v7780 = vmul.f32 %v7777, %v7779
        %v7781 = vadd.f32 %v7777, %v7780
        %vm7782 = vweird.f32 %v7728
        %vm7783 = vweird.f32 %v7777
        %vm7784 = vmor %vm7782, %vm7783
        %v7785 = vsel %vm7784, %v7777, %v7781
        %v7786 = vand.u32 2147483647, %v7728
        %vm7787 = vcmp.eq.f32.partialorder %v7786, 8.507059e+37
        %v7788 = vand.u32 %v7728, 2147483648
        %v7789 = vor.u32 1.1754944e-38, %v7788
        %v7790 = vsel %vm7787, %v7789, %v7785
        %v7791 = vmul.f32 1.0, %v7790
        %v7792 = vrcp.pop %v7729
        %v7793 = vmul.f32 %v7729, %v7792
        %v7794 = vsub.f32 1.0, %v7793
        %v7795 = vmul.f32 %v7792, %v7794
        %v7796 = vadd.f32 %v7792, %v7795
        %vm7797 = vweird.f32 %v7729
        %vm7798 = vweird.f32 %v7792
        %vm7799 = vmor %vm7797, %vm7798
        %v7800 = vsel %vm7799, %v7792, %v7796
        %v7801 = vand.u32 2147483647, %v7729
        %vm7802 = vcmp.eq.f32.partialorder %v7801, 8.507059e+37
        %v7803 = vand.u32 %v7729, 2147483648
        %v7804 = vor.u32 1.1754944e-38, %v7803
        %v7805 = vsel %vm7802, %v7804, %v7800
        %v7806 = vmul.f32 1.0, %v7805
        %v7807 = vrcp.pop %v7730
        %v7808 = vmul.f32 %v7730, %v7807
        %v7809 = vsub.f32 1.0, %v7808
        %v7810 = vmul.f32 %v7807, %v7809
        %v7811 = vadd.f32 %v7807, %v7810
        %vm7812 = vweird.f32 %v7730
        %vm7813 = vweird.f32 %v7807
        %vm7814 = vmor %vm7812, %vm7813
        %v7815 = vsel %vm7814, %v7807, %v7811
        %v7816 = vand.u32 2147483647, %v7730
        %vm7817 = vcmp.eq.f32.partialorder %v7816, 8.507059e+37
        %v7818 = vand.u32 %v7730, 2147483648
        %v7819 = vor.u32 1.1754944e-38, %v7818
        %v7820 = vsel %vm7817, %v7819, %v7815
        %v7821 = vmul.f32 1.0, %v7820
        %v7822 = vrcp.pop %v7731
        %v7823 = vmul.f32 %v7731, %v7822
        %v7824 = vsub.f32 1.0, %v7823
        %v7825 = vmul.f32 %v7822, %v7824
        %v7826 = vadd.f32 %v7822, %v7825
        %vm7827 = vweird.f32 %v7731
        %vm7828 = vweird.f32 %v7822
        %vm7829 = vmor %vm7827, %vm7828
        %v7830 = vsel %vm7829, %v7822, %v7826
        %v7831 = vand.u32 2147483647, %v7731
        %vm7832 = vcmp.eq.f32.partialorder %v7831, 8.507059e+37
        %v7833 = vand.u32 %v7731, 2147483648
        %v7834 = vor.u32 1.1754944e-38, %v7833
        %v7835 = vsel %vm7832, %v7834, %v7830
        %v7836 = vmul.f32 1.0, %v7835
        %7837 = vst [vmem:[%s656] sm:$0xff] %v7746
        %7838 = vst [vmem:[%s656 + $0x8] sm:$0xff] %v7761
        %7839 = vst [vmem:[%s656 + $0x10] sm:$0xff] %v7776
        %7840 = vst [vmem:[%s656 + $0x18] sm:$0xff] %v7791
        %7841 = vst [vmem:[%s656 + $0x20] sm:$0xff] %v7806
        %7842 = vst [vmem:[%s656 + $0x28] sm:$0xff] %v7821
        %7843 = vst [vmem:[%s656 + $0x30] sm:$0xff] %v7836
        %7844 = vst [vmem:[%s661] sm:$0xff] %v4245
        %7845 = vst [vmem:[%s661 + $0x8] sm:$0xff] %v4297
        %7846 = vst [vmem:[%s666] sm:$0xff] %v4349
        %7847 = vst [vmem:[%s666 + $0x8] sm:$0xff] %v4401
        %p7848 = scmp.lt.s32.totalorder %s32, 1
        %s7849 = scalar_select %p7848, %s32, 1
        %s7850 = smul.addr %s7849, 7
        %s7851 = smul.addr %s7850, 8
        %s7852 = scalar_lea.vmem %s14, %s7851
        %p7853 = scmp.lt.s32.totalorder %s32, 1
        %s7854 = scalar_select %p7853, %s32, 1
        %s7855 = smul.addr %s7854, 2
        %s7856 = smul.addr %s7855, 8
        %s7857 = scalar_lea.vmem %s15, %s7856
        %p7858 = scmp.lt.s32.totalorder %s32, 1
        %s7859 = scalar_select %p7858, %s32, 1
        %s7860 = smul.addr %s7859, 2
        %s7861 = smul.addr %s7860, 8
        %s7862 = scalar_lea.vmem %s16, %s7861
        // Predicated region
        $region101: #{vae_forward.1} parent=75 // pred_check
          %p7863 = pneg %p354
        $region102: #{vae_forward.1} parent=75 // pred_check_branch
          %7865 = sbr.rel (%p7863) target = $region104
        $region103: #{vae_forward.1} parent=75 // pred_region
          _
        $region104: #{vae_forward.1} parent=75 // pred_fallthru
          _
        // Predicated region
        $region105: #{vae_forward.1} parent=75 // pred_check
          %p7866 = pneg %p380
        $region106: #{vae_forward.1} parent=75 // pred_check_branch
          %7868 = sbr.rel (%p7866) target = $region108
        $region107: #{vae_forward.1} parent=75 // pred_region
          _
        $region108: #{vae_forward.1} parent=75 // pred_fallthru
          _
        // Predicated region
        $region109: #{vae_forward.1} parent=75 // pred_check
          %p7869 = pneg %p406
        $region110: #{vae_forward.1} parent=75 // pred_check_branch
          %7871 = sbr.rel (%p7869) target = $region112
        $region111: #{vae_forward.1} parent=75 // pred_region
          _
        $region112: #{vae_forward.1} parent=75 // pred_fallthru
          _
      $region76: #{vae_forward.1} parent=5 // pred_fallthru
        _
      %p7872 = scmp.le.s32.totalorder 2, %s27
      // Predicated region
      $region113: #{vae_forward.1} parent=5 // pred_check
        %p7873 = pneg %p7872
      $region114: #{vae_forward.1} parent=5 // pred_check_branch
        %7875 = sbr.rel (%p7873) target = $region116
      $region115: #{vae_forward.1} parent=5 // pred_region
        %s7876 = ssub.s32 %s27, 2
        // Predicated region
        $region117: #{vae_forward.1} parent=115 // pred_check
          %p7877 = pneg %p360
        $region118: #{vae_forward.1} parent=115 // pred_check_branch
          %7879 = sbr.rel (%p7877) target = $region120
        $region119: #{vae_forward.1} parent=115 // pred_region
          %p7880 = scmp.lt.s32.totalorder %s33, 1
          %s7881 = scalar_select %p7880, %s33, 1
          %s7882 = smul.addr %s7881, 7
          %s7883 = smul.addr %s7882, 8
          %s7884 = scalar_lea.vmem %s14, %s7883
        $region120: #{vae_forward.1} parent=115 // pred_fallthru
          _
        // Predicated region
        $region121: #{vae_forward.1} parent=115 // pred_check
          %p7885 = pneg %p386
        $region122: #{vae_forward.1} parent=115 // pred_check_branch
          %7887 = sbr.rel (%p7885) target = $region124
        $region123: #{vae_forward.1} parent=115 // pred_region
          %p7888 = scmp.lt.s32.totalorder %s33, 1
          %s7889 = scalar_select %p7888, %s33, 1
          %s7890 = smul.addr %s7889, 2
          %s7891 = smul.addr %s7890, 8
          %s7892 = scalar_lea.vmem %s15, %s7891
        $region124: #{vae_forward.1} parent=115 // pred_fallthru
          _
        // Predicated region
        $region125: #{vae_forward.1} parent=115 // pred_check
          %p7893 = pneg %p412
        $region126: #{vae_forward.1} parent=115 // pred_check_branch
          %7895 = sbr.rel (%p7893) target = $region128
        $region127: #{vae_forward.1} parent=115 // pred_region
          %p7896 = scmp.lt.s32.totalorder %s33, 1
          %s7897 = scalar_select %p7896, %s33, 1
          %s7898 = smul.addr %s7897, 2
          %s7899 = smul.addr %s7898, 8
          %s7900 = scalar_lea.vmem %s16, %s7899
        $region128: #{vae_forward.1} parent=115 // pred_fallthru
          _
      $region116: #{vae_forward.1} parent=5 // pred_fallthru
        _
    $region6: #{vae_forward.1} parent=1 // loop_footer
      %s31 = sadd.s32 1, %s27
    $region7: #{vae_forward.1} parent=1 // loop_footer_branch
      %26 = sbr.rel target = $region3
    $region8: #{vae_forward.1} parent=1 // loop_exit
      _
    %7901 = vsyncpa [#allocation3], 1
    %s7902 = scalar_lea.sflag [#allocation3], 1
    %7903 = vsyncpa %s7902, 1
    %7904 = vsyncpa [#allocation5], 1
    %7905 = vsyncpa [#allocation8], 1
    %7906 = vsyncpa [#allocation11], 1

</llo_original>
